<compile_context>
chip_gen: v5e
topology: v5e:2x2
jax: 0.10.0
libtpu: 0.0.40
codegen_flags: <defaults>
</compile_context>

<pallas_src>
import jax
import jax.numpy as jnp
from jax import lax
from jax.experimental import pallas as pl
from jax.experimental.pallas import tpu as pltpu


# ----------------------------- fused Pallas kernel ---------------------------

def _make_fused_gru_kernel(n_layers, hidden_dim):
    H = hidden_dim
    L = n_layers

    def kernel(*refs):
        # refs = (x_ref, [wx,bx,wh,bhn] * L, fc_w, fc_b, out_ref, h_scratch)
        x_ref = refs[0]
        layer_refs = refs[1:1 + 4 * L]
        fc_w_ref = refs[1 + 4 * L]
        fc_b_ref = refs[2 + 4 * L]
        out_ref = refs[3 + 4 * L]
        h_ref = refs[4 + 4 * L]            # VMEM scratch (L, TB, H), persists

        tc = pl.program_id(1)              # time-chunk index (inner grid axis)

        @pl.when(tc == 0)
        def _init():                       # fresh hidden state per batch block
            h_ref[...] = jnp.zeros_like(h_ref)

        Tc = x_ref.shape[0]

        def step(tt):
            inp = x_ref[tt]                # (TB, E) f32 activation for step tt
            for li in range(L):            # unrolled: n_layers is static
                wx_ref, bx_ref, wh_ref, bhn_ref = layer_refs[4 * li:4 * li + 4]
                h_prev = h_ref[li]         # (TB, H) f32

                # Packed projections; bf16 operands, f32 accumulation.
                xp = (jnp.dot(inp.astype(jnp.bfloat16), wx_ref[...],
                              preferred_element_type=jnp.float32)
                      + bx_ref[...])                              # (TB, 3H)
                hp = jnp.dot(h_prev.astype(jnp.bfloat16), wh_ref[...],
                             preferred_element_type=jnp.float32)  # (TB, 3H)

                rz = jax.nn.sigmoid(xp[:, :2 * H] + hp[:, :2 * H])
                r = rz[:, :H]
                z = rz[:, H:]
                n = jnp.tanh(xp[:, 2 * H:] + r * (hp[:, 2 * H:] + bhn_ref[...]))

                h_new = (1.0 - z) * n + z * h_prev
                h_ref[li] = h_new
                inp = h_new
                # per-cell dropout: identity in eval mode

        if Tc <= 16:                       # fully static unroll (LLO visibility)
            for tt in range(Tc):
                step(tt)
        else:
            def body(tt, carry):
                step(tt)
                return carry
            lax.fori_loop(0, Tc, body, jnp.int32(0))

        @pl.when(tc == pl.num_programs(1) - 1)
        def _final():
            # top-level dropout: identity in eval mode
            h_top = h_ref[L - 1]
            logits = (jnp.dot(h_top.astype(jnp.bfloat16), fc_w_ref[...],
                              preferred_element_type=jnp.float32)
                      + fc_b_ref[...])
            out_ref[...] = jax.nn.sigmoid(logits).astype(out_ref.dtype)

    return kernel


# --------------------------------- wrapper -----------------------------------

def _time_chunk(S, max_chunk=64):
    for c in range(min(S, max_chunk), 0, -1):
        if S % c == 0:
            return c
    return 1


def _batch_block(B):
    # Split batch in two blocks when both halves stay sublane-aligned; with the
    # leading "parallel" grid axis this lets v7x use its second TensorCore.
    if B >= 16 and B % 16 == 0:
        return B // 2
    return B


@jax.jit
def gru_forward(tokens, kparams):
    """Full GRU forward pass.  tokens: (B, S) int32 -> (B,) f32."""
    B, S = tokens.shape
    L = len(kparams["layers"])
    H = kparams["layers"][0]["wh"].shape[0]
    O = kparams["fc_w"].shape[1]

    # Embedding lookup, produced time-major directly (no activation transpose).
    x_seq = jnp.take(kparams["embedding"], tokens.T, axis=0)   # (S, B, E) f32
    E = x_seq.shape[-1]

    Tc = _time_chunk(S)
    TB = _batch_block(B)

    def const_spec(shape):
        return pl.BlockSpec(shape, lambda b, t, _n=len(shape): (0,) * _n)

    weight_inputs, weight_specs = [], []
    for lp in kparams["layers"]:
        for name in ("wx", "bx", "wh", "bhn"):
            weight_inputs.append(lp[name])
            weight_specs.append(const_spec(lp[name].shape))
    weight_inputs += [kparams["fc_w"], kparams["fc_b"]]
    weight_specs += [const_spec(kparams["fc_w"].shape),
                     const_spec(kparams["fc_b"].shape)]

    # Explicit VMEM budget: resident weights (double-buffered by default),
    # double-buffered activation chunk + output block, hidden scratch, margin.
    def _nbytes(a):
        return int(a.size) * a.dtype.itemsize
    weight_bytes = sum(_nbytes(w) for w in weight_inputs)
    footprint = (2 * weight_bytes + 2 * Tc * TB * E * 4
                 + 2 * TB * O * 4 + L * TB * H * 4)
    vmem_limit = int(min(128 << 20, max(32 << 20, 2 * footprint + (8 << 20))))

    out = pl.pallas_call(
        _make_fused_gru_kernel(L, H),
        out_shape=jax.ShapeDtypeStruct((B, O), jnp.float32),
        grid_spec=pltpu.PrefetchScalarGridSpec(
            num_scalar_prefetch=0,
            grid=(B // TB, S // Tc),
            in_specs=[pl.BlockSpec((Tc, TB, E), lambda b, t: (t, b, 0))]
                     + weight_specs,
            out_specs=pl.BlockSpec((TB, O), lambda b, t: (b, 0)),
            scratch_shapes=[pltpu.VMEM((L, TB, H), jnp.float32)],
        ),
        compiler_params=pltpu.CompilerParams(
            dimension_semantics=("parallel", "arbitrary"),
            vmem_limit_bytes=vmem_limit),
    )(x_seq, *weight_inputs)

    # torch .squeeze() for output_dim == 1 (don't collapse batch when B == 1).
    return jnp.squeeze(out, axis=-1)


# --------------------------- parameter init ----------------------------------

def _uniform(key, shape, fan_in):
    bound = 1.0 / jnp.sqrt(jnp.float32(fan_in))
    return jax.random.uniform(key, shape, jnp.float32, -bound, bound)


def init_params(key, vocab_size, embedding_dim, hidden_dim, output_dim, n_layers):
    """f32 master params, already packed: wx=[Wgx|Wi], wh=[Wgh|Wh], bhn=bh."""
    keys = jax.random.split(key, 1 + 7 * n_layers + 2)
    k = iter(keys)
    H = hidden_dim

    params = {"embedding": jax.random.normal(
        next(k), (vocab_size, embedding_dim), jnp.float32)}

    layers = []
    for layer in range(n_layers):
        in_size = embedding_dim if layer == 0 else hidden_dim
        fan_g = in_size + H
        wgx = _uniform(next(k), (in_size, 2 * H), fan_g)   # gate, x part
        wgh = _uniform(next(k), (H, 2 * H), fan_g)         # gate, h part
        bg = _uniform(next(k), (1, 2 * H), fan_g)
        wi = _uniform(next(k), (in_size, H), in_size)      # gate_i
        bi = _uniform(next(k), (1, H), in_size)
        wh = _uniform(next(k), (H, H), H)                  # gate_h
        bh = _uniform(next(k), (1, H), H)
        layers.append({
            "wx": jnp.concatenate([wgx, wi], axis=1),      # (in, 3H)
            "bx": jnp.concatenate([bg, bi], axis=1),       # (1, 3H)
            "wh": jnp.concatenate([wgh, wh], axis=1),      # (H, 3H)
            "bhn": bh,                                     # (1, H) n-gate only
        })
    params["layers"] = layers
    params["fc_w"] = _uniform(next(k), (hidden_dim, output_dim), hidden_dim)
    params["fc_b"] = _uniform(next(k), (1, output_dim), hidden_dim)
    return params


def to_kernel_params(params):
    """Cast matmul weights to bf16 (one-time); biases/embedding stay f32."""
    kp = {"embedding": params["embedding"],
          "fc_w": params["fc_w"].astype(jnp.bfloat16),
          "fc_b": params["fc_b"],
          "layers": []}
    for lp in params["layers"]:
        kp["layers"].append({
            "wx": lp["wx"].astype(jnp.bfloat16),
            "bx": lp["bx"],
            "wh": lp["wh"].astype(jnp.bfloat16),
            "bhn": lp["bhn"],
        })
    return kp


# ------------------------------ pure-JAX reference ---------------------------

def gru_forward_ref(tokens, params):
    """f32 reference matching the PyTorch forward semantics."""
    B, S = tokens.shape
    H = params["layers"][0]["wh"].shape[0]
    x = jnp.take(params["embedding"], tokens, axis=0)       # (B, S, E)
    hidden = [jnp.zeros((B, H), jnp.float32) for _ in params["layers"]]
    for t in range(S):
        inp = x[:, t, :]
        for li, lp in enumerate(params["layers"]):
            h = hidden[li]
            xp = inp @ lp["wx"] + lp["bx"]
            hp = h @ lp["wh"]
            r = jax.nn.sigmoid(xp[:, :H] + hp[:, :H])
            z = jax.nn.sigmoid(xp[:, H:2 * H] + hp[:, H:2 * H])
            n = jnp.tanh(xp[:, 2 * H:] + r * (hp[:, 2 * H:] + lp["bhn"]))
            h = (1.0 - z) * n + z * h
            hidden[li] = h
            inp = h
    out = jax.nn.sigmoid(inp @ params["fc_w"] + params["fc_b"])
    return jnp.squeeze(out, axis=-1)


# --------------------------------- main ---------------------------------------

if __name__ == "__main__":
    vocab_size = 50
    embedding_dim = 128   # lane-aligned (multiple of 128)
    hidden_dim = 128      # lane-aligned gate widths (3H = 384)
    output_dim = 1
    n_layers = 2
    batch = 8             # sublane-aligned (multiple of 8)
    seq = 8

    key = jax.random.PRNGKey(0)
    k_params, k_tokens = jax.random.split(key)

    params = init_params(k_params, vocab_size, embedding_dim, hidden_dim,
                         output_dim, n_layers)
    kparams = to_kernel_params(params)
    tokens = jax.random.randint(k_tokens, (batch, seq), 0, vocab_size, jnp.int32)

    out = gru_forward(tokens, kparams)
    jax.block_until_ready(out)

    ref = gru_forward_ref(tokens, params)
    assert out.shape == (batch,), out.shape
    assert bool(jnp.all(jnp.isfinite(out)))
    # bf16 matmul operands (f32 accumulation) vs f32 reference -> loosen tol.
    assert bool(jnp.allclose(out, ref, atol=1e-2, rtol=1e-2)), (
        jnp.max(jnp.abs(out - ref)))
    print("KERNEL_OK")
</pallas_src>

<mosaic_0001>
module attributes {stable_mosaic.version = 11 : i64} {
  func.func @kernel(%arg0: i32, %arg1: i32, %arg2: memref<8x8x128xf32, #tpu.memory_space<vmem>>, %arg3: memref<128x384xbf16, #tpu.memory_space<vmem>>, %arg4: memref<1x384xf32, #tpu.memory_space<vmem>>, %arg5: memref<128x384xbf16, #tpu.memory_space<vmem>>, %arg6: memref<1x128xf32, #tpu.memory_space<vmem>>, %arg7: memref<128x384xbf16, #tpu.memory_space<vmem>>, %arg8: memref<1x384xf32, #tpu.memory_space<vmem>>, %arg9: memref<128x384xbf16, #tpu.memory_space<vmem>>, %arg10: memref<1x128xf32, #tpu.memory_space<vmem>>, %arg11: memref<128x1xbf16, #tpu.memory_space<vmem>>, %arg12: memref<1x1xf32, #tpu.memory_space<vmem>>, %arg13: memref<8x1xf32, #tpu.memory_space<vmem>>, %arg14: memref<2x8x128xf32, #tpu.memory_space<vmem>>) attributes {dimension_semantics = [#tpu.dimension_semantics<parallel>, #tpu.dimension_semantics<arbitrary>], iteration_bounds = array<i64: 1, 1>, scalar_prefetch = 0 : i64, scratch_operands = 1 : i64, tpu.core_type = #tpu.core_type<tc>, window_params = [{transform_indices = @transform_0, window_bounds = array<i64: 8, 8, 128>}, {pipeline_mode = #tpu.pipeline_mode<synchronous>, transform_indices = @transform_1, window_bounds = array<i64: 128, 384>}, {pipeline_mode = #tpu.pipeline_mode<synchronous>, transform_indices = @transform_2, window_bounds = array<i64: 1, 384>}, {pipeline_mode = #tpu.pipeline_mode<synchronous>, transform_indices = @transform_3, window_bounds = array<i64: 128, 384>}, {pipeline_mode = #tpu.pipeline_mode<synchronous>, transform_indices = @transform_4, window_bounds = array<i64: 1, 128>}, {pipeline_mode = #tpu.pipeline_mode<synchronous>, transform_indices = @transform_5, window_bounds = array<i64: 128, 384>}, {pipeline_mode = #tpu.pipeline_mode<synchronous>, transform_indices = @transform_6, window_bounds = array<i64: 1, 384>}, {pipeline_mode = #tpu.pipeline_mode<synchronous>, transform_indices = @transform_7, window_bounds = array<i64: 128, 384>}, {pipeline_mode = #tpu.pipeline_mode<synchronous>, transform_indices = @transform_8, window_bounds = array<i64: 1, 128>}, {pipeline_mode = #tpu.pipeline_mode<synchronous>, transform_indices = @transform_9, window_bounds = array<i64: 128, 1>}, {pipeline_mode = #tpu.pipeline_mode<synchronous>, transform_indices = @transform_10, window_bounds = array<i64: 1, 1>}, {transform_indices = @transform_11, window_bounds = array<i64: 8, 1>}]} {
    %c0_i32 = arith.constant 0 : i32
    %0 = arith.cmpi eq, %arg1, %c0_i32 : i32
    %1 = arith.extui %0 : i1 to i32
    %c0_i32_0 = arith.constant 0 : i32
    %2 = arith.cmpi ne, %1, %c0_i32_0 : i32
    scf.if %2 {
      %cst_306 = arith.constant 0.000000e+00 : f32
      %614 = vector.broadcast %cst_306 : f32 to vector<2x8x128xf32>
      %c0_307 = arith.constant 0 : index
      %c0_308 = arith.constant 0 : index
      %c0_309 = arith.constant 0 : index
      %615 = vector.load %arg14[%c0_307, %c0_308, %c0_309] : memref<2x8x128xf32, #tpu.memory_space<vmem>>, vector<2x8x128xf32>
      tpu.vector_store %arg14[%c0_307, %c0_308, %c0_309], %614 {strides = array<i32>} : memref<2x8x128xf32, #tpu.memory_space<vmem>>, vector<2x8x128xf32>,
    } else {
    }
    %c0 = arith.constant 0 : index
    %c0_1 = arith.constant 0 : index
    %c0_2 = arith.constant 0 : index
    %3 = vector.load %arg2[%c0, %c0_1, %c0_2] : memref<8x8x128xf32, #tpu.memory_space<vmem>>, vector<1x8x128xf32>
    %4 = vector.shape_cast %3 : vector<1x8x128xf32> to vector<8x128xf32>
    %c0_3 = arith.constant 0 : index
    %c0_4 = arith.constant 0 : index
    %c0_5 = arith.constant 0 : index
    %5 = vector.load %arg14[%c0_3, %c0_4, %c0_5] : memref<2x8x128xf32, #tpu.memory_space<vmem>>, vector<1x8x128xf32>
    %6 = vector.shape_cast %5 : vector<1x8x128xf32> to vector<8x128xf32>
    %7 = arith.truncf %4 : vector<8x128xf32> to vector<8x128xbf16>
    %c0_6 = arith.constant 0 : index
    %c0_7 = arith.constant 0 : index
    %8 = vector.load %arg3[%c0_6, %c0_7] : memref<128x384xbf16, #tpu.memory_space<vmem>>, vector<128x384xbf16>
    %cst = arith.constant dense<0.000000e+00> : vector<8x384xf32>
    %9 = tpu.matmul %7, %8, %cst {dimension_numbers = #tpu.dot_dimension_numbers<[1], [0], [0], [1], [0, 0, 1, 1], [], []>} : vector<8x128xbf16>, vector<128x384xbf16>, vector<8x384xf32> -> vector<8x384xf32>
    %c0_8 = arith.constant 0 : index
    %c0_9 = arith.constant 0 : index
    %10 = vector.load %arg4[%c0_8, %c0_9] : memref<1x384xf32, #tpu.memory_space<vmem>>, vector<1x384xf32>
    %11 = vector.broadcast %10 : vector<1x384xf32> to vector<8x384xf32>
    %12 = arith.addf %9, %11 : vector<8x384xf32>
    %13 = arith.truncf %6 : vector<8x128xf32> to vector<8x128xbf16>
    %c0_10 = arith.constant 0 : index
    %c0_11 = arith.constant 0 : index
    %14 = vector.load %arg5[%c0_10, %c0_11] : memref<128x384xbf16, #tpu.memory_space<vmem>>, vector<128x384xbf16>
    %cst_12 = arith.constant dense<0.000000e+00> : vector<8x384xf32>
    %15 = tpu.matmul %13, %14, %cst_12 {dimension_numbers = #tpu.dot_dimension_numbers<[1], [0], [0], [1], [0, 0, 1, 1], [], []>} : vector<8x128xbf16>, vector<128x384xbf16>, vector<8x384xf32> -> vector<8x384xf32>
    %16 = vector.extract_strided_slice %12 {offsets = [0, 0], sizes = [8, 256], strides = [1, 1]} : vector<8x384xf32> to vector<8x256xf32>
    %17 = vector.extract_strided_slice %15 {offsets = [0, 0], sizes = [8, 256], strides = [1, 1]} : vector<8x384xf32> to vector<8x256xf32>
    %18 = arith.addf %16, %17 : vector<8x256xf32>
    %19 = arith.negf %18 : vector<8x256xf32>
    %20 = math.exp %19 : vector<8x256xf32>
    %cst_13 = arith.constant 1.000000e+00 : f32
    %21 = vector.broadcast %cst_13 : f32 to vector<8x256xf32>
    %22 = arith.addf %21, %20 : vector<8x256xf32>
    %23 = arith.divf %21, %22 : vector<8x256xf32>
    %24 = vector.extract_strided_slice %23 {offsets = [0, 0], sizes = [8, 128], strides = [1, 1]} : vector<8x256xf32> to vector<8x128xf32>
    %25 = vector.extract_strided_slice %23 {offsets = [0, 128], sizes = [8, 128], strides = [1, 1]} : vector<8x256xf32> to vector<8x128xf32>
    %26 = vector.extract_strided_slice %12 {offsets = [0, 256], sizes = [8, 128], strides = [1, 1]} : vector<8x384xf32> to vector<8x128xf32>
    %27 = vector.extract_strided_slice %15 {offsets = [0, 256], sizes = [8, 128], strides = [1, 1]} : vector<8x384xf32> to vector<8x128xf32>
    %c0_14 = arith.constant 0 : index
    %c0_15 = arith.constant 0 : index
    %28 = vector.load %arg6[%c0_14, %c0_15] : memref<1x128xf32, #tpu.memory_space<vmem>>, vector<1x128xf32>
    %29 = vector.broadcast %28 : vector<1x128xf32> to vector<8x128xf32>
    %30 = arith.addf %27, %29 : vector<8x128xf32>
    %31 = arith.mulf %24, %30 : vector<8x128xf32>
    %32 = arith.addf %26, %31 : vector<8x128xf32>
    %33 = math.tanh %32 : vector<8x128xf32>
    %cst_16 = arith.constant 1.000000e+00 : f32
    %34 = vector.broadcast %cst_16 : f32 to vector<8x128xf32>
    %35 = arith.subf %34, %25 : vector<8x128xf32>
    %36 = arith.mulf %35, %33 : vector<8x128xf32>
    %37 = arith.mulf %25, %6 : vector<8x128xf32>
    %38 = arith.addf %36, %37 : vector<8x128xf32>
    %c0_17 = arith.constant 0 : index
    %c0_18 = arith.constant 0 : index
    %c0_19 = arith.constant 0 : index
    %39 = vector.load %arg14[%c0_17, %c0_18, %c0_19] : memref<2x8x128xf32, #tpu.memory_space<vmem>>, vector<1x8x128xf32>
    %40 = vector.shape_cast %39 : vector<1x8x128xf32> to vector<8x128xf32>
    %41 = vector.shape_cast %38 : vector<8x128xf32> to vector<1x8x128xf32>
    tpu.vector_store %arg14[%c0_17, %c0_18, %c0_19], %41 {strides = array<i32>} : memref<2x8x128xf32, #tpu.memory_space<vmem>>, vector<1x8x128xf32>,
    %c1 = arith.constant 1 : index
    %c0_20 = arith.constant 0 : index
    %c0_21 = arith.constant 0 : index
    %42 = vector.load %arg14[%c1, %c0_20, %c0_21] : memref<2x8x128xf32, #tpu.memory_space<vmem>>, vector<1x8x128xf32>
    %43 = vector.shape_cast %42 : vector<1x8x128xf32> to vector<8x128xf32>
    %44 = arith.truncf %38 : vector<8x128xf32> to vector<8x128xbf16>
    %c0_22 = arith.constant 0 : index
    %c0_23 = arith.constant 0 : index
    %45 = vector.load %arg7[%c0_22, %c0_23] : memref<128x384xbf16, #tpu.memory_space<vmem>>, vector<128x384xbf16>
    %cst_24 = arith.constant dense<0.000000e+00> : vector<8x384xf32>
    %46 = tpu.matmul %44, %45, %cst_24 {dimension_numbers = #tpu.dot_dimension_numbers<[1], [0], [0], [1], [0, 0, 1, 1], [], []>} : vector<8x128xbf16>, vector<128x384xbf16>, vector<8x384xf32> -> vector<8x384xf32>
    %c0_25 = arith.constant 0 : index
    %c0_26 = arith.constant 0 : index
    %47 = vector.load %arg8[%c0_25, %c0_26] : memref<1x384xf32, #tpu.memory_space<vmem>>, vector<1x384xf32>
    %48 = vector.broadcast %47 : vector<1x384xf32> to vector<8x384xf32>
    %49 = arith.addf %46, %48 : vector<8x384xf32>
    %50 = arith.truncf %43 : vector<8x128xf32> to vector<8x128xbf16>
    %c0_27 = arith.constant 0 : index
    %c0_28 = arith.constant 0 : index
    %51 = vector.load %arg9[%c0_27, %c0_28] : memref<128x384xbf16, #tpu.memory_space<vmem>>, vector<128x384xbf16>
    %cst_29 = arith.constant dense<0.000000e+00> : vector<8x384xf32>
    %52 = tpu.matmul %50, %51, %cst_29 {dimension_numbers = #tpu.dot_dimension_numbers<[1], [0], [0], [1], [0, 0, 1, 1], [], []>} : vector<8x128xbf16>, vector<128x384xbf16>, vector<8x384xf32> -> vector<8x384xf32>
    %53 = vector.extract_strided_slice %49 {offsets = [0, 0], sizes = [8, 256], strides = [1, 1]} : vector<8x384xf32> to vector<8x256xf32>
    %54 = vector.extract_strided_slice %52 {offsets = [0, 0], sizes = [8, 256], strides = [1, 1]} : vector<8x384xf32> to vector<8x256xf32>
    %55 = arith.addf %53, %54 : vector<8x256xf32>
    %56 = arith.negf %55 : vector<8x256xf32>
    %57 = math.exp %56 : vector<8x256xf32>
    %cst_30 = arith.constant 1.000000e+00 : f32
    %58 = vector.broadcast %cst_30 : f32 to vector<8x256xf32>
    %59 = arith.addf %58, %57 : vector<8x256xf32>
    %60 = arith.divf %58, %59 : vector<8x256xf32>
    %61 = vector.extract_strided_slice %60 {offsets = [0, 0], sizes = [8, 128], strides = [1, 1]} : vector<8x256xf32> to vector<8x128xf32>
    %62 = vector.extract_strided_slice %60 {offsets = [0, 128], sizes = [8, 128], strides = [1, 1]} : vector<8x256xf32> to vector<8x128xf32>
    %63 = vector.extract_strided_slice %49 {offsets = [0, 256], sizes = [8, 128], strides = [1, 1]} : vector<8x384xf32> to vector<8x128xf32>
    %64 = vector.extract_strided_slice %52 {offsets = [0, 256], sizes = [8, 128], strides = [1, 1]} : vector<8x384xf32> to vector<8x128xf32>
    %c0_31 = arith.constant 0 : index
    %c0_32 = arith.constant 0 : index
    %65 = vector.load %arg10[%c0_31, %c0_32] : memref<1x128xf32, #tpu.memory_space<vmem>>, vector<1x128xf32>
    %66 = vector.broadcast %65 : vector<1x128xf32> to vector<8x128xf32>
    %67 = arith.addf %64, %66 : vector<8x128xf32>
    %68 = arith.mulf %61, %67 : vector<8x128xf32>
    %69 = arith.addf %63, %68 : vector<8x128xf32>
    %70 = math.tanh %69 : vector<8x128xf32>
    %cst_33 = arith.constant 1.000000e+00 : f32
    %71 = vector.broadcast %cst_33 : f32 to vector<8x128xf32>
    %72 = arith.subf %71, %62 : vector<8x128xf32>
    %73 = arith.mulf %72, %70 : vector<8x128xf32>
    %74 = arith.mulf %62, %43 : vector<8x128xf32>
    %75 = arith.addf %73, %74 : vector<8x128xf32>
    %c1_34 = arith.constant 1 : index
    %c0_35 = arith.constant 0 : index
    %c0_36 = arith.constant 0 : index
    %76 = vector.load %arg14[%c1_34, %c0_35, %c0_36] : memref<2x8x128xf32, #tpu.memory_space<vmem>>, vector<1x8x128xf32>
    %77 = vector.shape_cast %76 : vector<1x8x128xf32> to vector<8x128xf32>
    %78 = vector.shape_cast %75 : vector<8x128xf32> to vector<1x8x128xf32>
    tpu.vector_store %arg14[%c1_34, %c0_35, %c0_36], %78 {strides = array<i32>} : memref<2x8x128xf32, #tpu.memory_space<vmem>>, vector<1x8x128xf32>,
    %c1_37 = arith.constant 1 : index
    %c0_38 = arith.constant 0 : index
    %c0_39 = arith.constant 0 : index
    %79 = vector.load %arg2[%c1_37, %c0_38, %c0_39] : memref<8x8x128xf32, #tpu.memory_space<vmem>>, vector<1x8x128xf32>
    %80 = vector.shape_cast %79 : vector<1x8x128xf32> to vector<8x128xf32>
    %c0_40 = arith.constant 0 : index
    %c0_41 = arith.constant 0 : index
    %c0_42 = arith.constant 0 : index
    %81 = vector.load %arg14[%c0_40, %c0_41, %c0_42] : memref<2x8x128xf32, #tpu.memory_space<vmem>>, vector<1x8x128xf32>
    %82 = vector.shape_cast %81 : vector<1x8x128xf32> to vector<8x128xf32>
    %83 = arith.truncf %80 : vector<8x128xf32> to vector<8x128xbf16>
    %c0_43 = arith.constant 0 : index
    %c0_44 = arith.constant 0 : index
    %84 = vector.load %arg3[%c0_43, %c0_44] : memref<128x384xbf16, #tpu.memory_space<vmem>>, vector<128x384xbf16>
    %cst_45 = arith.constant dense<0.000000e+00> : vector<8x384xf32>
    %85 = tpu.matmul %83, %84, %cst_45 {dimension_numbers = #tpu.dot_dimension_numbers<[1], [0], [0], [1], [0, 0, 1, 1], [], []>} : vector<8x128xbf16>, vector<128x384xbf16>, vector<8x384xf32> -> vector<8x384xf32>
    %c0_46 = arith.constant 0 : index
    %c0_47 = arith.constant 0 : index
    %86 = vector.load %arg4[%c0_46, %c0_47] : memref<1x384xf32, #tpu.memory_space<vmem>>, vector<1x384xf32>
    %87 = vector.broadcast %86 : vector<1x384xf32> to vector<8x384xf32>
    %88 = arith.addf %85, %87 : vector<8x384xf32>
    %89 = arith.truncf %82 : vector<8x128xf32> to vector<8x128xbf16>
    %c0_48 = arith.constant 0 : index
    %c0_49 = arith.constant 0 : index
    %90 = vector.load %arg5[%c0_48, %c0_49] : memref<128x384xbf16, #tpu.memory_space<vmem>>, vector<128x384xbf16>
    %cst_50 = arith.constant dense<0.000000e+00> : vector<8x384xf32>
    %91 = tpu.matmul %89, %90, %cst_50 {dimension_numbers = #tpu.dot_dimension_numbers<[1], [0], [0], [1], [0, 0, 1, 1], [], []>} : vector<8x128xbf16>, vector<128x384xbf16>, vector<8x384xf32> -> vector<8x384xf32>
    %92 = vector.extract_strided_slice %88 {offsets = [0, 0], sizes = [8, 256], strides = [1, 1]} : vector<8x384xf32> to vector<8x256xf32>
    %93 = vector.extract_strided_slice %91 {offsets = [0, 0], sizes = [8, 256], strides = [1, 1]} : vector<8x384xf32> to vector<8x256xf32>
    %94 = arith.addf %92, %93 : vector<8x256xf32>
    %95 = arith.negf %94 : vector<8x256xf32>
    %96 = math.exp %95 : vector<8x256xf32>
    %cst_51 = arith.constant 1.000000e+00 : f32
    %97 = vector.broadcast %cst_51 : f32 to vector<8x256xf32>
    %98 = arith.addf %97, %96 : vector<8x256xf32>
    %99 = arith.divf %97, %98 : vector<8x256xf32>
    %100 = vector.extract_strided_slice %99 {offsets = [0, 0], sizes = [8, 128], strides = [1, 1]} : vector<8x256xf32> to vector<8x128xf32>
    %101 = vector.extract_strided_slice %99 {offsets = [0, 128], sizes = [8, 128], strides = [1, 1]} : vector<8x256xf32> to vector<8x128xf32>
    %102 = vector.extract_strided_slice %88 {offsets = [0, 256], sizes = [8, 128], strides = [1, 1]} : vector<8x384xf32> to vector<8x128xf32>
    %103 = vector.extract_strided_slice %91 {offsets = [0, 256], sizes = [8, 128], strides = [1, 1]} : vector<8x384xf32> to vector<8x128xf32>
    %c0_52 = arith.constant 0 : index
    %c0_53 = arith.constant 0 : index
    %104 = vector.load %arg6[%c0_52, %c0_53] : memref<1x128xf32, #tpu.memory_space<vmem>>, vector<1x128xf32>
    %105 = vector.broadcast %104 : vector<1x128xf32> to vector<8x128xf32>
    %106 = arith.addf %103, %105 : vector<8x128xf32>
    %107 = arith.mulf %100, %106 : vector<8x128xf32>
    %108 = arith.addf %102, %107 : vector<8x128xf32>
    %109 = math.tanh %108 : vector<8x128xf32>
    %cst_54 = arith.constant 1.000000e+00 : f32
    %110 = vector.broadcast %cst_54 : f32 to vector<8x128xf32>
    %111 = arith.subf %110, %101 : vector<8x128xf32>
    %112 = arith.mulf %111, %109 : vector<8x128xf32>
    %113 = arith.mulf %101, %82 : vector<8x128xf32>
    %114 = arith.addf %112, %113 : vector<8x128xf32>
    %c0_55 = arith.constant 0 : index
    %c0_56 = arith.constant 0 : index
    %c0_57 = arith.constant 0 : index
    %115 = vector.load %arg14[%c0_55, %c0_56, %c0_57] : memref<2x8x128xf32, #tpu.memory_space<vmem>>, vector<1x8x128xf32>
    %116 = vector.shape_cast %115 : vector<1x8x128xf32> to vector<8x128xf32>
    %117 = vector.shape_cast %114 : vector<8x128xf32> to vector<1x8x128xf32>
    tpu.vector_store %arg14[%c0_55, %c0_56, %c0_57], %117 {strides = array<i32>} : memref<2x8x128xf32, #tpu.memory_space<vmem>>, vector<1x8x128xf32>,
    %c1_58 = arith.constant 1 : index
    %c0_59 = arith.constant 0 : index
    %c0_60 = arith.constant 0 : index
    %118 = vector.load %arg14[%c1_58, %c0_59, %c0_60] : memref<2x8x128xf32, #tpu.memory_space<vmem>>, vector<1x8x128xf32>
    %119 = vector.shape_cast %118 : vector<1x8x128xf32> to vector<8x128xf32>
    %120 = arith.truncf %114 : vector<8x128xf32> to vector<8x128xbf16>
    %c0_61 = arith.constant 0 : index
    %c0_62 = arith.constant 0 : index
    %121 = vector.load %arg7[%c0_61, %c0_62] : memref<128x384xbf16, #tpu.memory_space<vmem>>, vector<128x384xbf16>
    %cst_63 = arith.constant dense<0.000000e+00> : vector<8x384xf32>
    %122 = tpu.matmul %120, %121, %cst_63 {dimension_numbers = #tpu.dot_dimension_numbers<[1], [0], [0], [1], [0, 0, 1, 1], [], []>} : vector<8x128xbf16>, vector<128x384xbf16>, vector<8x384xf32> -> vector<8x384xf32>
    %c0_64 = arith.constant 0 : index
    %c0_65 = arith.constant 0 : index
    %123 = vector.load %arg8[%c0_64, %c0_65] : memref<1x384xf32, #tpu.memory_space<vmem>>, vector<1x384xf32>
    %124 = vector.broadcast %123 : vector<1x384xf32> to vector<8x384xf32>
    %125 = arith.addf %122, %124 : vector<8x384xf32>
    %126 = arith.truncf %119 : vector<8x128xf32> to vector<8x128xbf16>
    %c0_66 = arith.constant 0 : index
    %c0_67 = arith.constant 0 : index
    %127 = vector.load %arg9[%c0_66, %c0_67] : memref<128x384xbf16, #tpu.memory_space<vmem>>, vector<128x384xbf16>
    %cst_68 = arith.constant dense<0.000000e+00> : vector<8x384xf32>
    %128 = tpu.matmul %126, %127, %cst_68 {dimension_numbers = #tpu.dot_dimension_numbers<[1], [0], [0], [1], [0, 0, 1, 1], [], []>} : vector<8x128xbf16>, vector<128x384xbf16>, vector<8x384xf32> -> vector<8x384xf32>
    %129 = vector.extract_strided_slice %125 {offsets = [0, 0], sizes = [8, 256], strides = [1, 1]} : vector<8x384xf32> to vector<8x256xf32>
    %130 = vector.extract_strided_slice %128 {offsets = [0, 0], sizes = [8, 256], strides = [1, 1]} : vector<8x384xf32> to vector<8x256xf32>
    %131 = arith.addf %129, %130 : vector<8x256xf32>
    %132 = arith.negf %131 : vector<8x256xf32>
    %133 = math.exp %132 : vector<8x256xf32>
    %cst_69 = arith.constant 1.000000e+00 : f32
    %134 = vector.broadcast %cst_69 : f32 to vector<8x256xf32>
    %135 = arith.addf %134, %133 : vector<8x256xf32>
    %136 = arith.divf %134, %135 : vector<8x256xf32>
    %137 = vector.extract_strided_slice %136 {offsets = [0, 0], sizes = [8, 128], strides = [1, 1]} : vector<8x256xf32> to vector<8x128xf32>
    %138 = vector.extract_strided_slice %136 {offsets = [0, 128], sizes = [8, 128], strides = [1, 1]} : vector<8x256xf32> to vector<8x128xf32>
    %139 = vector.extract_strided_slice %125 {offsets = [0, 256], sizes = [8, 128], strides = [1, 1]} : vector<8x384xf32> to vector<8x128xf32>
    %140 = vector.extract_strided_slice %128 {offsets = [0, 256], sizes = [8, 128], strides = [1, 1]} : vector<8x384xf32> to vector<8x128xf32>
    %c0_70 = arith.constant 0 : index
    %c0_71 = arith.constant 0 : index
    %141 = vector.load %arg10[%c0_70, %c0_71] : memref<1x128xf32, #tpu.memory_space<vmem>>, vector<1x128xf32>
    %142 = vector.broadcast %141 : vector<1x128xf32> to vector<8x128xf32>
    %143 = arith.addf %140, %142 : vector<8x128xf32>
    %144 = arith.mulf %137, %143 : vector<8x128xf32>
    %145 = arith.addf %139, %144 : vector<8x128xf32>
    %146 = math.tanh %145 : vector<8x128xf32>
    %cst_72 = arith.constant 1.000000e+00 : f32
    %147 = vector.broadcast %cst_72 : f32 to vector<8x128xf32>
    %148 = arith.subf %147, %138 : vector<8x128xf32>
    %149 = arith.mulf %148, %146 : vector<8x128xf32>
    %150 = arith.mulf %138, %119 : vector<8x128xf32>
    %151 = arith.addf %149, %150 : vector<8x128xf32>
    %c1_73 = arith.constant 1 : index
    %c0_74 = arith.constant 0 : index
    %c0_75 = arith.constant 0 : index
    %152 = vector.load %arg14[%c1_73, %c0_74, %c0_75] : memref<2x8x128xf32, #tpu.memory_space<vmem>>, vector<1x8x128xf32>
    %153 = vector.shape_cast %152 : vector<1x8x128xf32> to vector<8x128xf32>
    %154 = vector.shape_cast %151 : vector<8x128xf32> to vector<1x8x128xf32>
    tpu.vector_store %arg14[%c1_73, %c0_74, %c0_75], %154 {strides = array<i32>} : memref<2x8x128xf32, #tpu.memory_space<vmem>>, vector<1x8x128xf32>,
    %c2 = arith.constant 2 : index
    %c0_76 = arith.constant 0 : index
    %c0_77 = arith.constant 0 : index
    %155 = vector.load %arg2[%c2, %c0_76, %c0_77] : memref<8x8x128xf32, #tpu.memory_space<vmem>>, vector<1x8x128xf32>
    %156 = vector.shape_cast %155 : vector<1x8x128xf32> to vector<8x128xf32>
    %c0_78 = arith.constant 0 : index
    %c0_79 = arith.constant 0 : index
    %c0_80 = arith.constant 0 : index
    %157 = vector.load %arg14[%c0_78, %c0_79, %c0_80] : memref<2x8x128xf32, #tpu.memory_space<vmem>>, vector<1x8x128xf32>
    %158 = vector.shape_cast %157 : vector<1x8x128xf32> to vector<8x128xf32>
    %159 = arith.truncf %156 : vector<8x128xf32> to vector<8x128xbf16>
    %c0_81 = arith.constant 0 : index
    %c0_82 = arith.constant 0 : index
    %160 = vector.load %arg3[%c0_81, %c0_82] : memref<128x384xbf16, #tpu.memory_space<vmem>>, vector<128x384xbf16>
    %cst_83 = arith.constant dense<0.000000e+00> : vector<8x384xf32>
    %161 = tpu.matmul %159, %160, %cst_83 {dimension_numbers = #tpu.dot_dimension_numbers<[1], [0], [0], [1], [0, 0, 1, 1], [], []>} : vector<8x128xbf16>, vector<128x384xbf16>, vector<8x384xf32> -> vector<8x384xf32>
    %c0_84 = arith.constant 0 : index
    %c0_85 = arith.constant 0 : index
    %162 = vector.load %arg4[%c0_84, %c0_85] : memref<1x384xf32, #tpu.memory_space<vmem>>, vector<1x384xf32>
    %163 = vector.broadcast %162 : vector<1x384xf32> to vector<8x384xf32>
    %164 = arith.addf %161, %163 : vector<8x384xf32>
    %165 = arith.truncf %158 : vector<8x128xf32> to vector<8x128xbf16>
    %c0_86 = arith.constant 0 : index
    %c0_87 = arith.constant 0 : index
    %166 = vector.load %arg5[%c0_86, %c0_87] : memref<128x384xbf16, #tpu.memory_space<vmem>>, vector<128x384xbf16>
    %cst_88 = arith.constant dense<0.000000e+00> : vector<8x384xf32>
    %167 = tpu.matmul %165, %166, %cst_88 {dimension_numbers = #tpu.dot_dimension_numbers<[1], [0], [0], [1], [0, 0, 1, 1], [], []>} : vector<8x128xbf16>, vector<128x384xbf16>, vector<8x384xf32> -> vector<8x384xf32>
    %168 = vector.extract_strided_slice %164 {offsets = [0, 0], sizes = [8, 256], strides = [1, 1]} : vector<8x384xf32> to vector<8x256xf32>
    %169 = vector.extract_strided_slice %167 {offsets = [0, 0], sizes = [8, 256], strides = [1, 1]} : vector<8x384xf32> to vector<8x256xf32>
    %170 = arith.addf %168, %169 : vector<8x256xf32>
    %171 = arith.negf %170 : vector<8x256xf32>
    %172 = math.exp %171 : vector<8x256xf32>
    %cst_89 = arith.constant 1.000000e+00 : f32
    %173 = vector.broadcast %cst_89 : f32 to vector<8x256xf32>
    %174 = arith.addf %173, %172 : vector<8x256xf32>
    %175 = arith.divf %173, %174 : vector<8x256xf32>
    %176 = vector.extract_strided_slice %175 {offsets = [0, 0], sizes = [8, 128], strides = [1, 1]} : vector<8x256xf32> to vector<8x128xf32>
    %177 = vector.extract_strided_slice %175 {offsets = [0, 128], sizes = [8, 128], strides = [1, 1]} : vector<8x256xf32> to vector<8x128xf32>
    %178 = vector.extract_strided_slice %164 {offsets = [0, 256], sizes = [8, 128], strides = [1, 1]} : vector<8x384xf32> to vector<8x128xf32>
    %179 = vector.extract_strided_slice %167 {offsets = [0, 256], sizes = [8, 128], strides = [1, 1]} : vector<8x384xf32> to vector<8x128xf32>
    %c0_90 = arith.constant 0 : index
    %c0_91 = arith.constant 0 : index
    %180 = vector.load %arg6[%c0_90, %c0_91] : memref<1x128xf32, #tpu.memory_space<vmem>>, vector<1x128xf32>
    %181 = vector.broadcast %180 : vector<1x128xf32> to vector<8x128xf32>
    %182 = arith.addf %179, %181 : vector<8x128xf32>
    %183 = arith.mulf %176, %182 : vector<8x128xf32>
    %184 = arith.addf %178, %183 : vector<8x128xf32>
    %185 = math.tanh %184 : vector<8x128xf32>
    %cst_92 = arith.constant 1.000000e+00 : f32
    %186 = vector.broadcast %cst_92 : f32 to vector<8x128xf32>
    %187 = arith.subf %186, %177 : vector<8x128xf32>
    %188 = arith.mulf %187, %185 : vector<8x128xf32>
    %189 = arith.mulf %177, %158 : vector<8x128xf32>
    %190 = arith.addf %188, %189 : vector<8x128xf32>
    %c0_93 = arith.constant 0 : index
    %c0_94 = arith.constant 0 : index
    %c0_95 = arith.constant 0 : index
    %191 = vector.load %arg14[%c0_93, %c0_94, %c0_95] : memref<2x8x128xf32, #tpu.memory_space<vmem>>, vector<1x8x128xf32>
    %192 = vector.shape_cast %191 : vector<1x8x128xf32> to vector<8x128xf32>
    %193 = vector.shape_cast %190 : vector<8x128xf32> to vector<1x8x128xf32>
    tpu.vector_store %arg14[%c0_93, %c0_94, %c0_95], %193 {strides = array<i32>} : memref<2x8x128xf32, #tpu.memory_space<vmem>>, vector<1x8x128xf32>,
    %c1_96 = arith.constant 1 : index
    %c0_97 = arith.constant 0 : index
    %c0_98 = arith.constant 0 : index
    %194 = vector.load %arg14[%c1_96, %c0_97, %c0_98] : memref<2x8x128xf32, #tpu.memory_space<vmem>>, vector<1x8x128xf32>
    %195 = vector.shape_cast %194 : vector<1x8x128xf32> to vector<8x128xf32>
    %196 = arith.truncf %190 : vector<8x128xf32> to vector<8x128xbf16>
    %c0_99 = arith.constant 0 : index
    %c0_100 = arith.constant 0 : index
    %197 = vector.load %arg7[%c0_99, %c0_100] : memref<128x384xbf16, #tpu.memory_space<vmem>>, vector<128x384xbf16>
    %cst_101 = arith.constant dense<0.000000e+00> : vector<8x384xf32>
    %198 = tpu.matmul %196, %197, %cst_101 {dimension_numbers = #tpu.dot_dimension_numbers<[1], [0], [0], [1], [0, 0, 1, 1], [], []>} : vector<8x128xbf16>, vector<128x384xbf16>, vector<8x384xf32> -> vector<8x384xf32>
    %c0_102 = arith.constant 0 : index
    %c0_103 = arith.constant 0 : index
    %199 = vector.load %arg8[%c0_102, %c0_103] : memref<1x384xf32, #tpu.memory_space<vmem>>, vector<1x384xf32>
    %200 = vector.broadcast %199 : vector<1x384xf32> to vector<8x384xf32>
    %201 = arith.addf %198, %200 : vector<8x384xf32>
    %202 = arith.truncf %195 : vector<8x128xf32> to vector<8x128xbf16>
    %c0_104 = arith.constant 0 : index
    %c0_105 = arith.constant 0 : index
    %203 = vector.load %arg9[%c0_104, %c0_105] : memref<128x384xbf16, #tpu.memory_space<vmem>>, vector<128x384xbf16>
    %cst_106 = arith.constant dense<0.000000e+00> : vector<8x384xf32>
    %204 = tpu.matmul %202, %203, %cst_106 {dimension_numbers = #tpu.dot_dimension_numbers<[1], [0], [0], [1], [0, 0, 1, 1], [], []>} : vector<8x128xbf16>, vector<128x384xbf16>, vector<8x384xf32> -> vector<8x384xf32>
    %205 = vector.extract_strided_slice %201 {offsets = [0, 0], sizes = [8, 256], strides = [1, 1]} : vector<8x384xf32> to vector<8x256xf32>
    %206 = vector.extract_strided_slice %204 {offsets = [0, 0], sizes = [8, 256], strides = [1, 1]} : vector<8x384xf32> to vector<8x256xf32>
    %207 = arith.addf %205, %206 : vector<8x256xf32>
    %208 = arith.negf %207 : vector<8x256xf32>
    %209 = math.exp %208 : vector<8x256xf32>
    %cst_107 = arith.constant 1.000000e+00 : f32
    %210 = vector.broadcast %cst_107 : f32 to vector<8x256xf32>
    %211 = arith.addf %210, %209 : vector<8x256xf32>
    %212 = arith.divf %210, %211 : vector<8x256xf32>
    %213 = vector.extract_strided_slice %212 {offsets = [0, 0], sizes = [8, 128], strides = [1, 1]} : vector<8x256xf32> to vector<8x128xf32>
    %214 = vector.extract_strided_slice %212 {offsets = [0, 128], sizes = [8, 128], strides = [1, 1]} : vector<8x256xf32> to vector<8x128xf32>
    %215 = vector.extract_strided_slice %201 {offsets = [0, 256], sizes = [8, 128], strides = [1, 1]} : vector<8x384xf32> to vector<8x128xf32>
    %216 = vector.extract_strided_slice %204 {offsets = [0, 256], sizes = [8, 128], strides = [1, 1]} : vector<8x384xf32> to vector<8x128xf32>
    %c0_108 = arith.constant 0 : index
    %c0_109 = arith.constant 0 : index
    %217 = vector.load %arg10[%c0_108, %c0_109] : memref<1x128xf32, #tpu.memory_space<vmem>>, vector<1x128xf32>
    %218 = vector.broadcast %217 : vector<1x128xf32> to vector<8x128xf32>
    %219 = arith.addf %216, %218 : vector<8x128xf32>
    %220 = arith.mulf %213, %219 : vector<8x128xf32>
    %221 = arith.addf %215, %220 : vector<8x128xf32>
    %222 = math.tanh %221 : vector<8x128xf32>
    %cst_110 = arith.constant 1.000000e+00 : f32
    %223 = vector.broadcast %cst_110 : f32 to vector<8x128xf32>
    %224 = arith.subf %223, %214 : vector<8x128xf32>
    %225 = arith.mulf %224, %222 : vector<8x128xf32>
    %226 = arith.mulf %214, %195 : vector<8x128xf32>
    %227 = arith.addf %225, %226 : vector<8x128xf32>
    %c1_111 = arith.constant 1 : index
    %c0_112 = arith.constant 0 : index
    %c0_113 = arith.constant 0 : index
    %228 = vector.load %arg14[%c1_111, %c0_112, %c0_113] : memref<2x8x128xf32, #tpu.memory_space<vmem>>, vector<1x8x128xf32>
    %229 = vector.shape_cast %228 : vector<1x8x128xf32> to vector<8x128xf32>
    %230 = vector.shape_cast %227 : vector<8x128xf32> to vector<1x8x128xf32>
    tpu.vector_store %arg14[%c1_111, %c0_112, %c0_113], %230 {strides = array<i32>} : memref<2x8x128xf32, #tpu.memory_space<vmem>>, vector<1x8x128xf32>,
    %c3 = arith.constant 3 : index
    %c0_114 = arith.constant 0 : index
    %c0_115 = arith.constant 0 : index
    %231 = vector.load %arg2[%c3, %c0_114, %c0_115] : memref<8x8x128xf32, #tpu.memory_space<vmem>>, vector<1x8x128xf32>
    %232 = vector.shape_cast %231 : vector<1x8x128xf32> to vector<8x128xf32>
    %c0_116 = arith.constant 0 : index
    %c0_117 = arith.constant 0 : index
    %c0_118 = arith.constant 0 : index
    %233 = vector.load %arg14[%c0_116, %c0_117, %c0_118] : memref<2x8x128xf32, #tpu.memory_space<vmem>>, vector<1x8x128xf32>
    %234 = vector.shape_cast %233 : vector<1x8x128xf32> to vector<8x128xf32>
    %235 = arith.truncf %232 : vector<8x128xf32> to vector<8x128xbf16>
    %c0_119 = arith.constant 0 : index
    %c0_120 = arith.constant 0 : index
    %236 = vector.load %arg3[%c0_119, %c0_120] : memref<128x384xbf16, #tpu.memory_space<vmem>>, vector<128x384xbf16>
    %cst_121 = arith.constant dense<0.000000e+00> : vector<8x384xf32>
    %237 = tpu.matmul %235, %236, %cst_121 {dimension_numbers = #tpu.dot_dimension_numbers<[1], [0], [0], [1], [0, 0, 1, 1], [], []>} : vector<8x128xbf16>, vector<128x384xbf16>, vector<8x384xf32> -> vector<8x384xf32>
    %c0_122 = arith.constant 0 : index
    %c0_123 = arith.constant 0 : index
    %238 = vector.load %arg4[%c0_122, %c0_123] : memref<1x384xf32, #tpu.memory_space<vmem>>, vector<1x384xf32>
    %239 = vector.broadcast %238 : vector<1x384xf32> to vector<8x384xf32>
    %240 = arith.addf %237, %239 : vector<8x384xf32>
    %241 = arith.truncf %234 : vector<8x128xf32> to vector<8x128xbf16>
    %c0_124 = arith.constant 0 : index
    %c0_125 = arith.constant 0 : index
    %242 = vector.load %arg5[%c0_124, %c0_125] : memref<128x384xbf16, #tpu.memory_space<vmem>>, vector<128x384xbf16>
    %cst_126 = arith.constant dense<0.000000e+00> : vector<8x384xf32>
    %243 = tpu.matmul %241, %242, %cst_126 {dimension_numbers = #tpu.dot_dimension_numbers<[1], [0], [0], [1], [0, 0, 1, 1], [], []>} : vector<8x128xbf16>, vector<128x384xbf16>, vector<8x384xf32> -> vector<8x384xf32>
    %244 = vector.extract_strided_slice %240 {offsets = [0, 0], sizes = [8, 256], strides = [1, 1]} : vector<8x384xf32> to vector<8x256xf32>
    %245 = vector.extract_strided_slice %243 {offsets = [0, 0], sizes = [8, 256], strides = [1, 1]} : vector<8x384xf32> to vector<8x256xf32>
    %246 = arith.addf %244, %245 : vector<8x256xf32>
    %247 = arith.negf %246 : vector<8x256xf32>
    %248 = math.exp %247 : vector<8x256xf32>
    %cst_127 = arith.constant 1.000000e+00 : f32
    %249 = vector.broadcast %cst_127 : f32 to vector<8x256xf32>
    %250 = arith.addf %249, %248 : vector<8x256xf32>
    %251 = arith.divf %249, %250 : vector<8x256xf32>
    %252 = vector.extract_strided_slice %251 {offsets = [0, 0], sizes = [8, 128], strides = [1, 1]} : vector<8x256xf32> to vector<8x128xf32>
    %253 = vector.extract_strided_slice %251 {offsets = [0, 128], sizes = [8, 128], strides = [1, 1]} : vector<8x256xf32> to vector<8x128xf32>
    %254 = vector.extract_strided_slice %240 {offsets = [0, 256], sizes = [8, 128], strides = [1, 1]} : vector<8x384xf32> to vector<8x128xf32>
    %255 = vector.extract_strided_slice %243 {offsets = [0, 256], sizes = [8, 128], strides = [1, 1]} : vector<8x384xf32> to vector<8x128xf32>
    %c0_128 = arith.constant 0 : index
    %c0_129 = arith.constant 0 : index
    %256 = vector.load %arg6[%c0_128, %c0_129] : memref<1x128xf32, #tpu.memory_space<vmem>>, vector<1x128xf32>
    %257 = vector.broadcast %256 : vector<1x128xf32> to vector<8x128xf32>
    %258 = arith.addf %255, %257 : vector<8x128xf32>
    %259 = arith.mulf %252, %258 : vector<8x128xf32>
    %260 = arith.addf %254, %259 : vector<8x128xf32>
    %261 = math.tanh %260 : vector<8x128xf32>
    %cst_130 = arith.constant 1.000000e+00 : f32
    %262 = vector.broadcast %cst_130 : f32 to vector<8x128xf32>
    %263 = arith.subf %262, %253 : vector<8x128xf32>
    %264 = arith.mulf %263, %261 : vector<8x128xf32>
    %265 = arith.mulf %253, %234 : vector<8x128xf32>
    %266 = arith.addf %264, %265 : vector<8x128xf32>
    %c0_131 = arith.constant 0 : index
    %c0_132 = arith.constant 0 : index
    %c0_133 = arith.constant 0 : index
    %267 = vector.load %arg14[%c0_131, %c0_132, %c0_133] : memref<2x8x128xf32, #tpu.memory_space<vmem>>, vector<1x8x128xf32>
    %268 = vector.shape_cast %267 : vector<1x8x128xf32> to vector<8x128xf32>
    %269 = vector.shape_cast %266 : vector<8x128xf32> to vector<1x8x128xf32>
    tpu.vector_store %arg14[%c0_131, %c0_132, %c0_133], %269 {strides = array<i32>} : memref<2x8x128xf32, #tpu.memory_space<vmem>>, vector<1x8x128xf32>,
    %c1_134 = arith.constant 1 : index
    %c0_135 = arith.constant 0 : index
    %c0_136 = arith.constant 0 : index
    %270 = vector.load %arg14[%c1_134, %c0_135, %c0_136] : memref<2x8x128xf32, #tpu.memory_space<vmem>>, vector<1x8x128xf32>
    %271 = vector.shape_cast %270 : vector<1x8x128xf32> to vector<8x128xf32>
    %272 = arith.truncf %266 : vector<8x128xf32> to vector<8x128xbf16>
    %c0_137 = arith.constant 0 : index
    %c0_138 = arith.constant 0 : index
    %273 = vector.load %arg7[%c0_137, %c0_138] : memref<128x384xbf16, #tpu.memory_space<vmem>>, vector<128x384xbf16>
    %cst_139 = arith.constant dense<0.000000e+00> : vector<8x384xf32>
    %274 = tpu.matmul %272, %273, %cst_139 {dimension_numbers = #tpu.dot_dimension_numbers<[1], [0], [0], [1], [0, 0, 1, 1], [], []>} : vector<8x128xbf16>, vector<128x384xbf16>, vector<8x384xf32> -> vector<8x384xf32>
    %c0_140 = arith.constant 0 : index
    %c0_141 = arith.constant 0 : index
    %275 = vector.load %arg8[%c0_140, %c0_141] : memref<1x384xf32, #tpu.memory_space<vmem>>, vector<1x384xf32>
    %276 = vector.broadcast %275 : vector<1x384xf32> to vector<8x384xf32>
    %277 = arith.addf %274, %276 : vector<8x384xf32>
    %278 = arith.truncf %271 : vector<8x128xf32> to vector<8x128xbf16>
    %c0_142 = arith.constant 0 : index
    %c0_143 = arith.constant 0 : index
    %279 = vector.load %arg9[%c0_142, %c0_143] : memref<128x384xbf16, #tpu.memory_space<vmem>>, vector<128x384xbf16>
    %cst_144 = arith.constant dense<0.000000e+00> : vector<8x384xf32>
    %280 = tpu.matmul %278, %279, %cst_144 {dimension_numbers = #tpu.dot_dimension_numbers<[1], [0], [0], [1], [0, 0, 1, 1], [], []>} : vector<8x128xbf16>, vector<128x384xbf16>, vector<8x384xf32> -> vector<8x384xf32>
    %281 = vector.extract_strided_slice %277 {offsets = [0, 0], sizes = [8, 256], strides = [1, 1]} : vector<8x384xf32> to vector<8x256xf32>
    %282 = vector.extract_strided_slice %280 {offsets = [0, 0], sizes = [8, 256], strides = [1, 1]} : vector<8x384xf32> to vector<8x256xf32>
    %283 = arith.addf %281, %282 : vector<8x256xf32>
    %284 = arith.negf %283 : vector<8x256xf32>
    %285 = math.exp %284 : vector<8x256xf32>
    %cst_145 = arith.constant 1.000000e+00 : f32
    %286 = vector.broadcast %cst_145 : f32 to vector<8x256xf32>
    %287 = arith.addf %286, %285 : vector<8x256xf32>
    %288 = arith.divf %286, %287 : vector<8x256xf32>
    %289 = vector.extract_strided_slice %288 {offsets = [0, 0], sizes = [8, 128], strides = [1, 1]} : vector<8x256xf32> to vector<8x128xf32>
    %290 = vector.extract_strided_slice %288 {offsets = [0, 128], sizes = [8, 128], strides = [1, 1]} : vector<8x256xf32> to vector<8x128xf32>
    %291 = vector.extract_strided_slice %277 {offsets = [0, 256], sizes = [8, 128], strides = [1, 1]} : vector<8x384xf32> to vector<8x128xf32>
    %292 = vector.extract_strided_slice %280 {offsets = [0, 256], sizes = [8, 128], strides = [1, 1]} : vector<8x384xf32> to vector<8x128xf32>
    %c0_146 = arith.constant 0 : index
    %c0_147 = arith.constant 0 : index
    %293 = vector.load %arg10[%c0_146, %c0_147] : memref<1x128xf32, #tpu.memory_space<vmem>>, vector<1x128xf32>
    %294 = vector.broadcast %293 : vector<1x128xf32> to vector<8x128xf32>
    %295 = arith.addf %292, %294 : vector<8x128xf32>
    %296 = arith.mulf %289, %295 : vector<8x128xf32>
    %297 = arith.addf %291, %296 : vector<8x128xf32>
    %298 = math.tanh %297 : vector<8x128xf32>
    %cst_148 = arith.constant 1.000000e+00 : f32
    %299 = vector.broadcast %cst_148 : f32 to vector<8x128xf32>
    %300 = arith.subf %299, %290 : vector<8x128xf32>
    %301 = arith.mulf %300, %298 : vector<8x128xf32>
    %302 = arith.mulf %290, %271 : vector<8x128xf32>
    %303 = arith.addf %301, %302 : vector<8x128xf32>
    %c1_149 = arith.constant 1 : index
    %c0_150 = arith.constant 0 : index
    %c0_151 = arith.constant 0 : index
    %304 = vector.load %arg14[%c1_149, %c0_150, %c0_151] : memref<2x8x128xf32, #tpu.memory_space<vmem>>, vector<1x8x128xf32>
    %305 = vector.shape_cast %304 : vector<1x8x128xf32> to vector<8x128xf32>
    %306 = vector.shape_cast %303 : vector<8x128xf32> to vector<1x8x128xf32>
    tpu.vector_store %arg14[%c1_149, %c0_150, %c0_151], %306 {strides = array<i32>} : memref<2x8x128xf32, #tpu.memory_space<vmem>>, vector<1x8x128xf32>,
    %c4 = arith.constant 4 : index
    %c0_152 = arith.constant 0 : index
    %c0_153 = arith.constant 0 : index
    %307 = vector.load %arg2[%c4, %c0_152, %c0_153] : memref<8x8x128xf32, #tpu.memory_space<vmem>>, vector<1x8x128xf32>
    %308 = vector.shape_cast %307 : vector<1x8x128xf32> to vector<8x128xf32>
    %c0_154 = arith.constant 0 : index
    %c0_155 = arith.constant 0 : index
    %c0_156 = arith.constant 0 : index
    %309 = vector.load %arg14[%c0_154, %c0_155, %c0_156] : memref<2x8x128xf32, #tpu.memory_space<vmem>>, vector<1x8x128xf32>
    %310 = vector.shape_cast %309 : vector<1x8x128xf32> to vector<8x128xf32>
    %311 = arith.truncf %308 : vector<8x128xf32> to vector<8x128xbf16>
    %c0_157 = arith.constant 0 : index
    %c0_158 = arith.constant 0 : index
    %312 = vector.load %arg3[%c0_157, %c0_158] : memref<128x384xbf16, #tpu.memory_space<vmem>>, vector<128x384xbf16>
    %cst_159 = arith.constant dense<0.000000e+00> : vector<8x384xf32>
    %313 = tpu.matmul %311, %312, %cst_159 {dimension_numbers = #tpu.dot_dimension_numbers<[1], [0], [0], [1], [0, 0, 1, 1], [], []>} : vector<8x128xbf16>, vector<128x384xbf16>, vector<8x384xf32> -> vector<8x384xf32>
    %c0_160 = arith.constant 0 : index
    %c0_161 = arith.constant 0 : index
    %314 = vector.load %arg4[%c0_160, %c0_161] : memref<1x384xf32, #tpu.memory_space<vmem>>, vector<1x384xf32>
    %315 = vector.broadcast %314 : vector<1x384xf32> to vector<8x384xf32>
    %316 = arith.addf %313, %315 : vector<8x384xf32>
    %317 = arith.truncf %310 : vector<8x128xf32> to vector<8x128xbf16>
    %c0_162 = arith.constant 0 : index
    %c0_163 = arith.constant 0 : index
    %318 = vector.load %arg5[%c0_162, %c0_163] : memref<128x384xbf16, #tpu.memory_space<vmem>>, vector<128x384xbf16>
    %cst_164 = arith.constant dense<0.000000e+00> : vector<8x384xf32>
    %319 = tpu.matmul %317, %318, %cst_164 {dimension_numbers = #tpu.dot_dimension_numbers<[1], [0], [0], [1], [0, 0, 1, 1], [], []>} : vector<8x128xbf16>, vector<128x384xbf16>, vector<8x384xf32> -> vector<8x384xf32>
    %320 = vector.extract_strided_slice %316 {offsets = [0, 0], sizes = [8, 256], strides = [1, 1]} : vector<8x384xf32> to vector<8x256xf32>
    %321 = vector.extract_strided_slice %319 {offsets = [0, 0], sizes = [8, 256], strides = [1, 1]} : vector<8x384xf32> to vector<8x256xf32>
    %322 = arith.addf %320, %321 : vector<8x256xf32>
    %323 = arith.negf %322 : vector<8x256xf32>
    %324 = math.exp %323 : vector<8x256xf32>
    %cst_165 = arith.constant 1.000000e+00 : f32
    %325 = vector.broadcast %cst_165 : f32 to vector<8x256xf32>
    %326 = arith.addf %325, %324 : vector<8x256xf32>
    %327 = arith.divf %325, %326 : vector<8x256xf32>
    %328 = vector.extract_strided_slice %327 {offsets = [0, 0], sizes = [8, 128], strides = [1, 1]} : vector<8x256xf32> to vector<8x128xf32>
    %329 = vector.extract_strided_slice %327 {offsets = [0, 128], sizes = [8, 128], strides = [1, 1]} : vector<8x256xf32> to vector<8x128xf32>
    %330 = vector.extract_strided_slice %316 {offsets = [0, 256], sizes = [8, 128], strides = [1, 1]} : vector<8x384xf32> to vector<8x128xf32>
    %331 = vector.extract_strided_slice %319 {offsets = [0, 256], sizes = [8, 128], strides = [1, 1]} : vector<8x384xf32> to vector<8x128xf32>
    %c0_166 = arith.constant 0 : index
    %c0_167 = arith.constant 0 : index
    %332 = vector.load %arg6[%c0_166, %c0_167] : memref<1x128xf32, #tpu.memory_space<vmem>>, vector<1x128xf32>
    %333 = vector.broadcast %332 : vector<1x128xf32> to vector<8x128xf32>
    %334 = arith.addf %331, %333 : vector<8x128xf32>
    %335 = arith.mulf %328, %334 : vector<8x128xf32>
    %336 = arith.addf %330, %335 : vector<8x128xf32>
    %337 = math.tanh %336 : vector<8x128xf32>
    %cst_168 = arith.constant 1.000000e+00 : f32
    %338 = vector.broadcast %cst_168 : f32 to vector<8x128xf32>
    %339 = arith.subf %338, %329 : vector<8x128xf32>
    %340 = arith.mulf %339, %337 : vector<8x128xf32>
    %341 = arith.mulf %329, %310 : vector<8x128xf32>
    %342 = arith.addf %340, %341 : vector<8x128xf32>
    %c0_169 = arith.constant 0 : index
    %c0_170 = arith.constant 0 : index
    %c0_171 = arith.constant 0 : index
    %343 = vector.load %arg14[%c0_169, %c0_170, %c0_171] : memref<2x8x128xf32, #tpu.memory_space<vmem>>, vector<1x8x128xf32>
    %344 = vector.shape_cast %343 : vector<1x8x128xf32> to vector<8x128xf32>
    %345 = vector.shape_cast %342 : vector<8x128xf32> to vector<1x8x128xf32>
    tpu.vector_store %arg14[%c0_169, %c0_170, %c0_171], %345 {strides = array<i32>} : memref<2x8x128xf32, #tpu.memory_space<vmem>>, vector<1x8x128xf32>,
    %c1_172 = arith.constant 1 : index
    %c0_173 = arith.constant 0 : index
    %c0_174 = arith.constant 0 : index
    %346 = vector.load %arg14[%c1_172, %c0_173, %c0_174] : memref<2x8x128xf32, #tpu.memory_space<vmem>>, vector<1x8x128xf32>
    %347 = vector.shape_cast %346 : vector<1x8x128xf32> to vector<8x128xf32>
    %348 = arith.truncf %342 : vector<8x128xf32> to vector<8x128xbf16>
    %c0_175 = arith.constant 0 : index
    %c0_176 = arith.constant 0 : index
    %349 = vector.load %arg7[%c0_175, %c0_176] : memref<128x384xbf16, #tpu.memory_space<vmem>>, vector<128x384xbf16>
    %cst_177 = arith.constant dense<0.000000e+00> : vector<8x384xf32>
    %350 = tpu.matmul %348, %349, %cst_177 {dimension_numbers = #tpu.dot_dimension_numbers<[1], [0], [0], [1], [0, 0, 1, 1], [], []>} : vector<8x128xbf16>, vector<128x384xbf16>, vector<8x384xf32> -> vector<8x384xf32>
    %c0_178 = arith.constant 0 : index
    %c0_179 = arith.constant 0 : index
    %351 = vector.load %arg8[%c0_178, %c0_179] : memref<1x384xf32, #tpu.memory_space<vmem>>, vector<1x384xf32>
    %352 = vector.broadcast %351 : vector<1x384xf32> to vector<8x384xf32>
    %353 = arith.addf %350, %352 : vector<8x384xf32>
    %354 = arith.truncf %347 : vector<8x128xf32> to vector<8x128xbf16>
    %c0_180 = arith.constant 0 : index
    %c0_181 = arith.constant 0 : index
    %355 = vector.load %arg9[%c0_180, %c0_181] : memref<128x384xbf16, #tpu.memory_space<vmem>>, vector<128x384xbf16>
    %cst_182 = arith.constant dense<0.000000e+00> : vector<8x384xf32>
    %356 = tpu.matmul %354, %355, %cst_182 {dimension_numbers = #tpu.dot_dimension_numbers<[1], [0], [0], [1], [0, 0, 1, 1], [], []>} : vector<8x128xbf16>, vector<128x384xbf16>, vector<8x384xf32> -> vector<8x384xf32>
    %357 = vector.extract_strided_slice %353 {offsets = [0, 0], sizes = [8, 256], strides = [1, 1]} : vector<8x384xf32> to vector<8x256xf32>
    %358 = vector.extract_strided_slice %356 {offsets = [0, 0], sizes = [8, 256], strides = [1, 1]} : vector<8x384xf32> to vector<8x256xf32>
    %359 = arith.addf %357, %358 : vector<8x256xf32>
    %360 = arith.negf %359 : vector<8x256xf32>
    %361 = math.exp %360 : vector<8x256xf32>
    %cst_183 = arith.constant 1.000000e+00 : f32
    %362 = vector.broadcast %cst_183 : f32 to vector<8x256xf32>
    %363 = arith.addf %362, %361 : vector<8x256xf32>
    %364 = arith.divf %362, %363 : vector<8x256xf32>
    %365 = vector.extract_strided_slice %364 {offsets = [0, 0], sizes = [8, 128], strides = [1, 1]} : vector<8x256xf32> to vector<8x128xf32>
    %366 = vector.extract_strided_slice %364 {offsets = [0, 128], sizes = [8, 128], strides = [1, 1]} : vector<8x256xf32> to vector<8x128xf32>
    %367 = vector.extract_strided_slice %353 {offsets = [0, 256], sizes = [8, 128], strides = [1, 1]} : vector<8x384xf32> to vector<8x128xf32>
    %368 = vector.extract_strided_slice %356 {offsets = [0, 256], sizes = [8, 128], strides = [1, 1]} : vector<8x384xf32> to vector<8x128xf32>
    %c0_184 = arith.constant 0 : index
    %c0_185 = arith.constant 0 : index
    %369 = vector.load %arg10[%c0_184, %c0_185] : memref<1x128xf32, #tpu.memory_space<vmem>>, vector<1x128xf32>
    %370 = vector.broadcast %369 : vector<1x128xf32> to vector<8x128xf32>
    %371 = arith.addf %368, %370 : vector<8x128xf32>
    %372 = arith.mulf %365, %371 : vector<8x128xf32>
    %373 = arith.addf %367, %372 : vector<8x128xf32>
    %374 = math.tanh %373 : vector<8x128xf32>
    %cst_186 = arith.constant 1.000000e+00 : f32
    %375 = vector.broadcast %cst_186 : f32 to vector<8x128xf32>
    %376 = arith.subf %375, %366 : vector<8x128xf32>
    %377 = arith.mulf %376, %374 : vector<8x128xf32>
    %378 = arith.mulf %366, %347 : vector<8x128xf32>
    %379 = arith.addf %377, %378 : vector<8x128xf32>
    %c1_187 = arith.constant 1 : index
    %c0_188 = arith.constant 0 : index
    %c0_189 = arith.constant 0 : index
    %380 = vector.load %arg14[%c1_187, %c0_188, %c0_189] : memref<2x8x128xf32, #tpu.memory_space<vmem>>, vector<1x8x128xf32>
    %381 = vector.shape_cast %380 : vector<1x8x128xf32> to vector<8x128xf32>
    %382 = vector.shape_cast %379 : vector<8x128xf32> to vector<1x8x128xf32>
    tpu.vector_store %arg14[%c1_187, %c0_188, %c0_189], %382 {strides = array<i32>} : memref<2x8x128xf32, #tpu.memory_space<vmem>>, vector<1x8x128xf32>,
    %c5 = arith.constant 5 : index
    %c0_190 = arith.constant 0 : index
    %c0_191 = arith.constant 0 : index
    %383 = vector.load %arg2[%c5, %c0_190, %c0_191] : memref<8x8x128xf32, #tpu.memory_space<vmem>>, vector<1x8x128xf32>
    %384 = vector.shape_cast %383 : vector<1x8x128xf32> to vector<8x128xf32>
    %c0_192 = arith.constant 0 : index
    %c0_193 = arith.constant 0 : index
    %c0_194 = arith.constant 0 : index
    %385 = vector.load %arg14[%c0_192, %c0_193, %c0_194] : memref<2x8x128xf32, #tpu.memory_space<vmem>>, vector<1x8x128xf32>
    %386 = vector.shape_cast %385 : vector<1x8x128xf32> to vector<8x128xf32>
    %387 = arith.truncf %384 : vector<8x128xf32> to vector<8x128xbf16>
    %c0_195 = arith.constant 0 : index
    %c0_196 = arith.constant 0 : index
    %388 = vector.load %arg3[%c0_195, %c0_196] : memref<128x384xbf16, #tpu.memory_space<vmem>>, vector<128x384xbf16>
    %cst_197 = arith.constant dense<0.000000e+00> : vector<8x384xf32>
    %389 = tpu.matmul %387, %388, %cst_197 {dimension_numbers = #tpu.dot_dimension_numbers<[1], [0], [0], [1], [0, 0, 1, 1], [], []>} : vector<8x128xbf16>, vector<128x384xbf16>, vector<8x384xf32> -> vector<8x384xf32>
    %c0_198 = arith.constant 0 : index
    %c0_199 = arith.constant 0 : index
    %390 = vector.load %arg4[%c0_198, %c0_199] : memref<1x384xf32, #tpu.memory_space<vmem>>, vector<1x384xf32>
    %391 = vector.broadcast %390 : vector<1x384xf32> to vector<8x384xf32>
    %392 = arith.addf %389, %391 : vector<8x384xf32>
    %393 = arith.truncf %386 : vector<8x128xf32> to vector<8x128xbf16>
    %c0_200 = arith.constant 0 : index
    %c0_201 = arith.constant 0 : index
    %394 = vector.load %arg5[%c0_200, %c0_201] : memref<128x384xbf16, #tpu.memory_space<vmem>>, vector<128x384xbf16>
    %cst_202 = arith.constant dense<0.000000e+00> : vector<8x384xf32>
    %395 = tpu.matmul %393, %394, %cst_202 {dimension_numbers = #tpu.dot_dimension_numbers<[1], [0], [0], [1], [0, 0, 1, 1], [], []>} : vector<8x128xbf16>, vector<128x384xbf16>, vector<8x384xf32> -> vector<8x384xf32>
    %396 = vector.extract_strided_slice %392 {offsets = [0, 0], sizes = [8, 256], strides = [1, 1]} : vector<8x384xf32> to vector<8x256xf32>
    %397 = vector.extract_strided_slice %395 {offsets = [0, 0], sizes = [8, 256], strides = [1, 1]} : vector<8x384xf32> to vector<8x256xf32>
    %398 = arith.addf %396, %397 : vector<8x256xf32>
    %399 = arith.negf %398 : vector<8x256xf32>
    %400 = math.exp %399 : vector<8x256xf32>
    %cst_203 = arith.constant 1.000000e+00 : f32
    %401 = vector.broadcast %cst_203 : f32 to vector<8x256xf32>
    %402 = arith.addf %401, %400 : vector<8x256xf32>
    %403 = arith.divf %401, %402 : vector<8x256xf32>
    %404 = vector.extract_strided_slice %403 {offsets = [0, 0], sizes = [8, 128], strides = [1, 1]} : vector<8x256xf32> to vector<8x128xf32>
    %405 = vector.extract_strided_slice %403 {offsets = [0, 128], sizes = [8, 128], strides = [1, 1]} : vector<8x256xf32> to vector<8x128xf32>
    %406 = vector.extract_strided_slice %392 {offsets = [0, 256], sizes = [8, 128], strides = [1, 1]} : vector<8x384xf32> to vector<8x128xf32>
    %407 = vector.extract_strided_slice %395 {offsets = [0, 256], sizes = [8, 128], strides = [1, 1]} : vector<8x384xf32> to vector<8x128xf32>
    %c0_204 = arith.constant 0 : index
    %c0_205 = arith.constant 0 : index
    %408 = vector.load %arg6[%c0_204, %c0_205] : memref<1x128xf32, #tpu.memory_space<vmem>>, vector<1x128xf32>
    %409 = vector.broadcast %408 : vector<1x128xf32> to vector<8x128xf32>
    %410 = arith.addf %407, %409 : vector<8x128xf32>
    %411 = arith.mulf %404, %410 : vector<8x128xf32>
    %412 = arith.addf %406, %411 : vector<8x128xf32>
    %413 = math.tanh %412 : vector<8x128xf32>
    %cst_206 = arith.constant 1.000000e+00 : f32
    %414 = vector.broadcast %cst_206 : f32 to vector<8x128xf32>
    %415 = arith.subf %414, %405 : vector<8x128xf32>
    %416 = arith.mulf %415, %413 : vector<8x128xf32>
    %417 = arith.mulf %405, %386 : vector<8x128xf32>
    %418 = arith.addf %416, %417 : vector<8x128xf32>
    %c0_207 = arith.constant 0 : index
    %c0_208 = arith.constant 0 : index
    %c0_209 = arith.constant 0 : index
    %419 = vector.load %arg14[%c0_207, %c0_208, %c0_209] : memref<2x8x128xf32, #tpu.memory_space<vmem>>, vector<1x8x128xf32>
    %420 = vector.shape_cast %419 : vector<1x8x128xf32> to vector<8x128xf32>
    %421 = vector.shape_cast %418 : vector<8x128xf32> to vector<1x8x128xf32>
    tpu.vector_store %arg14[%c0_207, %c0_208, %c0_209], %421 {strides = array<i32>} : memref<2x8x128xf32, #tpu.memory_space<vmem>>, vector<1x8x128xf32>,
    %c1_210 = arith.constant 1 : index
    %c0_211 = arith.constant 0 : index
    %c0_212 = arith.constant 0 : index
    %422 = vector.load %arg14[%c1_210, %c0_211, %c0_212] : memref<2x8x128xf32, #tpu.memory_space<vmem>>, vector<1x8x128xf32>
    %423 = vector.shape_cast %422 : vector<1x8x128xf32> to vector<8x128xf32>
    %424 = arith.truncf %418 : vector<8x128xf32> to vector<8x128xbf16>
    %c0_213 = arith.constant 0 : index
    %c0_214 = arith.constant 0 : index
    %425 = vector.load %arg7[%c0_213, %c0_214] : memref<128x384xbf16, #tpu.memory_space<vmem>>, vector<128x384xbf16>
    %cst_215 = arith.constant dense<0.000000e+00> : vector<8x384xf32>
    %426 = tpu.matmul %424, %425, %cst_215 {dimension_numbers = #tpu.dot_dimension_numbers<[1], [0], [0], [1], [0, 0, 1, 1], [], []>} : vector<8x128xbf16>, vector<128x384xbf16>, vector<8x384xf32> -> vector<8x384xf32>
    %c0_216 = arith.constant 0 : index
    %c0_217 = arith.constant 0 : index
    %427 = vector.load %arg8[%c0_216, %c0_217] : memref<1x384xf32, #tpu.memory_space<vmem>>, vector<1x384xf32>
    %428 = vector.broadcast %427 : vector<1x384xf32> to vector<8x384xf32>
    %429 = arith.addf %426, %428 : vector<8x384xf32>
    %430 = arith.truncf %423 : vector<8x128xf32> to vector<8x128xbf16>
    %c0_218 = arith.constant 0 : index
    %c0_219 = arith.constant 0 : index
    %431 = vector.load %arg9[%c0_218, %c0_219] : memref<128x384xbf16, #tpu.memory_space<vmem>>, vector<128x384xbf16>
    %cst_220 = arith.constant dense<0.000000e+00> : vector<8x384xf32>
    %432 = tpu.matmul %430, %431, %cst_220 {dimension_numbers = #tpu.dot_dimension_numbers<[1], [0], [0], [1], [0, 0, 1, 1], [], []>} : vector<8x128xbf16>, vector<128x384xbf16>, vector<8x384xf32> -> vector<8x384xf32>
    %433 = vector.extract_strided_slice %429 {offsets = [0, 0], sizes = [8, 256], strides = [1, 1]} : vector<8x384xf32> to vector<8x256xf32>
    %434 = vector.extract_strided_slice %432 {offsets = [0, 0], sizes = [8, 256], strides = [1, 1]} : vector<8x384xf32> to vector<8x256xf32>
    %435 = arith.addf %433, %434 : vector<8x256xf32>
    %436 = arith.negf %435 : vector<8x256xf32>
    %437 = math.exp %436 : vector<8x256xf32>
    %cst_221 = arith.constant 1.000000e+00 : f32
    %438 = vector.broadcast %cst_221 : f32 to vector<8x256xf32>
    %439 = arith.addf %438, %437 : vector<8x256xf32>
    %440 = arith.divf %438, %439 : vector<8x256xf32>
    %441 = vector.extract_strided_slice %440 {offsets = [0, 0], sizes = [8, 128], strides = [1, 1]} : vector<8x256xf32> to vector<8x128xf32>
    %442 = vector.extract_strided_slice %440 {offsets = [0, 128], sizes = [8, 128], strides = [1, 1]} : vector<8x256xf32> to vector<8x128xf32>
    %443 = vector.extract_strided_slice %429 {offsets = [0, 256], sizes = [8, 128], strides = [1, 1]} : vector<8x384xf32> to vector<8x128xf32>
    %444 = vector.extract_strided_slice %432 {offsets = [0, 256], sizes = [8, 128], strides = [1, 1]} : vector<8x384xf32> to vector<8x128xf32>
    %c0_222 = arith.constant 0 : index
    %c0_223 = arith.constant 0 : index
    %445 = vector.load %arg10[%c0_222, %c0_223] : memref<1x128xf32, #tpu.memory_space<vmem>>, vector<1x128xf32>
    %446 = vector.broadcast %445 : vector<1x128xf32> to vector<8x128xf32>
    %447 = arith.addf %444, %446 : vector<8x128xf32>
    %448 = arith.mulf %441, %447 : vector<8x128xf32>
    %449 = arith.addf %443, %448 : vector<8x128xf32>
    %450 = math.tanh %449 : vector<8x128xf32>
    %cst_224 = arith.constant 1.000000e+00 : f32
    %451 = vector.broadcast %cst_224 : f32 to vector<8x128xf32>
    %452 = arith.subf %451, %442 : vector<8x128xf32>
    %453 = arith.mulf %452, %450 : vector<8x128xf32>
    %454 = arith.mulf %442, %423 : vector<8x128xf32>
    %455 = arith.addf %453, %454 : vector<8x128xf32>
    %c1_225 = arith.constant 1 : index
    %c0_226 = arith.constant 0 : index
    %c0_227 = arith.constant 0 : index
    %456 = vector.load %arg14[%c1_225, %c0_226, %c0_227] : memref<2x8x128xf32, #tpu.memory_space<vmem>>, vector<1x8x128xf32>
    %457 = vector.shape_cast %456 : vector<1x8x128xf32> to vector<8x128xf32>
    %458 = vector.shape_cast %455 : vector<8x128xf32> to vector<1x8x128xf32>
    tpu.vector_store %arg14[%c1_225, %c0_226, %c0_227], %458 {strides = array<i32>} : memref<2x8x128xf32, #tpu.memory_space<vmem>>, vector<1x8x128xf32>,
    %c6 = arith.constant 6 : index
    %c0_228 = arith.constant 0 : index
    %c0_229 = arith.constant 0 : index
    %459 = vector.load %arg2[%c6, %c0_228, %c0_229] : memref<8x8x128xf32, #tpu.memory_space<vmem>>, vector<1x8x128xf32>
    %460 = vector.shape_cast %459 : vector<1x8x128xf32> to vector<8x128xf32>
    %c0_230 = arith.constant 0 : index
    %c0_231 = arith.constant 0 : index
    %c0_232 = arith.constant 0 : index
    %461 = vector.load %arg14[%c0_230, %c0_231, %c0_232] : memref<2x8x128xf32, #tpu.memory_space<vmem>>, vector<1x8x128xf32>
    %462 = vector.shape_cast %461 : vector<1x8x128xf32> to vector<8x128xf32>
    %463 = arith.truncf %460 : vector<8x128xf32> to vector<8x128xbf16>
    %c0_233 = arith.constant 0 : index
    %c0_234 = arith.constant 0 : index
    %464 = vector.load %arg3[%c0_233, %c0_234] : memref<128x384xbf16, #tpu.memory_space<vmem>>, vector<128x384xbf16>
    %cst_235 = arith.constant dense<0.000000e+00> : vector<8x384xf32>
    %465 = tpu.matmul %463, %464, %cst_235 {dimension_numbers = #tpu.dot_dimension_numbers<[1], [0], [0], [1], [0, 0, 1, 1], [], []>} : vector<8x128xbf16>, vector<128x384xbf16>, vector<8x384xf32> -> vector<8x384xf32>
    %c0_236 = arith.constant 0 : index
    %c0_237 = arith.constant 0 : index
    %466 = vector.load %arg4[%c0_236, %c0_237] : memref<1x384xf32, #tpu.memory_space<vmem>>, vector<1x384xf32>
    %467 = vector.broadcast %466 : vector<1x384xf32> to vector<8x384xf32>
    %468 = arith.addf %465, %467 : vector<8x384xf32>
    %469 = arith.truncf %462 : vector<8x128xf32> to vector<8x128xbf16>
    %c0_238 = arith.constant 0 : index
    %c0_239 = arith.constant 0 : index
    %470 = vector.load %arg5[%c0_238, %c0_239] : memref<128x384xbf16, #tpu.memory_space<vmem>>, vector<128x384xbf16>
    %cst_240 = arith.constant dense<0.000000e+00> : vector<8x384xf32>
    %471 = tpu.matmul %469, %470, %cst_240 {dimension_numbers = #tpu.dot_dimension_numbers<[1], [0], [0], [1], [0, 0, 1, 1], [], []>} : vector<8x128xbf16>, vector<128x384xbf16>, vector<8x384xf32> -> vector<8x384xf32>
    %472 = vector.extract_strided_slice %468 {offsets = [0, 0], sizes = [8, 256], strides = [1, 1]} : vector<8x384xf32> to vector<8x256xf32>
    %473 = vector.extract_strided_slice %471 {offsets = [0, 0], sizes = [8, 256], strides = [1, 1]} : vector<8x384xf32> to vector<8x256xf32>
    %474 = arith.addf %472, %473 : vector<8x256xf32>
    %475 = arith.negf %474 : vector<8x256xf32>
    %476 = math.exp %475 : vector<8x256xf32>
    %cst_241 = arith.constant 1.000000e+00 : f32
    %477 = vector.broadcast %cst_241 : f32 to vector<8x256xf32>
    %478 = arith.addf %477, %476 : vector<8x256xf32>
    %479 = arith.divf %477, %478 : vector<8x256xf32>
    %480 = vector.extract_strided_slice %479 {offsets = [0, 0], sizes = [8, 128], strides = [1, 1]} : vector<8x256xf32> to vector<8x128xf32>
    %481 = vector.extract_strided_slice %479 {offsets = [0, 128], sizes = [8, 128], strides = [1, 1]} : vector<8x256xf32> to vector<8x128xf32>
    %482 = vector.extract_strided_slice %468 {offsets = [0, 256], sizes = [8, 128], strides = [1, 1]} : vector<8x384xf32> to vector<8x128xf32>
    %483 = vector.extract_strided_slice %471 {offsets = [0, 256], sizes = [8, 128], strides = [1, 1]} : vector<8x384xf32> to vector<8x128xf32>
    %c0_242 = arith.constant 0 : index
    %c0_243 = arith.constant 0 : index
    %484 = vector.load %arg6[%c0_242, %c0_243] : memref<1x128xf32, #tpu.memory_space<vmem>>, vector<1x128xf32>
    %485 = vector.broadcast %484 : vector<1x128xf32> to vector<8x128xf32>
    %486 = arith.addf %483, %485 : vector<8x128xf32>
    %487 = arith.mulf %480, %486 : vector<8x128xf32>
    %488 = arith.addf %482, %487 : vector<8x128xf32>
    %489 = math.tanh %488 : vector<8x128xf32>
    %cst_244 = arith.constant 1.000000e+00 : f32
    %490 = vector.broadcast %cst_244 : f32 to vector<8x128xf32>
    %491 = arith.subf %490, %481 : vector<8x128xf32>
    %492 = arith.mulf %491, %489 : vector<8x128xf32>
    %493 = arith.mulf %481, %462 : vector<8x128xf32>
    %494 = arith.addf %492, %493 : vector<8x128xf32>
    %c0_245 = arith.constant 0 : index
    %c0_246 = arith.constant 0 : index
    %c0_247 = arith.constant 0 : index
    %495 = vector.load %arg14[%c0_245, %c0_246, %c0_247] : memref<2x8x128xf32, #tpu.memory_space<vmem>>, vector<1x8x128xf32>
    %496 = vector.shape_cast %495 : vector<1x8x128xf32> to vector<8x128xf32>
    %497 = vector.shape_cast %494 : vector<8x128xf32> to vector<1x8x128xf32>
    tpu.vector_store %arg14[%c0_245, %c0_246, %c0_247], %497 {strides = array<i32>} : memref<2x8x128xf32, #tpu.memory_space<vmem>>, vector<1x8x128xf32>,
    %c1_248 = arith.constant 1 : index
    %c0_249 = arith.constant 0 : index
    %c0_250 = arith.constant 0 : index
    %498 = vector.load %arg14[%c1_248, %c0_249, %c0_250] : memref<2x8x128xf32, #tpu.memory_space<vmem>>, vector<1x8x128xf32>
    %499 = vector.shape_cast %498 : vector<1x8x128xf32> to vector<8x128xf32>
    %500 = arith.truncf %494 : vector<8x128xf32> to vector<8x128xbf16>
    %c0_251 = arith.constant 0 : index
    %c0_252 = arith.constant 0 : index
    %501 = vector.load %arg7[%c0_251, %c0_252] : memref<128x384xbf16, #tpu.memory_space<vmem>>, vector<128x384xbf16>
    %cst_253 = arith.constant dense<0.000000e+00> : vector<8x384xf32>
    %502 = tpu.matmul %500, %501, %cst_253 {dimension_numbers = #tpu.dot_dimension_numbers<[1], [0], [0], [1], [0, 0, 1, 1], [], []>} : vector<8x128xbf16>, vector<128x384xbf16>, vector<8x384xf32> -> vector<8x384xf32>
    %c0_254 = arith.constant 0 : index
    %c0_255 = arith.constant 0 : index
    %503 = vector.load %arg8[%c0_254, %c0_255] : memref<1x384xf32, #tpu.memory_space<vmem>>, vector<1x384xf32>
    %504 = vector.broadcast %503 : vector<1x384xf32> to vector<8x384xf32>
    %505 = arith.addf %502, %504 : vector<8x384xf32>
    %506 = arith.truncf %499 : vector<8x128xf32> to vector<8x128xbf16>
    %c0_256 = arith.constant 0 : index
    %c0_257 = arith.constant 0 : index
    %507 = vector.load %arg9[%c0_256, %c0_257] : memref<128x384xbf16, #tpu.memory_space<vmem>>, vector<128x384xbf16>
    %cst_258 = arith.constant dense<0.000000e+00> : vector<8x384xf32>
    %508 = tpu.matmul %506, %507, %cst_258 {dimension_numbers = #tpu.dot_dimension_numbers<[1], [0], [0], [1], [0, 0, 1, 1], [], []>} : vector<8x128xbf16>, vector<128x384xbf16>, vector<8x384xf32> -> vector<8x384xf32>
    %509 = vector.extract_strided_slice %505 {offsets = [0, 0], sizes = [8, 256], strides = [1, 1]} : vector<8x384xf32> to vector<8x256xf32>
    %510 = vector.extract_strided_slice %508 {offsets = [0, 0], sizes = [8, 256], strides = [1, 1]} : vector<8x384xf32> to vector<8x256xf32>
    %511 = arith.addf %509, %510 : vector<8x256xf32>
    %512 = arith.negf %511 : vector<8x256xf32>
    %513 = math.exp %512 : vector<8x256xf32>
    %cst_259 = arith.constant 1.000000e+00 : f32
    %514 = vector.broadcast %cst_259 : f32 to vector<8x256xf32>
    %515 = arith.addf %514, %513 : vector<8x256xf32>
    %516 = arith.divf %514, %515 : vector<8x256xf32>
    %517 = vector.extract_strided_slice %516 {offsets = [0, 0], sizes = [8, 128], strides = [1, 1]} : vector<8x256xf32> to vector<8x128xf32>
    %518 = vector.extract_strided_slice %516 {offsets = [0, 128], sizes = [8, 128], strides = [1, 1]} : vector<8x256xf32> to vector<8x128xf32>
    %519 = vector.extract_strided_slice %505 {offsets = [0, 256], sizes = [8, 128], strides = [1, 1]} : vector<8x384xf32> to vector<8x128xf32>
    %520 = vector.extract_strided_slice %508 {offsets = [0, 256], sizes = [8, 128], strides = [1, 1]} : vector<8x384xf32> to vector<8x128xf32>
    %c0_260 = arith.constant 0 : index
    %c0_261 = arith.constant 0 : index
    %521 = vector.load %arg10[%c0_260, %c0_261] : memref<1x128xf32, #tpu.memory_space<vmem>>, vector<1x128xf32>
    %522 = vector.broadcast %521 : vector<1x128xf32> to vector<8x128xf32>
    %523 = arith.addf %520, %522 : vector<8x128xf32>
    %524 = arith.mulf %517, %523 : vector<8x128xf32>
    %525 = arith.addf %519, %524 : vector<8x128xf32>
    %526 = math.tanh %525 : vector<8x128xf32>
    %cst_262 = arith.constant 1.000000e+00 : f32
    %527 = vector.broadcast %cst_262 : f32 to vector<8x128xf32>
    %528 = arith.subf %527, %518 : vector<8x128xf32>
    %529 = arith.mulf %528, %526 : vector<8x128xf32>
    %530 = arith.mulf %518, %499 : vector<8x128xf32>
    %531 = arith.addf %529, %530 : vector<8x128xf32>
    %c1_263 = arith.constant 1 : index
    %c0_264 = arith.constant 0 : index
    %c0_265 = arith.constant 0 : index
    %532 = vector.load %arg14[%c1_263, %c0_264, %c0_265] : memref<2x8x128xf32, #tpu.memory_space<vmem>>, vector<1x8x128xf32>
    %533 = vector.shape_cast %532 : vector<1x8x128xf32> to vector<8x128xf32>
    %534 = vector.shape_cast %531 : vector<8x128xf32> to vector<1x8x128xf32>
    tpu.vector_store %arg14[%c1_263, %c0_264, %c0_265], %534 {strides = array<i32>} : memref<2x8x128xf32, #tpu.memory_space<vmem>>, vector<1x8x128xf32>,
    %c7 = arith.constant 7 : index
    %c0_266 = arith.constant 0 : index
    %c0_267 = arith.constant 0 : index
    %535 = vector.load %arg2[%c7, %c0_266, %c0_267] : memref<8x8x128xf32, #tpu.memory_space<vmem>>, vector<1x8x128xf32>
    %536 = vector.shape_cast %535 : vector<1x8x128xf32> to vector<8x128xf32>
    %c0_268 = arith.constant 0 : index
    %c0_269 = arith.constant 0 : index
    %c0_270 = arith.constant 0 : index
    %537 = vector.load %arg14[%c0_268, %c0_269, %c0_270] : memref<2x8x128xf32, #tpu.memory_space<vmem>>, vector<1x8x128xf32>
    %538 = vector.shape_cast %537 : vector<1x8x128xf32> to vector<8x128xf32>
    %539 = arith.truncf %536 : vector<8x128xf32> to vector<8x128xbf16>
    %c0_271 = arith.constant 0 : index
    %c0_272 = arith.constant 0 : index
    %540 = vector.load %arg3[%c0_271, %c0_272] : memref<128x384xbf16, #tpu.memory_space<vmem>>, vector<128x384xbf16>
    %cst_273 = arith.constant dense<0.000000e+00> : vector<8x384xf32>
    %541 = tpu.matmul %539, %540, %cst_273 {dimension_numbers = #tpu.dot_dimension_numbers<[1], [0], [0], [1], [0, 0, 1, 1], [], []>} : vector<8x128xbf16>, vector<128x384xbf16>, vector<8x384xf32> -> vector<8x384xf32>
    %c0_274 = arith.constant 0 : index
    %c0_275 = arith.constant 0 : index
    %542 = vector.load %arg4[%c0_274, %c0_275] : memref<1x384xf32, #tpu.memory_space<vmem>>, vector<1x384xf32>
    %543 = vector.broadcast %542 : vector<1x384xf32> to vector<8x384xf32>
    %544 = arith.addf %541, %543 : vector<8x384xf32>
    %545 = arith.truncf %538 : vector<8x128xf32> to vector<8x128xbf16>
    %c0_276 = arith.constant 0 : index
    %c0_277 = arith.constant 0 : index
    %546 = vector.load %arg5[%c0_276, %c0_277] : memref<128x384xbf16, #tpu.memory_space<vmem>>, vector<128x384xbf16>
    %cst_278 = arith.constant dense<0.000000e+00> : vector<8x384xf32>
    %547 = tpu.matmul %545, %546, %cst_278 {dimension_numbers = #tpu.dot_dimension_numbers<[1], [0], [0], [1], [0, 0, 1, 1], [], []>} : vector<8x128xbf16>, vector<128x384xbf16>, vector<8x384xf32> -> vector<8x384xf32>
    %548 = vector.extract_strided_slice %544 {offsets = [0, 0], sizes = [8, 256], strides = [1, 1]} : vector<8x384xf32> to vector<8x256xf32>
    %549 = vector.extract_strided_slice %547 {offsets = [0, 0], sizes = [8, 256], strides = [1, 1]} : vector<8x384xf32> to vector<8x256xf32>
    %550 = arith.addf %548, %549 : vector<8x256xf32>
    %551 = arith.negf %550 : vector<8x256xf32>
    %552 = math.exp %551 : vector<8x256xf32>
    %cst_279 = arith.constant 1.000000e+00 : f32
    %553 = vector.broadcast %cst_279 : f32 to vector<8x256xf32>
    %554 = arith.addf %553, %552 : vector<8x256xf32>
    %555 = arith.divf %553, %554 : vector<8x256xf32>
    %556 = vector.extract_strided_slice %555 {offsets = [0, 0], sizes = [8, 128], strides = [1, 1]} : vector<8x256xf32> to vector<8x128xf32>
    %557 = vector.extract_strided_slice %555 {offsets = [0, 128], sizes = [8, 128], strides = [1, 1]} : vector<8x256xf32> to vector<8x128xf32>
    %558 = vector.extract_strided_slice %544 {offsets = [0, 256], sizes = [8, 128], strides = [1, 1]} : vector<8x384xf32> to vector<8x128xf32>
    %559 = vector.extract_strided_slice %547 {offsets = [0, 256], sizes = [8, 128], strides = [1, 1]} : vector<8x384xf32> to vector<8x128xf32>
    %c0_280 = arith.constant 0 : index
    %c0_281 = arith.constant 0 : index
    %560 = vector.load %arg6[%c0_280, %c0_281] : memref<1x128xf32, #tpu.memory_space<vmem>>, vector<1x128xf32>
    %561 = vector.broadcast %560 : vector<1x128xf32> to vector<8x128xf32>
    %562 = arith.addf %559, %561 : vector<8x128xf32>
    %563 = arith.mulf %556, %562 : vector<8x128xf32>
    %564 = arith.addf %558, %563 : vector<8x128xf32>
    %565 = math.tanh %564 : vector<8x128xf32>
    %cst_282 = arith.constant 1.000000e+00 : f32
    %566 = vector.broadcast %cst_282 : f32 to vector<8x128xf32>
    %567 = arith.subf %566, %557 : vector<8x128xf32>
    %568 = arith.mulf %567, %565 : vector<8x128xf32>
    %569 = arith.mulf %557, %538 : vector<8x128xf32>
    %570 = arith.addf %568, %569 : vector<8x128xf32>
    %c0_283 = arith.constant 0 : index
    %c0_284 = arith.constant 0 : index
    %c0_285 = arith.constant 0 : index
    %571 = vector.load %arg14[%c0_283, %c0_284, %c0_285] : memref<2x8x128xf32, #tpu.memory_space<vmem>>, vector<1x8x128xf32>
    %572 = vector.shape_cast %571 : vector<1x8x128xf32> to vector<8x128xf32>
    %573 = vector.shape_cast %570 : vector<8x128xf32> to vector<1x8x128xf32>
    tpu.vector_store %arg14[%c0_283, %c0_284, %c0_285], %573 {strides = array<i32>} : memref<2x8x128xf32, #tpu.memory_space<vmem>>, vector<1x8x128xf32>,
    %c1_286 = arith.constant 1 : index
    %c0_287 = arith.constant 0 : index
    %c0_288 = arith.constant 0 : index
    %574 = vector.load %arg14[%c1_286, %c0_287, %c0_288] : memref<2x8x128xf32, #tpu.memory_space<vmem>>, vector<1x8x128xf32>
    %575 = vector.shape_cast %574 : vector<1x8x128xf32> to vector<8x128xf32>
    %576 = arith.truncf %570 : vector<8x128xf32> to vector<8x128xbf16>
    %c0_289 = arith.constant 0 : index
    %c0_290 = arith.constant 0 : index
    %577 = vector.load %arg7[%c0_289, %c0_290] : memref<128x384xbf16, #tpu.memory_space<vmem>>, vector<128x384xbf16>
    %cst_291 = arith.constant dense<0.000000e+00> : vector<8x384xf32>
    %578 = tpu.matmul %576, %577, %cst_291 {dimension_numbers = #tpu.dot_dimension_numbers<[1], [0], [0], [1], [0, 0, 1, 1], [], []>} : vector<8x128xbf16>, vector<128x384xbf16>, vector<8x384xf32> -> vector<8x384xf32>
    %c0_292 = arith.constant 0 : index
    %c0_293 = arith.constant 0 : index
    %579 = vector.load %arg8[%c0_292, %c0_293] : memref<1x384xf32, #tpu.memory_space<vmem>>, vector<1x384xf32>
    %580 = vector.broadcast %579 : vector<1x384xf32> to vector<8x384xf32>
    %581 = arith.addf %578, %580 : vector<8x384xf32>
    %582 = arith.truncf %575 : vector<8x128xf32> to vector<8x128xbf16>
    %c0_294 = arith.constant 0 : index
    %c0_295 = arith.constant 0 : index
    %583 = vector.load %arg9[%c0_294, %c0_295] : memref<128x384xbf16, #tpu.memory_space<vmem>>, vector<128x384xbf16>
    %cst_296 = arith.constant dense<0.000000e+00> : vector<8x384xf32>
    %584 = tpu.matmul %582, %583, %cst_296 {dimension_numbers = #tpu.dot_dimension_numbers<[1], [0], [0], [1], [0, 0, 1, 1], [], []>} : vector<8x128xbf16>, vector<128x384xbf16>, vector<8x384xf32> -> vector<8x384xf32>
    %585 = vector.extract_strided_slice %581 {offsets = [0, 0], sizes = [8, 256], strides = [1, 1]} : vector<8x384xf32> to vector<8x256xf32>
    %586 = vector.extract_strided_slice %584 {offsets = [0, 0], sizes = [8, 256], strides = [1, 1]} : vector<8x384xf32> to vector<8x256xf32>
    %587 = arith.addf %585, %586 : vector<8x256xf32>
    %588 = arith.negf %587 : vector<8x256xf32>
    %589 = math.exp %588 : vector<8x256xf32>
    %cst_297 = arith.constant 1.000000e+00 : f32
    %590 = vector.broadcast %cst_297 : f32 to vector<8x256xf32>
    %591 = arith.addf %590, %589 : vector<8x256xf32>
    %592 = arith.divf %590, %591 : vector<8x256xf32>
    %593 = vector.extract_strided_slice %592 {offsets = [0, 0], sizes = [8, 128], strides = [1, 1]} : vector<8x256xf32> to vector<8x128xf32>
    %594 = vector.extract_strided_slice %592 {offsets = [0, 128], sizes = [8, 128], strides = [1, 1]} : vector<8x256xf32> to vector<8x128xf32>
    %595 = vector.extract_strided_slice %581 {offsets = [0, 256], sizes = [8, 128], strides = [1, 1]} : vector<8x384xf32> to vector<8x128xf32>
    %596 = vector.extract_strided_slice %584 {offsets = [0, 256], sizes = [8, 128], strides = [1, 1]} : vector<8x384xf32> to vector<8x128xf32>
    %c0_298 = arith.constant 0 : index
    %c0_299 = arith.constant 0 : index
    %597 = vector.load %arg10[%c0_298, %c0_299] : memref<1x128xf32, #tpu.memory_space<vmem>>, vector<1x128xf32>
    %598 = vector.broadcast %597 : vector<1x128xf32> to vector<8x128xf32>
    %599 = arith.addf %596, %598 : vector<8x128xf32>
    %600 = arith.mulf %593, %599 : vector<8x128xf32>
    %601 = arith.addf %595, %600 : vector<8x128xf32>
    %602 = math.tanh %601 : vector<8x128xf32>
    %cst_300 = arith.constant 1.000000e+00 : f32
    %603 = vector.broadcast %cst_300 : f32 to vector<8x128xf32>
    %604 = arith.subf %603, %594 : vector<8x128xf32>
    %605 = arith.mulf %604, %602 : vector<8x128xf32>
    %606 = arith.mulf %594, %575 : vector<8x128xf32>
    %607 = arith.addf %605, %606 : vector<8x128xf32>
    %c1_301 = arith.constant 1 : index
    %c0_302 = arith.constant 0 : index
    %c0_303 = arith.constant 0 : index
    %608 = vector.load %arg14[%c1_301, %c0_302, %c0_303] : memref<2x8x128xf32, #tpu.memory_space<vmem>>, vector<1x8x128xf32>
    %609 = vector.shape_cast %608 : vector<1x8x128xf32> to vector<8x128xf32>
    %610 = vector.shape_cast %607 : vector<8x128xf32> to vector<1x8x128xf32>
    tpu.vector_store %arg14[%c1_301, %c0_302, %c0_303], %610 {strides = array<i32>} : memref<2x8x128xf32, #tpu.memory_space<vmem>>, vector<1x8x128xf32>,
    %c0_i32_304 = arith.constant 0 : i32
    %611 = arith.cmpi eq, %arg1, %c0_i32_304 : i32
    %612 = arith.extui %611 : i1 to i32
    %c0_i32_305 = arith.constant 0 : i32
    %613 = arith.cmpi ne, %612, %c0_i32_305 : i32
    scf.if %613 {
      %c1_306 = arith.constant 1 : index
      %c0_307 = arith.constant 0 : index
      %c0_308 = arith.constant 0 : index
      %614 = vector.load %arg14[%c1_306, %c0_307, %c0_308] : memref<2x8x128xf32, #tpu.memory_space<vmem>>, vector<1x8x128xf32>
      %615 = vector.shape_cast %614 : vector<1x8x128xf32> to vector<8x128xf32>
      %616 = arith.truncf %615 : vector<8x128xf32> to vector<8x128xbf16>
      %c0_309 = arith.constant 0 : index
      %c0_310 = arith.constant 0 : index
      %617 = vector.load %arg11[%c0_309, %c0_310] : memref<128x1xbf16, #tpu.memory_space<vmem>>, vector<128x1xbf16>
      %cst_311 = arith.constant dense<0.000000e+00> : vector<8x1xf32>
      %618 = tpu.matmul %616, %617, %cst_311 {dimension_numbers = #tpu.dot_dimension_numbers<[1], [0], [0], [1], [0, 0, 1, 1], [], []>} : vector<8x128xbf16>, vector<128x1xbf16>, vector<8x1xf32> -> vector<8x1xf32>
      %c0_312 = arith.constant 0 : index
      %c0_313 = arith.constant 0 : index
      %619 = vector.load %arg12[%c0_312, %c0_313] : memref<1x1xf32, #tpu.memory_space<vmem>>, vector<1x1xf32>
      %620 = vector.broadcast %619 : vector<1x1xf32> to vector<8x1xf32>
      %621 = arith.addf %618, %620 : vector<8x1xf32>
      %622 = arith.negf %621 : vector<8x1xf32>
      %623 = math.exp %622 : vector<8x1xf32>
      %cst_314 = arith.constant 1.000000e+00 : f32
      %624 = vector.broadcast %cst_314 : f32 to vector<8x1xf32>
      %625 = arith.addf %624, %623 : vector<8x1xf32>
      %626 = arith.divf %624, %625 : vector<8x1xf32>
      %c0_315 = arith.constant 0 : index
      %c0_316 = arith.constant 0 : index
      %627 = vector.load %arg13[%c0_315, %c0_316] : memref<8x1xf32, #tpu.memory_space<vmem>>, vector<8x1xf32>
      tpu.vector_store %arg13[%c0_315, %c0_316], %626 {strides = array<i32>} : memref<8x1xf32, #tpu.memory_space<vmem>>, vector<8x1xf32>,
    } else {
    }
    return
  }
  func.func @transform_0(%arg0: i32, %arg1: i32) -> (i32, i32, i32) {
    %c0_i32 = arith.constant 0 : i32
    %c0_i32_0 = arith.constant 0 : i32
    return %arg1, %arg0, %c0_i32 : i32, i32, i32
  }
  func.func @transform_1(%arg0: i32, %arg1: i32) -> (i32, i32) {
    %c0_i32 = arith.constant 0 : i32
    %c0_i32_0 = arith.constant 0 : i32
    %c0_i32_1 = arith.constant 0 : i32
    return %c0_i32, %c0_i32_0 : i32, i32
  }
  func.func @transform_2(%arg0: i32, %arg1: i32) -> (i32, i32) {
    %c0_i32 = arith.constant 0 : i32
    %c0_i32_0 = arith.constant 0 : i32
    %c0_i32_1 = arith.constant 0 : i32
    return %c0_i32, %c0_i32_0 : i32, i32
  }
  func.func @transform_3(%arg0: i32, %arg1: i32) -> (i32, i32) {
    %c0_i32 = arith.constant 0 : i32
    %c0_i32_0 = arith.constant 0 : i32
    %c0_i32_1 = arith.constant 0 : i32
    return %c0_i32, %c0_i32_0 : i32, i32
  }
  func.func @transform_4(%arg0: i32, %arg1: i32) -> (i32, i32) {
    %c0_i32 = arith.constant 0 : i32
    %c0_i32_0 = arith.constant 0 : i32
    %c0_i32_1 = arith.constant 0 : i32
    return %c0_i32, %c0_i32_0 : i32, i32
  }
  func.func @transform_5(%arg0: i32, %arg1: i32) -> (i32, i32) {
    %c0_i32 = arith.constant 0 : i32
    %c0_i32_0 = arith.constant 0 : i32
    %c0_i32_1 = arith.constant 0 : i32
    return %c0_i32, %c0_i32_0 : i32, i32
  }
  func.func @transform_6(%arg0: i32, %arg1: i32) -> (i32, i32) {
    %c0_i32 = arith.constant 0 : i32
    %c0_i32_0 = arith.constant 0 : i32
    %c0_i32_1 = arith.constant 0 : i32
    return %c0_i32, %c0_i32_0 : i32, i32
  }
  func.func @transform_7(%arg0: i32, %arg1: i32) -> (i32, i32) {
    %c0_i32 = arith.constant 0 : i32
    %c0_i32_0 = arith.constant 0 : i32
    %c0_i32_1 = arith.constant 0 : i32
    return %c0_i32, %c0_i32_0 : i32, i32
  }
  func.func @transform_8(%arg0: i32, %arg1: i32) -> (i32, i32) {
    %c0_i32 = arith.constant 0 : i32
    %c0_i32_0 = arith.constant 0 : i32
    %c0_i32_1 = arith.constant 0 : i32
    return %c0_i32, %c0_i32_0 : i32, i32
  }
  func.func @transform_9(%arg0: i32, %arg1: i32) -> (i32, i32) {
    %c0_i32 = arith.constant 0 : i32
    %c0_i32_0 = arith.constant 0 : i32
    %c0_i32_1 = arith.constant 0 : i32
    return %c0_i32, %c0_i32_0 : i32, i32
  }
  func.func @transform_10(%arg0: i32, %arg1: i32) -> (i32, i32) {
    %c0_i32 = arith.constant 0 : i32
    %c0_i32_0 = arith.constant 0 : i32
    %c0_i32_1 = arith.constant 0 : i32
    return %c0_i32, %c0_i32_0 : i32, i32
  }
  func.func @transform_11(%arg0: i32, %arg1: i32) -> (i32, i32) {
    %c0_i32 = arith.constant 0 : i32
    %c0_i32_0 = arith.constant 0 : i32
    return %arg0, %c0_i32 : i32, i32
  }
}

</mosaic_0001>

<llo_original>
// kernel: gru_forward.1
$region0: #{gru_forward.1}
  #allocation0 [shape = 'u32[]', space=smem, size = 0x4, offset = 0x4, fixed_abs, tag = 'smem constant byte address 0x4 - core index']
  #allocation1 [shape = 'u32[72,128]{1,0:T(1,128)}', space=vmem, size = 0x9000, scoped, tag = 'internal scratch']
  #allocation2 [shape = 'f32[2,8,128]{2,1,0:T(8,128)}', space=vmem, size = 0x2000, scoped, tag = 'scratch operand']
  #allocation3 [shape = 'f32[1,1]{1,0:T(1,128)S(1)}', space=vmem, size = 0x200, scoped, tag = 'scoped memory for gru_forward.1']
  %s0 = inlined_call_operand.vmem [shape: f32[8,8,128], index: 0, kind: input, shape index: {}]
  %s1 = inlined_call_operand.vmem [shape: bf16[128,384], index: 1, kind: input, shape index: {}]
  %s2 = inlined_call_operand.vmem [shape: f32[1,384], index: 2, kind: input, shape index: {}]
  %s3 = inlined_call_operand.vmem [shape: bf16[128,384], index: 3, kind: input, shape index: {}]
  %s4 = inlined_call_operand.vmem [shape: f32[1,128], index: 4, kind: input, shape index: {}]
  %s5 = inlined_call_operand.vmem [shape: bf16[128,384], index: 5, kind: input, shape index: {}]
  %s6 = inlined_call_operand.vmem [shape: f32[1,384], index: 6, kind: input, shape index: {}]
  %s7 = inlined_call_operand.vmem [shape: bf16[128,384], index: 7, kind: input, shape index: {}]
  %s8 = inlined_call_operand.vmem [shape: f32[1,128], index: 8, kind: input, shape index: {}]
  %s9 = inlined_call_operand.vmem [shape: bf16[128,1], index: 9, kind: input, shape index: {}]
  %s10 = inlined_call_operand.<no memory space> [shape: f32[1,1], index: 10, kind: input, shape index: {}]
  %s11 = inlined_call_operand.vmem [shape: f32[8,1], index: 11, kind: output, shape index: {}]
  %s12 = sld [smem:[#allocation0]]
  $region62: #{gru_forward.1} parent=0
    _
  %s14 = ssub.s32 1, %s12
  %s15 = scalar_select 0, %s14, %s12
  %v16 = vstv %s10
  %17 = vst [vmem:[#allocation3] sm:$0x1] %v16
  // Predicated region
  $region2: #{gru_forward.1} parent=0 // pred_check
    _
  $region3: #{gru_forward.1} parent=0 // pred_check_branch
    %19 = sbr.rel (0) target = $region5
  $region4: #{gru_forward.1} parent=0 // pred_region
    _
  $region5: #{gru_forward.1} parent=0 // pred_fallthru
    _
  // Predicated region
  $region6: #{gru_forward.1} parent=0 // pred_check
    _
  $region7: #{gru_forward.1} parent=0 // pred_check_branch
    %21 = sbr.rel (0) target = $region9
  $region8: #{gru_forward.1} parent=0 // pred_region
    _
  $region9: #{gru_forward.1} parent=0 // pred_fallthru
    _
  // Predicated region
  $region10: #{gru_forward.1} parent=0 // pred_check
    _
  $region11: #{gru_forward.1} parent=0 // pred_check_branch
    %23 = sbr.rel (0) target = $region13
  $region12: #{gru_forward.1} parent=0 // pred_region
    _
  $region13: #{gru_forward.1} parent=0 // pred_fallthru
    _
  // Predicated region
  $region14: #{gru_forward.1} parent=0 // pred_check
    _
  $region15: #{gru_forward.1} parent=0 // pred_check_branch
    %25 = sbr.rel (0) target = $region17
  $region16: #{gru_forward.1} parent=0 // pred_region
    _
  $region17: #{gru_forward.1} parent=0 // pred_fallthru
    _
  // Predicated region
  $region18: #{gru_forward.1} parent=0 // pred_check
    _
  $region19: #{gru_forward.1} parent=0 // pred_check_branch
    %27 = sbr.rel (0) target = $region21
  $region20: #{gru_forward.1} parent=0 // pred_region
    _
  $region21: #{gru_forward.1} parent=0 // pred_fallthru
    _
  // Predicated region
  $region22: #{gru_forward.1} parent=0 // pred_check
    _
  $region23: #{gru_forward.1} parent=0 // pred_check_branch
    %29 = sbr.rel (0) target = $region25
  $region24: #{gru_forward.1} parent=0 // pred_region
    _
  $region25: #{gru_forward.1} parent=0 // pred_fallthru
    _
  // Predicated region
  $region26: #{gru_forward.1} parent=0 // pred_check
    _
  $region27: #{gru_forward.1} parent=0 // pred_check_branch
    %31 = sbr.rel (0) target = $region29
  $region28: #{gru_forward.1} parent=0 // pred_region
    _
  $region29: #{gru_forward.1} parent=0 // pred_fallthru
    _
  // Predicated region
  $region30: #{gru_forward.1} parent=0 // pred_check
    _
  $region31: #{gru_forward.1} parent=0 // pred_check_branch
    %33 = sbr.rel (0) target = $region33
  $region32: #{gru_forward.1} parent=0 // pred_region
    _
  $region33: #{gru_forward.1} parent=0 // pred_fallthru
    _
  // Predicated region
  $region34: #{gru_forward.1} parent=0 // pred_check
    _
  $region35: #{gru_forward.1} parent=0 // pred_check_branch
    %35 = sbr.rel (0) target = $region37
  $region36: #{gru_forward.1} parent=0 // pred_region
    _
  $region37: #{gru_forward.1} parent=0 // pred_fallthru
    _
  // Predicated region
  $region38: #{gru_forward.1} parent=0 // pred_check
    _
  $region39: #{gru_forward.1} parent=0 // pred_check_branch
    %37 = sbr.rel (0) target = $region41
  $region40: #{gru_forward.1} parent=0 // pred_region
    _
  $region41: #{gru_forward.1} parent=0 // pred_fallthru
    _
  // Predicated region
  $region42: #{gru_forward.1} parent=0 // pred_check
    _
  $region43: #{gru_forward.1} parent=0 // pred_check_branch
    %39 = sbr.rel (0) target = $region45
  $region44: #{gru_forward.1} parent=0 // pred_region
    _
  $region45: #{gru_forward.1} parent=0 // pred_fallthru
    _
  %p40 = scmp.eq.s32.totalorder 0, 0
  // Predicated region
  $region46: #{gru_forward.1} parent=0 // pred_check
    %p41 = pneg %p40
  $region47: #{gru_forward.1} parent=0 // pred_check_branch
    %43 = sbr.rel (%p41) target = $region49
  $region48: #{gru_forward.1} parent=0 // pred_region
    %44 = vst [vmem:[#allocation2] sm:$0xff] 0.0
    %45 = vst [vmem:[#allocation2 + $0x8] sm:$0xff] 0.0
  $region49: #{gru_forward.1} parent=0 // pred_fallthru
    _
  %v46 = vld [vmem:[%s0] sm:$0xff]
  %v47 = vld [vmem:[#allocation2] sm:$0xff]
  %v48 = vpack.c.bf16 %v46, %v46
  %v49 = vld [vmem:[%s1] sm:$0xff]
  %v50 = vld [vmem:[%s1 + $0x8] sm:$0xf]
  %v51 = vld [vmem:[%s1 + $0xc] sm:$0xff]
  %v52 = vld [vmem:[%s1 + $0x14] sm:$0xf]
  %v53 = vld [vmem:[%s1 + $0x18] sm:$0xff]
  %v54 = vld [vmem:[%s1 + $0x20] sm:$0xf]
  %v55 = vld [vmem:[%s1 + $0x24] sm:$0xff]
  %v56 = vld [vmem:[%s1 + $0x2c] sm:$0xf]
  %v57 = vld [vmem:[%s1 + $0x30] sm:$0xff]
  %v58 = vld [vmem:[%s1 + $0x38] sm:$0xf]
  %v59 = vld [vmem:[%s1 + $0x3c] sm:$0xff]
  %v60 = vld [vmem:[%s1 + $0x44] sm:$0xf]
  %v61 = vld [vmem:[%s1 + $0x48] sm:$0xff]
  %v62 = vld [vmem:[%s1 + $0x50] sm:$0xf]
  %v63 = vld [vmem:[%s1 + $0x54] sm:$0xff]
  %v64 = vld [vmem:[%s1 + $0x5c] sm:$0xf]
  %v65 = vld [vmem:[%s1 + $0x60] sm:$0xff]
  %v66 = vld [vmem:[%s1 + $0x68] sm:$0xf]
  %v67 = vld [vmem:[%s1 + $0x6c] sm:$0xff]
  %v68 = vld [vmem:[%s1 + $0x74] sm:$0xf]
  %v69 = vld [vmem:[%s1 + $0x78] sm:$0xff]
  %v70 = vld [vmem:[%s1 + $0x80] sm:$0xf]
  %v71 = vld [vmem:[%s1 + $0x84] sm:$0xff]
  %v72 = vld [vmem:[%s1 + $0x8c] sm:$0xf]
  %v73 = vld [vmem:[%s1 + $0x90] sm:$0xff]
  %v74 = vld [vmem:[%s1 + $0x98] sm:$0xf]
  %v75 = vld [vmem:[%s1 + $0x9c] sm:$0xff]
  %v76 = vld [vmem:[%s1 + $0xa4] sm:$0xf]
  %v77 = vld [vmem:[%s1 + $0xa8] sm:$0xff]
  %v78 = vld [vmem:[%s1 + $0xb0] sm:$0xf]
  %v79 = vld [vmem:[%s1 + $0xb4] sm:$0xff]
  %v80 = vld [vmem:[%s1 + $0xbc] sm:$0xf]
  %v81 = vld [vmem:[%s2] sm:$0x7]
  %v83 = vperm.slane %v81, 0
  %v84 = vperm.slane %v81, 1
  %v85 = vperm.slane %v81, 2
  %v121 = vunpack.c.l.b16 %v49
  %v122 = vunpack.c.h.b16 %v49
  %v123 = vunpack.c.l.b16 %v50
  %v124 = vunpack.c.l.b16 %v51
  %v125 = vunpack.c.h.b16 %v51
  %v126 = vunpack.c.l.b16 %v52
  %v127 = vunpack.c.l.b16 %v53
  %v128 = vunpack.c.h.b16 %v53
  %v129 = vunpack.c.l.b16 %v54
  %v130 = vunpack.c.l.b16 %v55
  %v131 = vunpack.c.h.b16 %v55
  %v132 = vunpack.c.l.b16 %v56
  %v133 = vunpack.c.l.b16 %v57
  %v134 = vunpack.c.h.b16 %v57
  %v135 = vunpack.c.l.b16 %v58
  %v136 = vunpack.c.l.b16 %v59
  %v137 = vunpack.c.h.b16 %v59
  %v138 = vunpack.c.l.b16 %v60
  %v139 = vunpack.c.l.b16 %v61
  %v140 = vunpack.c.h.b16 %v61
  %v141 = vunpack.c.l.b16 %v62
  %v142 = vunpack.c.l.b16 %v63
  %v143 = vunpack.c.h.b16 %v63
  %v144 = vunpack.c.l.b16 %v64
  %v145 = vunpack.c.l.b16 %v65
  %v146 = vunpack.c.h.b16 %v65
  %v147 = vunpack.c.l.b16 %v66
  %v148 = vunpack.c.l.b16 %v67
  %v149 = vunpack.c.h.b16 %v67
  %v150 = vunpack.c.l.b16 %v68
  %v151 = vunpack.c.l.b16 %v69
  %v152 = vunpack.c.h.b16 %v69
  %v153 = vunpack.c.l.b16 %v70
  %v154 = vunpack.c.l.b16 %v71
  %v155 = vunpack.c.h.b16 %v71
  %v156 = vunpack.c.l.b16 %v72
  %v157 = vunpack.c.l.b16 %v73
  %v158 = vunpack.c.h.b16 %v73
  %v159 = vunpack.c.l.b16 %v74
  %v160 = vunpack.c.l.b16 %v75
  %v161 = vunpack.c.h.b16 %v75
  %v162 = vunpack.c.l.b16 %v76
  %v163 = vunpack.c.l.b16 %v77
  %v164 = vunpack.c.h.b16 %v77
  %v165 = vunpack.c.l.b16 %v78
  %v166 = vunpack.c.l.b16 %v79
  %v167 = vunpack.c.h.b16 %v79
  %v168 = vunpack.c.l.b16 %v80
  %v169 = vpack.c.b16 %v124, %v121
  %v170 = vpack.c.b16 %v125, %v122
  %v171 = vpack.c.b16 %v126, %v123
  %v172 = vpack.c.b16 %v130, %v127
  %v173 = vpack.c.b16 %v131, %v128
  %v174 = vpack.c.b16 %v132, %v129
  %v175 = vpack.c.b16 %v136, %v133
  %v176 = vpack.c.b16 %v137, %v134
  %v177 = vpack.c.b16 %v138, %v135
  %v178 = vpack.c.b16 %v142, %v139
  %v179 = vpack.c.b16 %v143, %v140
  %v180 = vpack.c.b16 %v144, %v141
  %v181 = vpack.c.b16 %v148, %v145
  %v182 = vpack.c.b16 %v149, %v146
  %v183 = vpack.c.b16 %v150, %v147
  %v184 = vpack.c.b16 %v154, %v151
  %v185 = vpack.c.b16 %v155, %v152
  %v186 = vpack.c.b16 %v156, %v153
  %v187 = vpack.c.b16 %v160, %v157
  %v188 = vpack.c.b16 %v161, %v158
  %v189 = vpack.c.b16 %v162, %v159
  %v190 = vpack.c.b16 %v166, %v163
  %v191 = vpack.c.b16 %v167, %v164
  %v192 = vpack.c.b16 %v168, %v165
  %217 = vmatpush.bf16.msra.mxu0 %v190
  %218 = vmatpush.bf16.msra.mxu0 %v187
  %219 = vmatpush.bf16.msra.mxu0 %v184
  %220 = vmatpush.bf16.msra.mxu0 %v181
  %221 = vmatpush.bf16.msra.mxu0 %v178
  %222 = vmatpush.bf16.msra.mxu0 %v175
  %223 = vmatpush.bf16.msra.mxu0 %v172
  %224 = vmatpush.bf16.msra.mxu0 %v169
  %225 = vmatmul.bf16.gmra.mxu0 %v48
  %v226 = vpop.f32.mrf.mxu0
  %v227 = vadd.f32 %v83, %v226
  %v228 = vpop.f32.mrf.mxu0
  %229 = vdwg.mxu0
  %230 = vmatpush.bf16.msra.mxu0 %v191
  %231 = vmatpush.bf16.msra.mxu0 %v188
  %232 = vmatpush.bf16.msra.mxu0 %v185
  %233 = vmatpush.bf16.msra.mxu0 %v182
  %234 = vmatpush.bf16.msra.mxu0 %v179
  %235 = vmatpush.bf16.msra.mxu0 %v176
  %236 = vmatpush.bf16.msra.mxu0 %v173
  %237 = vmatpush.bf16.msra.mxu0 %v170
  %238 = vmatmul.bf16.gmra.mxu0 %v48
  %v239 = vpop.f32.mrf.mxu0
  %v240 = vadd.f32 %v84, %v239
  %v241 = vpop.f32.mrf.mxu0
  %242 = vdwg.mxu0
  %243 = vmatpush.bf16.msra.mxu0 %v192
  %244 = vmatpush.bf16.msra.mxu0 %v189
  %245 = vmatpush.bf16.msra.mxu0 %v186
  %246 = vmatpush.bf16.msra.mxu0 %v183
  %247 = vmatpush.bf16.msra.mxu0 %v180
  %248 = vmatpush.bf16.msra.mxu0 %v177
  %249 = vmatpush.bf16.msra.mxu0 %v174
  %250 = vmatpush.bf16.msra.mxu0 %v171
  %251 = vmatmul.bf16.gmra.mxu0 %v48
  %v252 = vpop.f32.mrf.mxu0
  %v253 = vadd.f32 %v85, %v252
  %v254 = vpop.f32.mrf.mxu0
  %255 = vdwg.mxu0
  %v256 = vpack.c.bf16 %v47, %v47
  %v257 = vld [vmem:[%s3] sm:$0xff]
  %v258 = vld [vmem:[%s3 + $0x8] sm:$0xf]
  %v259 = vld [vmem:[%s3 + $0xc] sm:$0xff]
  %v260 = vld [vmem:[%s3 + $0x14] sm:$0xf]
  %v261 = vld [vmem:[%s3 + $0x18] sm:$0xff]
  %v262 = vld [vmem:[%s3 + $0x20] sm:$0xf]
  %v263 = vld [vmem:[%s3 + $0x24] sm:$0xff]
  %v264 = vld [vmem:[%s3 + $0x2c] sm:$0xf]
  %v265 = vld [vmem:[%s3 + $0x30] sm:$0xff]
  %v266 = vld [vmem:[%s3 + $0x38] sm:$0xf]
  %v267 = vld [vmem:[%s3 + $0x3c] sm:$0xff]
  %v268 = vld [vmem:[%s3 + $0x44] sm:$0xf]
  %v269 = vld [vmem:[%s3 + $0x48] sm:$0xff]
  %v270 = vld [vmem:[%s3 + $0x50] sm:$0xf]
  %v271 = vld [vmem:[%s3 + $0x54] sm:$0xff]
  %v272 = vld [vmem:[%s3 + $0x5c] sm:$0xf]
  %v273 = vld [vmem:[%s3 + $0x60] sm:$0xff]
  %v274 = vld [vmem:[%s3 + $0x68] sm:$0xf]
  %v275 = vld [vmem:[%s3 + $0x6c] sm:$0xff]
  %v276 = vld [vmem:[%s3 + $0x74] sm:$0xf]
  %v277 = vld [vmem:[%s3 + $0x78] sm:$0xff]
  %v278 = vld [vmem:[%s3 + $0x80] sm:$0xf]
  %v279 = vld [vmem:[%s3 + $0x84] sm:$0xff]
  %v280 = vld [vmem:[%s3 + $0x8c] sm:$0xf]
  %v281 = vld [vmem:[%s3 + $0x90] sm:$0xff]
  %v282 = vld [vmem:[%s3 + $0x98] sm:$0xf]
  %v283 = vld [vmem:[%s3 + $0x9c] sm:$0xff]
  %v284 = vld [vmem:[%s3 + $0xa4] sm:$0xf]
  %v285 = vld [vmem:[%s3 + $0xa8] sm:$0xff]
  %v286 = vld [vmem:[%s3 + $0xb0] sm:$0xf]
  %v287 = vld [vmem:[%s3 + $0xb4] sm:$0xff]
  %v288 = vld [vmem:[%s3 + $0xbc] sm:$0xf]
  %v321 = vunpack.c.l.b16 %v257
  %v322 = vunpack.c.h.b16 %v257
  %v323 = vunpack.c.l.b16 %v258
  %v324 = vunpack.c.l.b16 %v259
  %v325 = vunpack.c.h.b16 %v259
  %v326 = vunpack.c.l.b16 %v260
  %v327 = vunpack.c.l.b16 %v261
  %v328 = vunpack.c.h.b16 %v261
  %v329 = vunpack.c.l.b16 %v262
  %v330 = vunpack.c.l.b16 %v263
  %v331 = vunpack.c.h.b16 %v263
  %v332 = vunpack.c.l.b16 %v264
  %v333 = vunpack.c.l.b16 %v265
  %v334 = vunpack.c.h.b16 %v265
  %v335 = vunpack.c.l.b16 %v266
  %v336 = vunpack.c.l.b16 %v267
  %v337 = vunpack.c.h.b16 %v267
  %v338 = vunpack.c.l.b16 %v268
  %v339 = vunpack.c.l.b16 %v269
  %v340 = vunpack.c.h.b16 %v269
  %v341 = vunpack.c.l.b16 %v270
  %v342 = vunpack.c.l.b16 %v271
  %v343 = vunpack.c.h.b16 %v271
  %v344 = vunpack.c.l.b16 %v272
  %v345 = vunpack.c.l.b16 %v273
  %v346 = vunpack.c.h.b16 %v273
  %v347 = vunpack.c.l.b16 %v274
  %v348 = vunpack.c.l.b16 %v275
  %v349 = vunpack.c.h.b16 %v275
  %v350 = vunpack.c.l.b16 %v276
  %v351 = vunpack.c.l.b16 %v277
  %v352 = vunpack.c.h.b16 %v277
  %v353 = vunpack.c.l.b16 %v278
  %v354 = vunpack.c.l.b16 %v279
  %v355 = vunpack.c.h.b16 %v279
  %v356 = vunpack.c.l.b16 %v280
  %v357 = vunpack.c.l.b16 %v281
  %v358 = vunpack.c.h.b16 %v281
  %v359 = vunpack.c.l.b16 %v282
  %v360 = vunpack.c.l.b16 %v283
  %v361 = vunpack.c.h.b16 %v283
  %v362 = vunpack.c.l.b16 %v284
  %v363 = vunpack.c.l.b16 %v285
  %v364 = vunpack.c.h.b16 %v285
  %v365 = vunpack.c.l.b16 %v286
  %v366 = vunpack.c.l.b16 %v287
  %v367 = vunpack.c.h.b16 %v287
  %v368 = vunpack.c.l.b16 %v288
  %v369 = vpack.c.b16 %v324, %v321
  %v370 = vpack.c.b16 %v325, %v322
  %v371 = vpack.c.b16 %v326, %v323
  %v372 = vpack.c.b16 %v330, %v327
  %v373 = vpack.c.b16 %v331, %v328
  %v374 = vpack.c.b16 %v332, %v329
  %v375 = vpack.c.b16 %v336, %v333
  %v376 = vpack.c.b16 %v337, %v334
  %v377 = vpack.c.b16 %v338, %v335
  %v378 = vpack.c.b16 %v342, %v339
  %v379 = vpack.c.b16 %v343, %v340
  %v380 = vpack.c.b16 %v344, %v341
  %v381 = vpack.c.b16 %v348, %v345
  %v382 = vpack.c.b16 %v349, %v346
  %v383 = vpack.c.b16 %v350, %v347
  %v384 = vpack.c.b16 %v354, %v351
  %v385 = vpack.c.b16 %v355, %v352
  %v386 = vpack.c.b16 %v356, %v353
  %v387 = vpack.c.b16 %v360, %v357
  %v388 = vpack.c.b16 %v361, %v358
  %v389 = vpack.c.b16 %v362, %v359
  %v390 = vpack.c.b16 %v366, %v363
  %v391 = vpack.c.b16 %v367, %v364
  %v392 = vpack.c.b16 %v368, %v365
  %417 = vmatpush.bf16.msra.mxu0 %v390
  %418 = vmatpush.bf16.msra.mxu0 %v387
  %419 = vmatpush.bf16.msra.mxu0 %v384
  %420 = vmatpush.bf16.msra.mxu0 %v381
  %421 = vmatpush.bf16.msra.mxu0 %v378
  %422 = vmatpush.bf16.msra.mxu0 %v375
  %423 = vmatpush.bf16.msra.mxu0 %v372
  %424 = vmatpush.bf16.msra.mxu0 %v369
  %425 = vmatmul.bf16.gmra.mxu0 %v256
  %v426 = vpop.f32.mrf.mxu0
  %v427 = vadd.f32 0.0, %v426
  %v428 = vpop.f32.mrf.mxu0
  %429 = vdwg.mxu0
  %430 = vmatpush.bf16.msra.mxu0 %v391
  %431 = vmatpush.bf16.msra.mxu0 %v388
  %432 = vmatpush.bf16.msra.mxu0 %v385
  %433 = vmatpush.bf16.msra.mxu0 %v382
  %434 = vmatpush.bf16.msra.mxu0 %v379
  %435 = vmatpush.bf16.msra.mxu0 %v376
  %436 = vmatpush.bf16.msra.mxu0 %v373
  %437 = vmatpush.bf16.msra.mxu0 %v370
  %438 = vmatmul.bf16.gmra.mxu0 %v256
  %v439 = vpop.f32.mrf.mxu0
  %v440 = vadd.f32 0.0, %v439
  %v441 = vpop.f32.mrf.mxu0
  %442 = vdwg.mxu0
  %443 = vmatpush.bf16.msra.mxu0 %v392
  %444 = vmatpush.bf16.msra.mxu0 %v389
  %445 = vmatpush.bf16.msra.mxu0 %v386
  %446 = vmatpush.bf16.msra.mxu0 %v383
  %447 = vmatpush.bf16.msra.mxu0 %v380
  %448 = vmatpush.bf16.msra.mxu0 %v377
  %449 = vmatpush.bf16.msra.mxu0 %v374
  %450 = vmatpush.bf16.msra.mxu0 %v371
  %451 = vmatmul.bf16.gmra.mxu0 %v256
  %v452 = vpop.f32.mrf.mxu0
  %v453 = vadd.f32 0.0, %v452
  %v454 = vpop.f32.mrf.mxu0
  %455 = vdwg.mxu0
  %v456 = vadd.f32 %v227, %v427
  %v457 = vadd.f32 %v240, %v440
  %v458 = vxor.u32 %v456, 2147483648
  %v459 = vxor.u32 %v457, 2147483648
  %v460 = vmul.f32 %v458, 1.442695
  %v461 = vpow.pop %v460
  %v462 = vmul.f32 %v459, 1.442695
  %v463 = vpow.pop %v462
  %v464 = vadd.f32 %v461, 1.0
  %v465 = vadd.f32 %v463, 1.0
  %v466 = vrcp.pop %v464
  %v467 = vmul.f32 %v464, %v466
  %v468 = vsub.f32 1.0, %v467
  %v469 = vmul.f32 %v466, %v468
  %v470 = vadd.f32 %v466, %v469
  %vm471 = vweird.f32 %v464
  %vm472 = vweird.f32 %v466
  %vm473 = vmor %vm471, %vm472
  %v474 = vsel %vm473, %v466, %v470
  %v475 = vand.u32 2147483647, %v464
  %vm476 = vcmp.eq.f32.partialorder %v475, 8.507059e+37
  %v477 = vand.u32 %v464, 2147483648
  %v478 = vor.u32 1.1754944e-38, %v477
  %v479 = vsel %vm476, %v478, %v474
  %v480 = vmul.f32 1.0, %v479
  %v481 = vrcp.pop %v465
  %v482 = vmul.f32 %v465, %v481
  %v483 = vsub.f32 1.0, %v482
  %v484 = vmul.f32 %v481, %v483
  %v485 = vadd.f32 %v481, %v484
  %vm486 = vweird.f32 %v465
  %vm487 = vweird.f32 %v481
  %vm488 = vmor %vm486, %vm487
  %v489 = vsel %vm488, %v481, %v485
  %v490 = vand.u32 2147483647, %v465
  %vm491 = vcmp.eq.f32.partialorder %v490, 8.507059e+37
  %v492 = vand.u32 %v465, 2147483648
  %v493 = vor.u32 1.1754944e-38, %v492
  %v494 = vsel %vm491, %v493, %v489
  %v495 = vmul.f32 1.0, %v494
  %v496 = vld [vmem:[%s4] sm:$0x1]
  %v498 = vperm.slane %v496, 0
  %v500 = vadd.f32 %v453, %v498
  %v501 = vmul.f32 %v480, %v500
  %v502 = vadd.f32 %v253, %v501
  %v503 = vtanh.pop %v502
  %v504 = vsub.f32 1.0, %v495
  %v505 = vmul.f32 %v504, %v503
  %v506 = vmul.f32 %v495, %v47
  %v507 = vadd.f32 %v505, %v506
  %508 = vst [vmem:[#allocation2] sm:$0xff] %v507
  %s509 = scalar_lea.vmem [#allocation2], 8
  %v510 = vld [vmem:[%s509] sm:$0xff]
  %v511 = vpack.c.bf16 %v507, %v507
  %v512 = vld [vmem:[%s5] sm:$0xff]
  %v513 = vld [vmem:[%s5 + $0x8] sm:$0xf]
  %v514 = vld [vmem:[%s5 + $0xc] sm:$0xff]
  %v515 = vld [vmem:[%s5 + $0x14] sm:$0xf]
  %v516 = vld [vmem:[%s5 + $0x18] sm:$0xff]
  %v517 = vld [vmem:[%s5 + $0x20] sm:$0xf]
  %v518 = vld [vmem:[%s5 + $0x24] sm:$0xff]
  %v519 = vld [vmem:[%s5 + $0x2c] sm:$0xf]
  %v520 = vld [vmem:[%s5 + $0x30] sm:$0xff]
  %v521 = vld [vmem:[%s5 + $0x38] sm:$0xf]
  %v522 = vld [vmem:[%s5 + $0x3c] sm:$0xff]
  %v523 = vld [vmem:[%s5 + $0x44] sm:$0xf]
  %v524 = vld [vmem:[%s5 + $0x48] sm:$0xff]
  %v525 = vld [vmem:[%s5 + $0x50] sm:$0xf]
  %v526 = vld [vmem:[%s5 + $0x54] sm:$0xff]
  %v527 = vld [vmem:[%s5 + $0x5c] sm:$0xf]
  %v528 = vld [vmem:[%s5 + $0x60] sm:$0xff]
  %v529 = vld [vmem:[%s5 + $0x68] sm:$0xf]
  %v530 = vld [vmem:[%s5 + $0x6c] sm:$0xff]
  %v531 = vld [vmem:[%s5 + $0x74] sm:$0xf]
  %v532 = vld [vmem:[%s5 + $0x78] sm:$0xff]
  %v533 = vld [vmem:[%s5 + $0x80] sm:$0xf]
  %v534 = vld [vmem:[%s5 + $0x84] sm:$0xff]
  %v535 = vld [vmem:[%s5 + $0x8c] sm:$0xf]
  %v536 = vld [vmem:[%s5 + $0x90] sm:$0xff]
  %v537 = vld [vmem:[%s5 + $0x98] sm:$0xf]
  %v538 = vld [vmem:[%s5 + $0x9c] sm:$0xff]
  %v539 = vld [vmem:[%s5 + $0xa4] sm:$0xf]
  %v540 = vld [vmem:[%s5 + $0xa8] sm:$0xff]
  %v541 = vld [vmem:[%s5 + $0xb0] sm:$0xf]
  %v542 = vld [vmem:[%s5 + $0xb4] sm:$0xff]
  %v543 = vld [vmem:[%s5 + $0xbc] sm:$0xf]
  %v544 = vld [vmem:[%s6] sm:$0x7]
  %v546 = vperm.slane %v544, 0
  %v547 = vperm.slane %v544, 1
  %v548 = vperm.slane %v544, 2
  %v584 = vunpack.c.l.b16 %v512
  %v585 = vunpack.c.h.b16 %v512
  %v586 = vunpack.c.l.b16 %v513
  %v587 = vunpack.c.l.b16 %v514
  %v588 = vunpack.c.h.b16 %v514
  %v589 = vunpack.c.l.b16 %v515
  %v590 = vunpack.c.l.b16 %v516
  %v591 = vunpack.c.h.b16 %v516
  %v592 = vunpack.c.l.b16 %v517
  %v593 = vunpack.c.l.b16 %v518
  %v594 = vunpack.c.h.b16 %v518
  %v595 = vunpack.c.l.b16 %v519
  %v596 = vunpack.c.l.b16 %v520
  %v597 = vunpack.c.h.b16 %v520
  %v598 = vunpack.c.l.b16 %v521
  %v599 = vunpack.c.l.b16 %v522
  %v600 = vunpack.c.h.b16 %v522
  %v601 = vunpack.c.l.b16 %v523
  %v602 = vunpack.c.l.b16 %v524
  %v603 = vunpack.c.h.b16 %v524
  %v604 = vunpack.c.l.b16 %v525
  %v605 = vunpack.c.l.b16 %v526
  %v606 = vunpack.c.h.b16 %v526
  %v607 = vunpack.c.l.b16 %v527
  %v608 = vunpack.c.l.b16 %v528
  %v609 = vunpack.c.h.b16 %v528
  %v610 = vunpack.c.l.b16 %v529
  %v611 = vunpack.c.l.b16 %v530
  %v612 = vunpack.c.h.b16 %v530
  %v613 = vunpack.c.l.b16 %v531
  %v614 = vunpack.c.l.b16 %v532
  %v615 = vunpack.c.h.b16 %v532
  %v616 = vunpack.c.l.b16 %v533
  %v617 = vunpack.c.l.b16 %v534
  %v618 = vunpack.c.h.b16 %v534
  %v619 = vunpack.c.l.b16 %v535
  %v620 = vunpack.c.l.b16 %v536
  %v621 = vunpack.c.h.b16 %v536
  %v622 = vunpack.c.l.b16 %v537
  %v623 = vunpack.c.l.b16 %v538
  %v624 = vunpack.c.h.b16 %v538
  %v625 = vunpack.c.l.b16 %v539
  %v626 = vunpack.c.l.b16 %v540
  %v627 = vunpack.c.h.b16 %v540
  %v628 = vunpack.c.l.b16 %v541
  %v629 = vunpack.c.l.b16 %v542
  %v630 = vunpack.c.h.b16 %v542
  %v631 = vunpack.c.l.b16 %v543
  %v632 = vpack.c.b16 %v587, %v584
  %v633 = vpack.c.b16 %v588, %v585
  %v634 = vpack.c.b16 %v589, %v586
  %v635 = vpack.c.b16 %v593, %v590
  %v636 = vpack.c.b16 %v594, %v591
  %v637 = vpack.c.b16 %v595, %v592
  %v638 = vpack.c.b16 %v599, %v596
  %v639 = vpack.c.b16 %v600, %v597
  %v640 = vpack.c.b16 %v601, %v598
  %v641 = vpack.c.b16 %v605, %v602
  %v642 = vpack.c.b16 %v606, %v603
  %v643 = vpack.c.b16 %v607, %v604
  %v644 = vpack.c.b16 %v611, %v608
  %v645 = vpack.c.b16 %v612, %v609
  %v646 = vpack.c.b16 %v613, %v610
  %v647 = vpack.c.b16 %v617, %v614
  %v648 = vpack.c.b16 %v618, %v615
  %v649 = vpack.c.b16 %v619, %v616
  %v650 = vpack.c.b16 %v623, %v620
  %v651 = vpack.c.b16 %v624, %v621
  %v652 = vpack.c.b16 %v625, %v622
  %v653 = vpack.c.b16 %v629, %v626
  %v654 = vpack.c.b16 %v630, %v627
  %v655 = vpack.c.b16 %v631, %v628
  %680 = vmatpush.bf16.msra.mxu0 %v653
  %681 = vmatpush.bf16.msra.mxu0 %v650
  %682 = vmatpush.bf16.msra.mxu0 %v647
  %683 = vmatpush.bf16.msra.mxu0 %v644
  %684 = vmatpush.bf16.msra.mxu0 %v641
  %685 = vmatpush.bf16.msra.mxu0 %v638
  %686 = vmatpush.bf16.msra.mxu0 %v635
  %687 = vmatpush.bf16.msra.mxu0 %v632
  %688 = vmatmul.bf16.gmra.mxu0 %v511
  %v689 = vpop.f32.mrf.mxu0
  %v690 = vadd.f32 %v546, %v689
  %v691 = vpop.f32.mrf.mxu0
  %692 = vdwg.mxu0
  %693 = vmatpush.bf16.msra.mxu0 %v654
  %694 = vmatpush.bf16.msra.mxu0 %v651
  %695 = vmatpush.bf16.msra.mxu0 %v648
  %696 = vmatpush.bf16.msra.mxu0 %v645
  %697 = vmatpush.bf16.msra.mxu0 %v642
  %698 = vmatpush.bf16.msra.mxu0 %v639
  %699 = vmatpush.bf16.msra.mxu0 %v636
  %700 = vmatpush.bf16.msra.mxu0 %v633
  %701 = vmatmul.bf16.gmra.mxu0 %v511
  %v702 = vpop.f32.mrf.mxu0
  %v703 = vadd.f32 %v547, %v702
  %v704 = vpop.f32.mrf.mxu0
  %705 = vdwg.mxu0
  %706 = vmatpush.bf16.msra.mxu0 %v655
  %707 = vmatpush.bf16.msra.mxu0 %v652
  %708 = vmatpush.bf16.msra.mxu0 %v649
  %709 = vmatpush.bf16.msra.mxu0 %v646
  %710 = vmatpush.bf16.msra.mxu0 %v643
  %711 = vmatpush.bf16.msra.mxu0 %v640
  %712 = vmatpush.bf16.msra.mxu0 %v637
  %713 = vmatpush.bf16.msra.mxu0 %v634
  %714 = vmatmul.bf16.gmra.mxu0 %v511
  %v715 = vpop.f32.mrf.mxu0
  %v716 = vadd.f32 %v548, %v715
  %v717 = vpop.f32.mrf.mxu0
  %718 = vdwg.mxu0
  %v719 = vpack.c.bf16 %v510, %v510
  %v720 = vld [vmem:[%s7] sm:$0xff]
  %v721 = vld [vmem:[%s7 + $0x8] sm:$0xf]
  %v722 = vld [vmem:[%s7 + $0xc] sm:$0xff]
  %v723 = vld [vmem:[%s7 + $0x14] sm:$0xf]
  %v724 = vld [vmem:[%s7 + $0x18] sm:$0xff]
  %v725 = vld [vmem:[%s7 + $0x20] sm:$0xf]
  %v726 = vld [vmem:[%s7 + $0x24] sm:$0xff]
  %v727 = vld [vmem:[%s7 + $0x2c] sm:$0xf]
  %v728 = vld [vmem:[%s7 + $0x30] sm:$0xff]
  %v729 = vld [vmem:[%s7 + $0x38] sm:$0xf]
  %v730 = vld [vmem:[%s7 + $0x3c] sm:$0xff]
  %v731 = vld [vmem:[%s7 + $0x44] sm:$0xf]
  %v732 = vld [vmem:[%s7 + $0x48] sm:$0xff]
  %v733 = vld [vmem:[%s7 + $0x50] sm:$0xf]
  %v734 = vld [vmem:[%s7 + $0x54] sm:$0xff]
  %v735 = vld [vmem:[%s7 + $0x5c] sm:$0xf]
  %v736 = vld [vmem:[%s7 + $0x60] sm:$0xff]
  %v737 = vld [vmem:[%s7 + $0x68] sm:$0xf]
  %v738 = vld [vmem:[%s7 + $0x6c] sm:$0xff]
  %v739 = vld [vmem:[%s7 + $0x74] sm:$0xf]
  %v740 = vld [vmem:[%s7 + $0x78] sm:$0xff]
  %v741 = vld [vmem:[%s7 + $0x80] sm:$0xf]
  %v742 = vld [vmem:[%s7 + $0x84] sm:$0xff]
  %v743 = vld [vmem:[%s7 + $0x8c] sm:$0xf]
  %v744 = vld [vmem:[%s7 + $0x90] sm:$0xff]
  %v745 = vld [vmem:[%s7 + $0x98] sm:$0xf]
  %v746 = vld [vmem:[%s7 + $0x9c] sm:$0xff]
  %v747 = vld [vmem:[%s7 + $0xa4] sm:$0xf]
  %v748 = vld [vmem:[%s7 + $0xa8] sm:$0xff]
  %v749 = vld [vmem:[%s7 + $0xb0] sm:$0xf]
  %v750 = vld [vmem:[%s7 + $0xb4] sm:$0xff]
  %v751 = vld [vmem:[%s7 + $0xbc] sm:$0xf]
  %v784 = vunpack.c.l.b16 %v720
  %v785 = vunpack.c.h.b16 %v720
  %v786 = vunpack.c.l.b16 %v721
  %v787 = vunpack.c.l.b16 %v722
  %v788 = vunpack.c.h.b16 %v722
  %v789 = vunpack.c.l.b16 %v723
  %v790 = vunpack.c.l.b16 %v724
  %v791 = vunpack.c.h.b16 %v724
  %v792 = vunpack.c.l.b16 %v725
  %v793 = vunpack.c.l.b16 %v726
  %v794 = vunpack.c.h.b16 %v726
  %v795 = vunpack.c.l.b16 %v727
  %v796 = vunpack.c.l.b16 %v728
  %v797 = vunpack.c.h.b16 %v728
  %v798 = vunpack.c.l.b16 %v729
  %v799 = vunpack.c.l.b16 %v730
  %v800 = vunpack.c.h.b16 %v730
  %v801 = vunpack.c.l.b16 %v731
  %v802 = vunpack.c.l.b16 %v732
  %v803 = vunpack.c.h.b16 %v732
  %v804 = vunpack.c.l.b16 %v733
  %v805 = vunpack.c.l.b16 %v734
  %v806 = vunpack.c.h.b16 %v734
  %v807 = vunpack.c.l.b16 %v735
  %v808 = vunpack.c.l.b16 %v736
  %v809 = vunpack.c.h.b16 %v736
  %v810 = vunpack.c.l.b16 %v737
  %v811 = vunpack.c.l.b16 %v738
  %v812 = vunpack.c.h.b16 %v738
  %v813 = vunpack.c.l.b16 %v739
  %v814 = vunpack.c.l.b16 %v740
  %v815 = vunpack.c.h.b16 %v740
  %v816 = vunpack.c.l.b16 %v741
  %v817 = vunpack.c.l.b16 %v742
  %v818 = vunpack.c.h.b16 %v742
  %v819 = vunpack.c.l.b16 %v743
  %v820 = vunpack.c.l.b16 %v744
  %v821 = vunpack.c.h.b16 %v744
  %v822 = vunpack.c.l.b16 %v745
  %v823 = vunpack.c.l.b16 %v746
  %v824 = vunpack.c.h.b16 %v746
  %v825 = vunpack.c.l.b16 %v747
  %v826 = vunpack.c.l.b16 %v748
  %v827 = vunpack.c.h.b16 %v748
  %v828 = vunpack.c.l.b16 %v749
  %v829 = vunpack.c.l.b16 %v750
  %v830 = vunpack.c.h.b16 %v750
  %v831 = vunpack.c.l.b16 %v751
  %v832 = vpack.c.b16 %v787, %v784
  %v833 = vpack.c.b16 %v788, %v785
  %v834 = vpack.c.b16 %v789, %v786
  %v835 = vpack.c.b16 %v793, %v790
  %v836 = vpack.c.b16 %v794, %v791
  %v837 = vpack.c.b16 %v795, %v792
  %v838 = vpack.c.b16 %v799, %v796
  %v839 = vpack.c.b16 %v800, %v797
  %v840 = vpack.c.b16 %v801, %v798
  %v841 = vpack.c.b16 %v805, %v802
  %v842 = vpack.c.b16 %v806, %v803
  %v843 = vpack.c.b16 %v807, %v804
  %v844 = vpack.c.b16 %v811, %v808
  %v845 = vpack.c.b16 %v812, %v809
  %v846 = vpack.c.b16 %v813, %v810
  %v847 = vpack.c.b16 %v817, %v814
  %v848 = vpack.c.b16 %v818, %v815
  %v849 = vpack.c.b16 %v819, %v816
  %v850 = vpack.c.b16 %v823, %v820
  %v851 = vpack.c.b16 %v824, %v821
  %v852 = vpack.c.b16 %v825, %v822
  %v853 = vpack.c.b16 %v829, %v826
  %v854 = vpack.c.b16 %v830, %v827
  %v855 = vpack.c.b16 %v831, %v828
  %880 = vmatpush.bf16.msra.mxu0 %v853
  %881 = vmatpush.bf16.msra.mxu0 %v850
  %882 = vmatpush.bf16.msra.mxu0 %v847
  %883 = vmatpush.bf16.msra.mxu0 %v844
  %884 = vmatpush.bf16.msra.mxu0 %v841
  %885 = vmatpush.bf16.msra.mxu0 %v838
  %886 = vmatpush.bf16.msra.mxu0 %v835
  %887 = vmatpush.bf16.msra.mxu0 %v832
  %888 = vmatmul.bf16.gmra.mxu0 %v719
  %v889 = vpop.f32.mrf.mxu0
  %v890 = vadd.f32 0.0, %v889
  %v891 = vpop.f32.mrf.mxu0
  %892 = vdwg.mxu0
  %893 = vmatpush.bf16.msra.mxu0 %v854
  %894 = vmatpush.bf16.msra.mxu0 %v851
  %895 = vmatpush.bf16.msra.mxu0 %v848
  %896 = vmatpush.bf16.msra.mxu0 %v845
  %897 = vmatpush.bf16.msra.mxu0 %v842
  %898 = vmatpush.bf16.msra.mxu0 %v839
  %899 = vmatpush.bf16.msra.mxu0 %v836
  %900 = vmatpush.bf16.msra.mxu0 %v833
  %901 = vmatmul.bf16.gmra.mxu0 %v719
  %v902 = vpop.f32.mrf.mxu0
  %v903 = vadd.f32 0.0, %v902
  %v904 = vpop.f32.mrf.mxu0
  %905 = vdwg.mxu0
  %906 = vmatpush.bf16.msra.mxu0 %v855
  %907 = vmatpush.bf16.msra.mxu0 %v852
  %908 = vmatpush.bf16.msra.mxu0 %v849
  %909 = vmatpush.bf16.msra.mxu0 %v846
  %910 = vmatpush.bf16.msra.mxu0 %v843
  %911 = vmatpush.bf16.msra.mxu0 %v840
  %912 = vmatpush.bf16.msra.mxu0 %v837
  %913 = vmatpush.bf16.msra.mxu0 %v834
  %914 = vmatmul.bf16.gmra.mxu0 %v719
  %v915 = vpop.f32.mrf.mxu0
  %v916 = vadd.f32 0.0, %v915
  %v917 = vpop.f32.mrf.mxu0
  %918 = vdwg.mxu0
  %v919 = vadd.f32 %v690, %v890
  %v920 = vadd.f32 %v703, %v903
  %v921 = vxor.u32 %v919, 2147483648
  %v922 = vxor.u32 %v920, 2147483648
  %v923 = vmul.f32 %v921, 1.442695
  %v924 = vpow.pop %v923
  %v925 = vmul.f32 %v922, 1.442695
  %v926 = vpow.pop %v925
  %v927 = vadd.f32 %v924, 1.0
  %v928 = vadd.f32 %v926, 1.0
  %v929 = vrcp.pop %v927
  %v930 = vmul.f32 %v927, %v929
  %v931 = vsub.f32 1.0, %v930
  %v932 = vmul.f32 %v929, %v931
  %v933 = vadd.f32 %v929, %v932
  %vm934 = vweird.f32 %v927
  %vm935 = vweird.f32 %v929
  %vm936 = vmor %vm934, %vm935
  %v937 = vsel %vm936, %v929, %v933
  %v938 = vand.u32 2147483647, %v927
  %vm939 = vcmp.eq.f32.partialorder %v938, 8.507059e+37
  %v940 = vand.u32 %v927, 2147483648
  %v941 = vor.u32 1.1754944e-38, %v940
  %v942 = vsel %vm939, %v941, %v937
  %v943 = vmul.f32 1.0, %v942
  %v944 = vrcp.pop %v928
  %v945 = vmul.f32 %v928, %v944
  %v946 = vsub.f32 1.0, %v945
  %v947 = vmul.f32 %v944, %v946
  %v948 = vadd.f32 %v944, %v947
  %vm949 = vweird.f32 %v928
  %vm950 = vweird.f32 %v944
  %vm951 = vmor %vm949, %vm950
  %v952 = vsel %vm951, %v944, %v948
  %v953 = vand.u32 2147483647, %v928
  %vm954 = vcmp.eq.f32.partialorder %v953, 8.507059e+37
  %v955 = vand.u32 %v928, 2147483648
  %v956 = vor.u32 1.1754944e-38, %v955
  %v957 = vsel %vm954, %v956, %v952
  %v958 = vmul.f32 1.0, %v957
  %v959 = vld [vmem:[%s8] sm:$0x1]
  %v961 = vperm.slane %v959, 0
  %v963 = vadd.f32 %v916, %v961
  %v964 = vmul.f32 %v943, %v963
  %v965 = vadd.f32 %v716, %v964
  %v966 = vtanh.pop %v965
  %v967 = vsub.f32 1.0, %v958
  %v968 = vmul.f32 %v967, %v966
  %v969 = vmul.f32 %v958, %v510
  %v970 = vadd.f32 %v968, %v969
  %971 = vst [vmem:[%s509] sm:$0xff] %v970
  %s972 = scalar_lea.vmem %s0, 8
  %v973 = vld [vmem:[%s972] sm:$0xff]
  %v974 = vld [vmem:[#allocation2] sm:$0xff]
  %v975 = vpack.c.bf16 %v973, %v973
  %v976 = vld [vmem:[%s1] sm:$0xff]
  %v977 = vld [vmem:[%s1 + $0x8] sm:$0xf]
  %v978 = vld [vmem:[%s1 + $0xc] sm:$0xff]
  %v979 = vld [vmem:[%s1 + $0x14] sm:$0xf]
  %v980 = vld [vmem:[%s1 + $0x18] sm:$0xff]
  %v981 = vld [vmem:[%s1 + $0x20] sm:$0xf]
  %v982 = vld [vmem:[%s1 + $0x24] sm:$0xff]
  %v983 = vld [vmem:[%s1 + $0x2c] sm:$0xf]
  %v984 = vld [vmem:[%s1 + $0x30] sm:$0xff]
  %v985 = vld [vmem:[%s1 + $0x38] sm:$0xf]
  %v986 = vld [vmem:[%s1 + $0x3c] sm:$0xff]
  %v987 = vld [vmem:[%s1 + $0x44] sm:$0xf]
  %v988 = vld [vmem:[%s1 + $0x48] sm:$0xff]
  %v989 = vld [vmem:[%s1 + $0x50] sm:$0xf]
  %v990 = vld [vmem:[%s1 + $0x54] sm:$0xff]
  %v991 = vld [vmem:[%s1 + $0x5c] sm:$0xf]
  %v992 = vld [vmem:[%s1 + $0x60] sm:$0xff]
  %v993 = vld [vmem:[%s1 + $0x68] sm:$0xf]
  %v994 = vld [vmem:[%s1 + $0x6c] sm:$0xff]
  %v995 = vld [vmem:[%s1 + $0x74] sm:$0xf]
  %v996 = vld [vmem:[%s1 + $0x78] sm:$0xff]
  %v997 = vld [vmem:[%s1 + $0x80] sm:$0xf]
  %v998 = vld [vmem:[%s1 + $0x84] sm:$0xff]
  %v999 = vld [vmem:[%s1 + $0x8c] sm:$0xf]
  %v1000 = vld [vmem:[%s1 + $0x90] sm:$0xff]
  %v1001 = vld [vmem:[%s1 + $0x98] sm:$0xf]
  %v1002 = vld [vmem:[%s1 + $0x9c] sm:$0xff]
  %v1003 = vld [vmem:[%s1 + $0xa4] sm:$0xf]
  %v1004 = vld [vmem:[%s1 + $0xa8] sm:$0xff]
  %v1005 = vld [vmem:[%s1 + $0xb0] sm:$0xf]
  %v1006 = vld [vmem:[%s1 + $0xb4] sm:$0xff]
  %v1007 = vld [vmem:[%s1 + $0xbc] sm:$0xf]
  %v1008 = vld [vmem:[%s2] sm:$0x7]
  %v1010 = vperm.slane %v1008, 0
  %v1011 = vperm.slane %v1008, 1
  %v1012 = vperm.slane %v1008, 2
  %v1048 = vunpack.c.l.b16 %v976
  %v1049 = vunpack.c.h.b16 %v976
  %v1050 = vunpack.c.l.b16 %v977
  %v1051 = vunpack.c.l.b16 %v978
  %v1052 = vunpack.c.h.b16 %v978
  %v1053 = vunpack.c.l.b16 %v979
  %v1054 = vunpack.c.l.b16 %v980
  %v1055 = vunpack.c.h.b16 %v980
  %v1056 = vunpack.c.l.b16 %v981
  %v1057 = vunpack.c.l.b16 %v982
  %v1058 = vunpack.c.h.b16 %v982
  %v1059 = vunpack.c.l.b16 %v983
  %v1060 = vunpack.c.l.b16 %v984
  %v1061 = vunpack.c.h.b16 %v984
  %v1062 = vunpack.c.l.b16 %v985
  %v1063 = vunpack.c.l.b16 %v986
  %v1064 = vunpack.c.h.b16 %v986
  %v1065 = vunpack.c.l.b16 %v987
  %v1066 = vunpack.c.l.b16 %v988
  %v1067 = vunpack.c.h.b16 %v988
  %v1068 = vunpack.c.l.b16 %v989
  %v1069 = vunpack.c.l.b16 %v990
  %v1070 = vunpack.c.h.b16 %v990
  %v1071 = vunpack.c.l.b16 %v991
  %v1072 = vunpack.c.l.b16 %v992
  %v1073 = vunpack.c.h.b16 %v992
  %v1074 = vunpack.c.l.b16 %v993
  %v1075 = vunpack.c.l.b16 %v994
  %v1076 = vunpack.c.h.b16 %v994
  %v1077 = vunpack.c.l.b16 %v995
  %v1078 = vunpack.c.l.b16 %v996
  %v1079 = vunpack.c.h.b16 %v996
  %v1080 = vunpack.c.l.b16 %v997
  %v1081 = vunpack.c.l.b16 %v998
  %v1082 = vunpack.c.h.b16 %v998
  %v1083 = vunpack.c.l.b16 %v999
  %v1084 = vunpack.c.l.b16 %v1000
  %v1085 = vunpack.c.h.b16 %v1000
  %v1086 = vunpack.c.l.b16 %v1001
  %v1087 = vunpack.c.l.b16 %v1002
  %v1088 = vunpack.c.h.b16 %v1002
  %v1089 = vunpack.c.l.b16 %v1003
  %v1090 = vunpack.c.l.b16 %v1004
  %v1091 = vunpack.c.h.b16 %v1004
  %v1092 = vunpack.c.l.b16 %v1005
  %v1093 = vunpack.c.l.b16 %v1006
  %v1094 = vunpack.c.h.b16 %v1006
  %v1095 = vunpack.c.l.b16 %v1007
  %v1096 = vpack.c.b16 %v1051, %v1048
  %v1097 = vpack.c.b16 %v1052, %v1049
  %v1098 = vpack.c.b16 %v1053, %v1050
  %v1099 = vpack.c.b16 %v1057, %v1054
  %v1100 = vpack.c.b16 %v1058, %v1055
  %v1101 = vpack.c.b16 %v1059, %v1056
  %v1102 = vpack.c.b16 %v1063, %v1060
  %v1103 = vpack.c.b16 %v1064, %v1061
  %v1104 = vpack.c.b16 %v1065, %v1062
  %v1105 = vpack.c.b16 %v1069, %v1066
  %v1106 = vpack.c.b16 %v1070, %v1067
  %v1107 = vpack.c.b16 %v1071, %v1068
  %v1108 = vpack.c.b16 %v1075, %v1072
  %v1109 = vpack.c.b16 %v1076, %v1073
  %v1110 = vpack.c.b16 %v1077, %v1074
  %v1111 = vpack.c.b16 %v1081, %v1078
  %v1112 = vpack.c.b16 %v1082, %v1079
  %v1113 = vpack.c.b16 %v1083, %v1080
  %v1114 = vpack.c.b16 %v1087, %v1084
  %v1115 = vpack.c.b16 %v1088, %v1085
  %v1116 = vpack.c.b16 %v1089, %v1086
  %v1117 = vpack.c.b16 %v1093, %v1090
  %v1118 = vpack.c.b16 %v1094, %v1091
  %v1119 = vpack.c.b16 %v1095, %v1092
  %1144 = vmatpush.bf16.msra.mxu0 %v1117
  %1145 = vmatpush.bf16.msra.mxu0 %v1114
  %1146 = vmatpush.bf16.msra.mxu0 %v1111
  %1147 = vmatpush.bf16.msra.mxu0 %v1108
  %1148 = vmatpush.bf16.msra.mxu0 %v1105
  %1149 = vmatpush.bf16.msra.mxu0 %v1102
  %1150 = vmatpush.bf16.msra.mxu0 %v1099
  %1151 = vmatpush.bf16.msra.mxu0 %v1096
  %1152 = vmatmul.bf16.gmra.mxu0 %v975
  %v1153 = vpop.f32.mrf.mxu0
  %v1154 = vadd.f32 %v1010, %v1153
  %v1155 = vpop.f32.mrf.mxu0
  %1156 = vdwg.mxu0
  %1157 = vmatpush.bf16.msra.mxu0 %v1118
  %1158 = vmatpush.bf16.msra.mxu0 %v1115
  %1159 = vmatpush.bf16.msra.mxu0 %v1112
  %1160 = vmatpush.bf16.msra.mxu0 %v1109
  %1161 = vmatpush.bf16.msra.mxu0 %v1106
  %1162 = vmatpush.bf16.msra.mxu0 %v1103
  %1163 = vmatpush.bf16.msra.mxu0 %v1100
  %1164 = vmatpush.bf16.msra.mxu0 %v1097
  %1165 = vmatmul.bf16.gmra.mxu0 %v975
  %v1166 = vpop.f32.mrf.mxu0
  %v1167 = vadd.f32 %v1011, %v1166
  %v1168 = vpop.f32.mrf.mxu0
  %1169 = vdwg.mxu0
  %1170 = vmatpush.bf16.msra.mxu0 %v1119
  %1171 = vmatpush.bf16.msra.mxu0 %v1116
  %1172 = vmatpush.bf16.msra.mxu0 %v1113
  %1173 = vmatpush.bf16.msra.mxu0 %v1110
  %1174 = vmatpush.bf16.msra.mxu0 %v1107
  %1175 = vmatpush.bf16.msra.mxu0 %v1104
  %1176 = vmatpush.bf16.msra.mxu0 %v1101
  %1177 = vmatpush.bf16.msra.mxu0 %v1098
  %1178 = vmatmul.bf16.gmra.mxu0 %v975
  %v1179 = vpop.f32.mrf.mxu0
  %v1180 = vadd.f32 %v1012, %v1179
  %v1181 = vpop.f32.mrf.mxu0
  %1182 = vdwg.mxu0
  %v1183 = vpack.c.bf16 %v974, %v974
  %v1184 = vld [vmem:[%s3] sm:$0xff]
  %v1185 = vld [vmem:[%s3 + $0x8] sm:$0xf]
  %v1186 = vld [vmem:[%s3 + $0xc] sm:$0xff]
  %v1187 = vld [vmem:[%s3 + $0x14] sm:$0xf]
  %v1188 = vld [vmem:[%s3 + $0x18] sm:$0xff]
  %v1189 = vld [vmem:[%s3 + $0x20] sm:$0xf]
  %v1190 = vld [vmem:[%s3 + $0x24] sm:$0xff]
  %v1191 = vld [vmem:[%s3 + $0x2c] sm:$0xf]
  %v1192 = vld [vmem:[%s3 + $0x30] sm:$0xff]
  %v1193 = vld [vmem:[%s3 + $0x38] sm:$0xf]
  %v1194 = vld [vmem:[%s3 + $0x3c] sm:$0xff]
  %v1195 = vld [vmem:[%s3 + $0x44] sm:$0xf]
  %v1196 = vld [vmem:[%s3 + $0x48] sm:$0xff]
  %v1197 = vld [vmem:[%s3 + $0x50] sm:$0xf]
  %v1198 = vld [vmem:[%s3 + $0x54] sm:$0xff]
  %v1199 = vld [vmem:[%s3 + $0x5c] sm:$0xf]
  %v1200 = vld [vmem:[%s3 + $0x60] sm:$0xff]
  %v1201 = vld [vmem:[%s3 + $0x68] sm:$0xf]
  %v1202 = vld [vmem:[%s3 + $0x6c] sm:$0xff]
  %v1203 = vld [vmem:[%s3 + $0x74] sm:$0xf]
  %v1204 = vld [vmem:[%s3 + $0x78] sm:$0xff]
  %v1205 = vld [vmem:[%s3 + $0x80] sm:$0xf]
  %v1206 = vld [vmem:[%s3 + $0x84] sm:$0xff]
  %v1207 = vld [vmem:[%s3 + $0x8c] sm:$0xf]
  %v1208 = vld [vmem:[%s3 + $0x90] sm:$0xff]
  %v1209 = vld [vmem:[%s3 + $0x98] sm:$0xf]
  %v1210 = vld [vmem:[%s3 + $0x9c] sm:$0xff]
  %v1211 = vld [vmem:[%s3 + $0xa4] sm:$0xf]
  %v1212 = vld [vmem:[%s3 + $0xa8] sm:$0xff]
  %v1213 = vld [vmem:[%s3 + $0xb0] sm:$0xf]
  %v1214 = vld [vmem:[%s3 + $0xb4] sm:$0xff]
  %v1215 = vld [vmem:[%s3 + $0xbc] sm:$0xf]
  %v1248 = vunpack.c.l.b16 %v1184
  %v1249 = vunpack.c.h.b16 %v1184
  %v1250 = vunpack.c.l.b16 %v1185
  %v1251 = vunpack.c.l.b16 %v1186
  %v1252 = vunpack.c.h.b16 %v1186
  %v1253 = vunpack.c.l.b16 %v1187
  %v1254 = vunpack.c.l.b16 %v1188
  %v1255 = vunpack.c.h.b16 %v1188
  %v1256 = vunpack.c.l.b16 %v1189
  %v1257 = vunpack.c.l.b16 %v1190
  %v1258 = vunpack.c.h.b16 %v1190
  %v1259 = vunpack.c.l.b16 %v1191
  %v1260 = vunpack.c.l.b16 %v1192
  %v1261 = vunpack.c.h.b16 %v1192
  %v1262 = vunpack.c.l.b16 %v1193
  %v1263 = vunpack.c.l.b16 %v1194
  %v1264 = vunpack.c.h.b16 %v1194
  %v1265 = vunpack.c.l.b16 %v1195
  %v1266 = vunpack.c.l.b16 %v1196
  %v1267 = vunpack.c.h.b16 %v1196
  %v1268 = vunpack.c.l.b16 %v1197
  %v1269 = vunpack.c.l.b16 %v1198
  %v1270 = vunpack.c.h.b16 %v1198
  %v1271 = vunpack.c.l.b16 %v1199
  %v1272 = vunpack.c.l.b16 %v1200
  %v1273 = vunpack.c.h.b16 %v1200
  %v1274 = vunpack.c.l.b16 %v1201
  %v1275 = vunpack.c.l.b16 %v1202
  %v1276 = vunpack.c.h.b16 %v1202
  %v1277 = vunpack.c.l.b16 %v1203
  %v1278 = vunpack.c.l.b16 %v1204
  %v1279 = vunpack.c.h.b16 %v1204
  %v1280 = vunpack.c.l.b16 %v1205
  %v1281 = vunpack.c.l.b16 %v1206
  %v1282 = vunpack.c.h.b16 %v1206
  %v1283 = vunpack.c.l.b16 %v1207
  %v1284 = vunpack.c.l.b16 %v1208
  %v1285 = vunpack.c.h.b16 %v1208
  %v1286 = vunpack.c.l.b16 %v1209
  %v1287 = vunpack.c.l.b16 %v1210
  %v1288 = vunpack.c.h.b16 %v1210
  %v1289 = vunpack.c.l.b16 %v1211
  %v1290 = vunpack.c.l.b16 %v1212
  %v1291 = vunpack.c.h.b16 %v1212
  %v1292 = vunpack.c.l.b16 %v1213
  %v1293 = vunpack.c.l.b16 %v1214
  %v1294 = vunpack.c.h.b16 %v1214
  %v1295 = vunpack.c.l.b16 %v1215
  %v1296 = vpack.c.b16 %v1251, %v1248
  %v1297 = vpack.c.b16 %v1252, %v1249
  %v1298 = vpack.c.b16 %v1253, %v1250
  %v1299 = vpack.c.b16 %v1257, %v1254
  %v1300 = vpack.c.b16 %v1258, %v1255
  %v1301 = vpack.c.b16 %v1259, %v1256
  %v1302 = vpack.c.b16 %v1263, %v1260
  %v1303 = vpack.c.b16 %v1264, %v1261
  %v1304 = vpack.c.b16 %v1265, %v1262
  %v1305 = vpack.c.b16 %v1269, %v1266
  %v1306 = vpack.c.b16 %v1270, %v1267
  %v1307 = vpack.c.b16 %v1271, %v1268
  %v1308 = vpack.c.b16 %v1275, %v1272
  %v1309 = vpack.c.b16 %v1276, %v1273
  %v1310 = vpack.c.b16 %v1277, %v1274
  %v1311 = vpack.c.b16 %v1281, %v1278
  %v1312 = vpack.c.b16 %v1282, %v1279
  %v1313 = vpack.c.b16 %v1283, %v1280
  %v1314 = vpack.c.b16 %v1287, %v1284
  %v1315 = vpack.c.b16 %v1288, %v1285
  %v1316 = vpack.c.b16 %v1289, %v1286
  %v1317 = vpack.c.b16 %v1293, %v1290
  %v1318 = vpack.c.b16 %v1294, %v1291
  %v1319 = vpack.c.b16 %v1295, %v1292
  %1344 = vmatpush.bf16.msra.mxu0 %v1317
  %1345 = vmatpush.bf16.msra.mxu0 %v1314
  %1346 = vmatpush.bf16.msra.mxu0 %v1311
  %1347 = vmatpush.bf16.msra.mxu0 %v1308
  %1348 = vmatpush.bf16.msra.mxu0 %v1305
  %1349 = vmatpush.bf16.msra.mxu0 %v1302
  %1350 = vmatpush.bf16.msra.mxu0 %v1299
  %1351 = vmatpush.bf16.msra.mxu0 %v1296
  %1352 = vmatmul.bf16.gmra.mxu0 %v1183
  %v1353 = vpop.f32.mrf.mxu0
  %v1354 = vadd.f32 0.0, %v1353
  %v1355 = vpop.f32.mrf.mxu0
  %1356 = vdwg.mxu0
  %1357 = vmatpush.bf16.msra.mxu0 %v1318
  %1358 = vmatpush.bf16.msra.mxu0 %v1315
  %1359 = vmatpush.bf16.msra.mxu0 %v1312
  %1360 = vmatpush.bf16.msra.mxu0 %v1309
  %1361 = vmatpush.bf16.msra.mxu0 %v1306
  %1362 = vmatpush.bf16.msra.mxu0 %v1303
  %1363 = vmatpush.bf16.msra.mxu0 %v1300
  %1364 = vmatpush.bf16.msra.mxu0 %v1297
  %1365 = vmatmul.bf16.gmra.mxu0 %v1183
  %v1366 = vpop.f32.mrf.mxu0
  %v1367 = vadd.f32 0.0, %v1366
  %v1368 = vpop.f32.mrf.mxu0
  %1369 = vdwg.mxu0
  %1370 = vmatpush.bf16.msra.mxu0 %v1319
  %1371 = vmatpush.bf16.msra.mxu0 %v1316
  %1372 = vmatpush.bf16.msra.mxu0 %v1313
  %1373 = vmatpush.bf16.msra.mxu0 %v1310
  %1374 = vmatpush.bf16.msra.mxu0 %v1307
  %1375 = vmatpush.bf16.msra.mxu0 %v1304
  %1376 = vmatpush.bf16.msra.mxu0 %v1301
  %1377 = vmatpush.bf16.msra.mxu0 %v1298
  %1378 = vmatmul.bf16.gmra.mxu0 %v1183
  %v1379 = vpop.f32.mrf.mxu0
  %v1380 = vadd.f32 0.0, %v1379
  %v1381 = vpop.f32.mrf.mxu0
  %1382 = vdwg.mxu0
  %v1383 = vadd.f32 %v1154, %v1354
  %v1384 = vadd.f32 %v1167, %v1367
  %v1385 = vxor.u32 %v1383, 2147483648
  %v1386 = vxor.u32 %v1384, 2147483648
  %v1387 = vmul.f32 %v1385, 1.442695
  %v1388 = vpow.pop %v1387
  %v1389 = vmul.f32 %v1386, 1.442695
  %v1390 = vpow.pop %v1389
  %v1391 = vadd.f32 %v1388, 1.0
  %v1392 = vadd.f32 %v1390, 1.0
  %v1393 = vrcp.pop %v1391
  %v1394 = vmul.f32 %v1391, %v1393
  %v1395 = vsub.f32 1.0, %v1394
  %v1396 = vmul.f32 %v1393, %v1395
  %v1397 = vadd.f32 %v1393, %v1396
  %vm1398 = vweird.f32 %v1391
  %vm1399 = vweird.f32 %v1393
  %vm1400 = vmor %vm1398, %vm1399
  %v1401 = vsel %vm1400, %v1393, %v1397
  %v1402 = vand.u32 2147483647, %v1391
  %vm1403 = vcmp.eq.f32.partialorder %v1402, 8.507059e+37
  %v1404 = vand.u32 %v1391, 2147483648
  %v1405 = vor.u32 1.1754944e-38, %v1404
  %v1406 = vsel %vm1403, %v1405, %v1401
  %v1407 = vmul.f32 1.0, %v1406
  %v1408 = vrcp.pop %v1392
  %v1409 = vmul.f32 %v1392, %v1408
  %v1410 = vsub.f32 1.0, %v1409
  %v1411 = vmul.f32 %v1408, %v1410
  %v1412 = vadd.f32 %v1408, %v1411
  %vm1413 = vweird.f32 %v1392
  %vm1414 = vweird.f32 %v1408
  %vm1415 = vmor %vm1413, %vm1414
  %v1416 = vsel %vm1415, %v1408, %v1412
  %v1417 = vand.u32 2147483647, %v1392
  %vm1418 = vcmp.eq.f32.partialorder %v1417, 8.507059e+37
  %v1419 = vand.u32 %v1392, 2147483648
  %v1420 = vor.u32 1.1754944e-38, %v1419
  %v1421 = vsel %vm1418, %v1420, %v1416
  %v1422 = vmul.f32 1.0, %v1421
  %v1423 = vld [vmem:[%s4] sm:$0x1]
  %v1425 = vperm.slane %v1423, 0
  %v1427 = vadd.f32 %v1380, %v1425
  %v1428 = vmul.f32 %v1407, %v1427
  %v1429 = vadd.f32 %v1180, %v1428
  %v1430 = vtanh.pop %v1429
  %v1431 = vsub.f32 1.0, %v1422
  %v1432 = vmul.f32 %v1431, %v1430
  %v1433 = vmul.f32 %v1422, %v974
  %v1434 = vadd.f32 %v1432, %v1433
  %1435 = vst [vmem:[#allocation2] sm:$0xff] %v1434
  %v1436 = vld [vmem:[%s509] sm:$0xff]
  %v1437 = vpack.c.bf16 %v1434, %v1434
  %v1438 = vld [vmem:[%s5] sm:$0xff]
  %v1439 = vld [vmem:[%s5 + $0x8] sm:$0xf]
  %v1440 = vld [vmem:[%s5 + $0xc] sm:$0xff]
  %v1441 = vld [vmem:[%s5 + $0x14] sm:$0xf]
  %v1442 = vld [vmem:[%s5 + $0x18] sm:$0xff]
  %v1443 = vld [vmem:[%s5 + $0x20] sm:$0xf]
  %v1444 = vld [vmem:[%s5 + $0x24] sm:$0xff]
  %v1445 = vld [vmem:[%s5 + $0x2c] sm:$0xf]
  %v1446 = vld [vmem:[%s5 + $0x30] sm:$0xff]
  %v1447 = vld [vmem:[%s5 + $0x38] sm:$0xf]
  %v1448 = vld [vmem:[%s5 + $0x3c] sm:$0xff]
  %v1449 = vld [vmem:[%s5 + $0x44] sm:$0xf]
  %v1450 = vld [vmem:[%s5 + $0x48] sm:$0xff]
  %v1451 = vld [vmem:[%s5 + $0x50] sm:$0xf]
  %v1452 = vld [vmem:[%s5 + $0x54] sm:$0xff]
  %v1453 = vld [vmem:[%s5 + $0x5c] sm:$0xf]
  %v1454 = vld [vmem:[%s5 + $0x60] sm:$0xff]
  %v1455 = vld [vmem:[%s5 + $0x68] sm:$0xf]
  %v1456 = vld [vmem:[%s5 + $0x6c] sm:$0xff]
  %v1457 = vld [vmem:[%s5 + $0x74] sm:$0xf]
  %v1458 = vld [vmem:[%s5 + $0x78] sm:$0xff]
  %v1459 = vld [vmem:[%s5 + $0x80] sm:$0xf]
  %v1460 = vld [vmem:[%s5 + $0x84] sm:$0xff]
  %v1461 = vld [vmem:[%s5 + $0x8c] sm:$0xf]
  %v1462 = vld [vmem:[%s5 + $0x90] sm:$0xff]
  %v1463 = vld [vmem:[%s5 + $0x98] sm:$0xf]
  %v1464 = vld [vmem:[%s5 + $0x9c] sm:$0xff]
  %v1465 = vld [vmem:[%s5 + $0xa4] sm:$0xf]
  %v1466 = vld [vmem:[%s5 + $0xa8] sm:$0xff]
  %v1467 = vld [vmem:[%s5 + $0xb0] sm:$0xf]
  %v1468 = vld [vmem:[%s5 + $0xb4] sm:$0xff]
  %v1469 = vld [vmem:[%s5 + $0xbc] sm:$0xf]
  %v1470 = vld [vmem:[%s6] sm:$0x7]
  %v1472 = vperm.slane %v1470, 0
  %v1473 = vperm.slane %v1470, 1
  %v1474 = vperm.slane %v1470, 2
  %v1510 = vunpack.c.l.b16 %v1438
  %v1511 = vunpack.c.h.b16 %v1438
  %v1512 = vunpack.c.l.b16 %v1439
  %v1513 = vunpack.c.l.b16 %v1440
  %v1514 = vunpack.c.h.b16 %v1440
  %v1515 = vunpack.c.l.b16 %v1441
  %v1516 = vunpack.c.l.b16 %v1442
  %v1517 = vunpack.c.h.b16 %v1442
  %v1518 = vunpack.c.l.b16 %v1443
  %v1519 = vunpack.c.l.b16 %v1444
  %v1520 = vunpack.c.h.b16 %v1444
  %v1521 = vunpack.c.l.b16 %v1445
  %v1522 = vunpack.c.l.b16 %v1446
  %v1523 = vunpack.c.h.b16 %v1446
  %v1524 = vunpack.c.l.b16 %v1447
  %v1525 = vunpack.c.l.b16 %v1448
  %v1526 = vunpack.c.h.b16 %v1448
  %v1527 = vunpack.c.l.b16 %v1449
  %v1528 = vunpack.c.l.b16 %v1450
  %v1529 = vunpack.c.h.b16 %v1450
  %v1530 = vunpack.c.l.b16 %v1451
  %v1531 = vunpack.c.l.b16 %v1452
  %v1532 = vunpack.c.h.b16 %v1452
  %v1533 = vunpack.c.l.b16 %v1453
  %v1534 = vunpack.c.l.b16 %v1454
  %v1535 = vunpack.c.h.b16 %v1454
  %v1536 = vunpack.c.l.b16 %v1455
  %v1537 = vunpack.c.l.b16 %v1456
  %v1538 = vunpack.c.h.b16 %v1456
  %v1539 = vunpack.c.l.b16 %v1457
  %v1540 = vunpack.c.l.b16 %v1458
  %v1541 = vunpack.c.h.b16 %v1458
  %v1542 = vunpack.c.l.b16 %v1459
  %v1543 = vunpack.c.l.b16 %v1460
  %v1544 = vunpack.c.h.b16 %v1460
  %v1545 = vunpack.c.l.b16 %v1461
  %v1546 = vunpack.c.l.b16 %v1462
  %v1547 = vunpack.c.h.b16 %v1462
  %v1548 = vunpack.c.l.b16 %v1463
  %v1549 = vunpack.c.l.b16 %v1464
  %v1550 = vunpack.c.h.b16 %v1464
  %v1551 = vunpack.c.l.b16 %v1465
  %v1552 = vunpack.c.l.b16 %v1466
  %v1553 = vunpack.c.h.b16 %v1466
  %v1554 = vunpack.c.l.b16 %v1467
  %v1555 = vunpack.c.l.b16 %v1468
  %v1556 = vunpack.c.h.b16 %v1468
  %v1557 = vunpack.c.l.b16 %v1469
  %v1558 = vpack.c.b16 %v1513, %v1510
  %v1559 = vpack.c.b16 %v1514, %v1511
  %v1560 = vpack.c.b16 %v1515, %v1512
  %v1561 = vpack.c.b16 %v1519, %v1516
  %v1562 = vpack.c.b16 %v1520, %v1517
  %v1563 = vpack.c.b16 %v1521, %v1518
  %v1564 = vpack.c.b16 %v1525, %v1522
  %v1565 = vpack.c.b16 %v1526, %v1523
  %v1566 = vpack.c.b16 %v1527, %v1524
  %v1567 = vpack.c.b16 %v1531, %v1528
  %v1568 = vpack.c.b16 %v1532, %v1529
  %v1569 = vpack.c.b16 %v1533, %v1530
  %v1570 = vpack.c.b16 %v1537, %v1534
  %v1571 = vpack.c.b16 %v1538, %v1535
  %v1572 = vpack.c.b16 %v1539, %v1536
  %v1573 = vpack.c.b16 %v1543, %v1540
  %v1574 = vpack.c.b16 %v1544, %v1541
  %v1575 = vpack.c.b16 %v1545, %v1542
  %v1576 = vpack.c.b16 %v1549, %v1546
  %v1577 = vpack.c.b16 %v1550, %v1547
  %v1578 = vpack.c.b16 %v1551, %v1548
  %v1579 = vpack.c.b16 %v1555, %v1552
  %v1580 = vpack.c.b16 %v1556, %v1553
  %v1581 = vpack.c.b16 %v1557, %v1554
  %1606 = vmatpush.bf16.msra.mxu0 %v1579
  %1607 = vmatpush.bf16.msra.mxu0 %v1576
  %1608 = vmatpush.bf16.msra.mxu0 %v1573
  %1609 = vmatpush.bf16.msra.mxu0 %v1570
  %1610 = vmatpush.bf16.msra.mxu0 %v1567
  %1611 = vmatpush.bf16.msra.mxu0 %v1564
  %1612 = vmatpush.bf16.msra.mxu0 %v1561
  %1613 = vmatpush.bf16.msra.mxu0 %v1558
  %1614 = vmatmul.bf16.gmra.mxu0 %v1437
  %v1615 = vpop.f32.mrf.mxu0
  %v1616 = vadd.f32 %v1472, %v1615
  %v1617 = vpop.f32.mrf.mxu0
  %1618 = vdwg.mxu0
  %1619 = vmatpush.bf16.msra.mxu0 %v1580
  %1620 = vmatpush.bf16.msra.mxu0 %v1577
  %1621 = vmatpush.bf16.msra.mxu0 %v1574
  %1622 = vmatpush.bf16.msra.mxu0 %v1571
  %1623 = vmatpush.bf16.msra.mxu0 %v1568
  %1624 = vmatpush.bf16.msra.mxu0 %v1565
  %1625 = vmatpush.bf16.msra.mxu0 %v1562
  %1626 = vmatpush.bf16.msra.mxu0 %v1559
  %1627 = vmatmul.bf16.gmra.mxu0 %v1437
  %v1628 = vpop.f32.mrf.mxu0
  %v1629 = vadd.f32 %v1473, %v1628
  %v1630 = vpop.f32.mrf.mxu0
  %1631 = vdwg.mxu0
  %1632 = vmatpush.bf16.msra.mxu0 %v1581
  %1633 = vmatpush.bf16.msra.mxu0 %v1578
  %1634 = vmatpush.bf16.msra.mxu0 %v1575
  %1635 = vmatpush.bf16.msra.mxu0 %v1572
  %1636 = vmatpush.bf16.msra.mxu0 %v1569
  %1637 = vmatpush.bf16.msra.mxu0 %v1566
  %1638 = vmatpush.bf16.msra.mxu0 %v1563
  %1639 = vmatpush.bf16.msra.mxu0 %v1560
  %1640 = vmatmul.bf16.gmra.mxu0 %v1437
  %v1641 = vpop.f32.mrf.mxu0
  %v1642 = vadd.f32 %v1474, %v1641
  %v1643 = vpop.f32.mrf.mxu0
  %1644 = vdwg.mxu0
  %v1645 = vpack.c.bf16 %v1436, %v1436
  %v1646 = vld [vmem:[%s7] sm:$0xff]
  %v1647 = vld [vmem:[%s7 + $0x8] sm:$0xf]
  %v1648 = vld [vmem:[%s7 + $0xc] sm:$0xff]
  %v1649 = vld [vmem:[%s7 + $0x14] sm:$0xf]
  %v1650 = vld [vmem:[%s7 + $0x18] sm:$0xff]
  %v1651 = vld [vmem:[%s7 + $0x20] sm:$0xf]
  %v1652 = vld [vmem:[%s7 + $0x24] sm:$0xff]
  %v1653 = vld [vmem:[%s7 + $0x2c] sm:$0xf]
  %v1654 = vld [vmem:[%s7 + $0x30] sm:$0xff]
  %v1655 = vld [vmem:[%s7 + $0x38] sm:$0xf]
  %v1656 = vld [vmem:[%s7 + $0x3c] sm:$0xff]
  %v1657 = vld [vmem:[%s7 + $0x44] sm:$0xf]
  %v1658 = vld [vmem:[%s7 + $0x48] sm:$0xff]
  %v1659 = vld [vmem:[%s7 + $0x50] sm:$0xf]
  %v1660 = vld [vmem:[%s7 + $0x54] sm:$0xff]
  %v1661 = vld [vmem:[%s7 + $0x5c] sm:$0xf]
  %v1662 = vld [vmem:[%s7 + $0x60] sm:$0xff]
  %v1663 = vld [vmem:[%s7 + $0x68] sm:$0xf]
  %v1664 = vld [vmem:[%s7 + $0x6c] sm:$0xff]
  %v1665 = vld [vmem:[%s7 + $0x74] sm:$0xf]
  %v1666 = vld [vmem:[%s7 + $0x78] sm:$0xff]
  %v1667 = vld [vmem:[%s7 + $0x80] sm:$0xf]
  %v1668 = vld [vmem:[%s7 + $0x84] sm:$0xff]
  %v1669 = vld [vmem:[%s7 + $0x8c] sm:$0xf]
  %v1670 = vld [vmem:[%s7 + $0x90] sm:$0xff]
  %v1671 = vld [vmem:[%s7 + $0x98] sm:$0xf]
  %v1672 = vld [vmem:[%s7 + $0x9c] sm:$0xff]
  %v1673 = vld [vmem:[%s7 + $0xa4] sm:$0xf]
  %v1674 = vld [vmem:[%s7 + $0xa8] sm:$0xff]
  %v1675 = vld [vmem:[%s7 + $0xb0] sm:$0xf]
  %v1676 = vld [vmem:[%s7 + $0xb4] sm:$0xff]
  %v1677 = vld [vmem:[%s7 + $0xbc] sm:$0xf]
  %v1710 = vunpack.c.l.b16 %v1646
  %v1711 = vunpack.c.h.b16 %v1646
  %v1712 = vunpack.c.l.b16 %v1647
  %v1713 = vunpack.c.l.b16 %v1648
  %v1714 = vunpack.c.h.b16 %v1648
  %v1715 = vunpack.c.l.b16 %v1649
  %v1716 = vunpack.c.l.b16 %v1650
  %v1717 = vunpack.c.h.b16 %v1650
  %v1718 = vunpack.c.l.b16 %v1651
  %v1719 = vunpack.c.l.b16 %v1652
  %v1720 = vunpack.c.h.b16 %v1652
  %v1721 = vunpack.c.l.b16 %v1653
  %v1722 = vunpack.c.l.b16 %v1654
  %v1723 = vunpack.c.h.b16 %v1654
  %v1724 = vunpack.c.l.b16 %v1655
  %v1725 = vunpack.c.l.b16 %v1656
  %v1726 = vunpack.c.h.b16 %v1656
  %v1727 = vunpack.c.l.b16 %v1657
  %v1728 = vunpack.c.l.b16 %v1658
  %v1729 = vunpack.c.h.b16 %v1658
  %v1730 = vunpack.c.l.b16 %v1659
  %v1731 = vunpack.c.l.b16 %v1660
  %v1732 = vunpack.c.h.b16 %v1660
  %v1733 = vunpack.c.l.b16 %v1661
  %v1734 = vunpack.c.l.b16 %v1662
  %v1735 = vunpack.c.h.b16 %v1662
  %v1736 = vunpack.c.l.b16 %v1663
  %v1737 = vunpack.c.l.b16 %v1664
  %v1738 = vunpack.c.h.b16 %v1664
  %v1739 = vunpack.c.l.b16 %v1665
  %v1740 = vunpack.c.l.b16 %v1666
  %v1741 = vunpack.c.h.b16 %v1666
  %v1742 = vunpack.c.l.b16 %v1667
  %v1743 = vunpack.c.l.b16 %v1668
  %v1744 = vunpack.c.h.b16 %v1668
  %v1745 = vunpack.c.l.b16 %v1669
  %v1746 = vunpack.c.l.b16 %v1670
  %v1747 = vunpack.c.h.b16 %v1670
  %v1748 = vunpack.c.l.b16 %v1671
  %v1749 = vunpack.c.l.b16 %v1672
  %v1750 = vunpack.c.h.b16 %v1672
  %v1751 = vunpack.c.l.b16 %v1673
  %v1752 = vunpack.c.l.b16 %v1674
  %v1753 = vunpack.c.h.b16 %v1674
  %v1754 = vunpack.c.l.b16 %v1675
  %v1755 = vunpack.c.l.b16 %v1676
  %v1756 = vunpack.c.h.b16 %v1676
  %v1757 = vunpack.c.l.b16 %v1677
  %v1758 = vpack.c.b16 %v1713, %v1710
  %v1759 = vpack.c.b16 %v1714, %v1711
  %v1760 = vpack.c.b16 %v1715, %v1712
  %v1761 = vpack.c.b16 %v1719, %v1716
  %v1762 = vpack.c.b16 %v1720, %v1717
  %v1763 = vpack.c.b16 %v1721, %v1718
  %v1764 = vpack.c.b16 %v1725, %v1722
  %v1765 = vpack.c.b16 %v1726, %v1723
  %v1766 = vpack.c.b16 %v1727, %v1724
  %v1767 = vpack.c.b16 %v1731, %v1728
  %v1768 = vpack.c.b16 %v1732, %v1729
  %v1769 = vpack.c.b16 %v1733, %v1730
  %v1770 = vpack.c.b16 %v1737, %v1734
  %v1771 = vpack.c.b16 %v1738, %v1735
  %v1772 = vpack.c.b16 %v1739, %v1736
  %v1773 = vpack.c.b16 %v1743, %v1740
  %v1774 = vpack.c.b16 %v1744, %v1741
  %v1775 = vpack.c.b16 %v1745, %v1742
  %v1776 = vpack.c.b16 %v1749, %v1746
  %v1777 = vpack.c.b16 %v1750, %v1747
  %v1778 = vpack.c.b16 %v1751, %v1748
  %v1779 = vpack.c.b16 %v1755, %v1752
  %v1780 = vpack.c.b16 %v1756, %v1753
  %v1781 = vpack.c.b16 %v1757, %v1754
  %1806 = vmatpush.bf16.msra.mxu0 %v1779
  %1807 = vmatpush.bf16.msra.mxu0 %v1776
  %1808 = vmatpush.bf16.msra.mxu0 %v1773
  %1809 = vmatpush.bf16.msra.mxu0 %v1770
  %1810 = vmatpush.bf16.msra.mxu0 %v1767
  %1811 = vmatpush.bf16.msra.mxu0 %v1764
  %1812 = vmatpush.bf16.msra.mxu0 %v1761
  %1813 = vmatpush.bf16.msra.mxu0 %v1758
  %1814 = vmatmul.bf16.gmra.mxu0 %v1645
  %v1815 = vpop.f32.mrf.mxu0
  %v1816 = vadd.f32 0.0, %v1815
  %v1817 = vpop.f32.mrf.mxu0
  %1818 = vdwg.mxu0
  %1819 = vmatpush.bf16.msra.mxu0 %v1780
  %1820 = vmatpush.bf16.msra.mxu0 %v1777
  %1821 = vmatpush.bf16.msra.mxu0 %v1774
  %1822 = vmatpush.bf16.msra.mxu0 %v1771
  %1823 = vmatpush.bf16.msra.mxu0 %v1768
  %1824 = vmatpush.bf16.msra.mxu0 %v1765
  %1825 = vmatpush.bf16.msra.mxu0 %v1762
  %1826 = vmatpush.bf16.msra.mxu0 %v1759
  %1827 = vmatmul.bf16.gmra.mxu0 %v1645
  %v1828 = vpop.f32.mrf.mxu0
  %v1829 = vadd.f32 0.0, %v1828
  %v1830 = vpop.f32.mrf.mxu0
  %1831 = vdwg.mxu0
  %1832 = vmatpush.bf16.msra.mxu0 %v1781
  %1833 = vmatpush.bf16.msra.mxu0 %v1778
  %1834 = vmatpush.bf16.msra.mxu0 %v1775
  %1835 = vmatpush.bf16.msra.mxu0 %v1772
  %1836 = vmatpush.bf16.msra.mxu0 %v1769
  %1837 = vmatpush.bf16.msra.mxu0 %v1766
  %1838 = vmatpush.bf16.msra.mxu0 %v1763
  %1839 = vmatpush.bf16.msra.mxu0 %v1760
  %1840 = vmatmul.bf16.gmra.mxu0 %v1645
  %v1841 = vpop.f32.mrf.mxu0
  %v1842 = vadd.f32 0.0, %v1841
  %v1843 = vpop.f32.mrf.mxu0
  %1844 = vdwg.mxu0
  %v1845 = vadd.f32 %v1616, %v1816
  %v1846 = vadd.f32 %v1629, %v1829
  %v1847 = vxor.u32 %v1845, 2147483648
  %v1848 = vxor.u32 %v1846, 2147483648
  %v1849 = vmul.f32 %v1847, 1.442695
  %v1850 = vpow.pop %v1849
  %v1851 = vmul.f32 %v1848, 1.442695
  %v1852 = vpow.pop %v1851
  %v1853 = vadd.f32 %v1850, 1.0
  %v1854 = vadd.f32 %v1852, 1.0
  %v1855 = vrcp.pop %v1853
  %v1856 = vmul.f32 %v1853, %v1855
  %v1857 = vsub.f32 1.0, %v1856
  %v1858 = vmul.f32 %v1855, %v1857
  %v1859 = vadd.f32 %v1855, %v1858
  %vm1860 = vweird.f32 %v1853
  %vm1861 = vweird.f32 %v1855
  %vm1862 = vmor %vm1860, %vm1861
  %v1863 = vsel %vm1862, %v1855, %v1859
  %v1864 = vand.u32 2147483647, %v1853
  %vm1865 = vcmp.eq.f32.partialorder %v1864, 8.507059e+37
  %v1866 = vand.u32 %v1853, 2147483648
  %v1867 = vor.u32 1.1754944e-38, %v1866
  %v1868 = vsel %vm1865, %v1867, %v1863
  %v1869 = vmul.f32 1.0, %v1868
  %v1870 = vrcp.pop %v1854
  %v1871 = vmul.f32 %v1854, %v1870
  %v1872 = vsub.f32 1.0, %v1871
  %v1873 = vmul.f32 %v1870, %v1872
  %v1874 = vadd.f32 %v1870, %v1873
  %vm1875 = vweird.f32 %v1854
  %vm1876 = vweird.f32 %v1870
  %vm1877 = vmor %vm1875, %vm1876
  %v1878 = vsel %vm1877, %v1870, %v1874
  %v1879 = vand.u32 2147483647, %v1854
  %vm1880 = vcmp.eq.f32.partialorder %v1879, 8.507059e+37
  %v1881 = vand.u32 %v1854, 2147483648
  %v1882 = vor.u32 1.1754944e-38, %v1881
  %v1883 = vsel %vm1880, %v1882, %v1878
  %v1884 = vmul.f32 1.0, %v1883
  %v1885 = vld [vmem:[%s8] sm:$0x1]
  %v1887 = vperm.slane %v1885, 0
  %v1889 = vadd.f32 %v1842, %v1887
  %v1890 = vmul.f32 %v1869, %v1889
  %v1891 = vadd.f32 %v1642, %v1890
  %v1892 = vtanh.pop %v1891
  %v1893 = vsub.f32 1.0, %v1884
  %v1894 = vmul.f32 %v1893, %v1892
  %v1895 = vmul.f32 %v1884, %v1436
  %v1896 = vadd.f32 %v1894, %v1895
  %1897 = vst [vmem:[%s509] sm:$0xff] %v1896
  %s1898 = scalar_lea.vmem %s0, 16
  %v1899 = vld [vmem:[%s1898] sm:$0xff]
  %v1900 = vld [vmem:[#allocation2] sm:$0xff]
  %v1901 = vpack.c.bf16 %v1899, %v1899
  %v1902 = vld [vmem:[%s1] sm:$0xff]
  %v1903 = vld [vmem:[%s1 + $0x8] sm:$0xf]
  %v1904 = vld [vmem:[%s1 + $0xc] sm:$0xff]
  %v1905 = vld [vmem:[%s1 + $0x14] sm:$0xf]
  %v1906 = vld [vmem:[%s1 + $0x18] sm:$0xff]
  %v1907 = vld [vmem:[%s1 + $0x20] sm:$0xf]
  %v1908 = vld [vmem:[%s1 + $0x24] sm:$0xff]
  %v1909 = vld [vmem:[%s1 + $0x2c] sm:$0xf]
  %v1910 = vld [vmem:[%s1 + $0x30] sm:$0xff]
  %v1911 = vld [vmem:[%s1 + $0x38] sm:$0xf]
  %v1912 = vld [vmem:[%s1 + $0x3c] sm:$0xff]
  %v1913 = vld [vmem:[%s1 + $0x44] sm:$0xf]
  %v1914 = vld [vmem:[%s1 + $0x48] sm:$0xff]
  %v1915 = vld [vmem:[%s1 + $0x50] sm:$0xf]
  %v1916 = vld [vmem:[%s1 + $0x54] sm:$0xff]
  %v1917 = vld [vmem:[%s1 + $0x5c] sm:$0xf]
  %v1918 = vld [vmem:[%s1 + $0x60] sm:$0xff]
  %v1919 = vld [vmem:[%s1 + $0x68] sm:$0xf]
  %v1920 = vld [vmem:[%s1 + $0x6c] sm:$0xff]
  %v1921 = vld [vmem:[%s1 + $0x74] sm:$0xf]
  %v1922 = vld [vmem:[%s1 + $0x78] sm:$0xff]
  %v1923 = vld [vmem:[%s1 + $0x80] sm:$0xf]
  %v1924 = vld [vmem:[%s1 + $0x84] sm:$0xff]
  %v1925 = vld [vmem:[%s1 + $0x8c] sm:$0xf]
  %v1926 = vld [vmem:[%s1 + $0x90] sm:$0xff]
  %v1927 = vld [vmem:[%s1 + $0x98] sm:$0xf]
  %v1928 = vld [vmem:[%s1 + $0x9c] sm:$0xff]
  %v1929 = vld [vmem:[%s1 + $0xa4] sm:$0xf]
  %v1930 = vld [vmem:[%s1 + $0xa8] sm:$0xff]
  %v1931 = vld [vmem:[%s1 + $0xb0] sm:$0xf]
  %v1932 = vld [vmem:[%s1 + $0xb4] sm:$0xff]
  %v1933 = vld [vmem:[%s1 + $0xbc] sm:$0xf]
  %v1934 = vld [vmem:[%s2] sm:$0x7]
  %v1936 = vperm.slane %v1934, 0
  %v1937 = vperm.slane %v1934, 1
  %v1938 = vperm.slane %v1934, 2
  %v1974 = vunpack.c.l.b16 %v1902
  %v1975 = vunpack.c.h.b16 %v1902
  %v1976 = vunpack.c.l.b16 %v1903
  %v1977 = vunpack.c.l.b16 %v1904
  %v1978 = vunpack.c.h.b16 %v1904
  %v1979 = vunpack.c.l.b16 %v1905
  %v1980 = vunpack.c.l.b16 %v1906
  %v1981 = vunpack.c.h.b16 %v1906
  %v1982 = vunpack.c.l.b16 %v1907
  %v1983 = vunpack.c.l.b16 %v1908
  %v1984 = vunpack.c.h.b16 %v1908
  %v1985 = vunpack.c.l.b16 %v1909
  %v1986 = vunpack.c.l.b16 %v1910
  %v1987 = vunpack.c.h.b16 %v1910
  %v1988 = vunpack.c.l.b16 %v1911
  %v1989 = vunpack.c.l.b16 %v1912
  %v1990 = vunpack.c.h.b16 %v1912
  %v1991 = vunpack.c.l.b16 %v1913
  %v1992 = vunpack.c.l.b16 %v1914
  %v1993 = vunpack.c.h.b16 %v1914
  %v1994 = vunpack.c.l.b16 %v1915
  %v1995 = vunpack.c.l.b16 %v1916
  %v1996 = vunpack.c.h.b16 %v1916
  %v1997 = vunpack.c.l.b16 %v1917
  %v1998 = vunpack.c.l.b16 %v1918
  %v1999 = vunpack.c.h.b16 %v1918
  %v2000 = vunpack.c.l.b16 %v1919
  %v2001 = vunpack.c.l.b16 %v1920
  %v2002 = vunpack.c.h.b16 %v1920
  %v2003 = vunpack.c.l.b16 %v1921
  %v2004 = vunpack.c.l.b16 %v1922
  %v2005 = vunpack.c.h.b16 %v1922
  %v2006 = vunpack.c.l.b16 %v1923
  %v2007 = vunpack.c.l.b16 %v1924
  %v2008 = vunpack.c.h.b16 %v1924
  %v2009 = vunpack.c.l.b16 %v1925
  %v2010 = vunpack.c.l.b16 %v1926
  %v2011 = vunpack.c.h.b16 %v1926
  %v2012 = vunpack.c.l.b16 %v1927
  %v2013 = vunpack.c.l.b16 %v1928
  %v2014 = vunpack.c.h.b16 %v1928
  %v2015 = vunpack.c.l.b16 %v1929
  %v2016 = vunpack.c.l.b16 %v1930
  %v2017 = vunpack.c.h.b16 %v1930
  %v2018 = vunpack.c.l.b16 %v1931
  %v2019 = vunpack.c.l.b16 %v1932
  %v2020 = vunpack.c.h.b16 %v1932
  %v2021 = vunpack.c.l.b16 %v1933
  %v2022 = vpack.c.b16 %v1977, %v1974
  %v2023 = vpack.c.b16 %v1978, %v1975
  %v2024 = vpack.c.b16 %v1979, %v1976
  %v2025 = vpack.c.b16 %v1983, %v1980
  %v2026 = vpack.c.b16 %v1984, %v1981
  %v2027 = vpack.c.b16 %v1985, %v1982
  %v2028 = vpack.c.b16 %v1989, %v1986
  %v2029 = vpack.c.b16 %v1990, %v1987
  %v2030 = vpack.c.b16 %v1991, %v1988
  %v2031 = vpack.c.b16 %v1995, %v1992
  %v2032 = vpack.c.b16 %v1996, %v1993
  %v2033 = vpack.c.b16 %v1997, %v1994
  %v2034 = vpack.c.b16 %v2001, %v1998
  %v2035 = vpack.c.b16 %v2002, %v1999
  %v2036 = vpack.c.b16 %v2003, %v2000
  %v2037 = vpack.c.b16 %v2007, %v2004
  %v2038 = vpack.c.b16 %v2008, %v2005
  %v2039 = vpack.c.b16 %v2009, %v2006
  %v2040 = vpack.c.b16 %v2013, %v2010
  %v2041 = vpack.c.b16 %v2014, %v2011
  %v2042 = vpack.c.b16 %v2015, %v2012
  %v2043 = vpack.c.b16 %v2019, %v2016
  %v2044 = vpack.c.b16 %v2020, %v2017
  %v2045 = vpack.c.b16 %v2021, %v2018
  %2070 = vmatpush.bf16.msra.mxu0 %v2043
  %2071 = vmatpush.bf16.msra.mxu0 %v2040
  %2072 = vmatpush.bf16.msra.mxu0 %v2037
  %2073 = vmatpush.bf16.msra.mxu0 %v2034
  %2074 = vmatpush.bf16.msra.mxu0 %v2031
  %2075 = vmatpush.bf16.msra.mxu0 %v2028
  %2076 = vmatpush.bf16.msra.mxu0 %v2025
  %2077 = vmatpush.bf16.msra.mxu0 %v2022
  %2078 = vmatmul.bf16.gmra.mxu0 %v1901
  %v2079 = vpop.f32.mrf.mxu0
  %v2080 = vadd.f32 %v1936, %v2079
  %v2081 = vpop.f32.mrf.mxu0
  %2082 = vdwg.mxu0
  %2083 = vmatpush.bf16.msra.mxu0 %v2044
  %2084 = vmatpush.bf16.msra.mxu0 %v2041
  %2085 = vmatpush.bf16.msra.mxu0 %v2038
  %2086 = vmatpush.bf16.msra.mxu0 %v2035
  %2087 = vmatpush.bf16.msra.mxu0 %v2032
  %2088 = vmatpush.bf16.msra.mxu0 %v2029
  %2089 = vmatpush.bf16.msra.mxu0 %v2026
  %2090 = vmatpush.bf16.msra.mxu0 %v2023
  %2091 = vmatmul.bf16.gmra.mxu0 %v1901
  %v2092 = vpop.f32.mrf.mxu0
  %v2093 = vadd.f32 %v1937, %v2092
  %v2094 = vpop.f32.mrf.mxu0
  %2095 = vdwg.mxu0
  %2096 = vmatpush.bf16.msra.mxu0 %v2045
  %2097 = vmatpush.bf16.msra.mxu0 %v2042
  %2098 = vmatpush.bf16.msra.mxu0 %v2039
  %2099 = vmatpush.bf16.msra.mxu0 %v2036
  %2100 = vmatpush.bf16.msra.mxu0 %v2033
  %2101 = vmatpush.bf16.msra.mxu0 %v2030
  %2102 = vmatpush.bf16.msra.mxu0 %v2027
  %2103 = vmatpush.bf16.msra.mxu0 %v2024
  %2104 = vmatmul.bf16.gmra.mxu0 %v1901
  %v2105 = vpop.f32.mrf.mxu0
  %v2106 = vadd.f32 %v1938, %v2105
  %v2107 = vpop.f32.mrf.mxu0
  %2108 = vdwg.mxu0
  %v2109 = vpack.c.bf16 %v1900, %v1900
  %v2110 = vld [vmem:[%s3] sm:$0xff]
  %v2111 = vld [vmem:[%s3 + $0x8] sm:$0xf]
  %v2112 = vld [vmem:[%s3 + $0xc] sm:$0xff]
  %v2113 = vld [vmem:[%s3 + $0x14] sm:$0xf]
  %v2114 = vld [vmem:[%s3 + $0x18] sm:$0xff]
  %v2115 = vld [vmem:[%s3 + $0x20] sm:$0xf]
  %v2116 = vld [vmem:[%s3 + $0x24] sm:$0xff]
  %v2117 = vld [vmem:[%s3 + $0x2c] sm:$0xf]
  %v2118 = vld [vmem:[%s3 + $0x30] sm:$0xff]
  %v2119 = vld [vmem:[%s3 + $0x38] sm:$0xf]
  %v2120 = vld [vmem:[%s3 + $0x3c] sm:$0xff]
  %v2121 = vld [vmem:[%s3 + $0x44] sm:$0xf]
  %v2122 = vld [vmem:[%s3 + $0x48] sm:$0xff]
  %v2123 = vld [vmem:[%s3 + $0x50] sm:$0xf]
  %v2124 = vld [vmem:[%s3 + $0x54] sm:$0xff]
  %v2125 = vld [vmem:[%s3 + $0x5c] sm:$0xf]
  %v2126 = vld [vmem:[%s3 + $0x60] sm:$0xff]
  %v2127 = vld [vmem:[%s3 + $0x68] sm:$0xf]
  %v2128 = vld [vmem:[%s3 + $0x6c] sm:$0xff]
  %v2129 = vld [vmem:[%s3 + $0x74] sm:$0xf]
  %v2130 = vld [vmem:[%s3 + $0x78] sm:$0xff]
  %v2131 = vld [vmem:[%s3 + $0x80] sm:$0xf]
  %v2132 = vld [vmem:[%s3 + $0x84] sm:$0xff]
  %v2133 = vld [vmem:[%s3 + $0x8c] sm:$0xf]
  %v2134 = vld [vmem:[%s3 + $0x90] sm:$0xff]
  %v2135 = vld [vmem:[%s3 + $0x98] sm:$0xf]
  %v2136 = vld [vmem:[%s3 + $0x9c] sm:$0xff]
  %v2137 = vld [vmem:[%s3 + $0xa4] sm:$0xf]
  %v2138 = vld [vmem:[%s3 + $0xa8] sm:$0xff]
  %v2139 = vld [vmem:[%s3 + $0xb0] sm:$0xf]
  %v2140 = vld [vmem:[%s3 + $0xb4] sm:$0xff]
  %v2141 = vld [vmem:[%s3 + $0xbc] sm:$0xf]
  %v2174 = vunpack.c.l.b16 %v2110
  %v2175 = vunpack.c.h.b16 %v2110
  %v2176 = vunpack.c.l.b16 %v2111
  %v2177 = vunpack.c.l.b16 %v2112
  %v2178 = vunpack.c.h.b16 %v2112
  %v2179 = vunpack.c.l.b16 %v2113
  %v2180 = vunpack.c.l.b16 %v2114
  %v2181 = vunpack.c.h.b16 %v2114
  %v2182 = vunpack.c.l.b16 %v2115
  %v2183 = vunpack.c.l.b16 %v2116
  %v2184 = vunpack.c.h.b16 %v2116
  %v2185 = vunpack.c.l.b16 %v2117
  %v2186 = vunpack.c.l.b16 %v2118
  %v2187 = vunpack.c.h.b16 %v2118
  %v2188 = vunpack.c.l.b16 %v2119
  %v2189 = vunpack.c.l.b16 %v2120
  %v2190 = vunpack.c.h.b16 %v2120
  %v2191 = vunpack.c.l.b16 %v2121
  %v2192 = vunpack.c.l.b16 %v2122
  %v2193 = vunpack.c.h.b16 %v2122
  %v2194 = vunpack.c.l.b16 %v2123
  %v2195 = vunpack.c.l.b16 %v2124
  %v2196 = vunpack.c.h.b16 %v2124
  %v2197 = vunpack.c.l.b16 %v2125
  %v2198 = vunpack.c.l.b16 %v2126
  %v2199 = vunpack.c.h.b16 %v2126
  %v2200 = vunpack.c.l.b16 %v2127
  %v2201 = vunpack.c.l.b16 %v2128
  %v2202 = vunpack.c.h.b16 %v2128
  %v2203 = vunpack.c.l.b16 %v2129
  %v2204 = vunpack.c.l.b16 %v2130
  %v2205 = vunpack.c.h.b16 %v2130
  %v2206 = vunpack.c.l.b16 %v2131
  %v2207 = vunpack.c.l.b16 %v2132
  %v2208 = vunpack.c.h.b16 %v2132
  %v2209 = vunpack.c.l.b16 %v2133
  %v2210 = vunpack.c.l.b16 %v2134
  %v2211 = vunpack.c.h.b16 %v2134
  %v2212 = vunpack.c.l.b16 %v2135
  %v2213 = vunpack.c.l.b16 %v2136
  %v2214 = vunpack.c.h.b16 %v2136
  %v2215 = vunpack.c.l.b16 %v2137
  %v2216 = vunpack.c.l.b16 %v2138
  %v2217 = vunpack.c.h.b16 %v2138
  %v2218 = vunpack.c.l.b16 %v2139
  %v2219 = vunpack.c.l.b16 %v2140
  %v2220 = vunpack.c.h.b16 %v2140
  %v2221 = vunpack.c.l.b16 %v2141
  %v2222 = vpack.c.b16 %v2177, %v2174
  %v2223 = vpack.c.b16 %v2178, %v2175
  %v2224 = vpack.c.b16 %v2179, %v2176
  %v2225 = vpack.c.b16 %v2183, %v2180
  %v2226 = vpack.c.b16 %v2184, %v2181
  %v2227 = vpack.c.b16 %v2185, %v2182
  %v2228 = vpack.c.b16 %v2189, %v2186
  %v2229 = vpack.c.b16 %v2190, %v2187
  %v2230 = vpack.c.b16 %v2191, %v2188
  %v2231 = vpack.c.b16 %v2195, %v2192
  %v2232 = vpack.c.b16 %v2196, %v2193
  %v2233 = vpack.c.b16 %v2197, %v2194
  %v2234 = vpack.c.b16 %v2201, %v2198
  %v2235 = vpack.c.b16 %v2202, %v2199
  %v2236 = vpack.c.b16 %v2203, %v2200
  %v2237 = vpack.c.b16 %v2207, %v2204
  %v2238 = vpack.c.b16 %v2208, %v2205
  %v2239 = vpack.c.b16 %v2209, %v2206
  %v2240 = vpack.c.b16 %v2213, %v2210
  %v2241 = vpack.c.b16 %v2214, %v2211
  %v2242 = vpack.c.b16 %v2215, %v2212
  %v2243 = vpack.c.b16 %v2219, %v2216
  %v2244 = vpack.c.b16 %v2220, %v2217
  %v2245 = vpack.c.b16 %v2221, %v2218
  %2270 = vmatpush.bf16.msra.mxu0 %v2243
  %2271 = vmatpush.bf16.msra.mxu0 %v2240
  %2272 = vmatpush.bf16.msra.mxu0 %v2237
  %2273 = vmatpush.bf16.msra.mxu0 %v2234
  %2274 = vmatpush.bf16.msra.mxu0 %v2231
  %2275 = vmatpush.bf16.msra.mxu0 %v2228
  %2276 = vmatpush.bf16.msra.mxu0 %v2225
  %2277 = vmatpush.bf16.msra.mxu0 %v2222
  %2278 = vmatmul.bf16.gmra.mxu0 %v2109
  %v2279 = vpop.f32.mrf.mxu0
  %v2280 = vadd.f32 0.0, %v2279
  %v2281 = vpop.f32.mrf.mxu0
  %2282 = vdwg.mxu0
  %2283 = vmatpush.bf16.msra.mxu0 %v2244
  %2284 = vmatpush.bf16.msra.mxu0 %v2241
  %2285 = vmatpush.bf16.msra.mxu0 %v2238
  %2286 = vmatpush.bf16.msra.mxu0 %v2235
  %2287 = vmatpush.bf16.msra.mxu0 %v2232
  %2288 = vmatpush.bf16.msra.mxu0 %v2229
  %2289 = vmatpush.bf16.msra.mxu0 %v2226
  %2290 = vmatpush.bf16.msra.mxu0 %v2223
  %2291 = vmatmul.bf16.gmra.mxu0 %v2109
  %v2292 = vpop.f32.mrf.mxu0
  %v2293 = vadd.f32 0.0, %v2292
  %v2294 = vpop.f32.mrf.mxu0
  %2295 = vdwg.mxu0
  %2296 = vmatpush.bf16.msra.mxu0 %v2245
  %2297 = vmatpush.bf16.msra.mxu0 %v2242
  %2298 = vmatpush.bf16.msra.mxu0 %v2239
  %2299 = vmatpush.bf16.msra.mxu0 %v2236
  %2300 = vmatpush.bf16.msra.mxu0 %v2233
  %2301 = vmatpush.bf16.msra.mxu0 %v2230
  %2302 = vmatpush.bf16.msra.mxu0 %v2227
  %2303 = vmatpush.bf16.msra.mxu0 %v2224
  %2304 = vmatmul.bf16.gmra.mxu0 %v2109
  %v2305 = vpop.f32.mrf.mxu0
  %v2306 = vadd.f32 0.0, %v2305
  %v2307 = vpop.f32.mrf.mxu0
  %2308 = vdwg.mxu0
  %v2309 = vadd.f32 %v2080, %v2280
  %v2310 = vadd.f32 %v2093, %v2293
  %v2311 = vxor.u32 %v2309, 2147483648
  %v2312 = vxor.u32 %v2310, 2147483648
  %v2313 = vmul.f32 %v2311, 1.442695
  %v2314 = vpow.pop %v2313
  %v2315 = vmul.f32 %v2312, 1.442695
  %v2316 = vpow.pop %v2315
  %v2317 = vadd.f32 %v2314, 1.0
  %v2318 = vadd.f32 %v2316, 1.0
  %v2319 = vrcp.pop %v2317
  %v2320 = vmul.f32 %v2317, %v2319
  %v2321 = vsub.f32 1.0, %v2320
  %v2322 = vmul.f32 %v2319, %v2321
  %v2323 = vadd.f32 %v2319, %v2322
  %vm2324 = vweird.f32 %v2317
  %vm2325 = vweird.f32 %v2319
  %vm2326 = vmor %vm2324, %vm2325
  %v2327 = vsel %vm2326, %v2319, %v2323
  %v2328 = vand.u32 2147483647, %v2317
  %vm2329 = vcmp.eq.f32.partialorder %v2328, 8.507059e+37
  %v2330 = vand.u32 %v2317, 2147483648
  %v2331 = vor.u32 1.1754944e-38, %v2330
  %v2332 = vsel %vm2329, %v2331, %v2327
  %v2333 = vmul.f32 1.0, %v2332
  %v2334 = vrcp.pop %v2318
  %v2335 = vmul.f32 %v2318, %v2334
  %v2336 = vsub.f32 1.0, %v2335
  %v2337 = vmul.f32 %v2334, %v2336
  %v2338 = vadd.f32 %v2334, %v2337
  %vm2339 = vweird.f32 %v2318
  %vm2340 = vweird.f32 %v2334
  %vm2341 = vmor %vm2339, %vm2340
  %v2342 = vsel %vm2341, %v2334, %v2338
  %v2343 = vand.u32 2147483647, %v2318
  %vm2344 = vcmp.eq.f32.partialorder %v2343, 8.507059e+37
  %v2345 = vand.u32 %v2318, 2147483648
  %v2346 = vor.u32 1.1754944e-38, %v2345
  %v2347 = vsel %vm2344, %v2346, %v2342
  %v2348 = vmul.f32 1.0, %v2347
  %v2349 = vld [vmem:[%s4] sm:$0x1]
  %v2351 = vperm.slane %v2349, 0
  %v2353 = vadd.f32 %v2306, %v2351
  %v2354 = vmul.f32 %v2333, %v2353
  %v2355 = vadd.f32 %v2106, %v2354
  %v2356 = vtanh.pop %v2355
  %v2357 = vsub.f32 1.0, %v2348
  %v2358 = vmul.f32 %v2357, %v2356
  %v2359 = vmul.f32 %v2348, %v1900
  %v2360 = vadd.f32 %v2358, %v2359
  %2361 = vst [vmem:[#allocation2] sm:$0xff] %v2360
  %v2362 = vld [vmem:[%s509] sm:$0xff]
  %v2363 = vpack.c.bf16 %v2360, %v2360
  %v2364 = vld [vmem:[%s5] sm:$0xff]
  %v2365 = vld [vmem:[%s5 + $0x8] sm:$0xf]
  %v2366 = vld [vmem:[%s5 + $0xc] sm:$0xff]
  %v2367 = vld [vmem:[%s5 + $0x14] sm:$0xf]
  %v2368 = vld [vmem:[%s5 + $0x18] sm:$0xff]
  %v2369 = vld [vmem:[%s5 + $0x20] sm:$0xf]
  %v2370 = vld [vmem:[%s5 + $0x24] sm:$0xff]
  %v2371 = vld [vmem:[%s5 + $0x2c] sm:$0xf]
  %v2372 = vld [vmem:[%s5 + $0x30] sm:$0xff]
  %v2373 = vld [vmem:[%s5 + $0x38] sm:$0xf]
  %v2374 = vld [vmem:[%s5 + $0x3c] sm:$0xff]
  %v2375 = vld [vmem:[%s5 + $0x44] sm:$0xf]
  %v2376 = vld [vmem:[%s5 + $0x48] sm:$0xff]
  %v2377 = vld [vmem:[%s5 + $0x50] sm:$0xf]
  %v2378 = vld [vmem:[%s5 + $0x54] sm:$0xff]
  %v2379 = vld [vmem:[%s5 + $0x5c] sm:$0xf]
  %v2380 = vld [vmem:[%s5 + $0x60] sm:$0xff]
  %v2381 = vld [vmem:[%s5 + $0x68] sm:$0xf]
  %v2382 = vld [vmem:[%s5 + $0x6c] sm:$0xff]
  %v2383 = vld [vmem:[%s5 + $0x74] sm:$0xf]
  %v2384 = vld [vmem:[%s5 + $0x78] sm:$0xff]
  %v2385 = vld [vmem:[%s5 + $0x80] sm:$0xf]
  %v2386 = vld [vmem:[%s5 + $0x84] sm:$0xff]
  %v2387 = vld [vmem:[%s5 + $0x8c] sm:$0xf]
  %v2388 = vld [vmem:[%s5 + $0x90] sm:$0xff]
  %v2389 = vld [vmem:[%s5 + $0x98] sm:$0xf]
  %v2390 = vld [vmem:[%s5 + $0x9c] sm:$0xff]
  %v2391 = vld [vmem:[%s5 + $0xa4] sm:$0xf]
  %v2392 = vld [vmem:[%s5 + $0xa8] sm:$0xff]
  %v2393 = vld [vmem:[%s5 + $0xb0] sm:$0xf]
  %v2394 = vld [vmem:[%s5 + $0xb4] sm:$0xff]
  %v2395 = vld [vmem:[%s5 + $0xbc] sm:$0xf]
  %v2396 = vld [vmem:[%s6] sm:$0x7]
  %v2398 = vperm.slane %v2396, 0
  %v2399 = vperm.slane %v2396, 1
  %v2400 = vperm.slane %v2396, 2
  %v2436 = vunpack.c.l.b16 %v2364
  %v2437 = vunpack.c.h.b16 %v2364
  %v2438 = vunpack.c.l.b16 %v2365
  %v2439 = vunpack.c.l.b16 %v2366
  %v2440 = vunpack.c.h.b16 %v2366
  %v2441 = vunpack.c.l.b16 %v2367
  %v2442 = vunpack.c.l.b16 %v2368
  %v2443 = vunpack.c.h.b16 %v2368
  %v2444 = vunpack.c.l.b16 %v2369
  %v2445 = vunpack.c.l.b16 %v2370
  %v2446 = vunpack.c.h.b16 %v2370
  %v2447 = vunpack.c.l.b16 %v2371
  %v2448 = vunpack.c.l.b16 %v2372
  %v2449 = vunpack.c.h.b16 %v2372
  %v2450 = vunpack.c.l.b16 %v2373
  %v2451 = vunpack.c.l.b16 %v2374
  %v2452 = vunpack.c.h.b16 %v2374
  %v2453 = vunpack.c.l.b16 %v2375
  %v2454 = vunpack.c.l.b16 %v2376
  %v2455 = vunpack.c.h.b16 %v2376
  %v2456 = vunpack.c.l.b16 %v2377
  %v2457 = vunpack.c.l.b16 %v2378
  %v2458 = vunpack.c.h.b16 %v2378
  %v2459 = vunpack.c.l.b16 %v2379
  %v2460 = vunpack.c.l.b16 %v2380
  %v2461 = vunpack.c.h.b16 %v2380
  %v2462 = vunpack.c.l.b16 %v2381
  %v2463 = vunpack.c.l.b16 %v2382
  %v2464 = vunpack.c.h.b16 %v2382
  %v2465 = vunpack.c.l.b16 %v2383
  %v2466 = vunpack.c.l.b16 %v2384
  %v2467 = vunpack.c.h.b16 %v2384
  %v2468 = vunpack.c.l.b16 %v2385
  %v2469 = vunpack.c.l.b16 %v2386
  %v2470 = vunpack.c.h.b16 %v2386
  %v2471 = vunpack.c.l.b16 %v2387
  %v2472 = vunpack.c.l.b16 %v2388
  %v2473 = vunpack.c.h.b16 %v2388
  %v2474 = vunpack.c.l.b16 %v2389
  %v2475 = vunpack.c.l.b16 %v2390
  %v2476 = vunpack.c.h.b16 %v2390
  %v2477 = vunpack.c.l.b16 %v2391
  %v2478 = vunpack.c.l.b16 %v2392
  %v2479 = vunpack.c.h.b16 %v2392
  %v2480 = vunpack.c.l.b16 %v2393
  %v2481 = vunpack.c.l.b16 %v2394
  %v2482 = vunpack.c.h.b16 %v2394
  %v2483 = vunpack.c.l.b16 %v2395
  %v2484 = vpack.c.b16 %v2439, %v2436
  %v2485 = vpack.c.b16 %v2440, %v2437
  %v2486 = vpack.c.b16 %v2441, %v2438
  %v2487 = vpack.c.b16 %v2445, %v2442
  %v2488 = vpack.c.b16 %v2446, %v2443
  %v2489 = vpack.c.b16 %v2447, %v2444
  %v2490 = vpack.c.b16 %v2451, %v2448
  %v2491 = vpack.c.b16 %v2452, %v2449
  %v2492 = vpack.c.b16 %v2453, %v2450
  %v2493 = vpack.c.b16 %v2457, %v2454
  %v2494 = vpack.c.b16 %v2458, %v2455
  %v2495 = vpack.c.b16 %v2459, %v2456
  %v2496 = vpack.c.b16 %v2463, %v2460
  %v2497 = vpack.c.b16 %v2464, %v2461
  %v2498 = vpack.c.b16 %v2465, %v2462
  %v2499 = vpack.c.b16 %v2469, %v2466
  %v2500 = vpack.c.b16 %v2470, %v2467
  %v2501 = vpack.c.b16 %v2471, %v2468
  %v2502 = vpack.c.b16 %v2475, %v2472
  %v2503 = vpack.c.b16 %v2476, %v2473
  %v2504 = vpack.c.b16 %v2477, %v2474
  %v2505 = vpack.c.b16 %v2481, %v2478
  %v2506 = vpack.c.b16 %v2482, %v2479
  %v2507 = vpack.c.b16 %v2483, %v2480
  %2532 = vmatpush.bf16.msra.mxu0 %v2505
  %2533 = vmatpush.bf16.msra.mxu0 %v2502
  %2534 = vmatpush.bf16.msra.mxu0 %v2499
  %2535 = vmatpush.bf16.msra.mxu0 %v2496
  %2536 = vmatpush.bf16.msra.mxu0 %v2493
  %2537 = vmatpush.bf16.msra.mxu0 %v2490
  %2538 = vmatpush.bf16.msra.mxu0 %v2487
  %2539 = vmatpush.bf16.msra.mxu0 %v2484
  %2540 = vmatmul.bf16.gmra.mxu0 %v2363
  %v2541 = vpop.f32.mrf.mxu0
  %v2542 = vadd.f32 %v2398, %v2541
  %v2543 = vpop.f32.mrf.mxu0
  %2544 = vdwg.mxu0
  %2545 = vmatpush.bf16.msra.mxu0 %v2506
  %2546 = vmatpush.bf16.msra.mxu0 %v2503
  %2547 = vmatpush.bf16.msra.mxu0 %v2500
  %2548 = vmatpush.bf16.msra.mxu0 %v2497
  %2549 = vmatpush.bf16.msra.mxu0 %v2494
  %2550 = vmatpush.bf16.msra.mxu0 %v2491
  %2551 = vmatpush.bf16.msra.mxu0 %v2488
  %2552 = vmatpush.bf16.msra.mxu0 %v2485
  %2553 = vmatmul.bf16.gmra.mxu0 %v2363
  %v2554 = vpop.f32.mrf.mxu0
  %v2555 = vadd.f32 %v2399, %v2554
  %v2556 = vpop.f32.mrf.mxu0
  %2557 = vdwg.mxu0
  %2558 = vmatpush.bf16.msra.mxu0 %v2507
  %2559 = vmatpush.bf16.msra.mxu0 %v2504
  %2560 = vmatpush.bf16.msra.mxu0 %v2501
  %2561 = vmatpush.bf16.msra.mxu0 %v2498
  %2562 = vmatpush.bf16.msra.mxu0 %v2495
  %2563 = vmatpush.bf16.msra.mxu0 %v2492
  %2564 = vmatpush.bf16.msra.mxu0 %v2489
  %2565 = vmatpush.bf16.msra.mxu0 %v2486
  %2566 = vmatmul.bf16.gmra.mxu0 %v2363
  %v2567 = vpop.f32.mrf.mxu0
  %v2568 = vadd.f32 %v2400, %v2567
  %v2569 = vpop.f32.mrf.mxu0
  %2570 = vdwg.mxu0
  %v2571 = vpack.c.bf16 %v2362, %v2362
  %v2572 = vld [vmem:[%s7] sm:$0xff]
  %v2573 = vld [vmem:[%s7 + $0x8] sm:$0xf]
  %v2574 = vld [vmem:[%s7 + $0xc] sm:$0xff]
  %v2575 = vld [vmem:[%s7 + $0x14] sm:$0xf]
  %v2576 = vld [vmem:[%s7 + $0x18] sm:$0xff]
  %v2577 = vld [vmem:[%s7 + $0x20] sm:$0xf]
  %v2578 = vld [vmem:[%s7 + $0x24] sm:$0xff]
  %v2579 = vld [vmem:[%s7 + $0x2c] sm:$0xf]
  %v2580 = vld [vmem:[%s7 + $0x30] sm:$0xff]
  %v2581 = vld [vmem:[%s7 + $0x38] sm:$0xf]
  %v2582 = vld [vmem:[%s7 + $0x3c] sm:$0xff]
  %v2583 = vld [vmem:[%s7 + $0x44] sm:$0xf]
  %v2584 = vld [vmem:[%s7 + $0x48] sm:$0xff]
  %v2585 = vld [vmem:[%s7 + $0x50] sm:$0xf]
  %v2586 = vld [vmem:[%s7 + $0x54] sm:$0xff]
  %v2587 = vld [vmem:[%s7 + $0x5c] sm:$0xf]
  %v2588 = vld [vmem:[%s7 + $0x60] sm:$0xff]
  %v2589 = vld [vmem:[%s7 + $0x68] sm:$0xf]
  %v2590 = vld [vmem:[%s7 + $0x6c] sm:$0xff]
  %v2591 = vld [vmem:[%s7 + $0x74] sm:$0xf]
  %v2592 = vld [vmem:[%s7 + $0x78] sm:$0xff]
  %v2593 = vld [vmem:[%s7 + $0x80] sm:$0xf]
  %v2594 = vld [vmem:[%s7 + $0x84] sm:$0xff]
  %v2595 = vld [vmem:[%s7 + $0x8c] sm:$0xf]
  %v2596 = vld [vmem:[%s7 + $0x90] sm:$0xff]
  %v2597 = vld [vmem:[%s7 + $0x98] sm:$0xf]
  %v2598 = vld [vmem:[%s7 + $0x9c] sm:$0xff]
  %v2599 = vld [vmem:[%s7 + $0xa4] sm:$0xf]
  %v2600 = vld [vmem:[%s7 + $0xa8] sm:$0xff]
  %v2601 = vld [vmem:[%s7 + $0xb0] sm:$0xf]
  %v2602 = vld [vmem:[%s7 + $0xb4] sm:$0xff]
  %v2603 = vld [vmem:[%s7 + $0xbc] sm:$0xf]
  %v2636 = vunpack.c.l.b16 %v2572
  %v2637 = vunpack.c.h.b16 %v2572
  %v2638 = vunpack.c.l.b16 %v2573
  %v2639 = vunpack.c.l.b16 %v2574
  %v2640 = vunpack.c.h.b16 %v2574
  %v2641 = vunpack.c.l.b16 %v2575
  %v2642 = vunpack.c.l.b16 %v2576
  %v2643 = vunpack.c.h.b16 %v2576
  %v2644 = vunpack.c.l.b16 %v2577
  %v2645 = vunpack.c.l.b16 %v2578
  %v2646 = vunpack.c.h.b16 %v2578
  %v2647 = vunpack.c.l.b16 %v2579
  %v2648 = vunpack.c.l.b16 %v2580
  %v2649 = vunpack.c.h.b16 %v2580
  %v2650 = vunpack.c.l.b16 %v2581
  %v2651 = vunpack.c.l.b16 %v2582
  %v2652 = vunpack.c.h.b16 %v2582
  %v2653 = vunpack.c.l.b16 %v2583
  %v2654 = vunpack.c.l.b16 %v2584
  %v2655 = vunpack.c.h.b16 %v2584
  %v2656 = vunpack.c.l.b16 %v2585
  %v2657 = vunpack.c.l.b16 %v2586
  %v2658 = vunpack.c.h.b16 %v2586
  %v2659 = vunpack.c.l.b16 %v2587
  %v2660 = vunpack.c.l.b16 %v2588
  %v2661 = vunpack.c.h.b16 %v2588
  %v2662 = vunpack.c.l.b16 %v2589
  %v2663 = vunpack.c.l.b16 %v2590
  %v2664 = vunpack.c.h.b16 %v2590
  %v2665 = vunpack.c.l.b16 %v2591
  %v2666 = vunpack.c.l.b16 %v2592
  %v2667 = vunpack.c.h.b16 %v2592
  %v2668 = vunpack.c.l.b16 %v2593
  %v2669 = vunpack.c.l.b16 %v2594
  %v2670 = vunpack.c.h.b16 %v2594
  %v2671 = vunpack.c.l.b16 %v2595
  %v2672 = vunpack.c.l.b16 %v2596
  %v2673 = vunpack.c.h.b16 %v2596
  %v2674 = vunpack.c.l.b16 %v2597
  %v2675 = vunpack.c.l.b16 %v2598
  %v2676 = vunpack.c.h.b16 %v2598
  %v2677 = vunpack.c.l.b16 %v2599
  %v2678 = vunpack.c.l.b16 %v2600
  %v2679 = vunpack.c.h.b16 %v2600
  %v2680 = vunpack.c.l.b16 %v2601
  %v2681 = vunpack.c.l.b16 %v2602
  %v2682 = vunpack.c.h.b16 %v2602
  %v2683 = vunpack.c.l.b16 %v2603
  %v2684 = vpack.c.b16 %v2639, %v2636
  %v2685 = vpack.c.b16 %v2640, %v2637
  %v2686 = vpack.c.b16 %v2641, %v2638
  %v2687 = vpack.c.b16 %v2645, %v2642
  %v2688 = vpack.c.b16 %v2646, %v2643
  %v2689 = vpack.c.b16 %v2647, %v2644
  %v2690 = vpack.c.b16 %v2651, %v2648
  %v2691 = vpack.c.b16 %v2652, %v2649
  %v2692 = vpack.c.b16 %v2653, %v2650
  %v2693 = vpack.c.b16 %v2657, %v2654
  %v2694 = vpack.c.b16 %v2658, %v2655
  %v2695 = vpack.c.b16 %v2659, %v2656
  %v2696 = vpack.c.b16 %v2663, %v2660
  %v2697 = vpack.c.b16 %v2664, %v2661
  %v2698 = vpack.c.b16 %v2665, %v2662
  %v2699 = vpack.c.b16 %v2669, %v2666
  %v2700 = vpack.c.b16 %v2670, %v2667
  %v2701 = vpack.c.b16 %v2671, %v2668
  %v2702 = vpack.c.b16 %v2675, %v2672
  %v2703 = vpack.c.b16 %v2676, %v2673
  %v2704 = vpack.c.b16 %v2677, %v2674
  %v2705 = vpack.c.b16 %v2681, %v2678
  %v2706 = vpack.c.b16 %v2682, %v2679
  %v2707 = vpack.c.b16 %v2683, %v2680
  %2732 = vmatpush.bf16.msra.mxu0 %v2705
  %2733 = vmatpush.bf16.msra.mxu0 %v2702
  %2734 = vmatpush.bf16.msra.mxu0 %v2699
  %2735 = vmatpush.bf16.msra.mxu0 %v2696
  %2736 = vmatpush.bf16.msra.mxu0 %v2693
  %2737 = vmatpush.bf16.msra.mxu0 %v2690
  %2738 = vmatpush.bf16.msra.mxu0 %v2687
  %2739 = vmatpush.bf16.msra.mxu0 %v2684
  %2740 = vmatmul.bf16.gmra.mxu0 %v2571
  %v2741 = vpop.f32.mrf.mxu0
  %v2742 = vadd.f32 0.0, %v2741
  %v2743 = vpop.f32.mrf.mxu0
  %2744 = vdwg.mxu0
  %2745 = vmatpush.bf16.msra.mxu0 %v2706
  %2746 = vmatpush.bf16.msra.mxu0 %v2703
  %2747 = vmatpush.bf16.msra.mxu0 %v2700
  %2748 = vmatpush.bf16.msra.mxu0 %v2697
  %2749 = vmatpush.bf16.msra.mxu0 %v2694
  %2750 = vmatpush.bf16.msra.mxu0 %v2691
  %2751 = vmatpush.bf16.msra.mxu0 %v2688
  %2752 = vmatpush.bf16.msra.mxu0 %v2685
  %2753 = vmatmul.bf16.gmra.mxu0 %v2571
  %v2754 = vpop.f32.mrf.mxu0
  %v2755 = vadd.f32 0.0, %v2754
  %v2756 = vpop.f32.mrf.mxu0
  %2757 = vdwg.mxu0
  %2758 = vmatpush.bf16.msra.mxu0 %v2707
  %2759 = vmatpush.bf16.msra.mxu0 %v2704
  %2760 = vmatpush.bf16.msra.mxu0 %v2701
  %2761 = vmatpush.bf16.msra.mxu0 %v2698
  %2762 = vmatpush.bf16.msra.mxu0 %v2695
  %2763 = vmatpush.bf16.msra.mxu0 %v2692
  %2764 = vmatpush.bf16.msra.mxu0 %v2689
  %2765 = vmatpush.bf16.msra.mxu0 %v2686
  %2766 = vmatmul.bf16.gmra.mxu0 %v2571
  %v2767 = vpop.f32.mrf.mxu0
  %v2768 = vadd.f32 0.0, %v2767
  %v2769 = vpop.f32.mrf.mxu0
  %2770 = vdwg.mxu0
  %v2771 = vadd.f32 %v2542, %v2742
  %v2772 = vadd.f32 %v2555, %v2755
  %v2773 = vxor.u32 %v2771, 2147483648
  %v2774 = vxor.u32 %v2772, 2147483648
  %v2775 = vmul.f32 %v2773, 1.442695
  %v2776 = vpow.pop %v2775
  %v2777 = vmul.f32 %v2774, 1.442695
  %v2778 = vpow.pop %v2777
  %v2779 = vadd.f32 %v2776, 1.0
  %v2780 = vadd.f32 %v2778, 1.0
  %v2781 = vrcp.pop %v2779
  %v2782 = vmul.f32 %v2779, %v2781
  %v2783 = vsub.f32 1.0, %v2782
  %v2784 = vmul.f32 %v2781, %v2783
  %v2785 = vadd.f32 %v2781, %v2784
  %vm2786 = vweird.f32 %v2779
  %vm2787 = vweird.f32 %v2781
  %vm2788 = vmor %vm2786, %vm2787
  %v2789 = vsel %vm2788, %v2781, %v2785
  %v2790 = vand.u32 2147483647, %v2779
  %vm2791 = vcmp.eq.f32.partialorder %v2790, 8.507059e+37
  %v2792 = vand.u32 %v2779, 2147483648
  %v2793 = vor.u32 1.1754944e-38, %v2792
  %v2794 = vsel %vm2791, %v2793, %v2789
  %v2795 = vmul.f32 1.0, %v2794
  %v2796 = vrcp.pop %v2780
  %v2797 = vmul.f32 %v2780, %v2796
  %v2798 = vsub.f32 1.0, %v2797
  %v2799 = vmul.f32 %v2796, %v2798
  %v2800 = vadd.f32 %v2796, %v2799
  %vm2801 = vweird.f32 %v2780
  %vm2802 = vweird.f32 %v2796
  %vm2803 = vmor %vm2801, %vm2802
  %v2804 = vsel %vm2803, %v2796, %v2800
  %v2805 = vand.u32 2147483647, %v2780
  %vm2806 = vcmp.eq.f32.partialorder %v2805, 8.507059e+37
  %v2807 = vand.u32 %v2780, 2147483648
  %v2808 = vor.u32 1.1754944e-38, %v2807
  %v2809 = vsel %vm2806, %v2808, %v2804
  %v2810 = vmul.f32 1.0, %v2809
  %v2811 = vld [vmem:[%s8] sm:$0x1]
  %v2813 = vperm.slane %v2811, 0
  %v2815 = vadd.f32 %v2768, %v2813
  %v2816 = vmul.f32 %v2795, %v2815
  %v2817 = vadd.f32 %v2568, %v2816
  %v2818 = vtanh.pop %v2817
  %v2819 = vsub.f32 1.0, %v2810
  %v2820 = vmul.f32 %v2819, %v2818
  %v2821 = vmul.f32 %v2810, %v2362
  %v2822 = vadd.f32 %v2820, %v2821
  %2823 = vst [vmem:[%s509] sm:$0xff] %v2822
  %s2824 = scalar_lea.vmem %s0, 24
  %v2825 = vld [vmem:[%s2824] sm:$0xff]
  %v2826 = vld [vmem:[#allocation2] sm:$0xff]
  %v2827 = vpack.c.bf16 %v2825, %v2825
  %v2828 = vld [vmem:[%s1] sm:$0xff]
  %v2829 = vld [vmem:[%s1 + $0x8] sm:$0xf]
  %v2830 = vld [vmem:[%s1 + $0xc] sm:$0xff]
  %v2831 = vld [vmem:[%s1 + $0x14] sm:$0xf]
  %v2832 = vld [vmem:[%s1 + $0x18] sm:$0xff]
  %v2833 = vld [vmem:[%s1 + $0x20] sm:$0xf]
  %v2834 = vld [vmem:[%s1 + $0x24] sm:$0xff]
  %v2835 = vld [vmem:[%s1 + $0x2c] sm:$0xf]
  %v2836 = vld [vmem:[%s1 + $0x30] sm:$0xff]
  %v2837 = vld [vmem:[%s1 + $0x38] sm:$0xf]
  %v2838 = vld [vmem:[%s1 + $0x3c] sm:$0xff]
  %v2839 = vld [vmem:[%s1 + $0x44] sm:$0xf]
  %v2840 = vld [vmem:[%s1 + $0x48] sm:$0xff]
  %v2841 = vld [vmem:[%s1 + $0x50] sm:$0xf]
  %v2842 = vld [vmem:[%s1 + $0x54] sm:$0xff]
  %v2843 = vld [vmem:[%s1 + $0x5c] sm:$0xf]
  %v2844 = vld [vmem:[%s1 + $0x60] sm:$0xff]
  %v2845 = vld [vmem:[%s1 + $0x68] sm:$0xf]
  %v2846 = vld [vmem:[%s1 + $0x6c] sm:$0xff]
  %v2847 = vld [vmem:[%s1 + $0x74] sm:$0xf]
  %v2848 = vld [vmem:[%s1 + $0x78] sm:$0xff]
  %v2849 = vld [vmem:[%s1 + $0x80] sm:$0xf]
  %v2850 = vld [vmem:[%s1 + $0x84] sm:$0xff]
  %v2851 = vld [vmem:[%s1 + $0x8c] sm:$0xf]
  %v2852 = vld [vmem:[%s1 + $0x90] sm:$0xff]
  %v2853 = vld [vmem:[%s1 + $0x98] sm:$0xf]
  %v2854 = vld [vmem:[%s1 + $0x9c] sm:$0xff]
  %v2855 = vld [vmem:[%s1 + $0xa4] sm:$0xf]
  %v2856 = vld [vmem:[%s1 + $0xa8] sm:$0xff]
  %v2857 = vld [vmem:[%s1 + $0xb0] sm:$0xf]
  %v2858 = vld [vmem:[%s1 + $0xb4] sm:$0xff]
  %v2859 = vld [vmem:[%s1 + $0xbc] sm:$0xf]
  %v2860 = vld [vmem:[%s2] sm:$0x7]
  %v2862 = vperm.slane %v2860, 0
  %v2863 = vperm.slane %v2860, 1
  %v2864 = vperm.slane %v2860, 2
  %v2900 = vunpack.c.l.b16 %v2828
  %v2901 = vunpack.c.h.b16 %v2828
  %v2902 = vunpack.c.l.b16 %v2829
  %v2903 = vunpack.c.l.b16 %v2830
  %v2904 = vunpack.c.h.b16 %v2830
  %v2905 = vunpack.c.l.b16 %v2831
  %v2906 = vunpack.c.l.b16 %v2832
  %v2907 = vunpack.c.h.b16 %v2832
  %v2908 = vunpack.c.l.b16 %v2833
  %v2909 = vunpack.c.l.b16 %v2834
  %v2910 = vunpack.c.h.b16 %v2834
  %v2911 = vunpack.c.l.b16 %v2835
  %v2912 = vunpack.c.l.b16 %v2836
  %v2913 = vunpack.c.h.b16 %v2836
  %v2914 = vunpack.c.l.b16 %v2837
  %v2915 = vunpack.c.l.b16 %v2838
  %v2916 = vunpack.c.h.b16 %v2838
  %v2917 = vunpack.c.l.b16 %v2839
  %v2918 = vunpack.c.l.b16 %v2840
  %v2919 = vunpack.c.h.b16 %v2840
  %v2920 = vunpack.c.l.b16 %v2841
  %v2921 = vunpack.c.l.b16 %v2842
  %v2922 = vunpack.c.h.b16 %v2842
  %v2923 = vunpack.c.l.b16 %v2843
  %v2924 = vunpack.c.l.b16 %v2844
  %v2925 = vunpack.c.h.b16 %v2844
  %v2926 = vunpack.c.l.b16 %v2845
  %v2927 = vunpack.c.l.b16 %v2846
  %v2928 = vunpack.c.h.b16 %v2846
  %v2929 = vunpack.c.l.b16 %v2847
  %v2930 = vunpack.c.l.b16 %v2848
  %v2931 = vunpack.c.h.b16 %v2848
  %v2932 = vunpack.c.l.b16 %v2849
  %v2933 = vunpack.c.l.b16 %v2850
  %v2934 = vunpack.c.h.b16 %v2850
  %v2935 = vunpack.c.l.b16 %v2851
  %v2936 = vunpack.c.l.b16 %v2852
  %v2937 = vunpack.c.h.b16 %v2852
  %v2938 = vunpack.c.l.b16 %v2853
  %v2939 = vunpack.c.l.b16 %v2854
  %v2940 = vunpack.c.h.b16 %v2854
  %v2941 = vunpack.c.l.b16 %v2855
  %v2942 = vunpack.c.l.b16 %v2856
  %v2943 = vunpack.c.h.b16 %v2856
  %v2944 = vunpack.c.l.b16 %v2857
  %v2945 = vunpack.c.l.b16 %v2858
  %v2946 = vunpack.c.h.b16 %v2858
  %v2947 = vunpack.c.l.b16 %v2859
  %v2948 = vpack.c.b16 %v2903, %v2900
  %v2949 = vpack.c.b16 %v2904, %v2901
  %v2950 = vpack.c.b16 %v2905, %v2902
  %v2951 = vpack.c.b16 %v2909, %v2906
  %v2952 = vpack.c.b16 %v2910, %v2907
  %v2953 = vpack.c.b16 %v2911, %v2908
  %v2954 = vpack.c.b16 %v2915, %v2912
  %v2955 = vpack.c.b16 %v2916, %v2913
  %v2956 = vpack.c.b16 %v2917, %v2914
  %v2957 = vpack.c.b16 %v2921, %v2918
  %v2958 = vpack.c.b16 %v2922, %v2919
  %v2959 = vpack.c.b16 %v2923, %v2920
  %v2960 = vpack.c.b16 %v2927, %v2924
  %v2961 = vpack.c.b16 %v2928, %v2925
  %v2962 = vpack.c.b16 %v2929, %v2926
  %v2963 = vpack.c.b16 %v2933, %v2930
  %v2964 = vpack.c.b16 %v2934, %v2931
  %v2965 = vpack.c.b16 %v2935, %v2932
  %v2966 = vpack.c.b16 %v2939, %v2936
  %v2967 = vpack.c.b16 %v2940, %v2937
  %v2968 = vpack.c.b16 %v2941, %v2938
  %v2969 = vpack.c.b16 %v2945, %v2942
  %v2970 = vpack.c.b16 %v2946, %v2943
  %v2971 = vpack.c.b16 %v2947, %v2944
  %2996 = vmatpush.bf16.msra.mxu0 %v2969
  %2997 = vmatpush.bf16.msra.mxu0 %v2966
  %2998 = vmatpush.bf16.msra.mxu0 %v2963
  %2999 = vmatpush.bf16.msra.mxu0 %v2960
  %3000 = vmatpush.bf16.msra.mxu0 %v2957
  %3001 = vmatpush.bf16.msra.mxu0 %v2954
  %3002 = vmatpush.bf16.msra.mxu0 %v2951
  %3003 = vmatpush.bf16.msra.mxu0 %v2948
  %3004 = vmatmul.bf16.gmra.mxu0 %v2827
  %v3005 = vpop.f32.mrf.mxu0
  %v3006 = vadd.f32 %v2862, %v3005
  %v3007 = vpop.f32.mrf.mxu0
  %3008 = vdwg.mxu0
  %3009 = vmatpush.bf16.msra.mxu0 %v2970
  %3010 = vmatpush.bf16.msra.mxu0 %v2967
  %3011 = vmatpush.bf16.msra.mxu0 %v2964
  %3012 = vmatpush.bf16.msra.mxu0 %v2961
  %3013 = vmatpush.bf16.msra.mxu0 %v2958
  %3014 = vmatpush.bf16.msra.mxu0 %v2955
  %3015 = vmatpush.bf16.msra.mxu0 %v2952
  %3016 = vmatpush.bf16.msra.mxu0 %v2949
  %3017 = vmatmul.bf16.gmra.mxu0 %v2827
  %v3018 = vpop.f32.mrf.mxu0
  %v3019 = vadd.f32 %v2863, %v3018
  %v3020 = vpop.f32.mrf.mxu0
  %3021 = vdwg.mxu0
  %3022 = vmatpush.bf16.msra.mxu0 %v2971
  %3023 = vmatpush.bf16.msra.mxu0 %v2968
  %3024 = vmatpush.bf16.msra.mxu0 %v2965
  %3025 = vmatpush.bf16.msra.mxu0 %v2962
  %3026 = vmatpush.bf16.msra.mxu0 %v2959
  %3027 = vmatpush.bf16.msra.mxu0 %v2956
  %3028 = vmatpush.bf16.msra.mxu0 %v2953
  %3029 = vmatpush.bf16.msra.mxu0 %v2950
  %3030 = vmatmul.bf16.gmra.mxu0 %v2827
  %v3031 = vpop.f32.mrf.mxu0
  %v3032 = vadd.f32 %v2864, %v3031
  %v3033 = vpop.f32.mrf.mxu0
  %3034 = vdwg.mxu0
  %v3035 = vpack.c.bf16 %v2826, %v2826
  %v3036 = vld [vmem:[%s3] sm:$0xff]
  %v3037 = vld [vmem:[%s3 + $0x8] sm:$0xf]
  %v3038 = vld [vmem:[%s3 + $0xc] sm:$0xff]
  %v3039 = vld [vmem:[%s3 + $0x14] sm:$0xf]
  %v3040 = vld [vmem:[%s3 + $0x18] sm:$0xff]
  %v3041 = vld [vmem:[%s3 + $0x20] sm:$0xf]
  %v3042 = vld [vmem:[%s3 + $0x24] sm:$0xff]
  %v3043 = vld [vmem:[%s3 + $0x2c] sm:$0xf]
  %v3044 = vld [vmem:[%s3 + $0x30] sm:$0xff]
  %v3045 = vld [vmem:[%s3 + $0x38] sm:$0xf]
  %v3046 = vld [vmem:[%s3 + $0x3c] sm:$0xff]
  %v3047 = vld [vmem:[%s3 + $0x44] sm:$0xf]
  %v3048 = vld [vmem:[%s3 + $0x48] sm:$0xff]
  %v3049 = vld [vmem:[%s3 + $0x50] sm:$0xf]
  %v3050 = vld [vmem:[%s3 + $0x54] sm:$0xff]
  %v3051 = vld [vmem:[%s3 + $0x5c] sm:$0xf]
  %v3052 = vld [vmem:[%s3 + $0x60] sm:$0xff]
  %v3053 = vld [vmem:[%s3 + $0x68] sm:$0xf]
  %v3054 = vld [vmem:[%s3 + $0x6c] sm:$0xff]
  %v3055 = vld [vmem:[%s3 + $0x74] sm:$0xf]
  %v3056 = vld [vmem:[%s3 + $0x78] sm:$0xff]
  %v3057 = vld [vmem:[%s3 + $0x80] sm:$0xf]
  %v3058 = vld [vmem:[%s3 + $0x84] sm:$0xff]
  %v3059 = vld [vmem:[%s3 + $0x8c] sm:$0xf]
  %v3060 = vld [vmem:[%s3 + $0x90] sm:$0xff]
  %v3061 = vld [vmem:[%s3 + $0x98] sm:$0xf]
  %v3062 = vld [vmem:[%s3 + $0x9c] sm:$0xff]
  %v3063 = vld [vmem:[%s3 + $0xa4] sm:$0xf]
  %v3064 = vld [vmem:[%s3 + $0xa8] sm:$0xff]
  %v3065 = vld [vmem:[%s3 + $0xb0] sm:$0xf]
  %v3066 = vld [vmem:[%s3 + $0xb4] sm:$0xff]
  %v3067 = vld [vmem:[%s3 + $0xbc] sm:$0xf]
  %v3100 = vunpack.c.l.b16 %v3036
  %v3101 = vunpack.c.h.b16 %v3036
  %v3102 = vunpack.c.l.b16 %v3037
  %v3103 = vunpack.c.l.b16 %v3038
  %v3104 = vunpack.c.h.b16 %v3038
  %v3105 = vunpack.c.l.b16 %v3039
  %v3106 = vunpack.c.l.b16 %v3040
  %v3107 = vunpack.c.h.b16 %v3040
  %v3108 = vunpack.c.l.b16 %v3041
  %v3109 = vunpack.c.l.b16 %v3042
  %v3110 = vunpack.c.h.b16 %v3042
  %v3111 = vunpack.c.l.b16 %v3043
  %v3112 = vunpack.c.l.b16 %v3044
  %v3113 = vunpack.c.h.b16 %v3044
  %v3114 = vunpack.c.l.b16 %v3045
  %v3115 = vunpack.c.l.b16 %v3046
  %v3116 = vunpack.c.h.b16 %v3046
  %v3117 = vunpack.c.l.b16 %v3047
  %v3118 = vunpack.c.l.b16 %v3048
  %v3119 = vunpack.c.h.b16 %v3048
  %v3120 = vunpack.c.l.b16 %v3049
  %v3121 = vunpack.c.l.b16 %v3050
  %v3122 = vunpack.c.h.b16 %v3050
  %v3123 = vunpack.c.l.b16 %v3051
  %v3124 = vunpack.c.l.b16 %v3052
  %v3125 = vunpack.c.h.b16 %v3052
  %v3126 = vunpack.c.l.b16 %v3053
  %v3127 = vunpack.c.l.b16 %v3054
  %v3128 = vunpack.c.h.b16 %v3054
  %v3129 = vunpack.c.l.b16 %v3055
  %v3130 = vunpack.c.l.b16 %v3056
  %v3131 = vunpack.c.h.b16 %v3056
  %v3132 = vunpack.c.l.b16 %v3057
  %v3133 = vunpack.c.l.b16 %v3058
  %v3134 = vunpack.c.h.b16 %v3058
  %v3135 = vunpack.c.l.b16 %v3059
  %v3136 = vunpack.c.l.b16 %v3060
  %v3137 = vunpack.c.h.b16 %v3060
  %v3138 = vunpack.c.l.b16 %v3061
  %v3139 = vunpack.c.l.b16 %v3062
  %v3140 = vunpack.c.h.b16 %v3062
  %v3141 = vunpack.c.l.b16 %v3063
  %v3142 = vunpack.c.l.b16 %v3064
  %v3143 = vunpack.c.h.b16 %v3064
  %v3144 = vunpack.c.l.b16 %v3065
  %v3145 = vunpack.c.l.b16 %v3066
  %v3146 = vunpack.c.h.b16 %v3066
  %v3147 = vunpack.c.l.b16 %v3067
  %v3148 = vpack.c.b16 %v3103, %v3100
  %v3149 = vpack.c.b16 %v3104, %v3101
  %v3150 = vpack.c.b16 %v3105, %v3102
  %v3151 = vpack.c.b16 %v3109, %v3106
  %v3152 = vpack.c.b16 %v3110, %v3107
  %v3153 = vpack.c.b16 %v3111, %v3108
  %v3154 = vpack.c.b16 %v3115, %v3112
  %v3155 = vpack.c.b16 %v3116, %v3113
  %v3156 = vpack.c.b16 %v3117, %v3114
  %v3157 = vpack.c.b16 %v3121, %v3118
  %v3158 = vpack.c.b16 %v3122, %v3119
  %v3159 = vpack.c.b16 %v3123, %v3120
  %v3160 = vpack.c.b16 %v3127, %v3124
  %v3161 = vpack.c.b16 %v3128, %v3125
  %v3162 = vpack.c.b16 %v3129, %v3126
  %v3163 = vpack.c.b16 %v3133, %v3130
  %v3164 = vpack.c.b16 %v3134, %v3131
  %v3165 = vpack.c.b16 %v3135, %v3132
  %v3166 = vpack.c.b16 %v3139, %v3136
  %v3167 = vpack.c.b16 %v3140, %v3137
  %v3168 = vpack.c.b16 %v3141, %v3138
  %v3169 = vpack.c.b16 %v3145, %v3142
  %v3170 = vpack.c.b16 %v3146, %v3143
  %v3171 = vpack.c.b16 %v3147, %v3144
  %3196 = vmatpush.bf16.msra.mxu0 %v3169
  %3197 = vmatpush.bf16.msra.mxu0 %v3166
  %3198 = vmatpush.bf16.msra.mxu0 %v3163
  %3199 = vmatpush.bf16.msra.mxu0 %v3160
  %3200 = vmatpush.bf16.msra.mxu0 %v3157
  %3201 = vmatpush.bf16.msra.mxu0 %v3154
  %3202 = vmatpush.bf16.msra.mxu0 %v3151
  %3203 = vmatpush.bf16.msra.mxu0 %v3148
  %3204 = vmatmul.bf16.gmra.mxu0 %v3035
  %v3205 = vpop.f32.mrf.mxu0
  %v3206 = vadd.f32 0.0, %v3205
  %v3207 = vpop.f32.mrf.mxu0
  %3208 = vdwg.mxu0
  %3209 = vmatpush.bf16.msra.mxu0 %v3170
  %3210 = vmatpush.bf16.msra.mxu0 %v3167
  %3211 = vmatpush.bf16.msra.mxu0 %v3164
  %3212 = vmatpush.bf16.msra.mxu0 %v3161
  %3213 = vmatpush.bf16.msra.mxu0 %v3158
  %3214 = vmatpush.bf16.msra.mxu0 %v3155
  %3215 = vmatpush.bf16.msra.mxu0 %v3152
  %3216 = vmatpush.bf16.msra.mxu0 %v3149
  %3217 = vmatmul.bf16.gmra.mxu0 %v3035
  %v3218 = vpop.f32.mrf.mxu0
  %v3219 = vadd.f32 0.0, %v3218
  %v3220 = vpop.f32.mrf.mxu0
  %3221 = vdwg.mxu0
  %3222 = vmatpush.bf16.msra.mxu0 %v3171
  %3223 = vmatpush.bf16.msra.mxu0 %v3168
  %3224 = vmatpush.bf16.msra.mxu0 %v3165
  %3225 = vmatpush.bf16.msra.mxu0 %v3162
  %3226 = vmatpush.bf16.msra.mxu0 %v3159
  %3227 = vmatpush.bf16.msra.mxu0 %v3156
  %3228 = vmatpush.bf16.msra.mxu0 %v3153
  %3229 = vmatpush.bf16.msra.mxu0 %v3150
  %3230 = vmatmul.bf16.gmra.mxu0 %v3035
  %v3231 = vpop.f32.mrf.mxu0
  %v3232 = vadd.f32 0.0, %v3231
  %v3233 = vpop.f32.mrf.mxu0
  %3234 = vdwg.mxu0
  %v3235 = vadd.f32 %v3006, %v3206
  %v3236 = vadd.f32 %v3019, %v3219
  %v3237 = vxor.u32 %v3235, 2147483648
  %v3238 = vxor.u32 %v3236, 2147483648
  %v3239 = vmul.f32 %v3237, 1.442695
  %v3240 = vpow.pop %v3239
  %v3241 = vmul.f32 %v3238, 1.442695
  %v3242 = vpow.pop %v3241
  %v3243 = vadd.f32 %v3240, 1.0
  %v3244 = vadd.f32 %v3242, 1.0
  %v3245 = vrcp.pop %v3243
  %v3246 = vmul.f32 %v3243, %v3245
  %v3247 = vsub.f32 1.0, %v3246
  %v3248 = vmul.f32 %v3245, %v3247
  %v3249 = vadd.f32 %v3245, %v3248
  %vm3250 = vweird.f32 %v3243
  %vm3251 = vweird.f32 %v3245
  %vm3252 = vmor %vm3250, %vm3251
  %v3253 = vsel %vm3252, %v3245, %v3249
  %v3254 = vand.u32 2147483647, %v3243
  %vm3255 = vcmp.eq.f32.partialorder %v3254, 8.507059e+37
  %v3256 = vand.u32 %v3243, 2147483648
  %v3257 = vor.u32 1.1754944e-38, %v3256
  %v3258 = vsel %vm3255, %v3257, %v3253
  %v3259 = vmul.f32 1.0, %v3258
  %v3260 = vrcp.pop %v3244
  %v3261 = vmul.f32 %v3244, %v3260
  %v3262 = vsub.f32 1.0, %v3261
  %v3263 = vmul.f32 %v3260, %v3262
  %v3264 = vadd.f32 %v3260, %v3263
  %vm3265 = vweird.f32 %v3244
  %vm3266 = vweird.f32 %v3260
  %vm3267 = vmor %vm3265, %vm3266
  %v3268 = vsel %vm3267, %v3260, %v3264
  %v3269 = vand.u32 2147483647, %v3244
  %vm3270 = vcmp.eq.f32.partialorder %v3269, 8.507059e+37
  %v3271 = vand.u32 %v3244, 2147483648
  %v3272 = vor.u32 1.1754944e-38, %v3271
  %v3273 = vsel %vm3270, %v3272, %v3268
  %v3274 = vmul.f32 1.0, %v3273
  %v3275 = vld [vmem:[%s4] sm:$0x1]
  %v3277 = vperm.slane %v3275, 0
  %v3279 = vadd.f32 %v3232, %v3277
  %v3280 = vmul.f32 %v3259, %v3279
  %v3281 = vadd.f32 %v3032, %v3280
  %v3282 = vtanh.pop %v3281
  %v3283 = vsub.f32 1.0, %v3274
  %v3284 = vmul.f32 %v3283, %v3282
  %v3285 = vmul.f32 %v3274, %v2826
  %v3286 = vadd.f32 %v3284, %v3285
  %3287 = vst [vmem:[#allocation2] sm:$0xff] %v3286
  %v3288 = vld [vmem:[%s509] sm:$0xff]
  %v3289 = vpack.c.bf16 %v3286, %v3286
  %v3290 = vld [vmem:[%s5] sm:$0xff]
  %v3291 = vld [vmem:[%s5 + $0x8] sm:$0xf]
  %v3292 = vld [vmem:[%s5 + $0xc] sm:$0xff]
  %v3293 = vld [vmem:[%s5 + $0x14] sm:$0xf]
  %v3294 = vld [vmem:[%s5 + $0x18] sm:$0xff]
  %v3295 = vld [vmem:[%s5 + $0x20] sm:$0xf]
  %v3296 = vld [vmem:[%s5 + $0x24] sm:$0xff]
  %v3297 = vld [vmem:[%s5 + $0x2c] sm:$0xf]
  %v3298 = vld [vmem:[%s5 + $0x30] sm:$0xff]
  %v3299 = vld [vmem:[%s5 + $0x38] sm:$0xf]
  %v3300 = vld [vmem:[%s5 + $0x3c] sm:$0xff]
  %v3301 = vld [vmem:[%s5 + $0x44] sm:$0xf]
  %v3302 = vld [vmem:[%s5 + $0x48] sm:$0xff]
  %v3303 = vld [vmem:[%s5 + $0x50] sm:$0xf]
  %v3304 = vld [vmem:[%s5 + $0x54] sm:$0xff]
  %v3305 = vld [vmem:[%s5 + $0x5c] sm:$0xf]
  %v3306 = vld [vmem:[%s5 + $0x60] sm:$0xff]
  %v3307 = vld [vmem:[%s5 + $0x68] sm:$0xf]
  %v3308 = vld [vmem:[%s5 + $0x6c] sm:$0xff]
  %v3309 = vld [vmem:[%s5 + $0x74] sm:$0xf]
  %v3310 = vld [vmem:[%s5 + $0x78] sm:$0xff]
  %v3311 = vld [vmem:[%s5 + $0x80] sm:$0xf]
  %v3312 = vld [vmem:[%s5 + $0x84] sm:$0xff]
  %v3313 = vld [vmem:[%s5 + $0x8c] sm:$0xf]
  %v3314 = vld [vmem:[%s5 + $0x90] sm:$0xff]
  %v3315 = vld [vmem:[%s5 + $0x98] sm:$0xf]
  %v3316 = vld [vmem:[%s5 + $0x9c] sm:$0xff]
  %v3317 = vld [vmem:[%s5 + $0xa4] sm:$0xf]
  %v3318 = vld [vmem:[%s5 + $0xa8] sm:$0xff]
  %v3319 = vld [vmem:[%s5 + $0xb0] sm:$0xf]
  %v3320 = vld [vmem:[%s5 + $0xb4] sm:$0xff]
  %v3321 = vld [vmem:[%s5 + $0xbc] sm:$0xf]
  %v3322 = vld [vmem:[%s6] sm:$0x7]
  %v3324 = vperm.slane %v3322, 0
  %v3325 = vperm.slane %v3322, 1
  %v3326 = vperm.slane %v3322, 2
  %v3362 = vunpack.c.l.b16 %v3290
  %v3363 = vunpack.c.h.b16 %v3290
  %v3364 = vunpack.c.l.b16 %v3291
  %v3365 = vunpack.c.l.b16 %v3292
  %v3366 = vunpack.c.h.b16 %v3292
  %v3367 = vunpack.c.l.b16 %v3293
  %v3368 = vunpack.c.l.b16 %v3294
  %v3369 = vunpack.c.h.b16 %v3294
  %v3370 = vunpack.c.l.b16 %v3295
  %v3371 = vunpack.c.l.b16 %v3296
  %v3372 = vunpack.c.h.b16 %v3296
  %v3373 = vunpack.c.l.b16 %v3297
  %v3374 = vunpack.c.l.b16 %v3298
  %v3375 = vunpack.c.h.b16 %v3298
  %v3376 = vunpack.c.l.b16 %v3299
  %v3377 = vunpack.c.l.b16 %v3300
  %v3378 = vunpack.c.h.b16 %v3300
  %v3379 = vunpack.c.l.b16 %v3301
  %v3380 = vunpack.c.l.b16 %v3302
  %v3381 = vunpack.c.h.b16 %v3302
  %v3382 = vunpack.c.l.b16 %v3303
  %v3383 = vunpack.c.l.b16 %v3304
  %v3384 = vunpack.c.h.b16 %v3304
  %v3385 = vunpack.c.l.b16 %v3305
  %v3386 = vunpack.c.l.b16 %v3306
  %v3387 = vunpack.c.h.b16 %v3306
  %v3388 = vunpack.c.l.b16 %v3307
  %v3389 = vunpack.c.l.b16 %v3308
  %v3390 = vunpack.c.h.b16 %v3308
  %v3391 = vunpack.c.l.b16 %v3309
  %v3392 = vunpack.c.l.b16 %v3310
  %v3393 = vunpack.c.h.b16 %v3310
  %v3394 = vunpack.c.l.b16 %v3311
  %v3395 = vunpack.c.l.b16 %v3312
  %v3396 = vunpack.c.h.b16 %v3312
  %v3397 = vunpack.c.l.b16 %v3313
  %v3398 = vunpack.c.l.b16 %v3314
  %v3399 = vunpack.c.h.b16 %v3314
  %v3400 = vunpack.c.l.b16 %v3315
  %v3401 = vunpack.c.l.b16 %v3316
  %v3402 = vunpack.c.h.b16 %v3316
  %v3403 = vunpack.c.l.b16 %v3317
  %v3404 = vunpack.c.l.b16 %v3318
  %v3405 = vunpack.c.h.b16 %v3318
  %v3406 = vunpack.c.l.b16 %v3319
  %v3407 = vunpack.c.l.b16 %v3320
  %v3408 = vunpack.c.h.b16 %v3320
  %v3409 = vunpack.c.l.b16 %v3321
  %v3410 = vpack.c.b16 %v3365, %v3362
  %v3411 = vpack.c.b16 %v3366, %v3363
  %v3412 = vpack.c.b16 %v3367, %v3364
  %v3413 = vpack.c.b16 %v3371, %v3368
  %v3414 = vpack.c.b16 %v3372, %v3369
  %v3415 = vpack.c.b16 %v3373, %v3370
  %v3416 = vpack.c.b16 %v3377, %v3374
  %v3417 = vpack.c.b16 %v3378, %v3375
  %v3418 = vpack.c.b16 %v3379, %v3376
  %v3419 = vpack.c.b16 %v3383, %v3380
  %v3420 = vpack.c.b16 %v3384, %v3381
  %v3421 = vpack.c.b16 %v3385, %v3382
  %v3422 = vpack.c.b16 %v3389, %v3386
  %v3423 = vpack.c.b16 %v3390, %v3387
  %v3424 = vpack.c.b16 %v3391, %v3388
  %v3425 = vpack.c.b16 %v3395, %v3392
  %v3426 = vpack.c.b16 %v3396, %v3393
  %v3427 = vpack.c.b16 %v3397, %v3394
  %v3428 = vpack.c.b16 %v3401, %v3398
  %v3429 = vpack.c.b16 %v3402, %v3399
  %v3430 = vpack.c.b16 %v3403, %v3400
  %v3431 = vpack.c.b16 %v3407, %v3404
  %v3432 = vpack.c.b16 %v3408, %v3405
  %v3433 = vpack.c.b16 %v3409, %v3406
  %3458 = vmatpush.bf16.msra.mxu0 %v3431
  %3459 = vmatpush.bf16.msra.mxu0 %v3428
  %3460 = vmatpush.bf16.msra.mxu0 %v3425
  %3461 = vmatpush.bf16.msra.mxu0 %v3422
  %3462 = vmatpush.bf16.msra.mxu0 %v3419
  %3463 = vmatpush.bf16.msra.mxu0 %v3416
  %3464 = vmatpush.bf16.msra.mxu0 %v3413
  %3465 = vmatpush.bf16.msra.mxu0 %v3410
  %3466 = vmatmul.bf16.gmra.mxu0 %v3289
  %v3467 = vpop.f32.mrf.mxu0
  %v3468 = vadd.f32 %v3324, %v3467
  %v3469 = vpop.f32.mrf.mxu0
  %3470 = vdwg.mxu0
  %3471 = vmatpush.bf16.msra.mxu0 %v3432
  %3472 = vmatpush.bf16.msra.mxu0 %v3429
  %3473 = vmatpush.bf16.msra.mxu0 %v3426
  %3474 = vmatpush.bf16.msra.mxu0 %v3423
  %3475 = vmatpush.bf16.msra.mxu0 %v3420
  %3476 = vmatpush.bf16.msra.mxu0 %v3417
  %3477 = vmatpush.bf16.msra.mxu0 %v3414
  %3478 = vmatpush.bf16.msra.mxu0 %v3411
  %3479 = vmatmul.bf16.gmra.mxu0 %v3289
  %v3480 = vpop.f32.mrf.mxu0
  %v3481 = vadd.f32 %v3325, %v3480
  %v3482 = vpop.f32.mrf.mxu0
  %3483 = vdwg.mxu0
  %3484 = vmatpush.bf16.msra.mxu0 %v3433
  %3485 = vmatpush.bf16.msra.mxu0 %v3430
  %3486 = vmatpush.bf16.msra.mxu0 %v3427
  %3487 = vmatpush.bf16.msra.mxu0 %v3424
  %3488 = vmatpush.bf16.msra.mxu0 %v3421
  %3489 = vmatpush.bf16.msra.mxu0 %v3418
  %3490 = vmatpush.bf16.msra.mxu0 %v3415
  %3491 = vmatpush.bf16.msra.mxu0 %v3412
  %3492 = vmatmul.bf16.gmra.mxu0 %v3289
  %v3493 = vpop.f32.mrf.mxu0
  %v3494 = vadd.f32 %v3326, %v3493
  %v3495 = vpop.f32.mrf.mxu0
  %3496 = vdwg.mxu0
  %v3497 = vpack.c.bf16 %v3288, %v3288
  %v3498 = vld [vmem:[%s7] sm:$0xff]
  %v3499 = vld [vmem:[%s7 + $0x8] sm:$0xf]
  %v3500 = vld [vmem:[%s7 + $0xc] sm:$0xff]
  %v3501 = vld [vmem:[%s7 + $0x14] sm:$0xf]
  %v3502 = vld [vmem:[%s7 + $0x18] sm:$0xff]
  %v3503 = vld [vmem:[%s7 + $0x20] sm:$0xf]
  %v3504 = vld [vmem:[%s7 + $0x24] sm:$0xff]
  %v3505 = vld [vmem:[%s7 + $0x2c] sm:$0xf]
  %v3506 = vld [vmem:[%s7 + $0x30] sm:$0xff]
  %v3507 = vld [vmem:[%s7 + $0x38] sm:$0xf]
  %v3508 = vld [vmem:[%s7 + $0x3c] sm:$0xff]
  %v3509 = vld [vmem:[%s7 + $0x44] sm:$0xf]
  %v3510 = vld [vmem:[%s7 + $0x48] sm:$0xff]
  %v3511 = vld [vmem:[%s7 + $0x50] sm:$0xf]
  %v3512 = vld [vmem:[%s7 + $0x54] sm:$0xff]
  %v3513 = vld [vmem:[%s7 + $0x5c] sm:$0xf]
  %v3514 = vld [vmem:[%s7 + $0x60] sm:$0xff]
  %v3515 = vld [vmem:[%s7 + $0x68] sm:$0xf]
  %v3516 = vld [vmem:[%s7 + $0x6c] sm:$0xff]
  %v3517 = vld [vmem:[%s7 + $0x74] sm:$0xf]
  %v3518 = vld [vmem:[%s7 + $0x78] sm:$0xff]
  %v3519 = vld [vmem:[%s7 + $0x80] sm:$0xf]
  %v3520 = vld [vmem:[%s7 + $0x84] sm:$0xff]
  %v3521 = vld [vmem:[%s7 + $0x8c] sm:$0xf]
  %v3522 = vld [vmem:[%s7 + $0x90] sm:$0xff]
  %v3523 = vld [vmem:[%s7 + $0x98] sm:$0xf]
  %v3524 = vld [vmem:[%s7 + $0x9c] sm:$0xff]
  %v3525 = vld [vmem:[%s7 + $0xa4] sm:$0xf]
  %v3526 = vld [vmem:[%s7 + $0xa8] sm:$0xff]
  %v3527 = vld [vmem:[%s7 + $0xb0] sm:$0xf]
  %v3528 = vld [vmem:[%s7 + $0xb4] sm:$0xff]
  %v3529 = vld [vmem:[%s7 + $0xbc] sm:$0xf]
  %v3562 = vunpack.c.l.b16 %v3498
  %v3563 = vunpack.c.h.b16 %v3498
  %v3564 = vunpack.c.l.b16 %v3499
  %v3565 = vunpack.c.l.b16 %v3500
  %v3566 = vunpack.c.h.b16 %v3500
  %v3567 = vunpack.c.l.b16 %v3501
  %v3568 = vunpack.c.l.b16 %v3502
  %v3569 = vunpack.c.h.b16 %v3502
  %v3570 = vunpack.c.l.b16 %v3503
  %v3571 = vunpack.c.l.b16 %v3504
  %v3572 = vunpack.c.h.b16 %v3504
  %v3573 = vunpack.c.l.b16 %v3505
  %v3574 = vunpack.c.l.b16 %v3506
  %v3575 = vunpack.c.h.b16 %v3506
  %v3576 = vunpack.c.l.b16 %v3507
  %v3577 = vunpack.c.l.b16 %v3508
  %v3578 = vunpack.c.h.b16 %v3508
  %v3579 = vunpack.c.l.b16 %v3509
  %v3580 = vunpack.c.l.b16 %v3510
  %v3581 = vunpack.c.h.b16 %v3510
  %v3582 = vunpack.c.l.b16 %v3511
  %v3583 = vunpack.c.l.b16 %v3512
  %v3584 = vunpack.c.h.b16 %v3512
  %v3585 = vunpack.c.l.b16 %v3513
  %v3586 = vunpack.c.l.b16 %v3514
  %v3587 = vunpack.c.h.b16 %v3514
  %v3588 = vunpack.c.l.b16 %v3515
  %v3589 = vunpack.c.l.b16 %v3516
  %v3590 = vunpack.c.h.b16 %v3516
  %v3591 = vunpack.c.l.b16 %v3517
  %v3592 = vunpack.c.l.b16 %v3518
  %v3593 = vunpack.c.h.b16 %v3518
  %v3594 = vunpack.c.l.b16 %v3519
  %v3595 = vunpack.c.l.b16 %v3520
  %v3596 = vunpack.c.h.b16 %v3520
  %v3597 = vunpack.c.l.b16 %v3521
  %v3598 = vunpack.c.l.b16 %v3522
  %v3599 = vunpack.c.h.b16 %v3522
  %v3600 = vunpack.c.l.b16 %v3523
  %v3601 = vunpack.c.l.b16 %v3524
  %v3602 = vunpack.c.h.b16 %v3524
  %v3603 = vunpack.c.l.b16 %v3525
  %v3604 = vunpack.c.l.b16 %v3526
  %v3605 = vunpack.c.h.b16 %v3526
  %v3606 = vunpack.c.l.b16 %v3527
  %v3607 = vunpack.c.l.b16 %v3528
  %v3608 = vunpack.c.h.b16 %v3528
  %v3609 = vunpack.c.l.b16 %v3529
  %v3610 = vpack.c.b16 %v3565, %v3562
  %v3611 = vpack.c.b16 %v3566, %v3563
  %v3612 = vpack.c.b16 %v3567, %v3564
  %v3613 = vpack.c.b16 %v3571, %v3568
  %v3614 = vpack.c.b16 %v3572, %v3569
  %v3615 = vpack.c.b16 %v3573, %v3570
  %v3616 = vpack.c.b16 %v3577, %v3574
  %v3617 = vpack.c.b16 %v3578, %v3575
  %v3618 = vpack.c.b16 %v3579, %v3576
  %v3619 = vpack.c.b16 %v3583, %v3580
  %v3620 = vpack.c.b16 %v3584, %v3581
  %v3621 = vpack.c.b16 %v3585, %v3582
  %v3622 = vpack.c.b16 %v3589, %v3586
  %v3623 = vpack.c.b16 %v3590, %v3587
  %v3624 = vpack.c.b16 %v3591, %v3588
  %v3625 = vpack.c.b16 %v3595, %v3592
  %v3626 = vpack.c.b16 %v3596, %v3593
  %v3627 = vpack.c.b16 %v3597, %v3594
  %v3628 = vpack.c.b16 %v3601, %v3598
  %v3629 = vpack.c.b16 %v3602, %v3599
  %v3630 = vpack.c.b16 %v3603, %v3600
  %v3631 = vpack.c.b16 %v3607, %v3604
  %v3632 = vpack.c.b16 %v3608, %v3605
  %v3633 = vpack.c.b16 %v3609, %v3606
  %3658 = vmatpush.bf16.msra.mxu0 %v3631
  %3659 = vmatpush.bf16.msra.mxu0 %v3628
  %3660 = vmatpush.bf16.msra.mxu0 %v3625
  %3661 = vmatpush.bf16.msra.mxu0 %v3622
  %3662 = vmatpush.bf16.msra.mxu0 %v3619
  %3663 = vmatpush.bf16.msra.mxu0 %v3616
  %3664 = vmatpush.bf16.msra.mxu0 %v3613
  %3665 = vmatpush.bf16.msra.mxu0 %v3610
  %3666 = vmatmul.bf16.gmra.mxu0 %v3497
  %v3667 = vpop.f32.mrf.mxu0
  %v3668 = vadd.f32 0.0, %v3667
  %v3669 = vpop.f32.mrf.mxu0
  %3670 = vdwg.mxu0
  %3671 = vmatpush.bf16.msra.mxu0 %v3632
  %3672 = vmatpush.bf16.msra.mxu0 %v3629
  %3673 = vmatpush.bf16.msra.mxu0 %v3626
  %3674 = vmatpush.bf16.msra.mxu0 %v3623
  %3675 = vmatpush.bf16.msra.mxu0 %v3620
  %3676 = vmatpush.bf16.msra.mxu0 %v3617
  %3677 = vmatpush.bf16.msra.mxu0 %v3614
  %3678 = vmatpush.bf16.msra.mxu0 %v3611
  %3679 = vmatmul.bf16.gmra.mxu0 %v3497
  %v3680 = vpop.f32.mrf.mxu0
  %v3681 = vadd.f32 0.0, %v3680
  %v3682 = vpop.f32.mrf.mxu0
  %3683 = vdwg.mxu0
  %3684 = vmatpush.bf16.msra.mxu0 %v3633
  %3685 = vmatpush.bf16.msra.mxu0 %v3630
  %3686 = vmatpush.bf16.msra.mxu0 %v3627
  %3687 = vmatpush.bf16.msra.mxu0 %v3624
  %3688 = vmatpush.bf16.msra.mxu0 %v3621
  %3689 = vmatpush.bf16.msra.mxu0 %v3618
  %3690 = vmatpush.bf16.msra.mxu0 %v3615
  %3691 = vmatpush.bf16.msra.mxu0 %v3612
  %3692 = vmatmul.bf16.gmra.mxu0 %v3497
  %v3693 = vpop.f32.mrf.mxu0
  %v3694 = vadd.f32 0.0, %v3693
  %v3695 = vpop.f32.mrf.mxu0
  %3696 = vdwg.mxu0
  %v3697 = vadd.f32 %v3468, %v3668
  %v3698 = vadd.f32 %v3481, %v3681
  %v3699 = vxor.u32 %v3697, 2147483648
  %v3700 = vxor.u32 %v3698, 2147483648
  %v3701 = vmul.f32 %v3699, 1.442695
  %v3702 = vpow.pop %v3701
  %v3703 = vmul.f32 %v3700, 1.442695
  %v3704 = vpow.pop %v3703
  %v3705 = vadd.f32 %v3702, 1.0
  %v3706 = vadd.f32 %v3704, 1.0
  %v3707 = vrcp.pop %v3705
  %v3708 = vmul.f32 %v3705, %v3707
  %v3709 = vsub.f32 1.0, %v3708
  %v3710 = vmul.f32 %v3707, %v3709
  %v3711 = vadd.f32 %v3707, %v3710
  %vm3712 = vweird.f32 %v3705
  %vm3713 = vweird.f32 %v3707
  %vm3714 = vmor %vm3712, %vm3713
  %v3715 = vsel %vm3714, %v3707, %v3711
  %v3716 = vand.u32 2147483647, %v3705
  %vm3717 = vcmp.eq.f32.partialorder %v3716, 8.507059e+37
  %v3718 = vand.u32 %v3705, 2147483648
  %v3719 = vor.u32 1.1754944e-38, %v3718
  %v3720 = vsel %vm3717, %v3719, %v3715
  %v3721 = vmul.f32 1.0, %v3720
  %v3722 = vrcp.pop %v3706
  %v3723 = vmul.f32 %v3706, %v3722
  %v3724 = vsub.f32 1.0, %v3723
  %v3725 = vmul.f32 %v3722, %v3724
  %v3726 = vadd.f32 %v3722, %v3725
  %vm3727 = vweird.f32 %v3706
  %vm3728 = vweird.f32 %v3722
  %vm3729 = vmor %vm3727, %vm3728
  %v3730 = vsel %vm3729, %v3722, %v3726
  %v3731 = vand.u32 2147483647, %v3706
  %vm3732 = vcmp.eq.f32.partialorder %v3731, 8.507059e+37
  %v3733 = vand.u32 %v3706, 2147483648
  %v3734 = vor.u32 1.1754944e-38, %v3733
  %v3735 = vsel %vm3732, %v3734, %v3730
  %v3736 = vmul.f32 1.0, %v3735
  %v3737 = vld [vmem:[%s8] sm:$0x1]
  %v3739 = vperm.slane %v3737, 0
  %v3741 = vadd.f32 %v3694, %v3739
  %v3742 = vmul.f32 %v3721, %v3741
  %v3743 = vadd.f32 %v3494, %v3742
  %v3744 = vtanh.pop %v3743
  %v3745 = vsub.f32 1.0, %v3736
  %v3746 = vmul.f32 %v3745, %v3744
  %v3747 = vmul.f32 %v3736, %v3288
  %v3748 = vadd.f32 %v3746, %v3747
  %3749 = vst [vmem:[%s509] sm:$0xff] %v3748
  %s3750 = scalar_lea.vmem %s0, 32
  %v3751 = vld [vmem:[%s3750] sm:$0xff]
  %v3752 = vld [vmem:[#allocation2] sm:$0xff]
  %v3753 = vpack.c.bf16 %v3751, %v3751
  %v3754 = vld [vmem:[%s1] sm:$0xff]
  %v3755 = vld [vmem:[%s1 + $0x8] sm:$0xf]
  %v3756 = vld [vmem:[%s1 + $0xc] sm:$0xff]
  %v3757 = vld [vmem:[%s1 + $0x14] sm:$0xf]
  %v3758 = vld [vmem:[%s1 + $0x18] sm:$0xff]
  %v3759 = vld [vmem:[%s1 + $0x20] sm:$0xf]
  %v3760 = vld [vmem:[%s1 + $0x24] sm:$0xff]
  %v3761 = vld [vmem:[%s1 + $0x2c] sm:$0xf]
  %v3762 = vld [vmem:[%s1 + $0x30] sm:$0xff]
  %v3763 = vld [vmem:[%s1 + $0x38] sm:$0xf]
  %v3764 = vld [vmem:[%s1 + $0x3c] sm:$0xff]
  %v3765 = vld [vmem:[%s1 + $0x44] sm:$0xf]
  %v3766 = vld [vmem:[%s1 + $0x48] sm:$0xff]
  %v3767 = vld [vmem:[%s1 + $0x50] sm:$0xf]
  %v3768 = vld [vmem:[%s1 + $0x54] sm:$0xff]
  %v3769 = vld [vmem:[%s1 + $0x5c] sm:$0xf]
  %v3770 = vld [vmem:[%s1 + $0x60] sm:$0xff]
  %v3771 = vld [vmem:[%s1 + $0x68] sm:$0xf]
  %v3772 = vld [vmem:[%s1 + $0x6c] sm:$0xff]
  %v3773 = vld [vmem:[%s1 + $0x74] sm:$0xf]
  %v3774 = vld [vmem:[%s1 + $0x78] sm:$0xff]
  %v3775 = vld [vmem:[%s1 + $0x80] sm:$0xf]
  %v3776 = vld [vmem:[%s1 + $0x84] sm:$0xff]
  %v3777 = vld [vmem:[%s1 + $0x8c] sm:$0xf]
  %v3778 = vld [vmem:[%s1 + $0x90] sm:$0xff]
  %v3779 = vld [vmem:[%s1 + $0x98] sm:$0xf]
  %v3780 = vld [vmem:[%s1 + $0x9c] sm:$0xff]
  %v3781 = vld [vmem:[%s1 + $0xa4] sm:$0xf]
  %v3782 = vld [vmem:[%s1 + $0xa8] sm:$0xff]
  %v3783 = vld [vmem:[%s1 + $0xb0] sm:$0xf]
  %v3784 = vld [vmem:[%s1 + $0xb4] sm:$0xff]
  %v3785 = vld [vmem:[%s1 + $0xbc] sm:$0xf]
  %v3786 = vld [vmem:[%s2] sm:$0x7]
  %v3788 = vperm.slane %v3786, 0
  %v3789 = vperm.slane %v3786, 1
  %v3790 = vperm.slane %v3786, 2
  %v3826 = vunpack.c.l.b16 %v3754
  %v3827 = vunpack.c.h.b16 %v3754
  %v3828 = vunpack.c.l.b16 %v3755
  %v3829 = vunpack.c.l.b16 %v3756
  %v3830 = vunpack.c.h.b16 %v3756
  %v3831 = vunpack.c.l.b16 %v3757
  %v3832 = vunpack.c.l.b16 %v3758
  %v3833 = vunpack.c.h.b16 %v3758
  %v3834 = vunpack.c.l.b16 %v3759
  %v3835 = vunpack.c.l.b16 %v3760
  %v3836 = vunpack.c.h.b16 %v3760
  %v3837 = vunpack.c.l.b16 %v3761
  %v3838 = vunpack.c.l.b16 %v3762
  %v3839 = vunpack.c.h.b16 %v3762
  %v3840 = vunpack.c.l.b16 %v3763
  %v3841 = vunpack.c.l.b16 %v3764
  %v3842 = vunpack.c.h.b16 %v3764
  %v3843 = vunpack.c.l.b16 %v3765
  %v3844 = vunpack.c.l.b16 %v3766
  %v3845 = vunpack.c.h.b16 %v3766
  %v3846 = vunpack.c.l.b16 %v3767
  %v3847 = vunpack.c.l.b16 %v3768
  %v3848 = vunpack.c.h.b16 %v3768
  %v3849 = vunpack.c.l.b16 %v3769
  %v3850 = vunpack.c.l.b16 %v3770
  %v3851 = vunpack.c.h.b16 %v3770
  %v3852 = vunpack.c.l.b16 %v3771
  %v3853 = vunpack.c.l.b16 %v3772
  %v3854 = vunpack.c.h.b16 %v3772
  %v3855 = vunpack.c.l.b16 %v3773
  %v3856 = vunpack.c.l.b16 %v3774
  %v3857 = vunpack.c.h.b16 %v3774
  %v3858 = vunpack.c.l.b16 %v3775
  %v3859 = vunpack.c.l.b16 %v3776
  %v3860 = vunpack.c.h.b16 %v3776
  %v3861 = vunpack.c.l.b16 %v3777
  %v3862 = vunpack.c.l.b16 %v3778
  %v3863 = vunpack.c.h.b16 %v3778
  %v3864 = vunpack.c.l.b16 %v3779
  %v3865 = vunpack.c.l.b16 %v3780
  %v3866 = vunpack.c.h.b16 %v3780
  %v3867 = vunpack.c.l.b16 %v3781
  %v3868 = vunpack.c.l.b16 %v3782
  %v3869 = vunpack.c.h.b16 %v3782
  %v3870 = vunpack.c.l.b16 %v3783
  %v3871 = vunpack.c.l.b16 %v3784
  %v3872 = vunpack.c.h.b16 %v3784
  %v3873 = vunpack.c.l.b16 %v3785
  %v3874 = vpack.c.b16 %v3829, %v3826
  %v3875 = vpack.c.b16 %v3830, %v3827
  %v3876 = vpack.c.b16 %v3831, %v3828
  %v3877 = vpack.c.b16 %v3835, %v3832
  %v3878 = vpack.c.b16 %v3836, %v3833
  %v3879 = vpack.c.b16 %v3837, %v3834
  %v3880 = vpack.c.b16 %v3841, %v3838
  %v3881 = vpack.c.b16 %v3842, %v3839
  %v3882 = vpack.c.b16 %v3843, %v3840
  %v3883 = vpack.c.b16 %v3847, %v3844
  %v3884 = vpack.c.b16 %v3848, %v3845
  %v3885 = vpack.c.b16 %v3849, %v3846
  %v3886 = vpack.c.b16 %v3853, %v3850
  %v3887 = vpack.c.b16 %v3854, %v3851
  %v3888 = vpack.c.b16 %v3855, %v3852
  %v3889 = vpack.c.b16 %v3859, %v3856
  %v3890 = vpack.c.b16 %v3860, %v3857
  %v3891 = vpack.c.b16 %v3861, %v3858
  %v3892 = vpack.c.b16 %v3865, %v3862
  %v3893 = vpack.c.b16 %v3866, %v3863
  %v3894 = vpack.c.b16 %v3867, %v3864
  %v3895 = vpack.c.b16 %v3871, %v3868
  %v3896 = vpack.c.b16 %v3872, %v3869
  %v3897 = vpack.c.b16 %v3873, %v3870
  %3922 = vmatpush.bf16.msra.mxu0 %v3895
  %3923 = vmatpush.bf16.msra.mxu0 %v3892
  %3924 = vmatpush.bf16.msra.mxu0 %v3889
  %3925 = vmatpush.bf16.msra.mxu0 %v3886
  %3926 = vmatpush.bf16.msra.mxu0 %v3883
  %3927 = vmatpush.bf16.msra.mxu0 %v3880
  %3928 = vmatpush.bf16.msra.mxu0 %v3877
  %3929 = vmatpush.bf16.msra.mxu0 %v3874
  %3930 = vmatmul.bf16.gmra.mxu0 %v3753
  %v3931 = vpop.f32.mrf.mxu0
  %v3932 = vadd.f32 %v3788, %v3931
  %v3933 = vpop.f32.mrf.mxu0
  %3934 = vdwg.mxu0
  %3935 = vmatpush.bf16.msra.mxu0 %v3896
  %3936 = vmatpush.bf16.msra.mxu0 %v3893
  %3937 = vmatpush.bf16.msra.mxu0 %v3890
  %3938 = vmatpush.bf16.msra.mxu0 %v3887
  %3939 = vmatpush.bf16.msra.mxu0 %v3884
  %3940 = vmatpush.bf16.msra.mxu0 %v3881
  %3941 = vmatpush.bf16.msra.mxu0 %v3878
  %3942 = vmatpush.bf16.msra.mxu0 %v3875
  %3943 = vmatmul.bf16.gmra.mxu0 %v3753
  %v3944 = vpop.f32.mrf.mxu0
  %v3945 = vadd.f32 %v3789, %v3944
  %v3946 = vpop.f32.mrf.mxu0
  %3947 = vdwg.mxu0
  %3948 = vmatpush.bf16.msra.mxu0 %v3897
  %3949 = vmatpush.bf16.msra.mxu0 %v3894
  %3950 = vmatpush.bf16.msra.mxu0 %v3891
  %3951 = vmatpush.bf16.msra.mxu0 %v3888
  %3952 = vmatpush.bf16.msra.mxu0 %v3885
  %3953 = vmatpush.bf16.msra.mxu0 %v3882
  %3954 = vmatpush.bf16.msra.mxu0 %v3879
  %3955 = vmatpush.bf16.msra.mxu0 %v3876
  %3956 = vmatmul.bf16.gmra.mxu0 %v3753
  %v3957 = vpop.f32.mrf.mxu0
  %v3958 = vadd.f32 %v3790, %v3957
  %v3959 = vpop.f32.mrf.mxu0
  %3960 = vdwg.mxu0
  %v3961 = vpack.c.bf16 %v3752, %v3752
  %v3962 = vld [vmem:[%s3] sm:$0xff]
  %v3963 = vld [vmem:[%s3 + $0x8] sm:$0xf]
  %v3964 = vld [vmem:[%s3 + $0xc] sm:$0xff]
  %v3965 = vld [vmem:[%s3 + $0x14] sm:$0xf]
  %v3966 = vld [vmem:[%s3 + $0x18] sm:$0xff]
  %v3967 = vld [vmem:[%s3 + $0x20] sm:$0xf]
  %v3968 = vld [vmem:[%s3 + $0x24] sm:$0xff]
  %v3969 = vld [vmem:[%s3 + $0x2c] sm:$0xf]
  %v3970 = vld [vmem:[%s3 + $0x30] sm:$0xff]
  %v3971 = vld [vmem:[%s3 + $0x38] sm:$0xf]
  %v3972 = vld [vmem:[%s3 + $0x3c] sm:$0xff]
  %v3973 = vld [vmem:[%s3 + $0x44] sm:$0xf]
  %v3974 = vld [vmem:[%s3 + $0x48] sm:$0xff]
  %v3975 = vld [vmem:[%s3 + $0x50] sm:$0xf]
  %v3976 = vld [vmem:[%s3 + $0x54] sm:$0xff]
  %v3977 = vld [vmem:[%s3 + $0x5c] sm:$0xf]
  %v3978 = vld [vmem:[%s3 + $0x60] sm:$0xff]
  %v3979 = vld [vmem:[%s3 + $0x68] sm:$0xf]
  %v3980 = vld [vmem:[%s3 + $0x6c] sm:$0xff]
  %v3981 = vld [vmem:[%s3 + $0x74] sm:$0xf]
  %v3982 = vld [vmem:[%s3 + $0x78] sm:$0xff]
  %v3983 = vld [vmem:[%s3 + $0x80] sm:$0xf]
  %v3984 = vld [vmem:[%s3 + $0x84] sm:$0xff]
  %v3985 = vld [vmem:[%s3 + $0x8c] sm:$0xf]
  %v3986 = vld [vmem:[%s3 + $0x90] sm:$0xff]
  %v3987 = vld [vmem:[%s3 + $0x98] sm:$0xf]
  %v3988 = vld [vmem:[%s3 + $0x9c] sm:$0xff]
  %v3989 = vld [vmem:[%s3 + $0xa4] sm:$0xf]
  %v3990 = vld [vmem:[%s3 + $0xa8] sm:$0xff]
  %v3991 = vld [vmem:[%s3 + $0xb0] sm:$0xf]
  %v3992 = vld [vmem:[%s3 + $0xb4] sm:$0xff]
  %v3993 = vld [vmem:[%s3 + $0xbc] sm:$0xf]
  %v4026 = vunpack.c.l.b16 %v3962
  %v4027 = vunpack.c.h.b16 %v3962
  %v4028 = vunpack.c.l.b16 %v3963
  %v4029 = vunpack.c.l.b16 %v3964
  %v4030 = vunpack.c.h.b16 %v3964
  %v4031 = vunpack.c.l.b16 %v3965
  %v4032 = vunpack.c.l.b16 %v3966
  %v4033 = vunpack.c.h.b16 %v3966
  %v4034 = vunpack.c.l.b16 %v3967
  %v4035 = vunpack.c.l.b16 %v3968
  %v4036 = vunpack.c.h.b16 %v3968
  %v4037 = vunpack.c.l.b16 %v3969
  %v4038 = vunpack.c.l.b16 %v3970
  %v4039 = vunpack.c.h.b16 %v3970
  %v4040 = vunpack.c.l.b16 %v3971
  %v4041 = vunpack.c.l.b16 %v3972
  %v4042 = vunpack.c.h.b16 %v3972
  %v4043 = vunpack.c.l.b16 %v3973
  %v4044 = vunpack.c.l.b16 %v3974
  %v4045 = vunpack.c.h.b16 %v3974
  %v4046 = vunpack.c.l.b16 %v3975
  %v4047 = vunpack.c.l.b16 %v3976
  %v4048 = vunpack.c.h.b16 %v3976
  %v4049 = vunpack.c.l.b16 %v3977
  %v4050 = vunpack.c.l.b16 %v3978
  %v4051 = vunpack.c.h.b16 %v3978
  %v4052 = vunpack.c.l.b16 %v3979
  %v4053 = vunpack.c.l.b16 %v3980
  %v4054 = vunpack.c.h.b16 %v3980
  %v4055 = vunpack.c.l.b16 %v3981
  %v4056 = vunpack.c.l.b16 %v3982
  %v4057 = vunpack.c.h.b16 %v3982
  %v4058 = vunpack.c.l.b16 %v3983
  %v4059 = vunpack.c.l.b16 %v3984
  %v4060 = vunpack.c.h.b16 %v3984
  %v4061 = vunpack.c.l.b16 %v3985
  %v4062 = vunpack.c.l.b16 %v3986
  %v4063 = vunpack.c.h.b16 %v3986
  %v4064 = vunpack.c.l.b16 %v3987
  %v4065 = vunpack.c.l.b16 %v3988
  %v4066 = vunpack.c.h.b16 %v3988
  %v4067 = vunpack.c.l.b16 %v3989
  %v4068 = vunpack.c.l.b16 %v3990
  %v4069 = vunpack.c.h.b16 %v3990
  %v4070 = vunpack.c.l.b16 %v3991
  %v4071 = vunpack.c.l.b16 %v3992
  %v4072 = vunpack.c.h.b16 %v3992
  %v4073 = vunpack.c.l.b16 %v3993
  %v4074 = vpack.c.b16 %v4029, %v4026
  %v4075 = vpack.c.b16 %v4030, %v4027
  %v4076 = vpack.c.b16 %v4031, %v4028
  %v4077 = vpack.c.b16 %v4035, %v4032
  %v4078 = vpack.c.b16 %v4036, %v4033
  %v4079 = vpack.c.b16 %v4037, %v4034
  %v4080 = vpack.c.b16 %v4041, %v4038
  %v4081 = vpack.c.b16 %v4042, %v4039
  %v4082 = vpack.c.b16 %v4043, %v4040
  %v4083 = vpack.c.b16 %v4047, %v4044
  %v4084 = vpack.c.b16 %v4048, %v4045
  %v4085 = vpack.c.b16 %v4049, %v4046
  %v4086 = vpack.c.b16 %v4053, %v4050
  %v4087 = vpack.c.b16 %v4054, %v4051
  %v4088 = vpack.c.b16 %v4055, %v4052
  %v4089 = vpack.c.b16 %v4059, %v4056
  %v4090 = vpack.c.b16 %v4060, %v4057
  %v4091 = vpack.c.b16 %v4061, %v4058
  %v4092 = vpack.c.b16 %v4065, %v4062
  %v4093 = vpack.c.b16 %v4066, %v4063
  %v4094 = vpack.c.b16 %v4067, %v4064
  %v4095 = vpack.c.b16 %v4071, %v4068
  %v4096 = vpack.c.b16 %v4072, %v4069
  %v4097 = vpack.c.b16 %v4073, %v4070
  %4122 = vmatpush.bf16.msra.mxu0 %v4095
  %4123 = vmatpush.bf16.msra.mxu0 %v4092
  %4124 = vmatpush.bf16.msra.mxu0 %v4089
  %4125 = vmatpush.bf16.msra.mxu0 %v4086
  %4126 = vmatpush.bf16.msra.mxu0 %v4083
  %4127 = vmatpush.bf16.msra.mxu0 %v4080
  %4128 = vmatpush.bf16.msra.mxu0 %v4077
  %4129 = vmatpush.bf16.msra.mxu0 %v4074
  %4130 = vmatmul.bf16.gmra.mxu0 %v3961
  %v4131 = vpop.f32.mrf.mxu0
  %v4132 = vadd.f32 0.0, %v4131
  %v4133 = vpop.f32.mrf.mxu0
  %4134 = vdwg.mxu0
  %4135 = vmatpush.bf16.msra.mxu0 %v4096
  %4136 = vmatpush.bf16.msra.mxu0 %v4093
  %4137 = vmatpush.bf16.msra.mxu0 %v4090
  %4138 = vmatpush.bf16.msra.mxu0 %v4087
  %4139 = vmatpush.bf16.msra.mxu0 %v4084
  %4140 = vmatpush.bf16.msra.mxu0 %v4081
  %4141 = vmatpush.bf16.msra.mxu0 %v4078
  %4142 = vmatpush.bf16.msra.mxu0 %v4075
  %4143 = vmatmul.bf16.gmra.mxu0 %v3961
  %v4144 = vpop.f32.mrf.mxu0
  %v4145 = vadd.f32 0.0, %v4144
  %v4146 = vpop.f32.mrf.mxu0
  %4147 = vdwg.mxu0
  %4148 = vmatpush.bf16.msra.mxu0 %v4097
  %4149 = vmatpush.bf16.msra.mxu0 %v4094
  %4150 = vmatpush.bf16.msra.mxu0 %v4091
  %4151 = vmatpush.bf16.msra.mxu0 %v4088
  %4152 = vmatpush.bf16.msra.mxu0 %v4085
  %4153 = vmatpush.bf16.msra.mxu0 %v4082
  %4154 = vmatpush.bf16.msra.mxu0 %v4079
  %4155 = vmatpush.bf16.msra.mxu0 %v4076
  %4156 = vmatmul.bf16.gmra.mxu0 %v3961
  %v4157 = vpop.f32.mrf.mxu0
  %v4158 = vadd.f32 0.0, %v4157
  %v4159 = vpop.f32.mrf.mxu0
  %4160 = vdwg.mxu0
  %v4161 = vadd.f32 %v3932, %v4132
  %v4162 = vadd.f32 %v3945, %v4145
  %v4163 = vxor.u32 %v4161, 2147483648
  %v4164 = vxor.u32 %v4162, 2147483648
  %v4165 = vmul.f32 %v4163, 1.442695
  %v4166 = vpow.pop %v4165
  %v4167 = vmul.f32 %v4164, 1.442695
  %v4168 = vpow.pop %v4167
  %v4169 = vadd.f32 %v4166, 1.0
  %v4170 = vadd.f32 %v4168, 1.0
  %v4171 = vrcp.pop %v4169
  %v4172 = vmul.f32 %v4169, %v4171
  %v4173 = vsub.f32 1.0, %v4172
  %v4174 = vmul.f32 %v4171, %v4173
  %v4175 = vadd.f32 %v4171, %v4174
  %vm4176 = vweird.f32 %v4169
  %vm4177 = vweird.f32 %v4171
  %vm4178 = vmor %vm4176, %vm4177
  %v4179 = vsel %vm4178, %v4171, %v4175
  %v4180 = vand.u32 2147483647, %v4169
  %vm4181 = vcmp.eq.f32.partialorder %v4180, 8.507059e+37
  %v4182 = vand.u32 %v4169, 2147483648
  %v4183 = vor.u32 1.1754944e-38, %v4182
  %v4184 = vsel %vm4181, %v4183, %v4179
  %v4185 = vmul.f32 1.0, %v4184
  %v4186 = vrcp.pop %v4170
  %v4187 = vmul.f32 %v4170, %v4186
  %v4188 = vsub.f32 1.0, %v4187
  %v4189 = vmul.f32 %v4186, %v4188
  %v4190 = vadd.f32 %v4186, %v4189
  %vm4191 = vweird.f32 %v4170
  %vm4192 = vweird.f32 %v4186
  %vm4193 = vmor %vm4191, %vm4192
  %v4194 = vsel %vm4193, %v4186, %v4190
  %v4195 = vand.u32 2147483647, %v4170
  %vm4196 = vcmp.eq.f32.partialorder %v4195, 8.507059e+37
  %v4197 = vand.u32 %v4170, 2147483648
  %v4198 = vor.u32 1.1754944e-38, %v4197
  %v4199 = vsel %vm4196, %v4198, %v4194
  %v4200 = vmul.f32 1.0, %v4199
  %v4201 = vld [vmem:[%s4] sm:$0x1]
  %v4203 = vperm.slane %v4201, 0
  %v4205 = vadd.f32 %v4158, %v4203
  %v4206 = vmul.f32 %v4185, %v4205
  %v4207 = vadd.f32 %v3958, %v4206
  %v4208 = vtanh.pop %v4207
  %v4209 = vsub.f32 1.0, %v4200
  %v4210 = vmul.f32 %v4209, %v4208
  %v4211 = vmul.f32 %v4200, %v3752
  %v4212 = vadd.f32 %v4210, %v4211
  %4213 = vst [vmem:[#allocation2] sm:$0xff] %v4212
  %v4214 = vld [vmem:[%s509] sm:$0xff]
  %v4215 = vpack.c.bf16 %v4212, %v4212
  %v4216 = vld [vmem:[%s5] sm:$0xff]
  %v4217 = vld [vmem:[%s5 + $0x8] sm:$0xf]
  %v4218 = vld [vmem:[%s5 + $0xc] sm:$0xff]
  %v4219 = vld [vmem:[%s5 + $0x14] sm:$0xf]
  %v4220 = vld [vmem:[%s5 + $0x18] sm:$0xff]
  %v4221 = vld [vmem:[%s5 + $0x20] sm:$0xf]
  %v4222 = vld [vmem:[%s5 + $0x24] sm:$0xff]
  %v4223 = vld [vmem:[%s5 + $0x2c] sm:$0xf]
  %v4224 = vld [vmem:[%s5 + $0x30] sm:$0xff]
  %v4225 = vld [vmem:[%s5 + $0x38] sm:$0xf]
  %v4226 = vld [vmem:[%s5 + $0x3c] sm:$0xff]
  %v4227 = vld [vmem:[%s5 + $0x44] sm:$0xf]
  %v4228 = vld [vmem:[%s5 + $0x48] sm:$0xff]
  %v4229 = vld [vmem:[%s5 + $0x50] sm:$0xf]
  %v4230 = vld [vmem:[%s5 + $0x54] sm:$0xff]
  %v4231 = vld [vmem:[%s5 + $0x5c] sm:$0xf]
  %v4232 = vld [vmem:[%s5 + $0x60] sm:$0xff]
  %v4233 = vld [vmem:[%s5 + $0x68] sm:$0xf]
  %v4234 = vld [vmem:[%s5 + $0x6c] sm:$0xff]
  %v4235 = vld [vmem:[%s5 + $0x74] sm:$0xf]
  %v4236 = vld [vmem:[%s5 + $0x78] sm:$0xff]
  %v4237 = vld [vmem:[%s5 + $0x80] sm:$0xf]
  %v4238 = vld [vmem:[%s5 + $0x84] sm:$0xff]
  %v4239 = vld [vmem:[%s5 + $0x8c] sm:$0xf]
  %v4240 = vld [vmem:[%s5 + $0x90] sm:$0xff]
  %v4241 = vld [vmem:[%s5 + $0x98] sm:$0xf]
  %v4242 = vld [vmem:[%s5 + $0x9c] sm:$0xff]
  %v4243 = vld [vmem:[%s5 + $0xa4] sm:$0xf]
  %v4244 = vld [vmem:[%s5 + $0xa8] sm:$0xff]
  %v4245 = vld [vmem:[%s5 + $0xb0] sm:$0xf]
  %v4246 = vld [vmem:[%s5 + $0xb4] sm:$0xff]
  %v4247 = vld [vmem:[%s5 + $0xbc] sm:$0xf]
  %v4248 = vld [vmem:[%s6] sm:$0x7]
  %v4250 = vperm.slane %v4248, 0
  %v4251 = vperm.slane %v4248, 1
  %v4252 = vperm.slane %v4248, 2
  %v4288 = vunpack.c.l.b16 %v4216
  %v4289 = vunpack.c.h.b16 %v4216
  %v4290 = vunpack.c.l.b16 %v4217
  %v4291 = vunpack.c.l.b16 %v4218
  %v4292 = vunpack.c.h.b16 %v4218
  %v4293 = vunpack.c.l.b16 %v4219
  %v4294 = vunpack.c.l.b16 %v4220
  %v4295 = vunpack.c.h.b16 %v4220
  %v4296 = vunpack.c.l.b16 %v4221
  %v4297 = vunpack.c.l.b16 %v4222
  %v4298 = vunpack.c.h.b16 %v4222
  %v4299 = vunpack.c.l.b16 %v4223
  %v4300 = vunpack.c.l.b16 %v4224
  %v4301 = vunpack.c.h.b16 %v4224
  %v4302 = vunpack.c.l.b16 %v4225
  %v4303 = vunpack.c.l.b16 %v4226
  %v4304 = vunpack.c.h.b16 %v4226
  %v4305 = vunpack.c.l.b16 %v4227
  %v4306 = vunpack.c.l.b16 %v4228
  %v4307 = vunpack.c.h.b16 %v4228
  %v4308 = vunpack.c.l.b16 %v4229
  %v4309 = vunpack.c.l.b16 %v4230
  %v4310 = vunpack.c.h.b16 %v4230
  %v4311 = vunpack.c.l.b16 %v4231
  %v4312 = vunpack.c.l.b16 %v4232
  %v4313 = vunpack.c.h.b16 %v4232
  %v4314 = vunpack.c.l.b16 %v4233
  %v4315 = vunpack.c.l.b16 %v4234
  %v4316 = vunpack.c.h.b16 %v4234
  %v4317 = vunpack.c.l.b16 %v4235
  %v4318 = vunpack.c.l.b16 %v4236
  %v4319 = vunpack.c.h.b16 %v4236
  %v4320 = vunpack.c.l.b16 %v4237
  %v4321 = vunpack.c.l.b16 %v4238
  %v4322 = vunpack.c.h.b16 %v4238
  %v4323 = vunpack.c.l.b16 %v4239
  %v4324 = vunpack.c.l.b16 %v4240
  %v4325 = vunpack.c.h.b16 %v4240
  %v4326 = vunpack.c.l.b16 %v4241
  %v4327 = vunpack.c.l.b16 %v4242
  %v4328 = vunpack.c.h.b16 %v4242
  %v4329 = vunpack.c.l.b16 %v4243
  %v4330 = vunpack.c.l.b16 %v4244
  %v4331 = vunpack.c.h.b16 %v4244
  %v4332 = vunpack.c.l.b16 %v4245
  %v4333 = vunpack.c.l.b16 %v4246
  %v4334 = vunpack.c.h.b16 %v4246
  %v4335 = vunpack.c.l.b16 %v4247
  %v4336 = vpack.c.b16 %v4291, %v4288
  %v4337 = vpack.c.b16 %v4292, %v4289
  %v4338 = vpack.c.b16 %v4293, %v4290
  %v4339 = vpack.c.b16 %v4297, %v4294
  %v4340 = vpack.c.b16 %v4298, %v4295
  %v4341 = vpack.c.b16 %v4299, %v4296
  %v4342 = vpack.c.b16 %v4303, %v4300
  %v4343 = vpack.c.b16 %v4304, %v4301
  %v4344 = vpack.c.b16 %v4305, %v4302
  %v4345 = vpack.c.b16 %v4309, %v4306
  %v4346 = vpack.c.b16 %v4310, %v4307
  %v4347 = vpack.c.b16 %v4311, %v4308
  %v4348 = vpack.c.b16 %v4315, %v4312
  %v4349 = vpack.c.b16 %v4316, %v4313
  %v4350 = vpack.c.b16 %v4317, %v4314
  %v4351 = vpack.c.b16 %v4321, %v4318
  %v4352 = vpack.c.b16 %v4322, %v4319
  %v4353 = vpack.c.b16 %v4323, %v4320
  %v4354 = vpack.c.b16 %v4327, %v4324
  %v4355 = vpack.c.b16 %v4328, %v4325
  %v4356 = vpack.c.b16 %v4329, %v4326
  %v4357 = vpack.c.b16 %v4333, %v4330
  %v4358 = vpack.c.b16 %v4334, %v4331
  %v4359 = vpack.c.b16 %v4335, %v4332
  %4384 = vmatpush.bf16.msra.mxu0 %v4357
  %4385 = vmatpush.bf16.msra.mxu0 %v4354
  %4386 = vmatpush.bf16.msra.mxu0 %v4351
  %4387 = vmatpush.bf16.msra.mxu0 %v4348
  %4388 = vmatpush.bf16.msra.mxu0 %v4345
  %4389 = vmatpush.bf16.msra.mxu0 %v4342
  %4390 = vmatpush.bf16.msra.mxu0 %v4339
  %4391 = vmatpush.bf16.msra.mxu0 %v4336
  %4392 = vmatmul.bf16.gmra.mxu0 %v4215
  %v4393 = vpop.f32.mrf.mxu0
  %v4394 = vadd.f32 %v4250, %v4393
  %v4395 = vpop.f32.mrf.mxu0
  %4396 = vdwg.mxu0
  %4397 = vmatpush.bf16.msra.mxu0 %v4358
  %4398 = vmatpush.bf16.msra.mxu0 %v4355
  %4399 = vmatpush.bf16.msra.mxu0 %v4352
  %4400 = vmatpush.bf16.msra.mxu0 %v4349
  %4401 = vmatpush.bf16.msra.mxu0 %v4346
  %4402 = vmatpush.bf16.msra.mxu0 %v4343
  %4403 = vmatpush.bf16.msra.mxu0 %v4340
  %4404 = vmatpush.bf16.msra.mxu0 %v4337
  %4405 = vmatmul.bf16.gmra.mxu0 %v4215
  %v4406 = vpop.f32.mrf.mxu0
  %v4407 = vadd.f32 %v4251, %v4406
  %v4408 = vpop.f32.mrf.mxu0
  %4409 = vdwg.mxu0
  %4410 = vmatpush.bf16.msra.mxu0 %v4359
  %4411 = vmatpush.bf16.msra.mxu0 %v4356
  %4412 = vmatpush.bf16.msra.mxu0 %v4353
  %4413 = vmatpush.bf16.msra.mxu0 %v4350
  %4414 = vmatpush.bf16.msra.mxu0 %v4347
  %4415 = vmatpush.bf16.msra.mxu0 %v4344
  %4416 = vmatpush.bf16.msra.mxu0 %v4341
  %4417 = vmatpush.bf16.msra.mxu0 %v4338
  %4418 = vmatmul.bf16.gmra.mxu0 %v4215
  %v4419 = vpop.f32.mrf.mxu0
  %v4420 = vadd.f32 %v4252, %v4419
  %v4421 = vpop.f32.mrf.mxu0
  %4422 = vdwg.mxu0
  %v4423 = vpack.c.bf16 %v4214, %v4214
  %v4424 = vld [vmem:[%s7] sm:$0xff]
  %v4425 = vld [vmem:[%s7 + $0x8] sm:$0xf]
  %v4426 = vld [vmem:[%s7 + $0xc] sm:$0xff]
  %v4427 = vld [vmem:[%s7 + $0x14] sm:$0xf]
  %v4428 = vld [vmem:[%s7 + $0x18] sm:$0xff]
  %v4429 = vld [vmem:[%s7 + $0x20] sm:$0xf]
  %v4430 = vld [vmem:[%s7 + $0x24] sm:$0xff]
  %v4431 = vld [vmem:[%s7 + $0x2c] sm:$0xf]
  %v4432 = vld [vmem:[%s7 + $0x30] sm:$0xff]
  %v4433 = vld [vmem:[%s7 + $0x38] sm:$0xf]
  %v4434 = vld [vmem:[%s7 + $0x3c] sm:$0xff]
  %v4435 = vld [vmem:[%s7 + $0x44] sm:$0xf]
  %v4436 = vld [vmem:[%s7 + $0x48] sm:$0xff]
  %v4437 = vld [vmem:[%s7 + $0x50] sm:$0xf]
  %v4438 = vld [vmem:[%s7 + $0x54] sm:$0xff]
  %v4439 = vld [vmem:[%s7 + $0x5c] sm:$0xf]
  %v4440 = vld [vmem:[%s7 + $0x60] sm:$0xff]
  %v4441 = vld [vmem:[%s7 + $0x68] sm:$0xf]
  %v4442 = vld [vmem:[%s7 + $0x6c] sm:$0xff]
  %v4443 = vld [vmem:[%s7 + $0x74] sm:$0xf]
  %v4444 = vld [vmem:[%s7 + $0x78] sm:$0xff]
  %v4445 = vld [vmem:[%s7 + $0x80] sm:$0xf]
  %v4446 = vld [vmem:[%s7 + $0x84] sm:$0xff]
  %v4447 = vld [vmem:[%s7 + $0x8c] sm:$0xf]
  %v4448 = vld [vmem:[%s7 + $0x90] sm:$0xff]
  %v4449 = vld [vmem:[%s7 + $0x98] sm:$0xf]
  %v4450 = vld [vmem:[%s7 + $0x9c] sm:$0xff]
  %v4451 = vld [vmem:[%s7 + $0xa4] sm:$0xf]
  %v4452 = vld [vmem:[%s7 + $0xa8] sm:$0xff]
  %v4453 = vld [vmem:[%s7 + $0xb0] sm:$0xf]
  %v4454 = vld [vmem:[%s7 + $0xb4] sm:$0xff]
  %v4455 = vld [vmem:[%s7 + $0xbc] sm:$0xf]
  %v4488 = vunpack.c.l.b16 %v4424
  %v4489 = vunpack.c.h.b16 %v4424
  %v4490 = vunpack.c.l.b16 %v4425
  %v4491 = vunpack.c.l.b16 %v4426
  %v4492 = vunpack.c.h.b16 %v4426
  %v4493 = vunpack.c.l.b16 %v4427
  %v4494 = vunpack.c.l.b16 %v4428
  %v4495 = vunpack.c.h.b16 %v4428
  %v4496 = vunpack.c.l.b16 %v4429
  %v4497 = vunpack.c.l.b16 %v4430
  %v4498 = vunpack.c.h.b16 %v4430
  %v4499 = vunpack.c.l.b16 %v4431
  %v4500 = vunpack.c.l.b16 %v4432
  %v4501 = vunpack.c.h.b16 %v4432
  %v4502 = vunpack.c.l.b16 %v4433
  %v4503 = vunpack.c.l.b16 %v4434
  %v4504 = vunpack.c.h.b16 %v4434
  %v4505 = vunpack.c.l.b16 %v4435
  %v4506 = vunpack.c.l.b16 %v4436
  %v4507 = vunpack.c.h.b16 %v4436
  %v4508 = vunpack.c.l.b16 %v4437
  %v4509 = vunpack.c.l.b16 %v4438
  %v4510 = vunpack.c.h.b16 %v4438
  %v4511 = vunpack.c.l.b16 %v4439
  %v4512 = vunpack.c.l.b16 %v4440
  %v4513 = vunpack.c.h.b16 %v4440
  %v4514 = vunpack.c.l.b16 %v4441
  %v4515 = vunpack.c.l.b16 %v4442
  %v4516 = vunpack.c.h.b16 %v4442
  %v4517 = vunpack.c.l.b16 %v4443
  %v4518 = vunpack.c.l.b16 %v4444
  %v4519 = vunpack.c.h.b16 %v4444
  %v4520 = vunpack.c.l.b16 %v4445
  %v4521 = vunpack.c.l.b16 %v4446
  %v4522 = vunpack.c.h.b16 %v4446
  %v4523 = vunpack.c.l.b16 %v4447
  %v4524 = vunpack.c.l.b16 %v4448
  %v4525 = vunpack.c.h.b16 %v4448
  %v4526 = vunpack.c.l.b16 %v4449
  %v4527 = vunpack.c.l.b16 %v4450
  %v4528 = vunpack.c.h.b16 %v4450
  %v4529 = vunpack.c.l.b16 %v4451
  %v4530 = vunpack.c.l.b16 %v4452
  %v4531 = vunpack.c.h.b16 %v4452
  %v4532 = vunpack.c.l.b16 %v4453
  %v4533 = vunpack.c.l.b16 %v4454
  %v4534 = vunpack.c.h.b16 %v4454
  %v4535 = vunpack.c.l.b16 %v4455
  %v4536 = vpack.c.b16 %v4491, %v4488
  %v4537 = vpack.c.b16 %v4492, %v4489
  %v4538 = vpack.c.b16 %v4493, %v4490
  %v4539 = vpack.c.b16 %v4497, %v4494
  %v4540 = vpack.c.b16 %v4498, %v4495
  %v4541 = vpack.c.b16 %v4499, %v4496
  %v4542 = vpack.c.b16 %v4503, %v4500
  %v4543 = vpack.c.b16 %v4504, %v4501
  %v4544 = vpack.c.b16 %v4505, %v4502
  %v4545 = vpack.c.b16 %v4509, %v4506
  %v4546 = vpack.c.b16 %v4510, %v4507
  %v4547 = vpack.c.b16 %v4511, %v4508
  %v4548 = vpack.c.b16 %v4515, %v4512
  %v4549 = vpack.c.b16 %v4516, %v4513
  %v4550 = vpack.c.b16 %v4517, %v4514
  %v4551 = vpack.c.b16 %v4521, %v4518
  %v4552 = vpack.c.b16 %v4522, %v4519
  %v4553 = vpack.c.b16 %v4523, %v4520
  %v4554 = vpack.c.b16 %v4527, %v4524
  %v4555 = vpack.c.b16 %v4528, %v4525
  %v4556 = vpack.c.b16 %v4529, %v4526
  %v4557 = vpack.c.b16 %v4533, %v4530
  %v4558 = vpack.c.b16 %v4534, %v4531
  %v4559 = vpack.c.b16 %v4535, %v4532
  %4584 = vmatpush.bf16.msra.mxu0 %v4557
  %4585 = vmatpush.bf16.msra.mxu0 %v4554
  %4586 = vmatpush.bf16.msra.mxu0 %v4551
  %4587 = vmatpush.bf16.msra.mxu0 %v4548
  %4588 = vmatpush.bf16.msra.mxu0 %v4545
  %4589 = vmatpush.bf16.msra.mxu0 %v4542
  %4590 = vmatpush.bf16.msra.mxu0 %v4539
  %4591 = vmatpush.bf16.msra.mxu0 %v4536
  %4592 = vmatmul.bf16.gmra.mxu0 %v4423
  %v4593 = vpop.f32.mrf.mxu0
  %v4594 = vadd.f32 0.0, %v4593
  %v4595 = vpop.f32.mrf.mxu0
  %4596 = vdwg.mxu0
  %4597 = vmatpush.bf16.msra.mxu0 %v4558
  %4598 = vmatpush.bf16.msra.mxu0 %v4555
  %4599 = vmatpush.bf16.msra.mxu0 %v4552
  %4600 = vmatpush.bf16.msra.mxu0 %v4549
  %4601 = vmatpush.bf16.msra.mxu0 %v4546
  %4602 = vmatpush.bf16.msra.mxu0 %v4543
  %4603 = vmatpush.bf16.msra.mxu0 %v4540
  %4604 = vmatpush.bf16.msra.mxu0 %v4537
  %4605 = vmatmul.bf16.gmra.mxu0 %v4423
  %v4606 = vpop.f32.mrf.mxu0
  %v4607 = vadd.f32 0.0, %v4606
  %v4608 = vpop.f32.mrf.mxu0
  %4609 = vdwg.mxu0
  %4610 = vmatpush.bf16.msra.mxu0 %v4559
  %4611 = vmatpush.bf16.msra.mxu0 %v4556
  %4612 = vmatpush.bf16.msra.mxu0 %v4553
  %4613 = vmatpush.bf16.msra.mxu0 %v4550
  %4614 = vmatpush.bf16.msra.mxu0 %v4547
  %4615 = vmatpush.bf16.msra.mxu0 %v4544
  %4616 = vmatpush.bf16.msra.mxu0 %v4541
  %4617 = vmatpush.bf16.msra.mxu0 %v4538
  %4618 = vmatmul.bf16.gmra.mxu0 %v4423
  %v4619 = vpop.f32.mrf.mxu0
  %v4620 = vadd.f32 0.0, %v4619
  %v4621 = vpop.f32.mrf.mxu0
  %4622 = vdwg.mxu0
  %v4623 = vadd.f32 %v4394, %v4594
  %v4624 = vadd.f32 %v4407, %v4607
  %v4625 = vxor.u32 %v4623, 2147483648
  %v4626 = vxor.u32 %v4624, 2147483648
  %v4627 = vmul.f32 %v4625, 1.442695
  %v4628 = vpow.pop %v4627
  %v4629 = vmul.f32 %v4626, 1.442695
  %v4630 = vpow.pop %v4629
  %v4631 = vadd.f32 %v4628, 1.0
  %v4632 = vadd.f32 %v4630, 1.0
  %v4633 = vrcp.pop %v4631
  %v4634 = vmul.f32 %v4631, %v4633
  %v4635 = vsub.f32 1.0, %v4634
  %v4636 = vmul.f32 %v4633, %v4635
  %v4637 = vadd.f32 %v4633, %v4636
  %vm4638 = vweird.f32 %v4631
  %vm4639 = vweird.f32 %v4633
  %vm4640 = vmor %vm4638, %vm4639
  %v4641 = vsel %vm4640, %v4633, %v4637
  %v4642 = vand.u32 2147483647, %v4631
  %vm4643 = vcmp.eq.f32.partialorder %v4642, 8.507059e+37
  %v4644 = vand.u32 %v4631, 2147483648
  %v4645 = vor.u32 1.1754944e-38, %v4644
  %v4646 = vsel %vm4643, %v4645, %v4641
  %v4647 = vmul.f32 1.0, %v4646
  %v4648 = vrcp.pop %v4632
  %v4649 = vmul.f32 %v4632, %v4648
  %v4650 = vsub.f32 1.0, %v4649
  %v4651 = vmul.f32 %v4648, %v4650
  %v4652 = vadd.f32 %v4648, %v4651
  %vm4653 = vweird.f32 %v4632
  %vm4654 = vweird.f32 %v4648
  %vm4655 = vmor %vm4653, %vm4654
  %v4656 = vsel %vm4655, %v4648, %v4652
  %v4657 = vand.u32 2147483647, %v4632
  %vm4658 = vcmp.eq.f32.partialorder %v4657, 8.507059e+37
  %v4659 = vand.u32 %v4632, 2147483648
  %v4660 = vor.u32 1.1754944e-38, %v4659
  %v4661 = vsel %vm4658, %v4660, %v4656
  %v4662 = vmul.f32 1.0, %v4661
  %v4663 = vld [vmem:[%s8] sm:$0x1]
  %v4665 = vperm.slane %v4663, 0
  %v4667 = vadd.f32 %v4620, %v4665
  %v4668 = vmul.f32 %v4647, %v4667
  %v4669 = vadd.f32 %v4420, %v4668
  %v4670 = vtanh.pop %v4669
  %v4671 = vsub.f32 1.0, %v4662
  %v4672 = vmul.f32 %v4671, %v4670
  %v4673 = vmul.f32 %v4662, %v4214
  %v4674 = vadd.f32 %v4672, %v4673
  %4675 = vst [vmem:[%s509] sm:$0xff] %v4674
  %s4676 = scalar_lea.vmem %s0, 40
  %v4677 = vld [vmem:[%s4676] sm:$0xff]
  %v4678 = vld [vmem:[#allocation2] sm:$0xff]
  %v4679 = vpack.c.bf16 %v4677, %v4677
  %v4680 = vld [vmem:[%s1] sm:$0xff]
  %v4681 = vld [vmem:[%s1 + $0x8] sm:$0xf]
  %v4682 = vld [vmem:[%s1 + $0xc] sm:$0xff]
  %v4683 = vld [vmem:[%s1 + $0x14] sm:$0xf]
  %v4684 = vld [vmem:[%s1 + $0x18] sm:$0xff]
  %v4685 = vld [vmem:[%s1 + $0x20] sm:$0xf]
  %v4686 = vld [vmem:[%s1 + $0x24] sm:$0xff]
  %v4687 = vld [vmem:[%s1 + $0x2c] sm:$0xf]
  %v4688 = vld [vmem:[%s1 + $0x30] sm:$0xff]
  %v4689 = vld [vmem:[%s1 + $0x38] sm:$0xf]
  %v4690 = vld [vmem:[%s1 + $0x3c] sm:$0xff]
  %v4691 = vld [vmem:[%s1 + $0x44] sm:$0xf]
  %v4692 = vld [vmem:[%s1 + $0x48] sm:$0xff]
  %v4693 = vld [vmem:[%s1 + $0x50] sm:$0xf]
  %v4694 = vld [vmem:[%s1 + $0x54] sm:$0xff]
  %v4695 = vld [vmem:[%s1 + $0x5c] sm:$0xf]
  %v4696 = vld [vmem:[%s1 + $0x60] sm:$0xff]
  %v4697 = vld [vmem:[%s1 + $0x68] sm:$0xf]
  %v4698 = vld [vmem:[%s1 + $0x6c] sm:$0xff]
  %v4699 = vld [vmem:[%s1 + $0x74] sm:$0xf]
  %v4700 = vld [vmem:[%s1 + $0x78] sm:$0xff]
  %v4701 = vld [vmem:[%s1 + $0x80] sm:$0xf]
  %v4702 = vld [vmem:[%s1 + $0x84] sm:$0xff]
  %v4703 = vld [vmem:[%s1 + $0x8c] sm:$0xf]
  %v4704 = vld [vmem:[%s1 + $0x90] sm:$0xff]
  %v4705 = vld [vmem:[%s1 + $0x98] sm:$0xf]
  %v4706 = vld [vmem:[%s1 + $0x9c] sm:$0xff]
  %v4707 = vld [vmem:[%s1 + $0xa4] sm:$0xf]
  %v4708 = vld [vmem:[%s1 + $0xa8] sm:$0xff]
  %v4709 = vld [vmem:[%s1 + $0xb0] sm:$0xf]
  %v4710 = vld [vmem:[%s1 + $0xb4] sm:$0xff]
  %v4711 = vld [vmem:[%s1 + $0xbc] sm:$0xf]
  %v4712 = vld [vmem:[%s2] sm:$0x7]
  %v4714 = vperm.slane %v4712, 0
  %v4715 = vperm.slane %v4712, 1
  %v4716 = vperm.slane %v4712, 2
  %v4752 = vunpack.c.l.b16 %v4680
  %v4753 = vunpack.c.h.b16 %v4680
  %v4754 = vunpack.c.l.b16 %v4681
  %v4755 = vunpack.c.l.b16 %v4682
  %v4756 = vunpack.c.h.b16 %v4682
  %v4757 = vunpack.c.l.b16 %v4683
  %v4758 = vunpack.c.l.b16 %v4684
  %v4759 = vunpack.c.h.b16 %v4684
  %v4760 = vunpack.c.l.b16 %v4685
  %v4761 = vunpack.c.l.b16 %v4686
  %v4762 = vunpack.c.h.b16 %v4686
  %v4763 = vunpack.c.l.b16 %v4687
  %v4764 = vunpack.c.l.b16 %v4688
  %v4765 = vunpack.c.h.b16 %v4688
  %v4766 = vunpack.c.l.b16 %v4689
  %v4767 = vunpack.c.l.b16 %v4690
  %v4768 = vunpack.c.h.b16 %v4690
  %v4769 = vunpack.c.l.b16 %v4691
  %v4770 = vunpack.c.l.b16 %v4692
  %v4771 = vunpack.c.h.b16 %v4692
  %v4772 = vunpack.c.l.b16 %v4693
  %v4773 = vunpack.c.l.b16 %v4694
  %v4774 = vunpack.c.h.b16 %v4694
  %v4775 = vunpack.c.l.b16 %v4695
  %v4776 = vunpack.c.l.b16 %v4696
  %v4777 = vunpack.c.h.b16 %v4696
  %v4778 = vunpack.c.l.b16 %v4697
  %v4779 = vunpack.c.l.b16 %v4698
  %v4780 = vunpack.c.h.b16 %v4698
  %v4781 = vunpack.c.l.b16 %v4699
  %v4782 = vunpack.c.l.b16 %v4700
  %v4783 = vunpack.c.h.b16 %v4700
  %v4784 = vunpack.c.l.b16 %v4701
  %v4785 = vunpack.c.l.b16 %v4702
  %v4786 = vunpack.c.h.b16 %v4702
  %v4787 = vunpack.c.l.b16 %v4703
  %v4788 = vunpack.c.l.b16 %v4704
  %v4789 = vunpack.c.h.b16 %v4704
  %v4790 = vunpack.c.l.b16 %v4705
  %v4791 = vunpack.c.l.b16 %v4706
  %v4792 = vunpack.c.h.b16 %v4706
  %v4793 = vunpack.c.l.b16 %v4707
  %v4794 = vunpack.c.l.b16 %v4708
  %v4795 = vunpack.c.h.b16 %v4708
  %v4796 = vunpack.c.l.b16 %v4709
  %v4797 = vunpack.c.l.b16 %v4710
  %v4798 = vunpack.c.h.b16 %v4710
  %v4799 = vunpack.c.l.b16 %v4711
  %v4800 = vpack.c.b16 %v4755, %v4752
  %v4801 = vpack.c.b16 %v4756, %v4753
  %v4802 = vpack.c.b16 %v4757, %v4754
  %v4803 = vpack.c.b16 %v4761, %v4758
  %v4804 = vpack.c.b16 %v4762, %v4759
  %v4805 = vpack.c.b16 %v4763, %v4760
  %v4806 = vpack.c.b16 %v4767, %v4764
  %v4807 = vpack.c.b16 %v4768, %v4765
  %v4808 = vpack.c.b16 %v4769, %v4766
  %v4809 = vpack.c.b16 %v4773, %v4770
  %v4810 = vpack.c.b16 %v4774, %v4771
  %v4811 = vpack.c.b16 %v4775, %v4772
  %v4812 = vpack.c.b16 %v4779, %v4776
  %v4813 = vpack.c.b16 %v4780, %v4777
  %v4814 = vpack.c.b16 %v4781, %v4778
  %v4815 = vpack.c.b16 %v4785, %v4782
  %v4816 = vpack.c.b16 %v4786, %v4783
  %v4817 = vpack.c.b16 %v4787, %v4784
  %v4818 = vpack.c.b16 %v4791, %v4788
  %v4819 = vpack.c.b16 %v4792, %v4789
  %v4820 = vpack.c.b16 %v4793, %v4790
  %v4821 = vpack.c.b16 %v4797, %v4794
  %v4822 = vpack.c.b16 %v4798, %v4795
  %v4823 = vpack.c.b16 %v4799, %v4796
  %4848 = vmatpush.bf16.msra.mxu0 %v4821
  %4849 = vmatpush.bf16.msra.mxu0 %v4818
  %4850 = vmatpush.bf16.msra.mxu0 %v4815
  %4851 = vmatpush.bf16.msra.mxu0 %v4812
  %4852 = vmatpush.bf16.msra.mxu0 %v4809
  %4853 = vmatpush.bf16.msra.mxu0 %v4806
  %4854 = vmatpush.bf16.msra.mxu0 %v4803
  %4855 = vmatpush.bf16.msra.mxu0 %v4800
  %4856 = vmatmul.bf16.gmra.mxu0 %v4679
  %v4857 = vpop.f32.mrf.mxu0
  %v4858 = vadd.f32 %v4714, %v4857
  %v4859 = vpop.f32.mrf.mxu0
  %4860 = vdwg.mxu0
  %4861 = vmatpush.bf16.msra.mxu0 %v4822
  %4862 = vmatpush.bf16.msra.mxu0 %v4819
  %4863 = vmatpush.bf16.msra.mxu0 %v4816
  %4864 = vmatpush.bf16.msra.mxu0 %v4813
  %4865 = vmatpush.bf16.msra.mxu0 %v4810
  %4866 = vmatpush.bf16.msra.mxu0 %v4807
  %4867 = vmatpush.bf16.msra.mxu0 %v4804
  %4868 = vmatpush.bf16.msra.mxu0 %v4801
  %4869 = vmatmul.bf16.gmra.mxu0 %v4679
  %v4870 = vpop.f32.mrf.mxu0
  %v4871 = vadd.f32 %v4715, %v4870
  %v4872 = vpop.f32.mrf.mxu0
  %4873 = vdwg.mxu0
  %4874 = vmatpush.bf16.msra.mxu0 %v4823
  %4875 = vmatpush.bf16.msra.mxu0 %v4820
  %4876 = vmatpush.bf16.msra.mxu0 %v4817
  %4877 = vmatpush.bf16.msra.mxu0 %v4814
  %4878 = vmatpush.bf16.msra.mxu0 %v4811
  %4879 = vmatpush.bf16.msra.mxu0 %v4808
  %4880 = vmatpush.bf16.msra.mxu0 %v4805
  %4881 = vmatpush.bf16.msra.mxu0 %v4802
  %4882 = vmatmul.bf16.gmra.mxu0 %v4679
  %v4883 = vpop.f32.mrf.mxu0
  %v4884 = vadd.f32 %v4716, %v4883
  %v4885 = vpop.f32.mrf.mxu0
  %4886 = vdwg.mxu0
  %v4887 = vpack.c.bf16 %v4678, %v4678
  %v4888 = vld [vmem:[%s3] sm:$0xff]
  %v4889 = vld [vmem:[%s3 + $0x8] sm:$0xf]
  %v4890 = vld [vmem:[%s3 + $0xc] sm:$0xff]
  %v4891 = vld [vmem:[%s3 + $0x14] sm:$0xf]
  %v4892 = vld [vmem:[%s3 + $0x18] sm:$0xff]
  %v4893 = vld [vmem:[%s3 + $0x20] sm:$0xf]
  %v4894 = vld [vmem:[%s3 + $0x24] sm:$0xff]
  %v4895 = vld [vmem:[%s3 + $0x2c] sm:$0xf]
  %v4896 = vld [vmem:[%s3 + $0x30] sm:$0xff]
  %v4897 = vld [vmem:[%s3 + $0x38] sm:$0xf]
  %v4898 = vld [vmem:[%s3 + $0x3c] sm:$0xff]
  %v4899 = vld [vmem:[%s3 + $0x44] sm:$0xf]
  %v4900 = vld [vmem:[%s3 + $0x48] sm:$0xff]
  %v4901 = vld [vmem:[%s3 + $0x50] sm:$0xf]
  %v4902 = vld [vmem:[%s3 + $0x54] sm:$0xff]
  %v4903 = vld [vmem:[%s3 + $0x5c] sm:$0xf]
  %v4904 = vld [vmem:[%s3 + $0x60] sm:$0xff]
  %v4905 = vld [vmem:[%s3 + $0x68] sm:$0xf]
  %v4906 = vld [vmem:[%s3 + $0x6c] sm:$0xff]
  %v4907 = vld [vmem:[%s3 + $0x74] sm:$0xf]
  %v4908 = vld [vmem:[%s3 + $0x78] sm:$0xff]
  %v4909 = vld [vmem:[%s3 + $0x80] sm:$0xf]
  %v4910 = vld [vmem:[%s3 + $0x84] sm:$0xff]
  %v4911 = vld [vmem:[%s3 + $0x8c] sm:$0xf]
  %v4912 = vld [vmem:[%s3 + $0x90] sm:$0xff]
  %v4913 = vld [vmem:[%s3 + $0x98] sm:$0xf]
  %v4914 = vld [vmem:[%s3 + $0x9c] sm:$0xff]
  %v4915 = vld [vmem:[%s3 + $0xa4] sm:$0xf]
  %v4916 = vld [vmem:[%s3 + $0xa8] sm:$0xff]
  %v4917 = vld [vmem:[%s3 + $0xb0] sm:$0xf]
  %v4918 = vld [vmem:[%s3 + $0xb4] sm:$0xff]
  %v4919 = vld [vmem:[%s3 + $0xbc] sm:$0xf]
  %v4952 = vunpack.c.l.b16 %v4888
  %v4953 = vunpack.c.h.b16 %v4888
  %v4954 = vunpack.c.l.b16 %v4889
  %v4955 = vunpack.c.l.b16 %v4890
  %v4956 = vunpack.c.h.b16 %v4890
  %v4957 = vunpack.c.l.b16 %v4891
  %v4958 = vunpack.c.l.b16 %v4892
  %v4959 = vunpack.c.h.b16 %v4892
  %v4960 = vunpack.c.l.b16 %v4893
  %v4961 = vunpack.c.l.b16 %v4894
  %v4962 = vunpack.c.h.b16 %v4894
  %v4963 = vunpack.c.l.b16 %v4895
  %v4964 = vunpack.c.l.b16 %v4896
  %v4965 = vunpack.c.h.b16 %v4896
  %v4966 = vunpack.c.l.b16 %v4897
  %v4967 = vunpack.c.l.b16 %v4898
  %v4968 = vunpack.c.h.b16 %v4898
  %v4969 = vunpack.c.l.b16 %v4899
  %v4970 = vunpack.c.l.b16 %v4900
  %v4971 = vunpack.c.h.b16 %v4900
  %v4972 = vunpack.c.l.b16 %v4901
  %v4973 = vunpack.c.l.b16 %v4902
  %v4974 = vunpack.c.h.b16 %v4902
  %v4975 = vunpack.c.l.b16 %v4903
  %v4976 = vunpack.c.l.b16 %v4904
  %v4977 = vunpack.c.h.b16 %v4904
  %v4978 = vunpack.c.l.b16 %v4905
  %v4979 = vunpack.c.l.b16 %v4906
  %v4980 = vunpack.c.h.b16 %v4906
  %v4981 = vunpack.c.l.b16 %v4907
  %v4982 = vunpack.c.l.b16 %v4908
  %v4983 = vunpack.c.h.b16 %v4908
  %v4984 = vunpack.c.l.b16 %v4909
  %v4985 = vunpack.c.l.b16 %v4910
  %v4986 = vunpack.c.h.b16 %v4910
  %v4987 = vunpack.c.l.b16 %v4911
  %v4988 = vunpack.c.l.b16 %v4912
  %v4989 = vunpack.c.h.b16 %v4912
  %v4990 = vunpack.c.l.b16 %v4913
  %v4991 = vunpack.c.l.b16 %v4914
  %v4992 = vunpack.c.h.b16 %v4914
  %v4993 = vunpack.c.l.b16 %v4915
  %v4994 = vunpack.c.l.b16 %v4916
  %v4995 = vunpack.c.h.b16 %v4916
  %v4996 = vunpack.c.l.b16 %v4917
  %v4997 = vunpack.c.l.b16 %v4918
  %v4998 = vunpack.c.h.b16 %v4918
  %v4999 = vunpack.c.l.b16 %v4919
  %v5000 = vpack.c.b16 %v4955, %v4952
  %v5001 = vpack.c.b16 %v4956, %v4953
  %v5002 = vpack.c.b16 %v4957, %v4954
  %v5003 = vpack.c.b16 %v4961, %v4958
  %v5004 = vpack.c.b16 %v4962, %v4959
  %v5005 = vpack.c.b16 %v4963, %v4960
  %v5006 = vpack.c.b16 %v4967, %v4964
  %v5007 = vpack.c.b16 %v4968, %v4965
  %v5008 = vpack.c.b16 %v4969, %v4966
  %v5009 = vpack.c.b16 %v4973, %v4970
  %v5010 = vpack.c.b16 %v4974, %v4971
  %v5011 = vpack.c.b16 %v4975, %v4972
  %v5012 = vpack.c.b16 %v4979, %v4976
  %v5013 = vpack.c.b16 %v4980, %v4977
  %v5014 = vpack.c.b16 %v4981, %v4978
  %v5015 = vpack.c.b16 %v4985, %v4982
  %v5016 = vpack.c.b16 %v4986, %v4983
  %v5017 = vpack.c.b16 %v4987, %v4984
  %v5018 = vpack.c.b16 %v4991, %v4988
  %v5019 = vpack.c.b16 %v4992, %v4989
  %v5020 = vpack.c.b16 %v4993, %v4990
  %v5021 = vpack.c.b16 %v4997, %v4994
  %v5022 = vpack.c.b16 %v4998, %v4995
  %v5023 = vpack.c.b16 %v4999, %v4996
  %5048 = vmatpush.bf16.msra.mxu0 %v5021
  %5049 = vmatpush.bf16.msra.mxu0 %v5018
  %5050 = vmatpush.bf16.msra.mxu0 %v5015
  %5051 = vmatpush.bf16.msra.mxu0 %v5012
  %5052 = vmatpush.bf16.msra.mxu0 %v5009
  %5053 = vmatpush.bf16.msra.mxu0 %v5006
  %5054 = vmatpush.bf16.msra.mxu0 %v5003
  %5055 = vmatpush.bf16.msra.mxu0 %v5000
  %5056 = vmatmul.bf16.gmra.mxu0 %v4887
  %v5057 = vpop.f32.mrf.mxu0
  %v5058 = vadd.f32 0.0, %v5057
  %v5059 = vpop.f32.mrf.mxu0
  %5060 = vdwg.mxu0
  %5061 = vmatpush.bf16.msra.mxu0 %v5022
  %5062 = vmatpush.bf16.msra.mxu0 %v5019
  %5063 = vmatpush.bf16.msra.mxu0 %v5016
  %5064 = vmatpush.bf16.msra.mxu0 %v5013
  %5065 = vmatpush.bf16.msra.mxu0 %v5010
  %5066 = vmatpush.bf16.msra.mxu0 %v5007
  %5067 = vmatpush.bf16.msra.mxu0 %v5004
  %5068 = vmatpush.bf16.msra.mxu0 %v5001
  %5069 = vmatmul.bf16.gmra.mxu0 %v4887
  %v5070 = vpop.f32.mrf.mxu0
  %v5071 = vadd.f32 0.0, %v5070
  %v5072 = vpop.f32.mrf.mxu0
  %5073 = vdwg.mxu0
  %5074 = vmatpush.bf16.msra.mxu0 %v5023
  %5075 = vmatpush.bf16.msra.mxu0 %v5020
  %5076 = vmatpush.bf16.msra.mxu0 %v5017
  %5077 = vmatpush.bf16.msra.mxu0 %v5014
  %5078 = vmatpush.bf16.msra.mxu0 %v5011
  %5079 = vmatpush.bf16.msra.mxu0 %v5008
  %5080 = vmatpush.bf16.msra.mxu0 %v5005
  %5081 = vmatpush.bf16.msra.mxu0 %v5002
  %5082 = vmatmul.bf16.gmra.mxu0 %v4887
  %v5083 = vpop.f32.mrf.mxu0
  %v5084 = vadd.f32 0.0, %v5083
  %v5085 = vpop.f32.mrf.mxu0
  %5086 = vdwg.mxu0
  %v5087 = vadd.f32 %v4858, %v5058
  %v5088 = vadd.f32 %v4871, %v5071
  %v5089 = vxor.u32 %v5087, 2147483648
  %v5090 = vxor.u32 %v5088, 2147483648
  %v5091 = vmul.f32 %v5089, 1.442695
  %v5092 = vpow.pop %v5091
  %v5093 = vmul.f32 %v5090, 1.442695
  %v5094 = vpow.pop %v5093
  %v5095 = vadd.f32 %v5092, 1.0
  %v5096 = vadd.f32 %v5094, 1.0
  %v5097 = vrcp.pop %v5095
  %v5098 = vmul.f32 %v5095, %v5097
  %v5099 = vsub.f32 1.0, %v5098
  %v5100 = vmul.f32 %v5097, %v5099
  %v5101 = vadd.f32 %v5097, %v5100
  %vm5102 = vweird.f32 %v5095
  %vm5103 = vweird.f32 %v5097
  %vm5104 = vmor %vm5102, %vm5103
  %v5105 = vsel %vm5104, %v5097, %v5101
  %v5106 = vand.u32 2147483647, %v5095
  %vm5107 = vcmp.eq.f32.partialorder %v5106, 8.507059e+37
  %v5108 = vand.u32 %v5095, 2147483648
  %v5109 = vor.u32 1.1754944e-38, %v5108
  %v5110 = vsel %vm5107, %v5109, %v5105
  %v5111 = vmul.f32 1.0, %v5110
  %v5112 = vrcp.pop %v5096
  %v5113 = vmul.f32 %v5096, %v5112
  %v5114 = vsub.f32 1.0, %v5113
  %v5115 = vmul.f32 %v5112, %v5114
  %v5116 = vadd.f32 %v5112, %v5115
  %vm5117 = vweird.f32 %v5096
  %vm5118 = vweird.f32 %v5112
  %vm5119 = vmor %vm5117, %vm5118
  %v5120 = vsel %vm5119, %v5112, %v5116
  %v5121 = vand.u32 2147483647, %v5096
  %vm5122 = vcmp.eq.f32.partialorder %v5121, 8.507059e+37
  %v5123 = vand.u32 %v5096, 2147483648
  %v5124 = vor.u32 1.1754944e-38, %v5123
  %v5125 = vsel %vm5122, %v5124, %v5120
  %v5126 = vmul.f32 1.0, %v5125
  %v5127 = vld [vmem:[%s4] sm:$0x1]
  %v5129 = vperm.slane %v5127, 0
  %v5131 = vadd.f32 %v5084, %v5129
  %v5132 = vmul.f32 %v5111, %v5131
  %v5133 = vadd.f32 %v4884, %v5132
  %v5134 = vtanh.pop %v5133
  %v5135 = vsub.f32 1.0, %v5126
  %v5136 = vmul.f32 %v5135, %v5134
  %v5137 = vmul.f32 %v5126, %v4678
  %v5138 = vadd.f32 %v5136, %v5137
  %5139 = vst [vmem:[#allocation2] sm:$0xff] %v5138
  %v5140 = vld [vmem:[%s509] sm:$0xff]
  %v5141 = vpack.c.bf16 %v5138, %v5138
  %v5142 = vld [vmem:[%s5] sm:$0xff]
  %v5143 = vld [vmem:[%s5 + $0x8] sm:$0xf]
  %v5144 = vld [vmem:[%s5 + $0xc] sm:$0xff]
  %v5145 = vld [vmem:[%s5 + $0x14] sm:$0xf]
  %v5146 = vld [vmem:[%s5 + $0x18] sm:$0xff]
  %v5147 = vld [vmem:[%s5 + $0x20] sm:$0xf]
  %v5148 = vld [vmem:[%s5 + $0x24] sm:$0xff]
  %v5149 = vld [vmem:[%s5 + $0x2c] sm:$0xf]
  %v5150 = vld [vmem:[%s5 + $0x30] sm:$0xff]
  %v5151 = vld [vmem:[%s5 + $0x38] sm:$0xf]
  %v5152 = vld [vmem:[%s5 + $0x3c] sm:$0xff]
  %v5153 = vld [vmem:[%s5 + $0x44] sm:$0xf]
  %v5154 = vld [vmem:[%s5 + $0x48] sm:$0xff]
  %v5155 = vld [vmem:[%s5 + $0x50] sm:$0xf]
  %v5156 = vld [vmem:[%s5 + $0x54] sm:$0xff]
  %v5157 = vld [vmem:[%s5 + $0x5c] sm:$0xf]
  %v5158 = vld [vmem:[%s5 + $0x60] sm:$0xff]
  %v5159 = vld [vmem:[%s5 + $0x68] sm:$0xf]
  %v5160 = vld [vmem:[%s5 + $0x6c] sm:$0xff]
  %v5161 = vld [vmem:[%s5 + $0x74] sm:$0xf]
  %v5162 = vld [vmem:[%s5 + $0x78] sm:$0xff]
  %v5163 = vld [vmem:[%s5 + $0x80] sm:$0xf]
  %v5164 = vld [vmem:[%s5 + $0x84] sm:$0xff]
  %v5165 = vld [vmem:[%s5 + $0x8c] sm:$0xf]
  %v5166 = vld [vmem:[%s5 + $0x90] sm:$0xff]
  %v5167 = vld [vmem:[%s5 + $0x98] sm:$0xf]
  %v5168 = vld [vmem:[%s5 + $0x9c] sm:$0xff]
  %v5169 = vld [vmem:[%s5 + $0xa4] sm:$0xf]
  %v5170 = vld [vmem:[%s5 + $0xa8] sm:$0xff]
  %v5171 = vld [vmem:[%s5 + $0xb0] sm:$0xf]
  %v5172 = vld [vmem:[%s5 + $0xb4] sm:$0xff]
  %v5173 = vld [vmem:[%s5 + $0xbc] sm:$0xf]
  %v5174 = vld [vmem:[%s6] sm:$0x7]
  %v5176 = vperm.slane %v5174, 0
  %v5177 = vperm.slane %v5174, 1
  %v5178 = vperm.slane %v5174, 2
  %v5214 = vunpack.c.l.b16 %v5142
  %v5215 = vunpack.c.h.b16 %v5142
  %v5216 = vunpack.c.l.b16 %v5143
  %v5217 = vunpack.c.l.b16 %v5144
  %v5218 = vunpack.c.h.b16 %v5144
  %v5219 = vunpack.c.l.b16 %v5145
  %v5220 = vunpack.c.l.b16 %v5146
  %v5221 = vunpack.c.h.b16 %v5146
  %v5222 = vunpack.c.l.b16 %v5147
  %v5223 = vunpack.c.l.b16 %v5148
  %v5224 = vunpack.c.h.b16 %v5148
  %v5225 = vunpack.c.l.b16 %v5149
  %v5226 = vunpack.c.l.b16 %v5150
  %v5227 = vunpack.c.h.b16 %v5150
  %v5228 = vunpack.c.l.b16 %v5151
  %v5229 = vunpack.c.l.b16 %v5152
  %v5230 = vunpack.c.h.b16 %v5152
  %v5231 = vunpack.c.l.b16 %v5153
  %v5232 = vunpack.c.l.b16 %v5154
  %v5233 = vunpack.c.h.b16 %v5154
  %v5234 = vunpack.c.l.b16 %v5155
  %v5235 = vunpack.c.l.b16 %v5156
  %v5236 = vunpack.c.h.b16 %v5156
  %v5237 = vunpack.c.l.b16 %v5157
  %v5238 = vunpack.c.l.b16 %v5158
  %v5239 = vunpack.c.h.b16 %v5158
  %v5240 = vunpack.c.l.b16 %v5159
  %v5241 = vunpack.c.l.b16 %v5160
  %v5242 = vunpack.c.h.b16 %v5160
  %v5243 = vunpack.c.l.b16 %v5161
  %v5244 = vunpack.c.l.b16 %v5162
  %v5245 = vunpack.c.h.b16 %v5162
  %v5246 = vunpack.c.l.b16 %v5163
  %v5247 = vunpack.c.l.b16 %v5164
  %v5248 = vunpack.c.h.b16 %v5164
  %v5249 = vunpack.c.l.b16 %v5165
  %v5250 = vunpack.c.l.b16 %v5166
  %v5251 = vunpack.c.h.b16 %v5166
  %v5252 = vunpack.c.l.b16 %v5167
  %v5253 = vunpack.c.l.b16 %v5168
  %v5254 = vunpack.c.h.b16 %v5168
  %v5255 = vunpack.c.l.b16 %v5169
  %v5256 = vunpack.c.l.b16 %v5170
  %v5257 = vunpack.c.h.b16 %v5170
  %v5258 = vunpack.c.l.b16 %v5171
  %v5259 = vunpack.c.l.b16 %v5172
  %v5260 = vunpack.c.h.b16 %v5172
  %v5261 = vunpack.c.l.b16 %v5173
  %v5262 = vpack.c.b16 %v5217, %v5214
  %v5263 = vpack.c.b16 %v5218, %v5215
  %v5264 = vpack.c.b16 %v5219, %v5216
  %v5265 = vpack.c.b16 %v5223, %v5220
  %v5266 = vpack.c.b16 %v5224, %v5221
  %v5267 = vpack.c.b16 %v5225, %v5222
  %v5268 = vpack.c.b16 %v5229, %v5226
  %v5269 = vpack.c.b16 %v5230, %v5227
  %v5270 = vpack.c.b16 %v5231, %v5228
  %v5271 = vpack.c.b16 %v5235, %v5232
  %v5272 = vpack.c.b16 %v5236, %v5233
  %v5273 = vpack.c.b16 %v5237, %v5234
  %v5274 = vpack.c.b16 %v5241, %v5238
  %v5275 = vpack.c.b16 %v5242, %v5239
  %v5276 = vpack.c.b16 %v5243, %v5240
  %v5277 = vpack.c.b16 %v5247, %v5244
  %v5278 = vpack.c.b16 %v5248, %v5245
  %v5279 = vpack.c.b16 %v5249, %v5246
  %v5280 = vpack.c.b16 %v5253, %v5250
  %v5281 = vpack.c.b16 %v5254, %v5251
  %v5282 = vpack.c.b16 %v5255, %v5252
  %v5283 = vpack.c.b16 %v5259, %v5256
  %v5284 = vpack.c.b16 %v5260, %v5257
  %v5285 = vpack.c.b16 %v5261, %v5258
  %5310 = vmatpush.bf16.msra.mxu0 %v5283
  %5311 = vmatpush.bf16.msra.mxu0 %v5280
  %5312 = vmatpush.bf16.msra.mxu0 %v5277
  %5313 = vmatpush.bf16.msra.mxu0 %v5274
  %5314 = vmatpush.bf16.msra.mxu0 %v5271
  %5315 = vmatpush.bf16.msra.mxu0 %v5268
  %5316 = vmatpush.bf16.msra.mxu0 %v5265
  %5317 = vmatpush.bf16.msra.mxu0 %v5262
  %5318 = vmatmul.bf16.gmra.mxu0 %v5141
  %v5319 = vpop.f32.mrf.mxu0
  %v5320 = vadd.f32 %v5176, %v5319
  %v5321 = vpop.f32.mrf.mxu0
  %5322 = vdwg.mxu0
  %5323 = vmatpush.bf16.msra.mxu0 %v5284
  %5324 = vmatpush.bf16.msra.mxu0 %v5281
  %5325 = vmatpush.bf16.msra.mxu0 %v5278
  %5326 = vmatpush.bf16.msra.mxu0 %v5275
  %5327 = vmatpush.bf16.msra.mxu0 %v5272
  %5328 = vmatpush.bf16.msra.mxu0 %v5269
  %5329 = vmatpush.bf16.msra.mxu0 %v5266
  %5330 = vmatpush.bf16.msra.mxu0 %v5263
  %5331 = vmatmul.bf16.gmra.mxu0 %v5141
  %v5332 = vpop.f32.mrf.mxu0
  %v5333 = vadd.f32 %v5177, %v5332
  %v5334 = vpop.f32.mrf.mxu0
  %5335 = vdwg.mxu0
  %5336 = vmatpush.bf16.msra.mxu0 %v5285
  %5337 = vmatpush.bf16.msra.mxu0 %v5282
  %5338 = vmatpush.bf16.msra.mxu0 %v5279
  %5339 = vmatpush.bf16.msra.mxu0 %v5276
  %5340 = vmatpush.bf16.msra.mxu0 %v5273
  %5341 = vmatpush.bf16.msra.mxu0 %v5270
  %5342 = vmatpush.bf16.msra.mxu0 %v5267
  %5343 = vmatpush.bf16.msra.mxu0 %v5264
  %5344 = vmatmul.bf16.gmra.mxu0 %v5141
  %v5345 = vpop.f32.mrf.mxu0
  %v5346 = vadd.f32 %v5178, %v5345
  %v5347 = vpop.f32.mrf.mxu0
  %5348 = vdwg.mxu0
  %v5349 = vpack.c.bf16 %v5140, %v5140
  %v5350 = vld [vmem:[%s7] sm:$0xff]
  %v5351 = vld [vmem:[%s7 + $0x8] sm:$0xf]
  %v5352 = vld [vmem:[%s7 + $0xc] sm:$0xff]
  %v5353 = vld [vmem:[%s7 + $0x14] sm:$0xf]
  %v5354 = vld [vmem:[%s7 + $0x18] sm:$0xff]
  %v5355 = vld [vmem:[%s7 + $0x20] sm:$0xf]
  %v5356 = vld [vmem:[%s7 + $0x24] sm:$0xff]
  %v5357 = vld [vmem:[%s7 + $0x2c] sm:$0xf]
  %v5358 = vld [vmem:[%s7 + $0x30] sm:$0xff]
  %v5359 = vld [vmem:[%s7 + $0x38] sm:$0xf]
  %v5360 = vld [vmem:[%s7 + $0x3c] sm:$0xff]
  %v5361 = vld [vmem:[%s7 + $0x44] sm:$0xf]
  %v5362 = vld [vmem:[%s7 + $0x48] sm:$0xff]
  %v5363 = vld [vmem:[%s7 + $0x50] sm:$0xf]
  %v5364 = vld [vmem:[%s7 + $0x54] sm:$0xff]
  %v5365 = vld [vmem:[%s7 + $0x5c] sm:$0xf]
  %v5366 = vld [vmem:[%s7 + $0x60] sm:$0xff]
  %v5367 = vld [vmem:[%s7 + $0x68] sm:$0xf]
  %v5368 = vld [vmem:[%s7 + $0x6c] sm:$0xff]
  %v5369 = vld [vmem:[%s7 + $0x74] sm:$0xf]
  %v5370 = vld [vmem:[%s7 + $0x78] sm:$0xff]
  %v5371 = vld [vmem:[%s7 + $0x80] sm:$0xf]
  %v5372 = vld [vmem:[%s7 + $0x84] sm:$0xff]
  %v5373 = vld [vmem:[%s7 + $0x8c] sm:$0xf]
  %v5374 = vld [vmem:[%s7 + $0x90] sm:$0xff]
  %v5375 = vld [vmem:[%s7 + $0x98] sm:$0xf]
  %v5376 = vld [vmem:[%s7 + $0x9c] sm:$0xff]
  %v5377 = vld [vmem:[%s7 + $0xa4] sm:$0xf]
  %v5378 = vld [vmem:[%s7 + $0xa8] sm:$0xff]
  %v5379 = vld [vmem:[%s7 + $0xb0] sm:$0xf]
  %v5380 = vld [vmem:[%s7 + $0xb4] sm:$0xff]
  %v5381 = vld [vmem:[%s7 + $0xbc] sm:$0xf]
  %v5414 = vunpack.c.l.b16 %v5350
  %v5415 = vunpack.c.h.b16 %v5350
  %v5416 = vunpack.c.l.b16 %v5351
  %v5417 = vunpack.c.l.b16 %v5352
  %v5418 = vunpack.c.h.b16 %v5352
  %v5419 = vunpack.c.l.b16 %v5353
  %v5420 = vunpack.c.l.b16 %v5354
  %v5421 = vunpack.c.h.b16 %v5354
  %v5422 = vunpack.c.l.b16 %v5355
  %v5423 = vunpack.c.l.b16 %v5356
  %v5424 = vunpack.c.h.b16 %v5356
  %v5425 = vunpack.c.l.b16 %v5357
  %v5426 = vunpack.c.l.b16 %v5358
  %v5427 = vunpack.c.h.b16 %v5358
  %v5428 = vunpack.c.l.b16 %v5359
  %v5429 = vunpack.c.l.b16 %v5360
  %v5430 = vunpack.c.h.b16 %v5360
  %v5431 = vunpack.c.l.b16 %v5361
  %v5432 = vunpack.c.l.b16 %v5362
  %v5433 = vunpack.c.h.b16 %v5362
  %v5434 = vunpack.c.l.b16 %v5363
  %v5435 = vunpack.c.l.b16 %v5364
  %v5436 = vunpack.c.h.b16 %v5364
  %v5437 = vunpack.c.l.b16 %v5365
  %v5438 = vunpack.c.l.b16 %v5366
  %v5439 = vunpack.c.h.b16 %v5366
  %v5440 = vunpack.c.l.b16 %v5367
  %v5441 = vunpack.c.l.b16 %v5368
  %v5442 = vunpack.c.h.b16 %v5368
  %v5443 = vunpack.c.l.b16 %v5369
  %v5444 = vunpack.c.l.b16 %v5370
  %v5445 = vunpack.c.h.b16 %v5370
  %v5446 = vunpack.c.l.b16 %v5371
  %v5447 = vunpack.c.l.b16 %v5372
  %v5448 = vunpack.c.h.b16 %v5372
  %v5449 = vunpack.c.l.b16 %v5373
  %v5450 = vunpack.c.l.b16 %v5374
  %v5451 = vunpack.c.h.b16 %v5374
  %v5452 = vunpack.c.l.b16 %v5375
  %v5453 = vunpack.c.l.b16 %v5376
  %v5454 = vunpack.c.h.b16 %v5376
  %v5455 = vunpack.c.l.b16 %v5377
  %v5456 = vunpack.c.l.b16 %v5378
  %v5457 = vunpack.c.h.b16 %v5378
  %v5458 = vunpack.c.l.b16 %v5379
  %v5459 = vunpack.c.l.b16 %v5380
  %v5460 = vunpack.c.h.b16 %v5380
  %v5461 = vunpack.c.l.b16 %v5381
  %v5462 = vpack.c.b16 %v5417, %v5414
  %v5463 = vpack.c.b16 %v5418, %v5415
  %v5464 = vpack.c.b16 %v5419, %v5416
  %v5465 = vpack.c.b16 %v5423, %v5420
  %v5466 = vpack.c.b16 %v5424, %v5421
  %v5467 = vpack.c.b16 %v5425, %v5422
  %v5468 = vpack.c.b16 %v5429, %v5426
  %v5469 = vpack.c.b16 %v5430, %v5427
  %v5470 = vpack.c.b16 %v5431, %v5428
  %v5471 = vpack.c.b16 %v5435, %v5432
  %v5472 = vpack.c.b16 %v5436, %v5433
  %v5473 = vpack.c.b16 %v5437, %v5434
  %v5474 = vpack.c.b16 %v5441, %v5438
  %v5475 = vpack.c.b16 %v5442, %v5439
  %v5476 = vpack.c.b16 %v5443, %v5440
  %v5477 = vpack.c.b16 %v5447, %v5444
  %v5478 = vpack.c.b16 %v5448, %v5445
  %v5479 = vpack.c.b16 %v5449, %v5446
  %v5480 = vpack.c.b16 %v5453, %v5450
  %v5481 = vpack.c.b16 %v5454, %v5451
  %v5482 = vpack.c.b16 %v5455, %v5452
  %v5483 = vpack.c.b16 %v5459, %v5456
  %v5484 = vpack.c.b16 %v5460, %v5457
  %v5485 = vpack.c.b16 %v5461, %v5458
  %5510 = vmatpush.bf16.msra.mxu0 %v5483
  %5511 = vmatpush.bf16.msra.mxu0 %v5480
  %5512 = vmatpush.bf16.msra.mxu0 %v5477
  %5513 = vmatpush.bf16.msra.mxu0 %v5474
  %5514 = vmatpush.bf16.msra.mxu0 %v5471
  %5515 = vmatpush.bf16.msra.mxu0 %v5468
  %5516 = vmatpush.bf16.msra.mxu0 %v5465
  %5517 = vmatpush.bf16.msra.mxu0 %v5462
  %5518 = vmatmul.bf16.gmra.mxu0 %v5349
  %v5519 = vpop.f32.mrf.mxu0
  %v5520 = vadd.f32 0.0, %v5519
  %v5521 = vpop.f32.mrf.mxu0
  %5522 = vdwg.mxu0
  %5523 = vmatpush.bf16.msra.mxu0 %v5484
  %5524 = vmatpush.bf16.msra.mxu0 %v5481
  %5525 = vmatpush.bf16.msra.mxu0 %v5478
  %5526 = vmatpush.bf16.msra.mxu0 %v5475
  %5527 = vmatpush.bf16.msra.mxu0 %v5472
  %5528 = vmatpush.bf16.msra.mxu0 %v5469
  %5529 = vmatpush.bf16.msra.mxu0 %v5466
  %5530 = vmatpush.bf16.msra.mxu0 %v5463
  %5531 = vmatmul.bf16.gmra.mxu0 %v5349
  %v5532 = vpop.f32.mrf.mxu0
  %v5533 = vadd.f32 0.0, %v5532
  %v5534 = vpop.f32.mrf.mxu0
  %5535 = vdwg.mxu0
  %5536 = vmatpush.bf16.msra.mxu0 %v5485
  %5537 = vmatpush.bf16.msra.mxu0 %v5482
  %5538 = vmatpush.bf16.msra.mxu0 %v5479
  %5539 = vmatpush.bf16.msra.mxu0 %v5476
  %5540 = vmatpush.bf16.msra.mxu0 %v5473
  %5541 = vmatpush.bf16.msra.mxu0 %v5470
  %5542 = vmatpush.bf16.msra.mxu0 %v5467
  %5543 = vmatpush.bf16.msra.mxu0 %v5464
  %5544 = vmatmul.bf16.gmra.mxu0 %v5349
  %v5545 = vpop.f32.mrf.mxu0
  %v5546 = vadd.f32 0.0, %v5545
  %v5547 = vpop.f32.mrf.mxu0
  %5548 = vdwg.mxu0
  %v5549 = vadd.f32 %v5320, %v5520
  %v5550 = vadd.f32 %v5333, %v5533
  %v5551 = vxor.u32 %v5549, 2147483648
  %v5552 = vxor.u32 %v5550, 2147483648
  %v5553 = vmul.f32 %v5551, 1.442695
  %v5554 = vpow.pop %v5553
  %v5555 = vmul.f32 %v5552, 1.442695
  %v5556 = vpow.pop %v5555
  %v5557 = vadd.f32 %v5554, 1.0
  %v5558 = vadd.f32 %v5556, 1.0
  %v5559 = vrcp.pop %v5557
  %v5560 = vmul.f32 %v5557, %v5559
  %v5561 = vsub.f32 1.0, %v5560
  %v5562 = vmul.f32 %v5559, %v5561
  %v5563 = vadd.f32 %v5559, %v5562
  %vm5564 = vweird.f32 %v5557
  %vm5565 = vweird.f32 %v5559
  %vm5566 = vmor %vm5564, %vm5565
  %v5567 = vsel %vm5566, %v5559, %v5563
  %v5568 = vand.u32 2147483647, %v5557
  %vm5569 = vcmp.eq.f32.partialorder %v5568, 8.507059e+37
  %v5570 = vand.u32 %v5557, 2147483648
  %v5571 = vor.u32 1.1754944e-38, %v5570
  %v5572 = vsel %vm5569, %v5571, %v5567
  %v5573 = vmul.f32 1.0, %v5572
  %v5574 = vrcp.pop %v5558
  %v5575 = vmul.f32 %v5558, %v5574
  %v5576 = vsub.f32 1.0, %v5575
  %v5577 = vmul.f32 %v5574, %v5576
  %v5578 = vadd.f32 %v5574, %v5577
  %vm5579 = vweird.f32 %v5558
  %vm5580 = vweird.f32 %v5574
  %vm5581 = vmor %vm5579, %vm5580
  %v5582 = vsel %vm5581, %v5574, %v5578
  %v5583 = vand.u32 2147483647, %v5558
  %vm5584 = vcmp.eq.f32.partialorder %v5583, 8.507059e+37
  %v5585 = vand.u32 %v5558, 2147483648
  %v5586 = vor.u32 1.1754944e-38, %v5585
  %v5587 = vsel %vm5584, %v5586, %v5582
  %v5588 = vmul.f32 1.0, %v5587
  %v5589 = vld [vmem:[%s8] sm:$0x1]
  %v5591 = vperm.slane %v5589, 0
  %v5593 = vadd.f32 %v5546, %v5591
  %v5594 = vmul.f32 %v5573, %v5593
  %v5595 = vadd.f32 %v5346, %v5594
  %v5596 = vtanh.pop %v5595
  %v5597 = vsub.f32 1.0, %v5588
  %v5598 = vmul.f32 %v5597, %v5596
  %v5599 = vmul.f32 %v5588, %v5140
  %v5600 = vadd.f32 %v5598, %v5599
  %5601 = vst [vmem:[%s509] sm:$0xff] %v5600
  %s5602 = scalar_lea.vmem %s0, 48
  %v5603 = vld [vmem:[%s5602] sm:$0xff]
  %v5604 = vld [vmem:[#allocation2] sm:$0xff]
  %v5605 = vpack.c.bf16 %v5603, %v5603
  %v5606 = vld [vmem:[%s1] sm:$0xff]
  %v5607 = vld [vmem:[%s1 + $0x8] sm:$0xf]
  %v5608 = vld [vmem:[%s1 + $0xc] sm:$0xff]
  %v5609 = vld [vmem:[%s1 + $0x14] sm:$0xf]
  %v5610 = vld [vmem:[%s1 + $0x18] sm:$0xff]
  %v5611 = vld [vmem:[%s1 + $0x20] sm:$0xf]
  %v5612 = vld [vmem:[%s1 + $0x24] sm:$0xff]
  %v5613 = vld [vmem:[%s1 + $0x2c] sm:$0xf]
  %v5614 = vld [vmem:[%s1 + $0x30] sm:$0xff]
  %v5615 = vld [vmem:[%s1 + $0x38] sm:$0xf]
  %v5616 = vld [vmem:[%s1 + $0x3c] sm:$0xff]
  %v5617 = vld [vmem:[%s1 + $0x44] sm:$0xf]
  %v5618 = vld [vmem:[%s1 + $0x48] sm:$0xff]
  %v5619 = vld [vmem:[%s1 + $0x50] sm:$0xf]
  %v5620 = vld [vmem:[%s1 + $0x54] sm:$0xff]
  %v5621 = vld [vmem:[%s1 + $0x5c] sm:$0xf]
  %v5622 = vld [vmem:[%s1 + $0x60] sm:$0xff]
  %v5623 = vld [vmem:[%s1 + $0x68] sm:$0xf]
  %v5624 = vld [vmem:[%s1 + $0x6c] sm:$0xff]
  %v5625 = vld [vmem:[%s1 + $0x74] sm:$0xf]
  %v5626 = vld [vmem:[%s1 + $0x78] sm:$0xff]
  %v5627 = vld [vmem:[%s1 + $0x80] sm:$0xf]
  %v5628 = vld [vmem:[%s1 + $0x84] sm:$0xff]
  %v5629 = vld [vmem:[%s1 + $0x8c] sm:$0xf]
  %v5630 = vld [vmem:[%s1 + $0x90] sm:$0xff]
  %v5631 = vld [vmem:[%s1 + $0x98] sm:$0xf]
  %v5632 = vld [vmem:[%s1 + $0x9c] sm:$0xff]
  %v5633 = vld [vmem:[%s1 + $0xa4] sm:$0xf]
  %v5634 = vld [vmem:[%s1 + $0xa8] sm:$0xff]
  %v5635 = vld [vmem:[%s1 + $0xb0] sm:$0xf]
  %v5636 = vld [vmem:[%s1 + $0xb4] sm:$0xff]
  %v5637 = vld [vmem:[%s1 + $0xbc] sm:$0xf]
  %v5638 = vld [vmem:[%s2] sm:$0x7]
  %v5640 = vperm.slane %v5638, 0
  %v5641 = vperm.slane %v5638, 1
  %v5642 = vperm.slane %v5638, 2
  %v5678 = vunpack.c.l.b16 %v5606
  %v5679 = vunpack.c.h.b16 %v5606
  %v5680 = vunpack.c.l.b16 %v5607
  %v5681 = vunpack.c.l.b16 %v5608
  %v5682 = vunpack.c.h.b16 %v5608
  %v5683 = vunpack.c.l.b16 %v5609
  %v5684 = vunpack.c.l.b16 %v5610
  %v5685 = vunpack.c.h.b16 %v5610
  %v5686 = vunpack.c.l.b16 %v5611
  %v5687 = vunpack.c.l.b16 %v5612
  %v5688 = vunpack.c.h.b16 %v5612
  %v5689 = vunpack.c.l.b16 %v5613
  %v5690 = vunpack.c.l.b16 %v5614
  %v5691 = vunpack.c.h.b16 %v5614
  %v5692 = vunpack.c.l.b16 %v5615
  %v5693 = vunpack.c.l.b16 %v5616
  %v5694 = vunpack.c.h.b16 %v5616
  %v5695 = vunpack.c.l.b16 %v5617
  %v5696 = vunpack.c.l.b16 %v5618
  %v5697 = vunpack.c.h.b16 %v5618
  %v5698 = vunpack.c.l.b16 %v5619
  %v5699 = vunpack.c.l.b16 %v5620
  %v5700 = vunpack.c.h.b16 %v5620
  %v5701 = vunpack.c.l.b16 %v5621
  %v5702 = vunpack.c.l.b16 %v5622
  %v5703 = vunpack.c.h.b16 %v5622
  %v5704 = vunpack.c.l.b16 %v5623
  %v5705 = vunpack.c.l.b16 %v5624
  %v5706 = vunpack.c.h.b16 %v5624
  %v5707 = vunpack.c.l.b16 %v5625
  %v5708 = vunpack.c.l.b16 %v5626
  %v5709 = vunpack.c.h.b16 %v5626
  %v5710 = vunpack.c.l.b16 %v5627
  %v5711 = vunpack.c.l.b16 %v5628
  %v5712 = vunpack.c.h.b16 %v5628
  %v5713 = vunpack.c.l.b16 %v5629
  %v5714 = vunpack.c.l.b16 %v5630
  %v5715 = vunpack.c.h.b16 %v5630
  %v5716 = vunpack.c.l.b16 %v5631
  %v5717 = vunpack.c.l.b16 %v5632
  %v5718 = vunpack.c.h.b16 %v5632
  %v5719 = vunpack.c.l.b16 %v5633
  %v5720 = vunpack.c.l.b16 %v5634
  %v5721 = vunpack.c.h.b16 %v5634
  %v5722 = vunpack.c.l.b16 %v5635
  %v5723 = vunpack.c.l.b16 %v5636
  %v5724 = vunpack.c.h.b16 %v5636
  %v5725 = vunpack.c.l.b16 %v5637
  %v5726 = vpack.c.b16 %v5681, %v5678
  %v5727 = vpack.c.b16 %v5682, %v5679
  %v5728 = vpack.c.b16 %v5683, %v5680
  %v5729 = vpack.c.b16 %v5687, %v5684
  %v5730 = vpack.c.b16 %v5688, %v5685
  %v5731 = vpack.c.b16 %v5689, %v5686
  %v5732 = vpack.c.b16 %v5693, %v5690
  %v5733 = vpack.c.b16 %v5694, %v5691
  %v5734 = vpack.c.b16 %v5695, %v5692
  %v5735 = vpack.c.b16 %v5699, %v5696
  %v5736 = vpack.c.b16 %v5700, %v5697
  %v5737 = vpack.c.b16 %v5701, %v5698
  %v5738 = vpack.c.b16 %v5705, %v5702
  %v5739 = vpack.c.b16 %v5706, %v5703
  %v5740 = vpack.c.b16 %v5707, %v5704
  %v5741 = vpack.c.b16 %v5711, %v5708
  %v5742 = vpack.c.b16 %v5712, %v5709
  %v5743 = vpack.c.b16 %v5713, %v5710
  %v5744 = vpack.c.b16 %v5717, %v5714
  %v5745 = vpack.c.b16 %v5718, %v5715
  %v5746 = vpack.c.b16 %v5719, %v5716
  %v5747 = vpack.c.b16 %v5723, %v5720
  %v5748 = vpack.c.b16 %v5724, %v5721
  %v5749 = vpack.c.b16 %v5725, %v5722
  %5774 = vmatpush.bf16.msra.mxu0 %v5747
  %5775 = vmatpush.bf16.msra.mxu0 %v5744
  %5776 = vmatpush.bf16.msra.mxu0 %v5741
  %5777 = vmatpush.bf16.msra.mxu0 %v5738
  %5778 = vmatpush.bf16.msra.mxu0 %v5735
  %5779 = vmatpush.bf16.msra.mxu0 %v5732
  %5780 = vmatpush.bf16.msra.mxu0 %v5729
  %5781 = vmatpush.bf16.msra.mxu0 %v5726
  %5782 = vmatmul.bf16.gmra.mxu0 %v5605
  %v5783 = vpop.f32.mrf.mxu0
  %v5784 = vadd.f32 %v5640, %v5783
  %v5785 = vpop.f32.mrf.mxu0
  %5786 = vdwg.mxu0
  %5787 = vmatpush.bf16.msra.mxu0 %v5748
  %5788 = vmatpush.bf16.msra.mxu0 %v5745
  %5789 = vmatpush.bf16.msra.mxu0 %v5742
  %5790 = vmatpush.bf16.msra.mxu0 %v5739
  %5791 = vmatpush.bf16.msra.mxu0 %v5736
  %5792 = vmatpush.bf16.msra.mxu0 %v5733
  %5793 = vmatpush.bf16.msra.mxu0 %v5730
  %5794 = vmatpush.bf16.msra.mxu0 %v5727
  %5795 = vmatmul.bf16.gmra.mxu0 %v5605
  %v5796 = vpop.f32.mrf.mxu0
  %v5797 = vadd.f32 %v5641, %v5796
  %v5798 = vpop.f32.mrf.mxu0
  %5799 = vdwg.mxu0
  %5800 = vmatpush.bf16.msra.mxu0 %v5749
  %5801 = vmatpush.bf16.msra.mxu0 %v5746
  %5802 = vmatpush.bf16.msra.mxu0 %v5743
  %5803 = vmatpush.bf16.msra.mxu0 %v5740
  %5804 = vmatpush.bf16.msra.mxu0 %v5737
  %5805 = vmatpush.bf16.msra.mxu0 %v5734
  %5806 = vmatpush.bf16.msra.mxu0 %v5731
  %5807 = vmatpush.bf16.msra.mxu0 %v5728
  %5808 = vmatmul.bf16.gmra.mxu0 %v5605
  %v5809 = vpop.f32.mrf.mxu0
  %v5810 = vadd.f32 %v5642, %v5809
  %v5811 = vpop.f32.mrf.mxu0
  %5812 = vdwg.mxu0
  %v5813 = vpack.c.bf16 %v5604, %v5604
  %v5814 = vld [vmem:[%s3] sm:$0xff]
  %v5815 = vld [vmem:[%s3 + $0x8] sm:$0xf]
  %v5816 = vld [vmem:[%s3 + $0xc] sm:$0xff]
  %v5817 = vld [vmem:[%s3 + $0x14] sm:$0xf]
  %v5818 = vld [vmem:[%s3 + $0x18] sm:$0xff]
  %v5819 = vld [vmem:[%s3 + $0x20] sm:$0xf]
  %v5820 = vld [vmem:[%s3 + $0x24] sm:$0xff]
  %v5821 = vld [vmem:[%s3 + $0x2c] sm:$0xf]
  %v5822 = vld [vmem:[%s3 + $0x30] sm:$0xff]
  %v5823 = vld [vmem:[%s3 + $0x38] sm:$0xf]
  %v5824 = vld [vmem:[%s3 + $0x3c] sm:$0xff]
  %v5825 = vld [vmem:[%s3 + $0x44] sm:$0xf]
  %v5826 = vld [vmem:[%s3 + $0x48] sm:$0xff]
  %v5827 = vld [vmem:[%s3 + $0x50] sm:$0xf]
  %v5828 = vld [vmem:[%s3 + $0x54] sm:$0xff]
  %v5829 = vld [vmem:[%s3 + $0x5c] sm:$0xf]
  %v5830 = vld [vmem:[%s3 + $0x60] sm:$0xff]
  %v5831 = vld [vmem:[%s3 + $0x68] sm:$0xf]
  %v5832 = vld [vmem:[%s3 + $0x6c] sm:$0xff]
  %v5833 = vld [vmem:[%s3 + $0x74] sm:$0xf]
  %v5834 = vld [vmem:[%s3 + $0x78] sm:$0xff]
  %v5835 = vld [vmem:[%s3 + $0x80] sm:$0xf]
  %v5836 = vld [vmem:[%s3 + $0x84] sm:$0xff]
  %v5837 = vld [vmem:[%s3 + $0x8c] sm:$0xf]
  %v5838 = vld [vmem:[%s3 + $0x90] sm:$0xff]
  %v5839 = vld [vmem:[%s3 + $0x98] sm:$0xf]
  %v5840 = vld [vmem:[%s3 + $0x9c] sm:$0xff]
  %v5841 = vld [vmem:[%s3 + $0xa4] sm:$0xf]
  %v5842 = vld [vmem:[%s3 + $0xa8] sm:$0xff]
  %v5843 = vld [vmem:[%s3 + $0xb0] sm:$0xf]
  %v5844 = vld [vmem:[%s3 + $0xb4] sm:$0xff]
  %v5845 = vld [vmem:[%s3 + $0xbc] sm:$0xf]
  %v5878 = vunpack.c.l.b16 %v5814
  %v5879 = vunpack.c.h.b16 %v5814
  %v5880 = vunpack.c.l.b16 %v5815
  %v5881 = vunpack.c.l.b16 %v5816
  %v5882 = vunpack.c.h.b16 %v5816
  %v5883 = vunpack.c.l.b16 %v5817
  %v5884 = vunpack.c.l.b16 %v5818
  %v5885 = vunpack.c.h.b16 %v5818
  %v5886 = vunpack.c.l.b16 %v5819
  %v5887 = vunpack.c.l.b16 %v5820
  %v5888 = vunpack.c.h.b16 %v5820
  %v5889 = vunpack.c.l.b16 %v5821
  %v5890 = vunpack.c.l.b16 %v5822
  %v5891 = vunpack.c.h.b16 %v5822
  %v5892 = vunpack.c.l.b16 %v5823
  %v5893 = vunpack.c.l.b16 %v5824
  %v5894 = vunpack.c.h.b16 %v5824
  %v5895 = vunpack.c.l.b16 %v5825
  %v5896 = vunpack.c.l.b16 %v5826
  %v5897 = vunpack.c.h.b16 %v5826
  %v5898 = vunpack.c.l.b16 %v5827
  %v5899 = vunpack.c.l.b16 %v5828
  %v5900 = vunpack.c.h.b16 %v5828
  %v5901 = vunpack.c.l.b16 %v5829
  %v5902 = vunpack.c.l.b16 %v5830
  %v5903 = vunpack.c.h.b16 %v5830
  %v5904 = vunpack.c.l.b16 %v5831
  %v5905 = vunpack.c.l.b16 %v5832
  %v5906 = vunpack.c.h.b16 %v5832
  %v5907 = vunpack.c.l.b16 %v5833
  %v5908 = vunpack.c.l.b16 %v5834
  %v5909 = vunpack.c.h.b16 %v5834
  %v5910 = vunpack.c.l.b16 %v5835
  %v5911 = vunpack.c.l.b16 %v5836
  %v5912 = vunpack.c.h.b16 %v5836
  %v5913 = vunpack.c.l.b16 %v5837
  %v5914 = vunpack.c.l.b16 %v5838
  %v5915 = vunpack.c.h.b16 %v5838
  %v5916 = vunpack.c.l.b16 %v5839
  %v5917 = vunpack.c.l.b16 %v5840
  %v5918 = vunpack.c.h.b16 %v5840
  %v5919 = vunpack.c.l.b16 %v5841
  %v5920 = vunpack.c.l.b16 %v5842
  %v5921 = vunpack.c.h.b16 %v5842
  %v5922 = vunpack.c.l.b16 %v5843
  %v5923 = vunpack.c.l.b16 %v5844
  %v5924 = vunpack.c.h.b16 %v5844
  %v5925 = vunpack.c.l.b16 %v5845
  %v5926 = vpack.c.b16 %v5881, %v5878
  %v5927 = vpack.c.b16 %v5882, %v5879
  %v5928 = vpack.c.b16 %v5883, %v5880
  %v5929 = vpack.c.b16 %v5887, %v5884
  %v5930 = vpack.c.b16 %v5888, %v5885
  %v5931 = vpack.c.b16 %v5889, %v5886
  %v5932 = vpack.c.b16 %v5893, %v5890
  %v5933 = vpack.c.b16 %v5894, %v5891
  %v5934 = vpack.c.b16 %v5895, %v5892
  %v5935 = vpack.c.b16 %v5899, %v5896
  %v5936 = vpack.c.b16 %v5900, %v5897
  %v5937 = vpack.c.b16 %v5901, %v5898
  %v5938 = vpack.c.b16 %v5905, %v5902
  %v5939 = vpack.c.b16 %v5906, %v5903
  %v5940 = vpack.c.b16 %v5907, %v5904
  %v5941 = vpack.c.b16 %v5911, %v5908
  %v5942 = vpack.c.b16 %v5912, %v5909
  %v5943 = vpack.c.b16 %v5913, %v5910
  %v5944 = vpack.c.b16 %v5917, %v5914
  %v5945 = vpack.c.b16 %v5918, %v5915
  %v5946 = vpack.c.b16 %v5919, %v5916
  %v5947 = vpack.c.b16 %v5923, %v5920
  %v5948 = vpack.c.b16 %v5924, %v5921
  %v5949 = vpack.c.b16 %v5925, %v5922
  %5974 = vmatpush.bf16.msra.mxu0 %v5947
  %5975 = vmatpush.bf16.msra.mxu0 %v5944
  %5976 = vmatpush.bf16.msra.mxu0 %v5941
  %5977 = vmatpush.bf16.msra.mxu0 %v5938
  %5978 = vmatpush.bf16.msra.mxu0 %v5935
  %5979 = vmatpush.bf16.msra.mxu0 %v5932
  %5980 = vmatpush.bf16.msra.mxu0 %v5929
  %5981 = vmatpush.bf16.msra.mxu0 %v5926
  %5982 = vmatmul.bf16.gmra.mxu0 %v5813
  %v5983 = vpop.f32.mrf.mxu0
  %v5984 = vadd.f32 0.0, %v5983
  %v5985 = vpop.f32.mrf.mxu0
  %5986 = vdwg.mxu0
  %5987 = vmatpush.bf16.msra.mxu0 %v5948
  %5988 = vmatpush.bf16.msra.mxu0 %v5945
  %5989 = vmatpush.bf16.msra.mxu0 %v5942
  %5990 = vmatpush.bf16.msra.mxu0 %v5939
  %5991 = vmatpush.bf16.msra.mxu0 %v5936
  %5992 = vmatpush.bf16.msra.mxu0 %v5933
  %5993 = vmatpush.bf16.msra.mxu0 %v5930
  %5994 = vmatpush.bf16.msra.mxu0 %v5927
  %5995 = vmatmul.bf16.gmra.mxu0 %v5813
  %v5996 = vpop.f32.mrf.mxu0
  %v5997 = vadd.f32 0.0, %v5996
  %v5998 = vpop.f32.mrf.mxu0
  %5999 = vdwg.mxu0
  %6000 = vmatpush.bf16.msra.mxu0 %v5949
  %6001 = vmatpush.bf16.msra.mxu0 %v5946
  %6002 = vmatpush.bf16.msra.mxu0 %v5943
  %6003 = vmatpush.bf16.msra.mxu0 %v5940
  %6004 = vmatpush.bf16.msra.mxu0 %v5937
  %6005 = vmatpush.bf16.msra.mxu0 %v5934
  %6006 = vmatpush.bf16.msra.mxu0 %v5931
  %6007 = vmatpush.bf16.msra.mxu0 %v5928
  %6008 = vmatmul.bf16.gmra.mxu0 %v5813
  %v6009 = vpop.f32.mrf.mxu0
  %v6010 = vadd.f32 0.0, %v6009
  %v6011 = vpop.f32.mrf.mxu0
  %6012 = vdwg.mxu0
  %v6013 = vadd.f32 %v5784, %v5984
  %v6014 = vadd.f32 %v5797, %v5997
  %v6015 = vxor.u32 %v6013, 2147483648
  %v6016 = vxor.u32 %v6014, 2147483648
  %v6017 = vmul.f32 %v6015, 1.442695
  %v6018 = vpow.pop %v6017
  %v6019 = vmul.f32 %v6016, 1.442695
  %v6020 = vpow.pop %v6019
  %v6021 = vadd.f32 %v6018, 1.0
  %v6022 = vadd.f32 %v6020, 1.0
  %v6023 = vrcp.pop %v6021
  %v6024 = vmul.f32 %v6021, %v6023
  %v6025 = vsub.f32 1.0, %v6024
  %v6026 = vmul.f32 %v6023, %v6025
  %v6027 = vadd.f32 %v6023, %v6026
  %vm6028 = vweird.f32 %v6021
  %vm6029 = vweird.f32 %v6023
  %vm6030 = vmor %vm6028, %vm6029
  %v6031 = vsel %vm6030, %v6023, %v6027
  %v6032 = vand.u32 2147483647, %v6021
  %vm6033 = vcmp.eq.f32.partialorder %v6032, 8.507059e+37
  %v6034 = vand.u32 %v6021, 2147483648
  %v6035 = vor.u32 1.1754944e-38, %v6034
  %v6036 = vsel %vm6033, %v6035, %v6031
  %v6037 = vmul.f32 1.0, %v6036
  %v6038 = vrcp.pop %v6022
  %v6039 = vmul.f32 %v6022, %v6038
  %v6040 = vsub.f32 1.0, %v6039
  %v6041 = vmul.f32 %v6038, %v6040
  %v6042 = vadd.f32 %v6038, %v6041
  %vm6043 = vweird.f32 %v6022
  %vm6044 = vweird.f32 %v6038
  %vm6045 = vmor %vm6043, %vm6044
  %v6046 = vsel %vm6045, %v6038, %v6042
  %v6047 = vand.u32 2147483647, %v6022
  %vm6048 = vcmp.eq.f32.partialorder %v6047, 8.507059e+37
  %v6049 = vand.u32 %v6022, 2147483648
  %v6050 = vor.u32 1.1754944e-38, %v6049
  %v6051 = vsel %vm6048, %v6050, %v6046
  %v6052 = vmul.f32 1.0, %v6051
  %v6053 = vld [vmem:[%s4] sm:$0x1]
  %v6055 = vperm.slane %v6053, 0
  %v6057 = vadd.f32 %v6010, %v6055
  %v6058 = vmul.f32 %v6037, %v6057
  %v6059 = vadd.f32 %v5810, %v6058
  %v6060 = vtanh.pop %v6059
  %v6061 = vsub.f32 1.0, %v6052
  %v6062 = vmul.f32 %v6061, %v6060
  %v6063 = vmul.f32 %v6052, %v5604
  %v6064 = vadd.f32 %v6062, %v6063
  %6065 = vst [vmem:[#allocation2] sm:$0xff] %v6064
  %v6066 = vld [vmem:[%s509] sm:$0xff]
  %v6067 = vpack.c.bf16 %v6064, %v6064
  %v6068 = vld [vmem:[%s5] sm:$0xff]
  %v6069 = vld [vmem:[%s5 + $0x8] sm:$0xf]
  %v6070 = vld [vmem:[%s5 + $0xc] sm:$0xff]
  %v6071 = vld [vmem:[%s5 + $0x14] sm:$0xf]
  %v6072 = vld [vmem:[%s5 + $0x18] sm:$0xff]
  %v6073 = vld [vmem:[%s5 + $0x20] sm:$0xf]
  %v6074 = vld [vmem:[%s5 + $0x24] sm:$0xff]
  %v6075 = vld [vmem:[%s5 + $0x2c] sm:$0xf]
  %v6076 = vld [vmem:[%s5 + $0x30] sm:$0xff]
  %v6077 = vld [vmem:[%s5 + $0x38] sm:$0xf]
  %v6078 = vld [vmem:[%s5 + $0x3c] sm:$0xff]
  %v6079 = vld [vmem:[%s5 + $0x44] sm:$0xf]
  %v6080 = vld [vmem:[%s5 + $0x48] sm:$0xff]
  %v6081 = vld [vmem:[%s5 + $0x50] sm:$0xf]
  %v6082 = vld [vmem:[%s5 + $0x54] sm:$0xff]
  %v6083 = vld [vmem:[%s5 + $0x5c] sm:$0xf]
  %v6084 = vld [vmem:[%s5 + $0x60] sm:$0xff]
  %v6085 = vld [vmem:[%s5 + $0x68] sm:$0xf]
  %v6086 = vld [vmem:[%s5 + $0x6c] sm:$0xff]
  %v6087 = vld [vmem:[%s5 + $0x74] sm:$0xf]
  %v6088 = vld [vmem:[%s5 + $0x78] sm:$0xff]
  %v6089 = vld [vmem:[%s5 + $0x80] sm:$0xf]
  %v6090 = vld [vmem:[%s5 + $0x84] sm:$0xff]
  %v6091 = vld [vmem:[%s5 + $0x8c] sm:$0xf]
  %v6092 = vld [vmem:[%s5 + $0x90] sm:$0xff]
  %v6093 = vld [vmem:[%s5 + $0x98] sm:$0xf]
  %v6094 = vld [vmem:[%s5 + $0x9c] sm:$0xff]
  %v6095 = vld [vmem:[%s5 + $0xa4] sm:$0xf]
  %v6096 = vld [vmem:[%s5 + $0xa8] sm:$0xff]
  %v6097 = vld [vmem:[%s5 + $0xb0] sm:$0xf]
  %v6098 = vld [vmem:[%s5 + $0xb4] sm:$0xff]
  %v6099 = vld [vmem:[%s5 + $0xbc] sm:$0xf]
  %v6100 = vld [vmem:[%s6] sm:$0x7]
  %v6102 = vperm.slane %v6100, 0
  %v6103 = vperm.slane %v6100, 1
  %v6104 = vperm.slane %v6100, 2
  %v6140 = vunpack.c.l.b16 %v6068
  %v6141 = vunpack.c.h.b16 %v6068
  %v6142 = vunpack.c.l.b16 %v6069
  %v6143 = vunpack.c.l.b16 %v6070
  %v6144 = vunpack.c.h.b16 %v6070
  %v6145 = vunpack.c.l.b16 %v6071
  %v6146 = vunpack.c.l.b16 %v6072
  %v6147 = vunpack.c.h.b16 %v6072
  %v6148 = vunpack.c.l.b16 %v6073
  %v6149 = vunpack.c.l.b16 %v6074
  %v6150 = vunpack.c.h.b16 %v6074
  %v6151 = vunpack.c.l.b16 %v6075
  %v6152 = vunpack.c.l.b16 %v6076
  %v6153 = vunpack.c.h.b16 %v6076
  %v6154 = vunpack.c.l.b16 %v6077
  %v6155 = vunpack.c.l.b16 %v6078
  %v6156 = vunpack.c.h.b16 %v6078
  %v6157 = vunpack.c.l.b16 %v6079
  %v6158 = vunpack.c.l.b16 %v6080
  %v6159 = vunpack.c.h.b16 %v6080
  %v6160 = vunpack.c.l.b16 %v6081
  %v6161 = vunpack.c.l.b16 %v6082
  %v6162 = vunpack.c.h.b16 %v6082
  %v6163 = vunpack.c.l.b16 %v6083
  %v6164 = vunpack.c.l.b16 %v6084
  %v6165 = vunpack.c.h.b16 %v6084
  %v6166 = vunpack.c.l.b16 %v6085
  %v6167 = vunpack.c.l.b16 %v6086
  %v6168 = vunpack.c.h.b16 %v6086
  %v6169 = vunpack.c.l.b16 %v6087
  %v6170 = vunpack.c.l.b16 %v6088
  %v6171 = vunpack.c.h.b16 %v6088
  %v6172 = vunpack.c.l.b16 %v6089
  %v6173 = vunpack.c.l.b16 %v6090
  %v6174 = vunpack.c.h.b16 %v6090
  %v6175 = vunpack.c.l.b16 %v6091
  %v6176 = vunpack.c.l.b16 %v6092
  %v6177 = vunpack.c.h.b16 %v6092
  %v6178 = vunpack.c.l.b16 %v6093
  %v6179 = vunpack.c.l.b16 %v6094
  %v6180 = vunpack.c.h.b16 %v6094
  %v6181 = vunpack.c.l.b16 %v6095
  %v6182 = vunpack.c.l.b16 %v6096
  %v6183 = vunpack.c.h.b16 %v6096
  %v6184 = vunpack.c.l.b16 %v6097
  %v6185 = vunpack.c.l.b16 %v6098
  %v6186 = vunpack.c.h.b16 %v6098
  %v6187 = vunpack.c.l.b16 %v6099
  %v6188 = vpack.c.b16 %v6143, %v6140
  %v6189 = vpack.c.b16 %v6144, %v6141
  %v6190 = vpack.c.b16 %v6145, %v6142
  %v6191 = vpack.c.b16 %v6149, %v6146
  %v6192 = vpack.c.b16 %v6150, %v6147
  %v6193 = vpack.c.b16 %v6151, %v6148
  %v6194 = vpack.c.b16 %v6155, %v6152
  %v6195 = vpack.c.b16 %v6156, %v6153
  %v6196 = vpack.c.b16 %v6157, %v6154
  %v6197 = vpack.c.b16 %v6161, %v6158
  %v6198 = vpack.c.b16 %v6162, %v6159
  %v6199 = vpack.c.b16 %v6163, %v6160
  %v6200 = vpack.c.b16 %v6167, %v6164
  %v6201 = vpack.c.b16 %v6168, %v6165
  %v6202 = vpack.c.b16 %v6169, %v6166
  %v6203 = vpack.c.b16 %v6173, %v6170
  %v6204 = vpack.c.b16 %v6174, %v6171
  %v6205 = vpack.c.b16 %v6175, %v6172
  %v6206 = vpack.c.b16 %v6179, %v6176
  %v6207 = vpack.c.b16 %v6180, %v6177
  %v6208 = vpack.c.b16 %v6181, %v6178
  %v6209 = vpack.c.b16 %v6185, %v6182
  %v6210 = vpack.c.b16 %v6186, %v6183
  %v6211 = vpack.c.b16 %v6187, %v6184
  %6236 = vmatpush.bf16.msra.mxu0 %v6209
  %6237 = vmatpush.bf16.msra.mxu0 %v6206
  %6238 = vmatpush.bf16.msra.mxu0 %v6203
  %6239 = vmatpush.bf16.msra.mxu0 %v6200
  %6240 = vmatpush.bf16.msra.mxu0 %v6197
  %6241 = vmatpush.bf16.msra.mxu0 %v6194
  %6242 = vmatpush.bf16.msra.mxu0 %v6191
  %6243 = vmatpush.bf16.msra.mxu0 %v6188
  %6244 = vmatmul.bf16.gmra.mxu0 %v6067
  %v6245 = vpop.f32.mrf.mxu0
  %v6246 = vadd.f32 %v6102, %v6245
  %v6247 = vpop.f32.mrf.mxu0
  %6248 = vdwg.mxu0
  %6249 = vmatpush.bf16.msra.mxu0 %v6210
  %6250 = vmatpush.bf16.msra.mxu0 %v6207
  %6251 = vmatpush.bf16.msra.mxu0 %v6204
  %6252 = vmatpush.bf16.msra.mxu0 %v6201
  %6253 = vmatpush.bf16.msra.mxu0 %v6198
  %6254 = vmatpush.bf16.msra.mxu0 %v6195
  %6255 = vmatpush.bf16.msra.mxu0 %v6192
  %6256 = vmatpush.bf16.msra.mxu0 %v6189
  %6257 = vmatmul.bf16.gmra.mxu0 %v6067
  %v6258 = vpop.f32.mrf.mxu0
  %v6259 = vadd.f32 %v6103, %v6258
  %v6260 = vpop.f32.mrf.mxu0
  %6261 = vdwg.mxu0
  %6262 = vmatpush.bf16.msra.mxu0 %v6211
  %6263 = vmatpush.bf16.msra.mxu0 %v6208
  %6264 = vmatpush.bf16.msra.mxu0 %v6205
  %6265 = vmatpush.bf16.msra.mxu0 %v6202
  %6266 = vmatpush.bf16.msra.mxu0 %v6199
  %6267 = vmatpush.bf16.msra.mxu0 %v6196
  %6268 = vmatpush.bf16.msra.mxu0 %v6193
  %6269 = vmatpush.bf16.msra.mxu0 %v6190
  %6270 = vmatmul.bf16.gmra.mxu0 %v6067
  %v6271 = vpop.f32.mrf.mxu0
  %v6272 = vadd.f32 %v6104, %v6271
  %v6273 = vpop.f32.mrf.mxu0
  %6274 = vdwg.mxu0
  %v6275 = vpack.c.bf16 %v6066, %v6066
  %v6276 = vld [vmem:[%s7] sm:$0xff]
  %v6277 = vld [vmem:[%s7 + $0x8] sm:$0xf]
  %v6278 = vld [vmem:[%s7 + $0xc] sm:$0xff]
  %v6279 = vld [vmem:[%s7 + $0x14] sm:$0xf]
  %v6280 = vld [vmem:[%s7 + $0x18] sm:$0xff]
  %v6281 = vld [vmem:[%s7 + $0x20] sm:$0xf]
  %v6282 = vld [vmem:[%s7 + $0x24] sm:$0xff]
  %v6283 = vld [vmem:[%s7 + $0x2c] sm:$0xf]
  %v6284 = vld [vmem:[%s7 + $0x30] sm:$0xff]
  %v6285 = vld [vmem:[%s7 + $0x38] sm:$0xf]
  %v6286 = vld [vmem:[%s7 + $0x3c] sm:$0xff]
  %v6287 = vld [vmem:[%s7 + $0x44] sm:$0xf]
  %v6288 = vld [vmem:[%s7 + $0x48] sm:$0xff]
  %v6289 = vld [vmem:[%s7 + $0x50] sm:$0xf]
  %v6290 = vld [vmem:[%s7 + $0x54] sm:$0xff]
  %v6291 = vld [vmem:[%s7 + $0x5c] sm:$0xf]
  %v6292 = vld [vmem:[%s7 + $0x60] sm:$0xff]
  %v6293 = vld [vmem:[%s7 + $0x68] sm:$0xf]
  %v6294 = vld [vmem:[%s7 + $0x6c] sm:$0xff]
  %v6295 = vld [vmem:[%s7 + $0x74] sm:$0xf]
  %v6296 = vld [vmem:[%s7 + $0x78] sm:$0xff]
  %v6297 = vld [vmem:[%s7 + $0x80] sm:$0xf]
  %v6298 = vld [vmem:[%s7 + $0x84] sm:$0xff]
  %v6299 = vld [vmem:[%s7 + $0x8c] sm:$0xf]
  %v6300 = vld [vmem:[%s7 + $0x90] sm:$0xff]
  %v6301 = vld [vmem:[%s7 + $0x98] sm:$0xf]
  %v6302 = vld [vmem:[%s7 + $0x9c] sm:$0xff]
  %v6303 = vld [vmem:[%s7 + $0xa4] sm:$0xf]
  %v6304 = vld [vmem:[%s7 + $0xa8] sm:$0xff]
  %v6305 = vld [vmem:[%s7 + $0xb0] sm:$0xf]
  %v6306 = vld [vmem:[%s7 + $0xb4] sm:$0xff]
  %v6307 = vld [vmem:[%s7 + $0xbc] sm:$0xf]
  %v6340 = vunpack.c.l.b16 %v6276
  %v6341 = vunpack.c.h.b16 %v6276
  %v6342 = vunpack.c.l.b16 %v6277
  %v6343 = vunpack.c.l.b16 %v6278
  %v6344 = vunpack.c.h.b16 %v6278
  %v6345 = vunpack.c.l.b16 %v6279
  %v6346 = vunpack.c.l.b16 %v6280
  %v6347 = vunpack.c.h.b16 %v6280
  %v6348 = vunpack.c.l.b16 %v6281
  %v6349 = vunpack.c.l.b16 %v6282
  %v6350 = vunpack.c.h.b16 %v6282
  %v6351 = vunpack.c.l.b16 %v6283
  %v6352 = vunpack.c.l.b16 %v6284
  %v6353 = vunpack.c.h.b16 %v6284
  %v6354 = vunpack.c.l.b16 %v6285
  %v6355 = vunpack.c.l.b16 %v6286
  %v6356 = vunpack.c.h.b16 %v6286
  %v6357 = vunpack.c.l.b16 %v6287
  %v6358 = vunpack.c.l.b16 %v6288
  %v6359 = vunpack.c.h.b16 %v6288
  %v6360 = vunpack.c.l.b16 %v6289
  %v6361 = vunpack.c.l.b16 %v6290
  %v6362 = vunpack.c.h.b16 %v6290
  %v6363 = vunpack.c.l.b16 %v6291
  %v6364 = vunpack.c.l.b16 %v6292
  %v6365 = vunpack.c.h.b16 %v6292
  %v6366 = vunpack.c.l.b16 %v6293
  %v6367 = vunpack.c.l.b16 %v6294
  %v6368 = vunpack.c.h.b16 %v6294
  %v6369 = vunpack.c.l.b16 %v6295
  %v6370 = vunpack.c.l.b16 %v6296
  %v6371 = vunpack.c.h.b16 %v6296
  %v6372 = vunpack.c.l.b16 %v6297
  %v6373 = vunpack.c.l.b16 %v6298
  %v6374 = vunpack.c.h.b16 %v6298
  %v6375 = vunpack.c.l.b16 %v6299
  %v6376 = vunpack.c.l.b16 %v6300
  %v6377 = vunpack.c.h.b16 %v6300
  %v6378 = vunpack.c.l.b16 %v6301
  %v6379 = vunpack.c.l.b16 %v6302
  %v6380 = vunpack.c.h.b16 %v6302
  %v6381 = vunpack.c.l.b16 %v6303
  %v6382 = vunpack.c.l.b16 %v6304
  %v6383 = vunpack.c.h.b16 %v6304
  %v6384 = vunpack.c.l.b16 %v6305
  %v6385 = vunpack.c.l.b16 %v6306
  %v6386 = vunpack.c.h.b16 %v6306
  %v6387 = vunpack.c.l.b16 %v6307
  %v6388 = vpack.c.b16 %v6343, %v6340
  %v6389 = vpack.c.b16 %v6344, %v6341
  %v6390 = vpack.c.b16 %v6345, %v6342
  %v6391 = vpack.c.b16 %v6349, %v6346
  %v6392 = vpack.c.b16 %v6350, %v6347
  %v6393 = vpack.c.b16 %v6351, %v6348
  %v6394 = vpack.c.b16 %v6355, %v6352
  %v6395 = vpack.c.b16 %v6356, %v6353
  %v6396 = vpack.c.b16 %v6357, %v6354
  %v6397 = vpack.c.b16 %v6361, %v6358
  %v6398 = vpack.c.b16 %v6362, %v6359
  %v6399 = vpack.c.b16 %v6363, %v6360
  %v6400 = vpack.c.b16 %v6367, %v6364
  %v6401 = vpack.c.b16 %v6368, %v6365
  %v6402 = vpack.c.b16 %v6369, %v6366
  %v6403 = vpack.c.b16 %v6373, %v6370
  %v6404 = vpack.c.b16 %v6374, %v6371
  %v6405 = vpack.c.b16 %v6375, %v6372
  %v6406 = vpack.c.b16 %v6379, %v6376
  %v6407 = vpack.c.b16 %v6380, %v6377
  %v6408 = vpack.c.b16 %v6381, %v6378
  %v6409 = vpack.c.b16 %v6385, %v6382
  %v6410 = vpack.c.b16 %v6386, %v6383
  %v6411 = vpack.c.b16 %v6387, %v6384
  %6436 = vmatpush.bf16.msra.mxu0 %v6409
  %6437 = vmatpush.bf16.msra.mxu0 %v6406
  %6438 = vmatpush.bf16.msra.mxu0 %v6403
  %6439 = vmatpush.bf16.msra.mxu0 %v6400
  %6440 = vmatpush.bf16.msra.mxu0 %v6397
  %6441 = vmatpush.bf16.msra.mxu0 %v6394
  %6442 = vmatpush.bf16.msra.mxu0 %v6391
  %6443 = vmatpush.bf16.msra.mxu0 %v6388
  %6444 = vmatmul.bf16.gmra.mxu0 %v6275
  %v6445 = vpop.f32.mrf.mxu0
  %v6446 = vadd.f32 0.0, %v6445
  %v6447 = vpop.f32.mrf.mxu0
  %6448 = vdwg.mxu0
  %6449 = vmatpush.bf16.msra.mxu0 %v6410
  %6450 = vmatpush.bf16.msra.mxu0 %v6407
  %6451 = vmatpush.bf16.msra.mxu0 %v6404
  %6452 = vmatpush.bf16.msra.mxu0 %v6401
  %6453 = vmatpush.bf16.msra.mxu0 %v6398
  %6454 = vmatpush.bf16.msra.mxu0 %v6395
  %6455 = vmatpush.bf16.msra.mxu0 %v6392
  %6456 = vmatpush.bf16.msra.mxu0 %v6389
  %6457 = vmatmul.bf16.gmra.mxu0 %v6275
  %v6458 = vpop.f32.mrf.mxu0
  %v6459 = vadd.f32 0.0, %v6458
  %v6460 = vpop.f32.mrf.mxu0
  %6461 = vdwg.mxu0
  %6462 = vmatpush.bf16.msra.mxu0 %v6411
  %6463 = vmatpush.bf16.msra.mxu0 %v6408
  %6464 = vmatpush.bf16.msra.mxu0 %v6405
  %6465 = vmatpush.bf16.msra.mxu0 %v6402
  %6466 = vmatpush.bf16.msra.mxu0 %v6399
  %6467 = vmatpush.bf16.msra.mxu0 %v6396
  %6468 = vmatpush.bf16.msra.mxu0 %v6393
  %6469 = vmatpush.bf16.msra.mxu0 %v6390
  %6470 = vmatmul.bf16.gmra.mxu0 %v6275
  %v6471 = vpop.f32.mrf.mxu0
  %v6472 = vadd.f32 0.0, %v6471
  %v6473 = vpop.f32.mrf.mxu0
  %6474 = vdwg.mxu0
  %v6475 = vadd.f32 %v6246, %v6446
  %v6476 = vadd.f32 %v6259, %v6459
  %v6477 = vxor.u32 %v6475, 2147483648
  %v6478 = vxor.u32 %v6476, 2147483648
  %v6479 = vmul.f32 %v6477, 1.442695
  %v6480 = vpow.pop %v6479
  %v6481 = vmul.f32 %v6478, 1.442695
  %v6482 = vpow.pop %v6481
  %v6483 = vadd.f32 %v6480, 1.0
  %v6484 = vadd.f32 %v6482, 1.0
  %v6485 = vrcp.pop %v6483
  %v6486 = vmul.f32 %v6483, %v6485
  %v6487 = vsub.f32 1.0, %v6486
  %v6488 = vmul.f32 %v6485, %v6487
  %v6489 = vadd.f32 %v6485, %v6488
  %vm6490 = vweird.f32 %v6483
  %vm6491 = vweird.f32 %v6485
  %vm6492 = vmor %vm6490, %vm6491
  %v6493 = vsel %vm6492, %v6485, %v6489
  %v6494 = vand.u32 2147483647, %v6483
  %vm6495 = vcmp.eq.f32.partialorder %v6494, 8.507059e+37
  %v6496 = vand.u32 %v6483, 2147483648
  %v6497 = vor.u32 1.1754944e-38, %v6496
  %v6498 = vsel %vm6495, %v6497, %v6493
  %v6499 = vmul.f32 1.0, %v6498
  %v6500 = vrcp.pop %v6484
  %v6501 = vmul.f32 %v6484, %v6500
  %v6502 = vsub.f32 1.0, %v6501
  %v6503 = vmul.f32 %v6500, %v6502
  %v6504 = vadd.f32 %v6500, %v6503
  %vm6505 = vweird.f32 %v6484
  %vm6506 = vweird.f32 %v6500
  %vm6507 = vmor %vm6505, %vm6506
  %v6508 = vsel %vm6507, %v6500, %v6504
  %v6509 = vand.u32 2147483647, %v6484
  %vm6510 = vcmp.eq.f32.partialorder %v6509, 8.507059e+37
  %v6511 = vand.u32 %v6484, 2147483648
  %v6512 = vor.u32 1.1754944e-38, %v6511
  %v6513 = vsel %vm6510, %v6512, %v6508
  %v6514 = vmul.f32 1.0, %v6513
  %v6515 = vld [vmem:[%s8] sm:$0x1]
  %v6517 = vperm.slane %v6515, 0
  %v6519 = vadd.f32 %v6472, %v6517
  %v6520 = vmul.f32 %v6499, %v6519
  %v6521 = vadd.f32 %v6272, %v6520
  %v6522 = vtanh.pop %v6521
  %v6523 = vsub.f32 1.0, %v6514
  %v6524 = vmul.f32 %v6523, %v6522
  %v6525 = vmul.f32 %v6514, %v6066
  %v6526 = vadd.f32 %v6524, %v6525
  %6527 = vst [vmem:[%s509] sm:$0xff] %v6526
  %s6528 = scalar_lea.vmem %s0, 56
  %v6529 = vld [vmem:[%s6528] sm:$0xff]
  %v6530 = vld [vmem:[#allocation2] sm:$0xff]
  %v6531 = vpack.c.bf16 %v6529, %v6529
  %v6532 = vld [vmem:[%s1] sm:$0xff]
  %v6533 = vld [vmem:[%s1 + $0x8] sm:$0xf]
  %v6534 = vld [vmem:[%s1 + $0xc] sm:$0xff]
  %v6535 = vld [vmem:[%s1 + $0x14] sm:$0xf]
  %v6536 = vld [vmem:[%s1 + $0x18] sm:$0xff]
  %v6537 = vld [vmem:[%s1 + $0x20] sm:$0xf]
  %v6538 = vld [vmem:[%s1 + $0x24] sm:$0xff]
  %v6539 = vld [vmem:[%s1 + $0x2c] sm:$0xf]
  %v6540 = vld [vmem:[%s1 + $0x30] sm:$0xff]
  %v6541 = vld [vmem:[%s1 + $0x38] sm:$0xf]
  %v6542 = vld [vmem:[%s1 + $0x3c] sm:$0xff]
  %v6543 = vld [vmem:[%s1 + $0x44] sm:$0xf]
  %v6544 = vld [vmem:[%s1 + $0x48] sm:$0xff]
  %v6545 = vld [vmem:[%s1 + $0x50] sm:$0xf]
  %v6546 = vld [vmem:[%s1 + $0x54] sm:$0xff]
  %v6547 = vld [vmem:[%s1 + $0x5c] sm:$0xf]
  %v6548 = vld [vmem:[%s1 + $0x60] sm:$0xff]
  %v6549 = vld [vmem:[%s1 + $0x68] sm:$0xf]
  %v6550 = vld [vmem:[%s1 + $0x6c] sm:$0xff]
  %v6551 = vld [vmem:[%s1 + $0x74] sm:$0xf]
  %v6552 = vld [vmem:[%s1 + $0x78] sm:$0xff]
  %v6553 = vld [vmem:[%s1 + $0x80] sm:$0xf]
  %v6554 = vld [vmem:[%s1 + $0x84] sm:$0xff]
  %v6555 = vld [vmem:[%s1 + $0x8c] sm:$0xf]
  %v6556 = vld [vmem:[%s1 + $0x90] sm:$0xff]
  %v6557 = vld [vmem:[%s1 + $0x98] sm:$0xf]
  %v6558 = vld [vmem:[%s1 + $0x9c] sm:$0xff]
  %v6559 = vld [vmem:[%s1 + $0xa4] sm:$0xf]
  %v6560 = vld [vmem:[%s1 + $0xa8] sm:$0xff]
  %v6561 = vld [vmem:[%s1 + $0xb0] sm:$0xf]
  %v6562 = vld [vmem:[%s1 + $0xb4] sm:$0xff]
  %v6563 = vld [vmem:[%s1 + $0xbc] sm:$0xf]
  %v6564 = vld [vmem:[%s2] sm:$0x7]
  %v6566 = vperm.slane %v6564, 0
  %v6567 = vperm.slane %v6564, 1
  %v6568 = vperm.slane %v6564, 2
  %v6604 = vunpack.c.l.b16 %v6532
  %v6605 = vunpack.c.h.b16 %v6532
  %v6606 = vunpack.c.l.b16 %v6533
  %v6607 = vunpack.c.l.b16 %v6534
  %v6608 = vunpack.c.h.b16 %v6534
  %v6609 = vunpack.c.l.b16 %v6535
  %v6610 = vunpack.c.l.b16 %v6536
  %v6611 = vunpack.c.h.b16 %v6536
  %v6612 = vunpack.c.l.b16 %v6537
  %v6613 = vunpack.c.l.b16 %v6538
  %v6614 = vunpack.c.h.b16 %v6538
  %v6615 = vunpack.c.l.b16 %v6539
  %v6616 = vunpack.c.l.b16 %v6540
  %v6617 = vunpack.c.h.b16 %v6540
  %v6618 = vunpack.c.l.b16 %v6541
  %v6619 = vunpack.c.l.b16 %v6542
  %v6620 = vunpack.c.h.b16 %v6542
  %v6621 = vunpack.c.l.b16 %v6543
  %v6622 = vunpack.c.l.b16 %v6544
  %v6623 = vunpack.c.h.b16 %v6544
  %v6624 = vunpack.c.l.b16 %v6545
  %v6625 = vunpack.c.l.b16 %v6546
  %v6626 = vunpack.c.h.b16 %v6546
  %v6627 = vunpack.c.l.b16 %v6547
  %v6628 = vunpack.c.l.b16 %v6548
  %v6629 = vunpack.c.h.b16 %v6548
  %v6630 = vunpack.c.l.b16 %v6549
  %v6631 = vunpack.c.l.b16 %v6550
  %v6632 = vunpack.c.h.b16 %v6550
  %v6633 = vunpack.c.l.b16 %v6551
  %v6634 = vunpack.c.l.b16 %v6552
  %v6635 = vunpack.c.h.b16 %v6552
  %v6636 = vunpack.c.l.b16 %v6553
  %v6637 = vunpack.c.l.b16 %v6554
  %v6638 = vunpack.c.h.b16 %v6554
  %v6639 = vunpack.c.l.b16 %v6555
  %v6640 = vunpack.c.l.b16 %v6556
  %v6641 = vunpack.c.h.b16 %v6556
  %v6642 = vunpack.c.l.b16 %v6557
  %v6643 = vunpack.c.l.b16 %v6558
  %v6644 = vunpack.c.h.b16 %v6558
  %v6645 = vunpack.c.l.b16 %v6559
  %v6646 = vunpack.c.l.b16 %v6560
  %v6647 = vunpack.c.h.b16 %v6560
  %v6648 = vunpack.c.l.b16 %v6561
  %v6649 = vunpack.c.l.b16 %v6562
  %v6650 = vunpack.c.h.b16 %v6562
  %v6651 = vunpack.c.l.b16 %v6563
  %v6652 = vpack.c.b16 %v6607, %v6604
  %v6653 = vpack.c.b16 %v6608, %v6605
  %v6654 = vpack.c.b16 %v6609, %v6606
  %v6655 = vpack.c.b16 %v6613, %v6610
  %v6656 = vpack.c.b16 %v6614, %v6611
  %v6657 = vpack.c.b16 %v6615, %v6612
  %v6658 = vpack.c.b16 %v6619, %v6616
  %v6659 = vpack.c.b16 %v6620, %v6617
  %v6660 = vpack.c.b16 %v6621, %v6618
  %v6661 = vpack.c.b16 %v6625, %v6622
  %v6662 = vpack.c.b16 %v6626, %v6623
  %v6663 = vpack.c.b16 %v6627, %v6624
  %v6664 = vpack.c.b16 %v6631, %v6628
  %v6665 = vpack.c.b16 %v6632, %v6629
  %v6666 = vpack.c.b16 %v6633, %v6630
  %v6667 = vpack.c.b16 %v6637, %v6634
  %v6668 = vpack.c.b16 %v6638, %v6635
  %v6669 = vpack.c.b16 %v6639, %v6636
  %v6670 = vpack.c.b16 %v6643, %v6640
  %v6671 = vpack.c.b16 %v6644, %v6641
  %v6672 = vpack.c.b16 %v6645, %v6642
  %v6673 = vpack.c.b16 %v6649, %v6646
  %v6674 = vpack.c.b16 %v6650, %v6647
  %v6675 = vpack.c.b16 %v6651, %v6648
  %6700 = vmatpush.bf16.msra.mxu0 %v6673
  %6701 = vmatpush.bf16.msra.mxu0 %v6670
  %6702 = vmatpush.bf16.msra.mxu0 %v6667
  %6703 = vmatpush.bf16.msra.mxu0 %v6664
  %6704 = vmatpush.bf16.msra.mxu0 %v6661
  %6705 = vmatpush.bf16.msra.mxu0 %v6658
  %6706 = vmatpush.bf16.msra.mxu0 %v6655
  %6707 = vmatpush.bf16.msra.mxu0 %v6652
  %6708 = vmatmul.bf16.gmra.mxu0 %v6531
  %v6709 = vpop.f32.mrf.mxu0
  %v6710 = vadd.f32 %v6566, %v6709
  %v6711 = vpop.f32.mrf.mxu0
  %6712 = vdwg.mxu0
  %6713 = vmatpush.bf16.msra.mxu0 %v6674
  %6714 = vmatpush.bf16.msra.mxu0 %v6671
  %6715 = vmatpush.bf16.msra.mxu0 %v6668
  %6716 = vmatpush.bf16.msra.mxu0 %v6665
  %6717 = vmatpush.bf16.msra.mxu0 %v6662
  %6718 = vmatpush.bf16.msra.mxu0 %v6659
  %6719 = vmatpush.bf16.msra.mxu0 %v6656
  %6720 = vmatpush.bf16.msra.mxu0 %v6653
  %6721 = vmatmul.bf16.gmra.mxu0 %v6531
  %v6722 = vpop.f32.mrf.mxu0
  %v6723 = vadd.f32 %v6567, %v6722
  %v6724 = vpop.f32.mrf.mxu0
  %6725 = vdwg.mxu0
  %6726 = vmatpush.bf16.msra.mxu0 %v6675
  %6727 = vmatpush.bf16.msra.mxu0 %v6672
  %6728 = vmatpush.bf16.msra.mxu0 %v6669
  %6729 = vmatpush.bf16.msra.mxu0 %v6666
  %6730 = vmatpush.bf16.msra.mxu0 %v6663
  %6731 = vmatpush.bf16.msra.mxu0 %v6660
  %6732 = vmatpush.bf16.msra.mxu0 %v6657
  %6733 = vmatpush.bf16.msra.mxu0 %v6654
  %6734 = vmatmul.bf16.gmra.mxu0 %v6531
  %v6735 = vpop.f32.mrf.mxu0
  %v6736 = vadd.f32 %v6568, %v6735
  %v6737 = vpop.f32.mrf.mxu0
  %6738 = vdwg.mxu0
  %v6739 = vpack.c.bf16 %v6530, %v6530
  %v6740 = vld [vmem:[%s3] sm:$0xff]
  %v6741 = vld [vmem:[%s3 + $0x8] sm:$0xf]
  %v6742 = vld [vmem:[%s3 + $0xc] sm:$0xff]
  %v6743 = vld [vmem:[%s3 + $0x14] sm:$0xf]
  %v6744 = vld [vmem:[%s3 + $0x18] sm:$0xff]
  %v6745 = vld [vmem:[%s3 + $0x20] sm:$0xf]
  %v6746 = vld [vmem:[%s3 + $0x24] sm:$0xff]
  %v6747 = vld [vmem:[%s3 + $0x2c] sm:$0xf]
  %v6748 = vld [vmem:[%s3 + $0x30] sm:$0xff]
  %v6749 = vld [vmem:[%s3 + $0x38] sm:$0xf]
  %v6750 = vld [vmem:[%s3 + $0x3c] sm:$0xff]
  %v6751 = vld [vmem:[%s3 + $0x44] sm:$0xf]
  %v6752 = vld [vmem:[%s3 + $0x48] sm:$0xff]
  %v6753 = vld [vmem:[%s3 + $0x50] sm:$0xf]
  %v6754 = vld [vmem:[%s3 + $0x54] sm:$0xff]
  %v6755 = vld [vmem:[%s3 + $0x5c] sm:$0xf]
  %v6756 = vld [vmem:[%s3 + $0x60] sm:$0xff]
  %v6757 = vld [vmem:[%s3 + $0x68] sm:$0xf]
  %v6758 = vld [vmem:[%s3 + $0x6c] sm:$0xff]
  %v6759 = vld [vmem:[%s3 + $0x74] sm:$0xf]
  %v6760 = vld [vmem:[%s3 + $0x78] sm:$0xff]
  %v6761 = vld [vmem:[%s3 + $0x80] sm:$0xf]
  %v6762 = vld [vmem:[%s3 + $0x84] sm:$0xff]
  %v6763 = vld [vmem:[%s3 + $0x8c] sm:$0xf]
  %v6764 = vld [vmem:[%s3 + $0x90] sm:$0xff]
  %v6765 = vld [vmem:[%s3 + $0x98] sm:$0xf]
  %v6766 = vld [vmem:[%s3 + $0x9c] sm:$0xff]
  %v6767 = vld [vmem:[%s3 + $0xa4] sm:$0xf]
  %v6768 = vld [vmem:[%s3 + $0xa8] sm:$0xff]
  %v6769 = vld [vmem:[%s3 + $0xb0] sm:$0xf]
  %v6770 = vld [vmem:[%s3 + $0xb4] sm:$0xff]
  %v6771 = vld [vmem:[%s3 + $0xbc] sm:$0xf]
  %v6804 = vunpack.c.l.b16 %v6740
  %v6805 = vunpack.c.h.b16 %v6740
  %v6806 = vunpack.c.l.b16 %v6741
  %v6807 = vunpack.c.l.b16 %v6742
  %v6808 = vunpack.c.h.b16 %v6742
  %v6809 = vunpack.c.l.b16 %v6743
  %v6810 = vunpack.c.l.b16 %v6744
  %v6811 = vunpack.c.h.b16 %v6744
  %v6812 = vunpack.c.l.b16 %v6745
  %v6813 = vunpack.c.l.b16 %v6746
  %v6814 = vunpack.c.h.b16 %v6746
  %v6815 = vunpack.c.l.b16 %v6747
  %v6816 = vunpack.c.l.b16 %v6748
  %v6817 = vunpack.c.h.b16 %v6748
  %v6818 = vunpack.c.l.b16 %v6749
  %v6819 = vunpack.c.l.b16 %v6750
  %v6820 = vunpack.c.h.b16 %v6750
  %v6821 = vunpack.c.l.b16 %v6751
  %v6822 = vunpack.c.l.b16 %v6752
  %v6823 = vunpack.c.h.b16 %v6752
  %v6824 = vunpack.c.l.b16 %v6753
  %v6825 = vunpack.c.l.b16 %v6754
  %v6826 = vunpack.c.h.b16 %v6754
  %v6827 = vunpack.c.l.b16 %v6755
  %v6828 = vunpack.c.l.b16 %v6756
  %v6829 = vunpack.c.h.b16 %v6756
  %v6830 = vunpack.c.l.b16 %v6757
  %v6831 = vunpack.c.l.b16 %v6758
  %v6832 = vunpack.c.h.b16 %v6758
  %v6833 = vunpack.c.l.b16 %v6759
  %v6834 = vunpack.c.l.b16 %v6760
  %v6835 = vunpack.c.h.b16 %v6760
  %v6836 = vunpack.c.l.b16 %v6761
  %v6837 = vunpack.c.l.b16 %v6762
  %v6838 = vunpack.c.h.b16 %v6762
  %v6839 = vunpack.c.l.b16 %v6763
  %v6840 = vunpack.c.l.b16 %v6764
  %v6841 = vunpack.c.h.b16 %v6764
  %v6842 = vunpack.c.l.b16 %v6765
  %v6843 = vunpack.c.l.b16 %v6766
  %v6844 = vunpack.c.h.b16 %v6766
  %v6845 = vunpack.c.l.b16 %v6767
  %v6846 = vunpack.c.l.b16 %v6768
  %v6847 = vunpack.c.h.b16 %v6768
  %v6848 = vunpack.c.l.b16 %v6769
  %v6849 = vunpack.c.l.b16 %v6770
  %v6850 = vunpack.c.h.b16 %v6770
  %v6851 = vunpack.c.l.b16 %v6771
  %v6852 = vpack.c.b16 %v6807, %v6804
  %v6853 = vpack.c.b16 %v6808, %v6805
  %v6854 = vpack.c.b16 %v6809, %v6806
  %v6855 = vpack.c.b16 %v6813, %v6810
  %v6856 = vpack.c.b16 %v6814, %v6811
  %v6857 = vpack.c.b16 %v6815, %v6812
  %v6858 = vpack.c.b16 %v6819, %v6816
  %v6859 = vpack.c.b16 %v6820, %v6817
  %v6860 = vpack.c.b16 %v6821, %v6818
  %v6861 = vpack.c.b16 %v6825, %v6822
  %v6862 = vpack.c.b16 %v6826, %v6823
  %v6863 = vpack.c.b16 %v6827, %v6824
  %v6864 = vpack.c.b16 %v6831, %v6828
  %v6865 = vpack.c.b16 %v6832, %v6829
  %v6866 = vpack.c.b16 %v6833, %v6830
  %v6867 = vpack.c.b16 %v6837, %v6834
  %v6868 = vpack.c.b16 %v6838, %v6835
  %v6869 = vpack.c.b16 %v6839, %v6836
  %v6870 = vpack.c.b16 %v6843, %v6840
  %v6871 = vpack.c.b16 %v6844, %v6841
  %v6872 = vpack.c.b16 %v6845, %v6842
  %v6873 = vpack.c.b16 %v6849, %v6846
  %v6874 = vpack.c.b16 %v6850, %v6847
  %v6875 = vpack.c.b16 %v6851, %v6848
  %6900 = vmatpush.bf16.msra.mxu0 %v6873
  %6901 = vmatpush.bf16.msra.mxu0 %v6870
  %6902 = vmatpush.bf16.msra.mxu0 %v6867
  %6903 = vmatpush.bf16.msra.mxu0 %v6864
  %6904 = vmatpush.bf16.msra.mxu0 %v6861
  %6905 = vmatpush.bf16.msra.mxu0 %v6858
  %6906 = vmatpush.bf16.msra.mxu0 %v6855
  %6907 = vmatpush.bf16.msra.mxu0 %v6852
  %6908 = vmatmul.bf16.gmra.mxu0 %v6739
  %v6909 = vpop.f32.mrf.mxu0
  %v6910 = vadd.f32 0.0, %v6909
  %v6911 = vpop.f32.mrf.mxu0
  %6912 = vdwg.mxu0
  %6913 = vmatpush.bf16.msra.mxu0 %v6874
  %6914 = vmatpush.bf16.msra.mxu0 %v6871
  %6915 = vmatpush.bf16.msra.mxu0 %v6868
  %6916 = vmatpush.bf16.msra.mxu0 %v6865
  %6917 = vmatpush.bf16.msra.mxu0 %v6862
  %6918 = vmatpush.bf16.msra.mxu0 %v6859
  %6919 = vmatpush.bf16.msra.mxu0 %v6856
  %6920 = vmatpush.bf16.msra.mxu0 %v6853
  %6921 = vmatmul.bf16.gmra.mxu0 %v6739
  %v6922 = vpop.f32.mrf.mxu0
  %v6923 = vadd.f32 0.0, %v6922
  %v6924 = vpop.f32.mrf.mxu0
  %6925 = vdwg.mxu0
  %6926 = vmatpush.bf16.msra.mxu0 %v6875
  %6927 = vmatpush.bf16.msra.mxu0 %v6872
  %6928 = vmatpush.bf16.msra.mxu0 %v6869
  %6929 = vmatpush.bf16.msra.mxu0 %v6866
  %6930 = vmatpush.bf16.msra.mxu0 %v6863
  %6931 = vmatpush.bf16.msra.mxu0 %v6860
  %6932 = vmatpush.bf16.msra.mxu0 %v6857
  %6933 = vmatpush.bf16.msra.mxu0 %v6854
  %6934 = vmatmul.bf16.gmra.mxu0 %v6739
  %v6935 = vpop.f32.mrf.mxu0
  %v6936 = vadd.f32 0.0, %v6935
  %v6937 = vpop.f32.mrf.mxu0
  %6938 = vdwg.mxu0
  %v6939 = vadd.f32 %v6710, %v6910
  %v6940 = vadd.f32 %v6723, %v6923
  %v6941 = vxor.u32 %v6939, 2147483648
  %v6942 = vxor.u32 %v6940, 2147483648
  %v6943 = vmul.f32 %v6941, 1.442695
  %v6944 = vpow.pop %v6943
  %v6945 = vmul.f32 %v6942, 1.442695
  %v6946 = vpow.pop %v6945
  %v6947 = vadd.f32 %v6944, 1.0
  %v6948 = vadd.f32 %v6946, 1.0
  %v6949 = vrcp.pop %v6947
  %v6950 = vmul.f32 %v6947, %v6949
  %v6951 = vsub.f32 1.0, %v6950
  %v6952 = vmul.f32 %v6949, %v6951
  %v6953 = vadd.f32 %v6949, %v6952
  %vm6954 = vweird.f32 %v6947
  %vm6955 = vweird.f32 %v6949
  %vm6956 = vmor %vm6954, %vm6955
  %v6957 = vsel %vm6956, %v6949, %v6953
  %v6958 = vand.u32 2147483647, %v6947
  %vm6959 = vcmp.eq.f32.partialorder %v6958, 8.507059e+37
  %v6960 = vand.u32 %v6947, 2147483648
  %v6961 = vor.u32 1.1754944e-38, %v6960
  %v6962 = vsel %vm6959, %v6961, %v6957
  %v6963 = vmul.f32 1.0, %v6962
  %v6964 = vrcp.pop %v6948
  %v6965 = vmul.f32 %v6948, %v6964
  %v6966 = vsub.f32 1.0, %v6965
  %v6967 = vmul.f32 %v6964, %v6966
  %v6968 = vadd.f32 %v6964, %v6967
  %vm6969 = vweird.f32 %v6948
  %vm6970 = vweird.f32 %v6964
  %vm6971 = vmor %vm6969, %vm6970
  %v6972 = vsel %vm6971, %v6964, %v6968
  %v6973 = vand.u32 2147483647, %v6948
  %vm6974 = vcmp.eq.f32.partialorder %v6973, 8.507059e+37
  %v6975 = vand.u32 %v6948, 2147483648
  %v6976 = vor.u32 1.1754944e-38, %v6975
  %v6977 = vsel %vm6974, %v6976, %v6972
  %v6978 = vmul.f32 1.0, %v6977
  %v6979 = vld [vmem:[%s4] sm:$0x1]
  %v6981 = vperm.slane %v6979, 0
  %v6983 = vadd.f32 %v6936, %v6981
  %v6984 = vmul.f32 %v6963, %v6983
  %v6985 = vadd.f32 %v6736, %v6984
  %v6986 = vtanh.pop %v6985
  %v6987 = vsub.f32 1.0, %v6978
  %v6988 = vmul.f32 %v6987, %v6986
  %v6989 = vmul.f32 %v6978, %v6530
  %v6990 = vadd.f32 %v6988, %v6989
  %6991 = vst [vmem:[#allocation2] sm:$0xff] %v6990
  %v6992 = vld [vmem:[%s509] sm:$0xff]
  %v6993 = vpack.c.bf16 %v6990, %v6990
  %v6994 = vld [vmem:[%s5] sm:$0xff]
  %v6995 = vld [vmem:[%s5 + $0x8] sm:$0xf]
  %v6996 = vld [vmem:[%s5 + $0xc] sm:$0xff]
  %v6997 = vld [vmem:[%s5 + $0x14] sm:$0xf]
  %v6998 = vld [vmem:[%s5 + $0x18] sm:$0xff]
  %v6999 = vld [vmem:[%s5 + $0x20] sm:$0xf]
  %v7000 = vld [vmem:[%s5 + $0x24] sm:$0xff]
  %v7001 = vld [vmem:[%s5 + $0x2c] sm:$0xf]
  %v7002 = vld [vmem:[%s5 + $0x30] sm:$0xff]
  %v7003 = vld [vmem:[%s5 + $0x38] sm:$0xf]
  %v7004 = vld [vmem:[%s5 + $0x3c] sm:$0xff]
  %v7005 = vld [vmem:[%s5 + $0x44] sm:$0xf]
  %v7006 = vld [vmem:[%s5 + $0x48] sm:$0xff]
  %v7007 = vld [vmem:[%s5 + $0x50] sm:$0xf]
  %v7008 = vld [vmem:[%s5 + $0x54] sm:$0xff]
  %v7009 = vld [vmem:[%s5 + $0x5c] sm:$0xf]
  %v7010 = vld [vmem:[%s5 + $0x60] sm:$0xff]
  %v7011 = vld [vmem:[%s5 + $0x68] sm:$0xf]
  %v7012 = vld [vmem:[%s5 + $0x6c] sm:$0xff]
  %v7013 = vld [vmem:[%s5 + $0x74] sm:$0xf]
  %v7014 = vld [vmem:[%s5 + $0x78] sm:$0xff]
  %v7015 = vld [vmem:[%s5 + $0x80] sm:$0xf]
  %v7016 = vld [vmem:[%s5 + $0x84] sm:$0xff]
  %v7017 = vld [vmem:[%s5 + $0x8c] sm:$0xf]
  %v7018 = vld [vmem:[%s5 + $0x90] sm:$0xff]
  %v7019 = vld [vmem:[%s5 + $0x98] sm:$0xf]
  %v7020 = vld [vmem:[%s5 + $0x9c] sm:$0xff]
  %v7021 = vld [vmem:[%s5 + $0xa4] sm:$0xf]
  %v7022 = vld [vmem:[%s5 + $0xa8] sm:$0xff]
  %v7023 = vld [vmem:[%s5 + $0xb0] sm:$0xf]
  %v7024 = vld [vmem:[%s5 + $0xb4] sm:$0xff]
  %v7025 = vld [vmem:[%s5 + $0xbc] sm:$0xf]
  %v7026 = vld [vmem:[%s6] sm:$0x7]
  %v7028 = vperm.slane %v7026, 0
  %v7029 = vperm.slane %v7026, 1
  %v7030 = vperm.slane %v7026, 2
  %v7066 = vunpack.c.l.b16 %v6994
  %v7067 = vunpack.c.h.b16 %v6994
  %v7068 = vunpack.c.l.b16 %v6995
  %v7069 = vunpack.c.l.b16 %v6996
  %v7070 = vunpack.c.h.b16 %v6996
  %v7071 = vunpack.c.l.b16 %v6997
  %v7072 = vunpack.c.l.b16 %v6998
  %v7073 = vunpack.c.h.b16 %v6998
  %v7074 = vunpack.c.l.b16 %v6999
  %v7075 = vunpack.c.l.b16 %v7000
  %v7076 = vunpack.c.h.b16 %v7000
  %v7077 = vunpack.c.l.b16 %v7001
  %v7078 = vunpack.c.l.b16 %v7002
  %v7079 = vunpack.c.h.b16 %v7002
  %v7080 = vunpack.c.l.b16 %v7003
  %v7081 = vunpack.c.l.b16 %v7004
  %v7082 = vunpack.c.h.b16 %v7004
  %v7083 = vunpack.c.l.b16 %v7005
  %v7084 = vunpack.c.l.b16 %v7006
  %v7085 = vunpack.c.h.b16 %v7006
  %v7086 = vunpack.c.l.b16 %v7007
  %v7087 = vunpack.c.l.b16 %v7008
  %v7088 = vunpack.c.h.b16 %v7008
  %v7089 = vunpack.c.l.b16 %v7009
  %v7090 = vunpack.c.l.b16 %v7010
  %v7091 = vunpack.c.h.b16 %v7010
  %v7092 = vunpack.c.l.b16 %v7011
  %v7093 = vunpack.c.l.b16 %v7012
  %v7094 = vunpack.c.h.b16 %v7012
  %v7095 = vunpack.c.l.b16 %v7013
  %v7096 = vunpack.c.l.b16 %v7014
  %v7097 = vunpack.c.h.b16 %v7014
  %v7098 = vunpack.c.l.b16 %v7015
  %v7099 = vunpack.c.l.b16 %v7016
  %v7100 = vunpack.c.h.b16 %v7016
  %v7101 = vunpack.c.l.b16 %v7017
  %v7102 = vunpack.c.l.b16 %v7018
  %v7103 = vunpack.c.h.b16 %v7018
  %v7104 = vunpack.c.l.b16 %v7019
  %v7105 = vunpack.c.l.b16 %v7020
  %v7106 = vunpack.c.h.b16 %v7020
  %v7107 = vunpack.c.l.b16 %v7021
  %v7108 = vunpack.c.l.b16 %v7022
  %v7109 = vunpack.c.h.b16 %v7022
  %v7110 = vunpack.c.l.b16 %v7023
  %v7111 = vunpack.c.l.b16 %v7024
  %v7112 = vunpack.c.h.b16 %v7024
  %v7113 = vunpack.c.l.b16 %v7025
  %v7114 = vpack.c.b16 %v7069, %v7066
  %v7115 = vpack.c.b16 %v7070, %v7067
  %v7116 = vpack.c.b16 %v7071, %v7068
  %v7117 = vpack.c.b16 %v7075, %v7072
  %v7118 = vpack.c.b16 %v7076, %v7073
  %v7119 = vpack.c.b16 %v7077, %v7074
  %v7120 = vpack.c.b16 %v7081, %v7078
  %v7121 = vpack.c.b16 %v7082, %v7079
  %v7122 = vpack.c.b16 %v7083, %v7080
  %v7123 = vpack.c.b16 %v7087, %v7084
  %v7124 = vpack.c.b16 %v7088, %v7085
  %v7125 = vpack.c.b16 %v7089, %v7086
  %v7126 = vpack.c.b16 %v7093, %v7090
  %v7127 = vpack.c.b16 %v7094, %v7091
  %v7128 = vpack.c.b16 %v7095, %v7092
  %v7129 = vpack.c.b16 %v7099, %v7096
  %v7130 = vpack.c.b16 %v7100, %v7097
  %v7131 = vpack.c.b16 %v7101, %v7098
  %v7132 = vpack.c.b16 %v7105, %v7102
  %v7133 = vpack.c.b16 %v7106, %v7103
  %v7134 = vpack.c.b16 %v7107, %v7104
  %v7135 = vpack.c.b16 %v7111, %v7108
  %v7136 = vpack.c.b16 %v7112, %v7109
  %v7137 = vpack.c.b16 %v7113, %v7110
  %7162 = vmatpush.bf16.msra.mxu0 %v7135
  %7163 = vmatpush.bf16.msra.mxu0 %v7132
  %7164 = vmatpush.bf16.msra.mxu0 %v7129
  %7165 = vmatpush.bf16.msra.mxu0 %v7126
  %7166 = vmatpush.bf16.msra.mxu0 %v7123
  %7167 = vmatpush.bf16.msra.mxu0 %v7120
  %7168 = vmatpush.bf16.msra.mxu0 %v7117
  %7169 = vmatpush.bf16.msra.mxu0 %v7114
  %7170 = vmatmul.bf16.gmra.mxu0 %v6993
  %v7171 = vpop.f32.mrf.mxu0
  %v7172 = vadd.f32 %v7028, %v7171
  %v7173 = vpop.f32.mrf.mxu0
  %7174 = vdwg.mxu0
  %7175 = vmatpush.bf16.msra.mxu0 %v7136
  %7176 = vmatpush.bf16.msra.mxu0 %v7133
  %7177 = vmatpush.bf16.msra.mxu0 %v7130
  %7178 = vmatpush.bf16.msra.mxu0 %v7127
  %7179 = vmatpush.bf16.msra.mxu0 %v7124
  %7180 = vmatpush.bf16.msra.mxu0 %v7121
  %7181 = vmatpush.bf16.msra.mxu0 %v7118
  %7182 = vmatpush.bf16.msra.mxu0 %v7115
  %7183 = vmatmul.bf16.gmra.mxu0 %v6993
  %v7184 = vpop.f32.mrf.mxu0
  %v7185 = vadd.f32 %v7029, %v7184
  %v7186 = vpop.f32.mrf.mxu0
  %7187 = vdwg.mxu0
  %7188 = vmatpush.bf16.msra.mxu0 %v7137
  %7189 = vmatpush.bf16.msra.mxu0 %v7134
  %7190 = vmatpush.bf16.msra.mxu0 %v7131
  %7191 = vmatpush.bf16.msra.mxu0 %v7128
  %7192 = vmatpush.bf16.msra.mxu0 %v7125
  %7193 = vmatpush.bf16.msra.mxu0 %v7122
  %7194 = vmatpush.bf16.msra.mxu0 %v7119
  %7195 = vmatpush.bf16.msra.mxu0 %v7116
  %7196 = vmatmul.bf16.gmra.mxu0 %v6993
  %v7197 = vpop.f32.mrf.mxu0
  %v7198 = vadd.f32 %v7030, %v7197
  %v7199 = vpop.f32.mrf.mxu0
  %7200 = vdwg.mxu0
  %v7201 = vpack.c.bf16 %v6992, %v6992
  %v7202 = vld [vmem:[%s7] sm:$0xff]
  %v7203 = vld [vmem:[%s7 + $0x8] sm:$0xf]
  %v7204 = vld [vmem:[%s7 + $0xc] sm:$0xff]
  %v7205 = vld [vmem:[%s7 + $0x14] sm:$0xf]
  %v7206 = vld [vmem:[%s7 + $0x18] sm:$0xff]
  %v7207 = vld [vmem:[%s7 + $0x20] sm:$0xf]
  %v7208 = vld [vmem:[%s7 + $0x24] sm:$0xff]
  %v7209 = vld [vmem:[%s7 + $0x2c] sm:$0xf]
  %v7210 = vld [vmem:[%s7 + $0x30] sm:$0xff]
  %v7211 = vld [vmem:[%s7 + $0x38] sm:$0xf]
  %v7212 = vld [vmem:[%s7 + $0x3c] sm:$0xff]
  %v7213 = vld [vmem:[%s7 + $0x44] sm:$0xf]
  %v7214 = vld [vmem:[%s7 + $0x48] sm:$0xff]
  %v7215 = vld [vmem:[%s7 + $0x50] sm:$0xf]
  %v7216 = vld [vmem:[%s7 + $0x54] sm:$0xff]
  %v7217 = vld [vmem:[%s7 + $0x5c] sm:$0xf]
  %v7218 = vld [vmem:[%s7 + $0x60] sm:$0xff]
  %v7219 = vld [vmem:[%s7 + $0x68] sm:$0xf]
  %v7220 = vld [vmem:[%s7 + $0x6c] sm:$0xff]
  %v7221 = vld [vmem:[%s7 + $0x74] sm:$0xf]
  %v7222 = vld [vmem:[%s7 + $0x78] sm:$0xff]
  %v7223 = vld [vmem:[%s7 + $0x80] sm:$0xf]
  %v7224 = vld [vmem:[%s7 + $0x84] sm:$0xff]
  %v7225 = vld [vmem:[%s7 + $0x8c] sm:$0xf]
  %v7226 = vld [vmem:[%s7 + $0x90] sm:$0xff]
  %v7227 = vld [vmem:[%s7 + $0x98] sm:$0xf]
  %v7228 = vld [vmem:[%s7 + $0x9c] sm:$0xff]
  %v7229 = vld [vmem:[%s7 + $0xa4] sm:$0xf]
  %v7230 = vld [vmem:[%s7 + $0xa8] sm:$0xff]
  %v7231 = vld [vmem:[%s7 + $0xb0] sm:$0xf]
  %v7232 = vld [vmem:[%s7 + $0xb4] sm:$0xff]
  %v7233 = vld [vmem:[%s7 + $0xbc] sm:$0xf]
  %v7266 = vunpack.c.l.b16 %v7202
  %v7267 = vunpack.c.h.b16 %v7202
  %v7268 = vunpack.c.l.b16 %v7203
  %v7269 = vunpack.c.l.b16 %v7204
  %v7270 = vunpack.c.h.b16 %v7204
  %v7271 = vunpack.c.l.b16 %v7205
  %v7272 = vunpack.c.l.b16 %v7206
  %v7273 = vunpack.c.h.b16 %v7206
  %v7274 = vunpack.c.l.b16 %v7207
  %v7275 = vunpack.c.l.b16 %v7208
  %v7276 = vunpack.c.h.b16 %v7208
  %v7277 = vunpack.c.l.b16 %v7209
  %v7278 = vunpack.c.l.b16 %v7210
  %v7279 = vunpack.c.h.b16 %v7210
  %v7280 = vunpack.c.l.b16 %v7211
  %v7281 = vunpack.c.l.b16 %v7212
  %v7282 = vunpack.c.h.b16 %v7212
  %v7283 = vunpack.c.l.b16 %v7213
  %v7284 = vunpack.c.l.b16 %v7214
  %v7285 = vunpack.c.h.b16 %v7214
  %v7286 = vunpack.c.l.b16 %v7215
  %v7287 = vunpack.c.l.b16 %v7216
  %v7288 = vunpack.c.h.b16 %v7216
  %v7289 = vunpack.c.l.b16 %v7217
  %v7290 = vunpack.c.l.b16 %v7218
  %v7291 = vunpack.c.h.b16 %v7218
  %v7292 = vunpack.c.l.b16 %v7219
  %v7293 = vunpack.c.l.b16 %v7220
  %v7294 = vunpack.c.h.b16 %v7220
  %v7295 = vunpack.c.l.b16 %v7221
  %v7296 = vunpack.c.l.b16 %v7222
  %v7297 = vunpack.c.h.b16 %v7222
  %v7298 = vunpack.c.l.b16 %v7223
  %v7299 = vunpack.c.l.b16 %v7224
  %v7300 = vunpack.c.h.b16 %v7224
  %v7301 = vunpack.c.l.b16 %v7225
  %v7302 = vunpack.c.l.b16 %v7226
  %v7303 = vunpack.c.h.b16 %v7226
  %v7304 = vunpack.c.l.b16 %v7227
  %v7305 = vunpack.c.l.b16 %v7228
  %v7306 = vunpack.c.h.b16 %v7228
  %v7307 = vunpack.c.l.b16 %v7229
  %v7308 = vunpack.c.l.b16 %v7230
  %v7309 = vunpack.c.h.b16 %v7230
  %v7310 = vunpack.c.l.b16 %v7231
  %v7311 = vunpack.c.l.b16 %v7232
  %v7312 = vunpack.c.h.b16 %v7232
  %v7313 = vunpack.c.l.b16 %v7233
  %v7314 = vpack.c.b16 %v7269, %v7266
  %v7315 = vpack.c.b16 %v7270, %v7267
  %v7316 = vpack.c.b16 %v7271, %v7268
  %v7317 = vpack.c.b16 %v7275, %v7272
  %v7318 = vpack.c.b16 %v7276, %v7273
  %v7319 = vpack.c.b16 %v7277, %v7274
  %v7320 = vpack.c.b16 %v7281, %v7278
  %v7321 = vpack.c.b16 %v7282, %v7279
  %v7322 = vpack.c.b16 %v7283, %v7280
  %v7323 = vpack.c.b16 %v7287, %v7284
  %v7324 = vpack.c.b16 %v7288, %v7285
  %v7325 = vpack.c.b16 %v7289, %v7286
  %v7326 = vpack.c.b16 %v7293, %v7290
  %v7327 = vpack.c.b16 %v7294, %v7291
  %v7328 = vpack.c.b16 %v7295, %v7292
  %v7329 = vpack.c.b16 %v7299, %v7296
  %v7330 = vpack.c.b16 %v7300, %v7297
  %v7331 = vpack.c.b16 %v7301, %v7298
  %v7332 = vpack.c.b16 %v7305, %v7302
  %v7333 = vpack.c.b16 %v7306, %v7303
  %v7334 = vpack.c.b16 %v7307, %v7304
  %v7335 = vpack.c.b16 %v7311, %v7308
  %v7336 = vpack.c.b16 %v7312, %v7309
  %v7337 = vpack.c.b16 %v7313, %v7310
  %7362 = vmatpush.bf16.msra.mxu0 %v7335
  %7363 = vmatpush.bf16.msra.mxu0 %v7332
  %7364 = vmatpush.bf16.msra.mxu0 %v7329
  %7365 = vmatpush.bf16.msra.mxu0 %v7326
  %7366 = vmatpush.bf16.msra.mxu0 %v7323
  %7367 = vmatpush.bf16.msra.mxu0 %v7320
  %7368 = vmatpush.bf16.msra.mxu0 %v7317
  %7369 = vmatpush.bf16.msra.mxu0 %v7314
  %7370 = vmatmul.bf16.gmra.mxu0 %v7201
  %v7371 = vpop.f32.mrf.mxu0
  %v7372 = vadd.f32 0.0, %v7371
  %v7373 = vpop.f32.mrf.mxu0
  %7374 = vdwg.mxu0
  %7375 = vmatpush.bf16.msra.mxu0 %v7336
  %7376 = vmatpush.bf16.msra.mxu0 %v7333
  %7377 = vmatpush.bf16.msra.mxu0 %v7330
  %7378 = vmatpush.bf16.msra.mxu0 %v7327
  %7379 = vmatpush.bf16.msra.mxu0 %v7324
  %7380 = vmatpush.bf16.msra.mxu0 %v7321
  %7381 = vmatpush.bf16.msra.mxu0 %v7318
  %7382 = vmatpush.bf16.msra.mxu0 %v7315
  %7383 = vmatmul.bf16.gmra.mxu0 %v7201
  %v7384 = vpop.f32.mrf.mxu0
  %v7385 = vadd.f32 0.0, %v7384
  %v7386 = vpop.f32.mrf.mxu0
  %7387 = vdwg.mxu0
  %7388 = vmatpush.bf16.msra.mxu0 %v7337
  %7389 = vmatpush.bf16.msra.mxu0 %v7334
  %7390 = vmatpush.bf16.msra.mxu0 %v7331
  %7391 = vmatpush.bf16.msra.mxu0 %v7328
  %7392 = vmatpush.bf16.msra.mxu0 %v7325
  %7393 = vmatpush.bf16.msra.mxu0 %v7322
  %7394 = vmatpush.bf16.msra.mxu0 %v7319
  %7395 = vmatpush.bf16.msra.mxu0 %v7316
  %7396 = vmatmul.bf16.gmra.mxu0 %v7201
  %v7397 = vpop.f32.mrf.mxu0
  %v7398 = vadd.f32 0.0, %v7397
  %v7399 = vpop.f32.mrf.mxu0
  %7400 = vdwg.mxu0
  %v7401 = vadd.f32 %v7172, %v7372
  %v7402 = vadd.f32 %v7185, %v7385
  %v7403 = vxor.u32 %v7401, 2147483648
  %v7404 = vxor.u32 %v7402, 2147483648
  %v7405 = vmul.f32 %v7403, 1.442695
  %v7406 = vpow.pop %v7405
  %v7407 = vmul.f32 %v7404, 1.442695
  %v7408 = vpow.pop %v7407
  %v7409 = vadd.f32 %v7406, 1.0
  %v7410 = vadd.f32 %v7408, 1.0
  %v7411 = vrcp.pop %v7409
  %v7412 = vmul.f32 %v7409, %v7411
  %v7413 = vsub.f32 1.0, %v7412
  %v7414 = vmul.f32 %v7411, %v7413
  %v7415 = vadd.f32 %v7411, %v7414
  %vm7416 = vweird.f32 %v7409
  %vm7417 = vweird.f32 %v7411
  %vm7418 = vmor %vm7416, %vm7417
  %v7419 = vsel %vm7418, %v7411, %v7415
  %v7420 = vand.u32 2147483647, %v7409
  %vm7421 = vcmp.eq.f32.partialorder %v7420, 8.507059e+37
  %v7422 = vand.u32 %v7409, 2147483648
  %v7423 = vor.u32 1.1754944e-38, %v7422
  %v7424 = vsel %vm7421, %v7423, %v7419
  %v7425 = vmul.f32 1.0, %v7424
  %v7426 = vrcp.pop %v7410
  %v7427 = vmul.f32 %v7410, %v7426
  %v7428 = vsub.f32 1.0, %v7427
  %v7429 = vmul.f32 %v7426, %v7428
  %v7430 = vadd.f32 %v7426, %v7429
  %vm7431 = vweird.f32 %v7410
  %vm7432 = vweird.f32 %v7426
  %vm7433 = vmor %vm7431, %vm7432
  %v7434 = vsel %vm7433, %v7426, %v7430
  %v7435 = vand.u32 2147483647, %v7410
  %vm7436 = vcmp.eq.f32.partialorder %v7435, 8.507059e+37
  %v7437 = vand.u32 %v7410, 2147483648
  %v7438 = vor.u32 1.1754944e-38, %v7437
  %v7439 = vsel %vm7436, %v7438, %v7434
  %v7440 = vmul.f32 1.0, %v7439
  %v7441 = vld [vmem:[%s8] sm:$0x1]
  %v7443 = vperm.slane %v7441, 0
  %v7445 = vadd.f32 %v7398, %v7443
  %v7446 = vmul.f32 %v7425, %v7445
  %v7447 = vadd.f32 %v7198, %v7446
  %v7448 = vtanh.pop %v7447
  %v7449 = vsub.f32 1.0, %v7440
  %v7450 = vmul.f32 %v7449, %v7448
  %v7451 = vmul.f32 %v7440, %v6992
  %v7452 = vadd.f32 %v7450, %v7451
  %7453 = vst [vmem:[%s509] sm:$0xff] %v7452
  // Predicated region
  $region50: #{gru_forward.1} parent=0 // pred_check
    %p7454 = pneg %p40
  $region51: #{gru_forward.1} parent=0 // pred_check_branch
    %7456 = sbr.rel (%p7454) target = $region53
  $region52: #{gru_forward.1} parent=0 // pred_region
    %v7457 = vld [vmem:[%s509] sm:$0xff]
    %v7458 = vpack.c.bf16 %v7457, %v7457
    %v7459 = vld [vmem:[%s9] sm:$0xf]
    %v7460 = vld [vmem:[%s9 + $0x4] sm:$0xf]
    %v7461 = vld [vmem:[%s9 + $0x8] sm:$0xf]
    %v7462 = vld [vmem:[%s9 + $0xc] sm:$0xf]
    %v7463 = vld [vmem:[%s9 + $0x10] sm:$0xf]
    %v7464 = vld [vmem:[%s9 + $0x14] sm:$0xf]
    %v7465 = vld [vmem:[%s9 + $0x18] sm:$0xf]
    %v7466 = vld [vmem:[%s9 + $0x1c] sm:$0xf]
    %v7467 = vld [vmem:[%s9 + $0x20] sm:$0xf]
    %v7468 = vld [vmem:[%s9 + $0x24] sm:$0xf]
    %v7469 = vld [vmem:[%s9 + $0x28] sm:$0xf]
    %v7470 = vld [vmem:[%s9 + $0x2c] sm:$0xf]
    %v7471 = vld [vmem:[%s9 + $0x30] sm:$0xf]
    %v7472 = vld [vmem:[%s9 + $0x34] sm:$0xf]
    %v7473 = vld [vmem:[%s9 + $0x38] sm:$0xf]
    %v7474 = vld [vmem:[%s9 + $0x3c] sm:$0xf]
    %v7475 = vld [vmem:[#allocation3] sm:$0x1]
    %v7477 = vperm.slane %v7475, 0
    %v7495 = vunpack.c.l.b16 %v7459
    %v7496 = vunpack.c.l.b16 %v7460
    %v7497 = vunpack.c.l.b16 %v7461
    %v7498 = vunpack.c.l.b16 %v7462
    %v7499 = vunpack.c.l.b16 %v7463
    %v7500 = vunpack.c.l.b16 %v7464
    %v7501 = vunpack.c.l.b16 %v7465
    %v7502 = vunpack.c.l.b16 %v7466
    %v7503 = vunpack.c.l.b16 %v7467
    %v7504 = vunpack.c.l.b16 %v7468
    %v7505 = vunpack.c.l.b16 %v7469
    %v7506 = vunpack.c.l.b16 %v7470
    %v7507 = vunpack.c.l.b16 %v7471
    %v7508 = vunpack.c.l.b16 %v7472
    %v7509 = vunpack.c.l.b16 %v7473
    %v7510 = vunpack.c.l.b16 %v7474
    %v7511 = vpack.c.b16 %v7496, %v7495
    %v7512 = vpack.c.b16 %v7498, %v7497
    %v7513 = vpack.c.b16 %v7500, %v7499
    %v7514 = vpack.c.b16 %v7502, %v7501
    %v7515 = vpack.c.b16 %v7504, %v7503
    %v7516 = vpack.c.b16 %v7506, %v7505
    %v7517 = vpack.c.b16 %v7508, %v7507
    %v7518 = vpack.c.b16 %v7510, %v7509
    %7527 = vmatpush.bf16.msra.mxu0 %v7518
    %7528 = vmatpush.bf16.msra.mxu0 %v7517
    %7529 = vmatpush.bf16.msra.mxu0 %v7516
    %7530 = vmatpush.bf16.msra.mxu0 %v7515
    %7531 = vmatpush.bf16.msra.mxu0 %v7514
    %7532 = vmatpush.bf16.msra.mxu0 %v7513
    %7533 = vmatpush.bf16.msra.mxu0 %v7512
    %7534 = vmatpush.bf16.msra.mxu0 %v7511
    %7535 = vmatmul.bf16.gmra.mxu0 %v7458
    %v7536 = vpop.f32.mrf.mxu0
    %v7537 = vadd.f32 %v7477, %v7536
    %v7538 = vpop.f32.mrf.mxu0
    %7539 = vdwg.mxu0
    %v7540 = vxor.u32 %v7537, 2147483648
    %v7541 = vmul.f32 %v7540, 1.442695
    %v7542 = vpow.pop %v7541
    %v7543 = vadd.f32 %v7542, 1.0
    %v7544 = vrcp.pop %v7543
    %v7545 = vmul.f32 %v7543, %v7544
    %v7546 = vsub.f32 1.0, %v7545
    %v7547 = vmul.f32 %v7544, %v7546
    %v7548 = vadd.f32 %v7544, %v7547
    %vm7549 = vweird.f32 %v7543
    %vm7550 = vweird.f32 %v7544
    %vm7551 = vmor %vm7549, %vm7550
    %v7552 = vsel %vm7551, %v7544, %v7548
    %v7553 = vand.u32 2147483647, %v7543
    %vm7554 = vcmp.eq.f32.partialorder %v7553, 8.507059e+37
    %v7555 = vand.u32 %v7543, 2147483648
    %v7556 = vor.u32 1.1754944e-38, %v7555
    %v7557 = vsel %vm7554, %v7556, %v7552
    %v7558 = vmul.f32 1.0, %v7557
    %vm7559 = vcmask 7168
    %7560 = vst.msk [vmem:[%s11] sm:$0xff] %vm7559, %v7558
  $region53: #{gru_forward.1} parent=0 // pred_fallthru
    _
  // Predicated region
  $region54: #{gru_forward.1} parent=0 // pred_check
    _
  $region55: #{gru_forward.1} parent=0 // pred_check_branch
    %7562 = sbr.rel (0) target = $region57
  $region56: #{gru_forward.1} parent=0 // pred_region
    _
  $region57: #{gru_forward.1} parent=0 // pred_fallthru
    _
  // Predicated region
  $region58: #{gru_forward.1} parent=0 // pred_check
    _
  $region59: #{gru_forward.1} parent=0 // pred_check_branch
    %7564 = sbr.rel (0) target = $region61
  $region60: #{gru_forward.1} parent=0 // pred_region
    _
  $region61: #{gru_forward.1} parent=0 // pred_fallthru
    _

</llo_original>
